<compile_context>
chip_gen: v7x
topology: tpu7x:2x2x1
jax: 0.10.0
libtpu: 0.0.40
codegen_flags: <defaults>
</compile_context>

<pallas_src>
import inspect

import jax
import jax.numpy as jnp
from jax.experimental import pallas as pl
from jax.experimental.pallas import tpu as pltpu


BB_OUT = 1000                # resnet18 feature dim
BB_PAD = 1024                # padded to a multiple of 128
TK = 2048                    # K tile for the tiled backbone matmul
SINGLE_STEP_MAX_K = 2048     # <= this: load wbb whole, no K grid
EMB_PAD = 128                # padded embedding width
BRANCH_PAD = 128             # per-branch padded width (128 -> 64 -> 24 all fit)
FUSE_PAD = 3 * BRANCH_PAD    # three branches fused along N -> 384
HEAD_PAD = 128               # lane-dense output: [mu(3) | sigma(3) | v(1) | 0..]

try:
    _HAS_PIPELINE_MODE = hasattr(pl, "Buffered") and (
        "pipeline_mode" in inspect.signature(pl.BlockSpec).parameters)
except (TypeError, ValueError):   # pragma: no cover
    _HAS_PIPELINE_MODE = False


def _round_up(x, m):
    return (x + m - 1) // m * m


def _k_pad_dim(image_flat_dim):
    """Padded image-flat dim: multiple of 128 (toy) or of TK (tiled path)."""
    if image_flat_dim <= SINGLE_STEP_MAX_K:
        return _round_up(image_flat_dim, 128)
    return _round_up(image_flat_dim, TK)


# ----------------------------------------------------------------------------
# In-kernel helpers (traced inside both kernel variants).
# ----------------------------------------------------------------------------
def _dense(h, w_ref, b_ref, relu):
    y = jnp.dot(h.astype(jnp.bfloat16), w_ref[...],
                preferred_element_type=jnp.float32) + b_ref[...]
    return jnp.maximum(y, 0.0) if relu else y


def _fc_e(e_ref, we1_ref, be1_ref, we2_ref, be2_ref):
    # fc_e: Linear(E->E/2) ReLU, Linear(E/2->E/4) ReLU (lane-padded to 128)
    he = _dense(e_ref[...], we1_ref, be1_ref, True)
    return _dense(he, we2_ref, be2_ref, True)


def _mlp_tail(feat, e_feat,
              wc1_ref, bc1_ref, wc2_ref, bc2_ref,
              w1im_ref, w1e_ref, b1_ref, w2_ref, b2_ref, w3_ref, b3_ref,
              wh_ref, bh_ref):
    # cnn tail: Linear(1000->512) ReLU, Linear(512->256) ReLU
    feat = _dense(feat, wc1_ref, bc1_ref, True)               # (B, 512)
    im_feat = _dense(feat, wc2_ref, bc2_ref, True)            # (B, 256)

    # cat([im_feat, e_feat]) @ W1  ==  im_feat @ W1_im + e_feat @ W1_e
    # (first layers of fc_a / fc_s / fc_v fused along N: columns = a|s|v)
    h1 = jnp.dot(im_feat.astype(jnp.bfloat16), w1im_ref[...],
                 preferred_element_type=jnp.float32)
    h1 = h1 + jnp.dot(e_feat.astype(jnp.bfloat16), w1e_ref[...],
                      preferred_element_type=jnp.float32)
    h1 = jnp.maximum(h1 + b1_ref[...], 0.0)                   # (B, 384)

    # layers 2/3 of the three branches: block-diagonal fused matmuls
    h2 = _dense(h1, w2_ref, b2_ref, True)                     # (B, 384)
    h3 = _dense(h2, w3_ref, b3_ref, True)                     # (B, 384)

    # fused heads -> lane-dense output: cols 0:3 mu, 3:6 sigma, 6 value
    hp = _dense(h3, wh_ref, bh_ref, False)                    # (B, 128)
    lane = jax.lax.broadcasted_iota(jnp.int32, hp.shape, 1)
    return jnp.where(lane < 3, jnp.tanh(hp),
                     jnp.where(lane < 6, jax.nn.sigmoid(hp) + 0.005, hp))


# ----------------------------------------------------------------------------
# Kernel variant 1: single step (toy image sizes, kpad <= SINGLE_STEP_MAX_K).
# ----------------------------------------------------------------------------
def _acnet_kernel_single(im_ref, e_ref,
                         wbb_ref, bbb_ref, wc1_ref, bc1_ref, wc2_ref, bc2_ref,
                         we1_ref, be1_ref, we2_ref, be2_ref,
                         w1im_ref, w1e_ref, b1_ref, w2_ref, b2_ref, w3_ref,
                         b3_ref, wh_ref, bh_ref,
                         out_ref):
    e_feat = _fc_e(e_ref, we1_ref, be1_ref, we2_ref, be2_ref)
    feat = jnp.dot(im_ref[...], wbb_ref[...],
                   preferred_element_type=jnp.float32) + bbb_ref[...]
    out = _mlp_tail(feat, e_feat, wc1_ref, bc1_ref, wc2_ref, bc2_ref,
                    w1im_ref, w1e_ref, b1_ref, w2_ref, b2_ref, w3_ref, b3_ref,
                    wh_ref, bh_ref)
    out_ref[...] = out.astype(out_ref.dtype)


# ----------------------------------------------------------------------------
# Kernel variant 2: K-tiled backbone with f32 accumulator (realistic images).
# ----------------------------------------------------------------------------
def _acnet_kernel_tiled(im_ref, e_ref,
                        wbb_ref, bbb_ref, wc1_ref, bc1_ref, wc2_ref, bc2_ref,
                        we1_ref, be1_ref, we2_ref, be2_ref,
                        w1im_ref, w1e_ref, b1_ref, w2_ref, b2_ref, w3_ref,
                        b3_ref, wh_ref, bh_ref,
                        out_ref, acc_ref, efeat_ref):
    k = pl.program_id(0)

    @pl.when(k == 0)
    def _():
        acc_ref[...] = jnp.zeros_like(acc_ref)
        # fc_e depends only on the embedding: run it once at k==0 so its two
        # matmuls overlap the backbone-weight DMA instead of the serial tail.
        efeat_ref[...] = _fc_e(e_ref, we1_ref, be1_ref, we2_ref, be2_ref)

    # Backbone stand-in: accumulate (B, TK) @ (TK, 1024) over the K grid axis.
    acc_ref[...] += jnp.dot(im_ref[...], wbb_ref[...],
                            preferred_element_type=jnp.float32)

    @pl.when(k == pl.num_programs(0) - 1)
    def _():
        feat = acc_ref[...] + bbb_ref[...]
        out = _mlp_tail(feat, efeat_ref[...], wc1_ref, bc1_ref, wc2_ref,
                        bc2_ref, w1im_ref, w1e_ref, b1_ref, w2_ref, b2_ref,
                        w3_ref, b3_ref, wh_ref, bh_ref)
        out_ref[...] = out.astype(out_ref.dtype)


# ----------------------------------------------------------------------------
# JAX wrapper: pad, pick a path, run one pallas_call, slice mu / sigma / values.
# ----------------------------------------------------------------------------
@jax.jit
def acnet_forward(packed, im_nhwc, e):
    """im_nhwc: (B, H, W, C) f32; e: (B, embedding_dim). Returns (mu, sigma, values)."""
    batch = im_nhwc.shape[0]
    assert e.shape[1] <= EMB_PAD
    im_flat = im_nhwc.reshape(batch, -1).astype(jnp.bfloat16)   # pre-cast: bf16 DMA

    bp = _round_up(max(batch, 8), 8)
    kp = packed["wbb"].shape[0]              # padded image-flat dim

    im_p = jnp.pad(im_flat, ((0, bp - batch), (0, kp - im_flat.shape[1])))
    e_p = jnp.pad(e.astype(jnp.bfloat16),
                  ((0, bp - batch), (0, EMB_PAD - e.shape[1])))

    weight_args = [
        packed["wbb"], packed["bbb"], packed["wc1"], packed["bc1"],
        packed["wc2"], packed["bc2"], packed["we1"], packed["be1"],
        packed["we2"], packed["be2"], packed["w1im"], packed["w1e"],
        packed["b1"], packed["w2"], packed["b2"], packed["w3"],
        packed["b3"], packed["wh"], packed["bh"],
    ]

    single_step = kp <= SINGLE_STEP_MAX_K

    def resident_spec(shape):
        # Grid-invariant blocks: no double buffering on the K-tiled path.
        if (not single_step) and _HAS_PIPELINE_MODE:
            return pl.BlockSpec(shape, lambda k: (0, 0),
                                pipeline_mode=pl.Buffered(1))
        return pl.BlockSpec(shape, lambda k: (0, 0))

    if single_step:
        kernel = _acnet_kernel_single
        grid = (1,)
        im_spec = pl.BlockSpec((bp, kp), lambda k: (0, 0))
        wbb_spec = pl.BlockSpec((kp, BB_PAD), lambda k: (0, 0))
        scratch_shapes = []
    else:
        kernel = _acnet_kernel_tiled
        grid = (kp // TK,)
        im_spec = pl.BlockSpec((bp, TK), lambda k: (0, k))
        wbb_spec = pl.BlockSpec((TK, BB_PAD), lambda k: (k, 0))
        scratch_shapes = [pltpu.VMEM((bp, BB_PAD), jnp.float32),
                          pltpu.VMEM((bp, EMB_PAD), jnp.float32)]

    in_specs = ([im_spec, resident_spec((bp, EMB_PAD)), wbb_spec]
                + [resident_spec(a.shape) for a in weight_args[1:]])

    grid_spec = pltpu.PrefetchScalarGridSpec(
        num_scalar_prefetch=0,
        grid=grid,
        in_specs=in_specs,
        out_specs=pl.BlockSpec((bp, HEAD_PAD), lambda k: (0, 0)),
        scratch_shapes=scratch_shapes,
    )

    out = pl.pallas_call(
        kernel,
        out_shape=jax.ShapeDtypeStruct((bp, HEAD_PAD), jnp.float32),
        grid_spec=grid_spec,
        compiler_params=pltpu.CompilerParams(
            dimension_semantics=("arbitrary",),
            vmem_limit_bytes=32 * 1024 * 1024),
    )(im_p, e_p, *weight_args)

    mu = out[:batch, 0:3]
    sigma = out[:batch, 3:6]
    values = out[:batch, 6:7]
    return mu, sigma, values


# ----------------------------------------------------------------------------
# Deterministic parameter construction (PyTorch layer shapes) + packing.
# ----------------------------------------------------------------------------
def _linear_params(key, in_dim, out_dim, std):
    kw, _ = jax.random.split(key)
    w = std * jax.random.normal(kw, (in_dim, out_dim), dtype=jnp.float32)
    b = jnp.zeros((out_dim,), dtype=jnp.float32)
    return w, b


def init_acnet_params(key, image_flat_dim, embedding_dim):
    e_half = embedding_dim // 2
    e_quart = embedding_dim // 4
    cat_dim = 256 + e_quart
    keys = iter(jax.random.split(key, 20))
    p = {}
    # TODO(synk): resnet18(pretrained=True) replaced by deterministic projection.
    p["backbone"] = _linear_params(next(keys), image_flat_dim, BB_OUT, 0.02)
    p["cnn1"] = _linear_params(next(keys), BB_OUT, 512, 0.02)
    p["cnn2"] = _linear_params(next(keys), 512, 256, 0.02)
    p["fce1"] = _linear_params(next(keys), embedding_dim, e_half, 0.05)
    p["fce2"] = _linear_params(next(keys), e_half, e_quart, 0.05)
    for br in ("a", "s", "v"):
        p[f"fc{br}1"] = _linear_params(next(keys), cat_dim, 128, 0.05)
        p[f"fc{br}2"] = _linear_params(next(keys), 128, 64, 0.05)
        p[f"fc{br}3"] = _linear_params(next(keys), 64, 24, 0.05)
    # heads: set_init -> normal(0, 0.01), zero bias
    p["mu"] = _linear_params(next(keys), 24, 3, 0.01)
    p["sigma"] = _linear_params(next(keys), 24, 3, 0.01)
    p["v"] = _linear_params(next(keys), 24, 1, 0.01)
    return p


def _pad2(w, rows, cols):
    out = jnp.zeros((rows, cols), jnp.float32)
    return out.at[: w.shape[0], : w.shape[1]].set(w)


def _pad_row(b, n):
    out = jnp.zeros((1, n), jnp.float32)
    return out.at[0, : b.shape[0]].set(b)


def pack_acnet_params(raw, image_flat_dim, embedding_dim):
    """Pad / fuse raw (PyTorch-shaped) params into kernel-layout bf16 weights."""
    assert embedding_dim <= EMB_PAD
    kpad = _k_pad_dim(image_flat_dim)

    wbb, bbb = raw["backbone"]
    wc1, bc1 = raw["cnn1"]
    wc2, bc2 = raw["cnn2"]
    we1, be1 = raw["fce1"]
    we2, be2 = raw["fce2"]

    # Branch layer 1: split rows into im(256) / e(padded 128) blocks, fuse a|s|v on N.
    w1_im = jnp.concatenate(
        [raw[f"fc{b}1"][0][:256, :] for b in ("a", "s", "v")], axis=1)      # (256, 384)
    w1_e = jnp.concatenate(
        [_pad2(raw[f"fc{b}1"][0][256:, :], EMB_PAD, BRANCH_PAD)
         for b in ("a", "s", "v")], axis=1)                                  # (128, 384)
    b1 = jnp.concatenate([raw[f"fc{b}1"][1] for b in ("a", "s", "v")]).reshape(1, -1)

    # Branch layers 2/3: block-diagonal over the three branches.
    w2 = jnp.zeros((FUSE_PAD, FUSE_PAD), jnp.float32)
    b2 = jnp.zeros((1, FUSE_PAD), jnp.float32)
    w3 = jnp.zeros((FUSE_PAD, FUSE_PAD), jnp.float32)
    b3 = jnp.zeros((1, FUSE_PAD), jnp.float32)
    for i, br in enumerate(("a", "s", "v")):
        w2i, b2i = raw[f"fc{br}2"]      # (128, 64)
        w3i, b3i = raw[f"fc{br}3"]      # (64, 24)
        r = i * BRANCH_PAD
        w2 = w2.at[r:r + 128, r:r + 64].set(w2i)
        b2 = b2.at[0, r:r + 64].set(b2i)
        w3 = w3.at[r:r + 64, r:r + 24].set(w3i)
        b3 = b3.at[0, r:r + 24].set(b3i)

    # Heads fused into one (384, 128) projection: cols 0:3 mu, 3:6 sigma, 6 v.
    wmu, bmu = raw["mu"]
    wsg, bsg = raw["sigma"]
    wv, bv = raw["v"]
    wh = jnp.zeros((FUSE_PAD, HEAD_PAD), jnp.float32)
    bh = jnp.zeros((1, HEAD_PAD), jnp.float32)
    wh = wh.at[0:24, 0:3].set(wmu)
    wh = wh.at[128:152, 3:6].set(wsg)
    wh = wh.at[256:280, 6:7].set(wv)
    bh = bh.at[0, 0:3].set(bmu).at[0, 3:6].set(bsg).at[0, 6:7].set(bv)

    bf = lambda x: x.astype(jnp.bfloat16)
    return {
        "wbb": bf(_pad2(wbb, kpad, BB_PAD)),  "bbb": _pad_row(bbb, BB_PAD),
        "wc1": bf(_pad2(wc1, BB_PAD, 512)),   "bc1": _pad_row(bc1, 512),
        "wc2": bf(wc2),                        "bc2": _pad_row(bc2, 256),
        "we1": bf(_pad2(we1, EMB_PAD, EMB_PAD)), "be1": _pad_row(be1, EMB_PAD),
        "we2": bf(_pad2(we2, EMB_PAD, EMB_PAD)), "be2": _pad_row(be2, EMB_PAD),
        "w1im": bf(w1_im), "w1e": bf(w1_e),    "b1": b1,
        "w2": bf(w2), "b2": b2,
        "w3": bf(w3), "b3": b3,
        "wh": bf(wh), "bh": bh,
    }


# ----------------------------------------------------------------------------
# Pure-JAX reference (unpadded, same bf16-weight / f32-accumulate numerics).
# ----------------------------------------------------------------------------
def acnet_forward_ref(raw, im_nhwc, e):
    def lin(h, wb, relu=False):
        w, b = wb
        y = jnp.dot(h.astype(jnp.bfloat16), w.astype(jnp.bfloat16),
                    preferred_element_type=jnp.float32) + b
        return jnp.maximum(y, 0.0) if relu else y

    batch = im_nhwc.shape[0]
    x = im_nhwc.reshape(batch, -1).astype(jnp.float32)
    x = lin(x, raw["backbone"])
    x = lin(x, raw["cnn1"], True)
    im_feat = lin(x, raw["cnn2"], True)
    he = lin(e.astype(jnp.float32), raw["fce1"], True)
    e_feat = lin(he, raw["fce2"], True)
    cat = jnp.concatenate([im_feat, e_feat], axis=1)

    def branch(prefix):
        h = lin(cat, raw[f"{prefix}1"], True)
        h = lin(h, raw[f"{prefix}2"], True)
        return lin(h, raw[f"{prefix}3"], True)

    mu = jnp.tanh(lin(branch("fca"), raw["mu"]))
    sigma = jax.nn.sigmoid(lin(branch("fcs"), raw["sigma"])) + 0.005
    values = lin(branch("fcv"), raw["v"])
    return mu, sigma, values


if __name__ == "__main__":
    B, H, W, C = 2, 16, 16, 3        # NHWC image (pre-transpose in the torch code)
    EMBEDDING_DIM = 32               # opt.embedding_dim

    key = jax.random.PRNGKey(0)
    k_params, k_im, k_e = jax.random.split(key, 3)

    raw = init_acnet_params(k_params, image_flat_dim=H * W * C,
                            embedding_dim=EMBEDDING_DIM)
    packed = pack_acnet_params(raw, image_flat_dim=H * W * C,
                               embedding_dim=EMBEDDING_DIM)

    im = jax.random.uniform(k_im, (B, H, W, C), dtype=jnp.float32)
    e = jax.random.normal(k_e, (B, EMBEDDING_DIM), dtype=jnp.float32)

    mu, sigma, values = acnet_forward(packed, im, e)
    jax.block_until_ready((mu, sigma, values))

    assert mu.shape == (B, 3)
    assert sigma.shape == (B, 3)
    assert values.shape == (B, 1)
    assert bool(jnp.all(sigma > 0.0))            # sigmoid(.) + 0.005 > 0
    assert bool(jnp.all(jnp.abs(mu) <= 1.0))     # tanh bound

    mu_r, sig_r, val_r = acnet_forward_ref(raw, im, e)
    for got, want in ((mu, mu_r), (sigma, sig_r), (values, val_r)):
        assert bool(jnp.allclose(got, want, atol=2e-2, rtol=2e-2))

    print("KERNEL_OK")
</pallas_src>

<mosaic_0001>
module attributes {stable_mosaic.version = 11 : i64} {
  func.func @_acnet_kernel_single(%arg0: i32, %arg1: memref<8x768xbf16, #tpu.memory_space<vmem>>, %arg2: memref<8x128xbf16, #tpu.memory_space<vmem>>, %arg3: memref<768x1024xbf16, #tpu.memory_space<vmem>>, %arg4: memref<1x1024xf32, #tpu.memory_space<vmem>>, %arg5: memref<1024x512xbf16, #tpu.memory_space<vmem>>, %arg6: memref<1x512xf32, #tpu.memory_space<vmem>>, %arg7: memref<512x256xbf16, #tpu.memory_space<vmem>>, %arg8: memref<1x256xf32, #tpu.memory_space<vmem>>, %arg9: memref<128x128xbf16, #tpu.memory_space<vmem>>, %arg10: memref<1x128xf32, #tpu.memory_space<vmem>>, %arg11: memref<128x128xbf16, #tpu.memory_space<vmem>>, %arg12: memref<1x128xf32, #tpu.memory_space<vmem>>, %arg13: memref<256x384xbf16, #tpu.memory_space<vmem>>, %arg14: memref<128x384xbf16, #tpu.memory_space<vmem>>, %arg15: memref<1x384xf32, #tpu.memory_space<vmem>>, %arg16: memref<384x384xbf16, #tpu.memory_space<vmem>>, %arg17: memref<1x384xf32, #tpu.memory_space<vmem>>, %arg18: memref<384x384xbf16, #tpu.memory_space<vmem>>, %arg19: memref<1x384xf32, #tpu.memory_space<vmem>>, %arg20: memref<384x128xbf16, #tpu.memory_space<vmem>>, %arg21: memref<1x128xf32, #tpu.memory_space<vmem>>, %arg22: memref<8x128xf32, #tpu.memory_space<vmem>>) attributes {dimension_semantics = [#tpu.dimension_semantics<arbitrary>], iteration_bounds = array<i64: 1>, scalar_prefetch = 0 : i64, scratch_operands = 0 : i64, tpu.core_type = #tpu.core_type<tc>, window_params = [{pipeline_mode = #tpu.pipeline_mode<synchronous>, transform_indices = @transform_0, window_bounds = array<i64: 8, 768>}, {pipeline_mode = #tpu.pipeline_mode<synchronous>, transform_indices = @transform_1, window_bounds = array<i64: 8, 128>}, {pipeline_mode = #tpu.pipeline_mode<synchronous>, transform_indices = @transform_2, window_bounds = array<i64: 768, 1024>}, {pipeline_mode = #tpu.pipeline_mode<synchronous>, transform_indices = @transform_3, window_bounds = array<i64: 1, 1024>}, {pipeline_mode = #tpu.pipeline_mode<synchronous>, transform_indices = @transform_4, window_bounds = array<i64: 1024, 512>}, {pipeline_mode = #tpu.pipeline_mode<synchronous>, transform_indices = @transform_5, window_bounds = array<i64: 1, 512>}, {pipeline_mode = #tpu.pipeline_mode<synchronous>, transform_indices = @transform_6, window_bounds = array<i64: 512, 256>}, {pipeline_mode = #tpu.pipeline_mode<synchronous>, transform_indices = @transform_7, window_bounds = array<i64: 1, 256>}, {pipeline_mode = #tpu.pipeline_mode<synchronous>, transform_indices = @transform_8, window_bounds = array<i64: 128, 128>}, {pipeline_mode = #tpu.pipeline_mode<synchronous>, transform_indices = @transform_9, window_bounds = array<i64: 1, 128>}, {pipeline_mode = #tpu.pipeline_mode<synchronous>, transform_indices = @transform_10, window_bounds = array<i64: 128, 128>}, {pipeline_mode = #tpu.pipeline_mode<synchronous>, transform_indices = @transform_11, window_bounds = array<i64: 1, 128>}, {pipeline_mode = #tpu.pipeline_mode<synchronous>, transform_indices = @transform_12, window_bounds = array<i64: 256, 384>}, {pipeline_mode = #tpu.pipeline_mode<synchronous>, transform_indices = @transform_13, window_bounds = array<i64: 128, 384>}, {pipeline_mode = #tpu.pipeline_mode<synchronous>, transform_indices = @transform_14, window_bounds = array<i64: 1, 384>}, {pipeline_mode = #tpu.pipeline_mode<synchronous>, transform_indices = @transform_15, window_bounds = array<i64: 384, 384>}, {pipeline_mode = #tpu.pipeline_mode<synchronous>, transform_indices = @transform_16, window_bounds = array<i64: 1, 384>}, {pipeline_mode = #tpu.pipeline_mode<synchronous>, transform_indices = @transform_17, window_bounds = array<i64: 384, 384>}, {pipeline_mode = #tpu.pipeline_mode<synchronous>, transform_indices = @transform_18, window_bounds = array<i64: 1, 384>}, {pipeline_mode = #tpu.pipeline_mode<synchronous>, transform_indices = @transform_19, window_bounds = array<i64: 384, 128>}, {pipeline_mode = #tpu.pipeline_mode<synchronous>, transform_indices = @transform_20, window_bounds = array<i64: 1, 128>}, {pipeline_mode = #tpu.pipeline_mode<synchronous>, transform_indices = @transform_21, window_bounds = array<i64: 8, 128>}]} {
    %c0 = arith.constant 0 : index
    %c0_0 = arith.constant 0 : index
    %0 = vector.load %arg2[%c0, %c0_0] : memref<8x128xbf16, #tpu.memory_space<vmem>>, vector<8x128xbf16>
    %c0_1 = arith.constant 0 : index
    %c0_2 = arith.constant 0 : index
    %1 = vector.load %arg9[%c0_1, %c0_2] : memref<128x128xbf16, #tpu.memory_space<vmem>>, vector<128x128xbf16>
    %cst = arith.constant dense<0.000000e+00> : vector<8x128xf32>
    %2 = tpu.matmul %0, %1, %cst {dimension_numbers = #tpu.dot_dimension_numbers<[1], [0], [0], [1], [0, 0, 1, 1], [], []>} : vector<8x128xbf16>, vector<128x128xbf16>, vector<8x128xf32> -> vector<8x128xf32>
    %c0_3 = arith.constant 0 : index
    %c0_4 = arith.constant 0 : index
    %3 = vector.load %arg10[%c0_3, %c0_4] : memref<1x128xf32, #tpu.memory_space<vmem>>, vector<1x128xf32>
    %4 = vector.broadcast %3 : vector<1x128xf32> to vector<8x128xf32>
    %5 = arith.addf %2, %4 : vector<8x128xf32>
    %cst_5 = arith.constant 0.000000e+00 : f32
    %6 = vector.broadcast %cst_5 : f32 to vector<8x128xf32>
    %7 = arith.maximumf %5, %6 : vector<8x128xf32>
    %8 = arith.truncf %7 : vector<8x128xf32> to vector<8x128xbf16>
    %c0_6 = arith.constant 0 : index
    %c0_7 = arith.constant 0 : index
    %9 = vector.load %arg11[%c0_6, %c0_7] : memref<128x128xbf16, #tpu.memory_space<vmem>>, vector<128x128xbf16>
    %cst_8 = arith.constant dense<0.000000e+00> : vector<8x128xf32>
    %10 = tpu.matmul %8, %9, %cst_8 {dimension_numbers = #tpu.dot_dimension_numbers<[1], [0], [0], [1], [0, 0, 1, 1], [], []>} : vector<8x128xbf16>, vector<128x128xbf16>, vector<8x128xf32> -> vector<8x128xf32>
    %c0_9 = arith.constant 0 : index
    %c0_10 = arith.constant 0 : index
    %11 = vector.load %arg12[%c0_9, %c0_10] : memref<1x128xf32, #tpu.memory_space<vmem>>, vector<1x128xf32>
    %12 = vector.broadcast %11 : vector<1x128xf32> to vector<8x128xf32>
    %13 = arith.addf %10, %12 : vector<8x128xf32>
    %cst_11 = arith.constant 0.000000e+00 : f32
    %14 = vector.broadcast %cst_11 : f32 to vector<8x128xf32>
    %15 = arith.maximumf %13, %14 : vector<8x128xf32>
    %c0_12 = arith.constant 0 : index
    %c0_13 = arith.constant 0 : index
    %16 = vector.load %arg1[%c0_12, %c0_13] : memref<8x768xbf16, #tpu.memory_space<vmem>>, vector<8x768xbf16>
    %c0_14 = arith.constant 0 : index
    %c0_15 = arith.constant 0 : index
    %17 = vector.load %arg3[%c0_14, %c0_15] : memref<768x1024xbf16, #tpu.memory_space<vmem>>, vector<768x1024xbf16>
    %cst_16 = arith.constant dense<0.000000e+00> : vector<8x1024xf32>
    %18 = tpu.matmul %16, %17, %cst_16 {dimension_numbers = #tpu.dot_dimension_numbers<[1], [0], [0], [1], [0, 0, 1, 1], [], []>} : vector<8x768xbf16>, vector<768x1024xbf16>, vector<8x1024xf32> -> vector<8x1024xf32>
    %c0_17 = arith.constant 0 : index
    %c0_18 = arith.constant 0 : index
    %19 = vector.load %arg4[%c0_17, %c0_18] : memref<1x1024xf32, #tpu.memory_space<vmem>>, vector<1x1024xf32>
    %20 = vector.broadcast %19 : vector<1x1024xf32> to vector<8x1024xf32>
    %21 = arith.addf %18, %20 : vector<8x1024xf32>
    %22 = arith.truncf %21 : vector<8x1024xf32> to vector<8x1024xbf16>
    %c0_19 = arith.constant 0 : index
    %c0_20 = arith.constant 0 : index
    %23 = vector.load %arg5[%c0_19, %c0_20] : memref<1024x512xbf16, #tpu.memory_space<vmem>>, vector<1024x512xbf16>
    %cst_21 = arith.constant dense<0.000000e+00> : vector<8x512xf32>
    %24 = tpu.matmul %22, %23, %cst_21 {dimension_numbers = #tpu.dot_dimension_numbers<[1], [0], [0], [1], [0, 0, 1, 1], [], []>} : vector<8x1024xbf16>, vector<1024x512xbf16>, vector<8x512xf32> -> vector<8x512xf32>
    %c0_22 = arith.constant 0 : index
    %c0_23 = arith.constant 0 : index
    %25 = vector.load %arg6[%c0_22, %c0_23] : memref<1x512xf32, #tpu.memory_space<vmem>>, vector<1x512xf32>
    %26 = vector.broadcast %25 : vector<1x512xf32> to vector<8x512xf32>
    %27 = arith.addf %24, %26 : vector<8x512xf32>
    %cst_24 = arith.constant 0.000000e+00 : f32
    %28 = vector.broadcast %cst_24 : f32 to vector<8x512xf32>
    %29 = arith.maximumf %27, %28 : vector<8x512xf32>
    %30 = arith.truncf %29 : vector<8x512xf32> to vector<8x512xbf16>
    %c0_25 = arith.constant 0 : index
    %c0_26 = arith.constant 0 : index
    %31 = vector.load %arg7[%c0_25, %c0_26] : memref<512x256xbf16, #tpu.memory_space<vmem>>, vector<512x256xbf16>
    %cst_27 = arith.constant dense<0.000000e+00> : vector<8x256xf32>
    %32 = tpu.matmul %30, %31, %cst_27 {dimension_numbers = #tpu.dot_dimension_numbers<[1], [0], [0], [1], [0, 0, 1, 1], [], []>} : vector<8x512xbf16>, vector<512x256xbf16>, vector<8x256xf32> -> vector<8x256xf32>
    %c0_28 = arith.constant 0 : index
    %c0_29 = arith.constant 0 : index
    %33 = vector.load %arg8[%c0_28, %c0_29] : memref<1x256xf32, #tpu.memory_space<vmem>>, vector<1x256xf32>
    %34 = vector.broadcast %33 : vector<1x256xf32> to vector<8x256xf32>
    %35 = arith.addf %32, %34 : vector<8x256xf32>
    %cst_30 = arith.constant 0.000000e+00 : f32
    %36 = vector.broadcast %cst_30 : f32 to vector<8x256xf32>
    %37 = arith.maximumf %35, %36 : vector<8x256xf32>
    %38 = arith.truncf %37 : vector<8x256xf32> to vector<8x256xbf16>
    %c0_31 = arith.constant 0 : index
    %c0_32 = arith.constant 0 : index
    %39 = vector.load %arg13[%c0_31, %c0_32] : memref<256x384xbf16, #tpu.memory_space<vmem>>, vector<256x384xbf16>
    %cst_33 = arith.constant dense<0.000000e+00> : vector<8x384xf32>
    %40 = tpu.matmul %38, %39, %cst_33 {dimension_numbers = #tpu.dot_dimension_numbers<[1], [0], [0], [1], [0, 0, 1, 1], [], []>} : vector<8x256xbf16>, vector<256x384xbf16>, vector<8x384xf32> -> vector<8x384xf32>
    %41 = arith.truncf %15 : vector<8x128xf32> to vector<8x128xbf16>
    %c0_34 = arith.constant 0 : index
    %c0_35 = arith.constant 0 : index
    %42 = vector.load %arg14[%c0_34, %c0_35] : memref<128x384xbf16, #tpu.memory_space<vmem>>, vector<128x384xbf16>
    %cst_36 = arith.constant dense<0.000000e+00> : vector<8x384xf32>
    %43 = tpu.matmul %41, %42, %cst_36 {dimension_numbers = #tpu.dot_dimension_numbers<[1], [0], [0], [1], [0, 0, 1, 1], [], []>} : vector<8x128xbf16>, vector<128x384xbf16>, vector<8x384xf32> -> vector<8x384xf32>
    %44 = arith.addf %40, %43 : vector<8x384xf32>
    %c0_37 = arith.constant 0 : index
    %c0_38 = arith.constant 0 : index
    %45 = vector.load %arg15[%c0_37, %c0_38] : memref<1x384xf32, #tpu.memory_space<vmem>>, vector<1x384xf32>
    %46 = vector.broadcast %45 : vector<1x384xf32> to vector<8x384xf32>
    %47 = arith.addf %44, %46 : vector<8x384xf32>
    %cst_39 = arith.constant 0.000000e+00 : f32
    %48 = vector.broadcast %cst_39 : f32 to vector<8x384xf32>
    %49 = arith.maximumf %47, %48 : vector<8x384xf32>
    %50 = arith.truncf %49 : vector<8x384xf32> to vector<8x384xbf16>
    %c0_40 = arith.constant 0 : index
    %c0_41 = arith.constant 0 : index
    %51 = vector.load %arg16[%c0_40, %c0_41] : memref<384x384xbf16, #tpu.memory_space<vmem>>, vector<384x384xbf16>
    %cst_42 = arith.constant dense<0.000000e+00> : vector<8x384xf32>
    %52 = tpu.matmul %50, %51, %cst_42 {dimension_numbers = #tpu.dot_dimension_numbers<[1], [0], [0], [1], [0, 0, 1, 1], [], []>} : vector<8x384xbf16>, vector<384x384xbf16>, vector<8x384xf32> -> vector<8x384xf32>
    %c0_43 = arith.constant 0 : index
    %c0_44 = arith.constant 0 : index
    %53 = vector.load %arg17[%c0_43, %c0_44] : memref<1x384xf32, #tpu.memory_space<vmem>>, vector<1x384xf32>
    %54 = vector.broadcast %53 : vector<1x384xf32> to vector<8x384xf32>
    %55 = arith.addf %52, %54 : vector<8x384xf32>
    %cst_45 = arith.constant 0.000000e+00 : f32
    %56 = vector.broadcast %cst_45 : f32 to vector<8x384xf32>
    %57 = arith.maximumf %55, %56 : vector<8x384xf32>
    %58 = arith.truncf %57 : vector<8x384xf32> to vector<8x384xbf16>
    %c0_46 = arith.constant 0 : index
    %c0_47 = arith.constant 0 : index
    %59 = vector.load %arg18[%c0_46, %c0_47] : memref<384x384xbf16, #tpu.memory_space<vmem>>, vector<384x384xbf16>
    %cst_48 = arith.constant dense<0.000000e+00> : vector<8x384xf32>
    %60 = tpu.matmul %58, %59, %cst_48 {dimension_numbers = #tpu.dot_dimension_numbers<[1], [0], [0], [1], [0, 0, 1, 1], [], []>} : vector<8x384xbf16>, vector<384x384xbf16>, vector<8x384xf32> -> vector<8x384xf32>
    %c0_49 = arith.constant 0 : index
    %c0_50 = arith.constant 0 : index
    %61 = vector.load %arg19[%c0_49, %c0_50] : memref<1x384xf32, #tpu.memory_space<vmem>>, vector<1x384xf32>
    %62 = vector.broadcast %61 : vector<1x384xf32> to vector<8x384xf32>
    %63 = arith.addf %60, %62 : vector<8x384xf32>
    %cst_51 = arith.constant 0.000000e+00 : f32
    %64 = vector.broadcast %cst_51 : f32 to vector<8x384xf32>
    %65 = arith.maximumf %63, %64 : vector<8x384xf32>
    %66 = arith.truncf %65 : vector<8x384xf32> to vector<8x384xbf16>
    %c0_52 = arith.constant 0 : index
    %c0_53 = arith.constant 0 : index
    %67 = vector.load %arg20[%c0_52, %c0_53] : memref<384x128xbf16, #tpu.memory_space<vmem>>, vector<384x128xbf16>
    %cst_54 = arith.constant dense<0.000000e+00> : vector<8x128xf32>
    %68 = tpu.matmul %66, %67, %cst_54 {dimension_numbers = #tpu.dot_dimension_numbers<[1], [0], [0], [1], [0, 0, 1, 1], [], []>} : vector<8x384xbf16>, vector<384x128xbf16>, vector<8x128xf32> -> vector<8x128xf32>
    %c0_55 = arith.constant 0 : index
    %c0_56 = arith.constant 0 : index
    %69 = vector.load %arg21[%c0_55, %c0_56] : memref<1x128xf32, #tpu.memory_space<vmem>>, vector<1x128xf32>
    %70 = vector.broadcast %69 : vector<1x128xf32> to vector<8x128xf32>
    %71 = arith.addf %68, %70 : vector<8x128xf32>
    %72 = tpu.iota {dimensions = array<i32: 1>} : vector<8x128xi32>
    %c3_i32 = arith.constant 3 : i32
    %73 = vector.broadcast %c3_i32 : i32 to vector<8x128xi32>
    %74 = arith.cmpi slt, %72, %73 : vector<8x128xi32>
    %75 = math.tanh %71 : vector<8x128xf32>
    %c6_i32 = arith.constant 6 : i32
    %76 = vector.broadcast %c6_i32 : i32 to vector<8x128xi32>
    %77 = arith.cmpi slt, %72, %76 : vector<8x128xi32>
    %78 = arith.negf %71 : vector<8x128xf32>
    %79 = math.exp %78 : vector<8x128xf32>
    %cst_57 = arith.constant 1.000000e+00 : f32
    %80 = vector.broadcast %cst_57 : f32 to vector<8x128xf32>
    %81 = arith.addf %80, %79 : vector<8x128xf32>
    %82 = arith.divf %80, %81 : vector<8x128xf32>
    %cst_58 = arith.constant 5.000000e-03 : f32
    %83 = vector.broadcast %cst_58 : f32 to vector<8x128xf32>
    %84 = arith.addf %82, %83 : vector<8x128xf32>
    %85 = arith.select %77, %84, %71 : vector<8x128xi1>, vector<8x128xf32>
    %86 = arith.select %74, %75, %85 : vector<8x128xi1>, vector<8x128xf32>
    %c0_59 = arith.constant 0 : index
    %c0_60 = arith.constant 0 : index
    %87 = vector.load %arg22[%c0_59, %c0_60] : memref<8x128xf32, #tpu.memory_space<vmem>>, vector<8x128xf32>
    tpu.vector_store %arg22[%c0_59, %c0_60], %86 {strides = array<i32>} : memref<8x128xf32, #tpu.memory_space<vmem>>, vector<8x128xf32>,
    return
  }
  func.func @transform_0(%arg0: i32) -> (i32, i32) {
    %c0_i32 = arith.constant 0 : i32
    %c0_i32_0 = arith.constant 0 : i32
    %c0_i32_1 = arith.constant 0 : i32
    return %c0_i32, %c0_i32_0 : i32, i32
  }
  func.func @transform_1(%arg0: i32) -> (i32, i32) {
    %c0_i32 = arith.constant 0 : i32
    %c0_i32_0 = arith.constant 0 : i32
    %c0_i32_1 = arith.constant 0 : i32
    return %c0_i32, %c0_i32_0 : i32, i32
  }
  func.func @transform_2(%arg0: i32) -> (i32, i32) {
    %c0_i32 = arith.constant 0 : i32
    %c0_i32_0 = arith.constant 0 : i32
    %c0_i32_1 = arith.constant 0 : i32
    return %c0_i32, %c0_i32_0 : i32, i32
  }
  func.func @transform_3(%arg0: i32) -> (i32, i32) {
    %c0_i32 = arith.constant 0 : i32
    %c0_i32_0 = arith.constant 0 : i32
    %c0_i32_1 = arith.constant 0 : i32
    return %c0_i32, %c0_i32_0 : i32, i32
  }
  func.func @transform_4(%arg0: i32) -> (i32, i32) {
    %c0_i32 = arith.constant 0 : i32
    %c0_i32_0 = arith.constant 0 : i32
    %c0_i32_1 = arith.constant 0 : i32
    return %c0_i32, %c0_i32_0 : i32, i32
  }
  func.func @transform_5(%arg0: i32) -> (i32, i32) {
    %c0_i32 = arith.constant 0 : i32
    %c0_i32_0 = arith.constant 0 : i32
    %c0_i32_1 = arith.constant 0 : i32
    return %c0_i32, %c0_i32_0 : i32, i32
  }
  func.func @transform_6(%arg0: i32) -> (i32, i32) {
    %c0_i32 = arith.constant 0 : i32
    %c0_i32_0 = arith.constant 0 : i32
    %c0_i32_1 = arith.constant 0 : i32
    return %c0_i32, %c0_i32_0 : i32, i32
  }
  func.func @transform_7(%arg0: i32) -> (i32, i32) {
    %c0_i32 = arith.constant 0 : i32
    %c0_i32_0 = arith.constant 0 : i32
    %c0_i32_1 = arith.constant 0 : i32
    return %c0_i32, %c0_i32_0 : i32, i32
  }
  func.func @transform_8(%arg0: i32) -> (i32, i32) {
    %c0_i32 = arith.constant 0 : i32
    %c0_i32_0 = arith.constant 0 : i32
    %c0_i32_1 = arith.constant 0 : i32
    return %c0_i32, %c0_i32_0 : i32, i32
  }
  func.func @transform_9(%arg0: i32) -> (i32, i32) {
    %c0_i32 = arith.constant 0 : i32
    %c0_i32_0 = arith.constant 0 : i32
    %c0_i32_1 = arith.constant 0 : i32
    return %c0_i32, %c0_i32_0 : i32, i32
  }
  func.func @transform_10(%arg0: i32) -> (i32, i32) {
    %c0_i32 = arith.constant 0 : i32
    %c0_i32_0 = arith.constant 0 : i32
    %c0_i32_1 = arith.constant 0 : i32
    return %c0_i32, %c0_i32_0 : i32, i32
  }
  func.func @transform_11(%arg0: i32) -> (i32, i32) {
    %c0_i32 = arith.constant 0 : i32
    %c0_i32_0 = arith.constant 0 : i32
    %c0_i32_1 = arith.constant 0 : i32
    return %c0_i32, %c0_i32_0 : i32, i32
  }
  func.func @transform_12(%arg0: i32) -> (i32, i32) {
    %c0_i32 = arith.constant 0 : i32
    %c0_i32_0 = arith.constant 0 : i32
    %c0_i32_1 = arith.constant 0 : i32
    return %c0_i32, %c0_i32_0 : i32, i32
  }
  func.func @transform_13(%arg0: i32) -> (i32, i32) {
    %c0_i32 = arith.constant 0 : i32
    %c0_i32_0 = arith.constant 0 : i32
    %c0_i32_1 = arith.constant 0 : i32
    return %c0_i32, %c0_i32_0 : i32, i32
  }
  func.func @transform_14(%arg0: i32) -> (i32, i32) {
    %c0_i32 = arith.constant 0 : i32
    %c0_i32_0 = arith.constant 0 : i32
    %c0_i32_1 = arith.constant 0 : i32
    return %c0_i32, %c0_i32_0 : i32, i32
  }
  func.func @transform_15(%arg0: i32) -> (i32, i32) {
    %c0_i32 = arith.constant 0 : i32
    %c0_i32_0 = arith.constant 0 : i32
    %c0_i32_1 = arith.constant 0 : i32
    return %c0_i32, %c0_i32_0 : i32, i32
  }
  func.func @transform_16(%arg0: i32) -> (i32, i32) {
    %c0_i32 = arith.constant 0 : i32
    %c0_i32_0 = arith.constant 0 : i32
    %c0_i32_1 = arith.constant 0 : i32
    return %c0_i32, %c0_i32_0 : i32, i32
  }
  func.func @transform_17(%arg0: i32) -> (i32, i32) {
    %c0_i32 = arith.constant 0 : i32
    %c0_i32_0 = arith.constant 0 : i32
    %c0_i32_1 = arith.constant 0 : i32
    return %c0_i32, %c0_i32_0 : i32, i32
  }
  func.func @transform_18(%arg0: i32) -> (i32, i32) {
    %c0_i32 = arith.constant 0 : i32
    %c0_i32_0 = arith.constant 0 : i32
    %c0_i32_1 = arith.constant 0 : i32
    return %c0_i32, %c0_i32_0 : i32, i32
  }
  func.func @transform_19(%arg0: i32) -> (i32, i32) {
    %c0_i32 = arith.constant 0 : i32
    %c0_i32_0 = arith.constant 0 : i32
    %c0_i32_1 = arith.constant 0 : i32
    return %c0_i32, %c0_i32_0 : i32, i32
  }
  func.func @transform_20(%arg0: i32) -> (i32, i32) {
    %c0_i32 = arith.constant 0 : i32
    %c0_i32_0 = arith.constant 0 : i32
    %c0_i32_1 = arith.constant 0 : i32
    return %c0_i32, %c0_i32_0 : i32, i32
  }
  func.func @transform_21(%arg0: i32) -> (i32, i32) {
    %c0_i32 = arith.constant 0 : i32
    %c0_i32_0 = arith.constant 0 : i32
    %c0_i32_1 = arith.constant 0 : i32
    return %c0_i32, %c0_i32_0 : i32, i32
  }
}

</mosaic_0001>

<llo_original>
// kernel: acnet_forward.1
$region0: #{acnet_forward.1}
  #allocation0 [shape = 'u32[]', space=smem, size = 0x4, offset = 0x4, fixed_abs, tag = 'smem constant byte address 0x4 - core index']
  #allocation1 [shape = 'u32[144,128]{1,0:T(1,128)}', space=vmem, size = 0x12000, scoped, tag = 'internal scratch']
  %s0 = inlined_call_operand.vmem [shape: bf16[8,768], index: 0, kind: input, shape index: {}]
  %s1 = inlined_call_operand.vmem [shape: bf16[8,128], index: 1, kind: input, shape index: {}]
  %s2 = inlined_call_operand.hbm [shape: bf16[768,1024], index: 2, kind: input, shape index: {}]
  %s3 = inlined_call_operand.hbm [shape: f32[1,1024], index: 3, kind: input, shape index: {}]
  %s4 = inlined_call_operand.hbm [shape: bf16[1024,512], index: 4, kind: input, shape index: {}]
  %s5 = inlined_call_operand.hbm [shape: f32[1,512], index: 5, kind: input, shape index: {}]
  %s6 = inlined_call_operand.hbm [shape: bf16[512,256], index: 6, kind: input, shape index: {}]
  %s7 = inlined_call_operand.hbm [shape: f32[1,256], index: 7, kind: input, shape index: {}]
  %s8 = inlined_call_operand.hbm [shape: bf16[128,128], index: 8, kind: input, shape index: {}]
  %s9 = inlined_call_operand.hbm [shape: f32[1,128], index: 9, kind: input, shape index: {}]
  %s10 = inlined_call_operand.hbm [shape: bf16[128,128], index: 10, kind: input, shape index: {}]
  %s11 = inlined_call_operand.hbm [shape: f32[1,128], index: 11, kind: input, shape index: {}]
  %s12 = inlined_call_operand.hbm [shape: bf16[256,384], index: 12, kind: input, shape index: {}]
  %s13 = inlined_call_operand.hbm [shape: bf16[128,384], index: 13, kind: input, shape index: {}]
  %s14 = inlined_call_operand.hbm [shape: f32[1,384], index: 14, kind: input, shape index: {}]
  %s15 = inlined_call_operand.hbm [shape: bf16[384,384], index: 15, kind: input, shape index: {}]
  %s16 = inlined_call_operand.hbm [shape: f32[1,384], index: 16, kind: input, shape index: {}]
  %s17 = inlined_call_operand.hbm [shape: bf16[384,384], index: 17, kind: input, shape index: {}]
  %s18 = inlined_call_operand.hbm [shape: f32[1,384], index: 18, kind: input, shape index: {}]
  %s19 = inlined_call_operand.hbm [shape: bf16[384,128], index: 19, kind: input, shape index: {}]
  %s20 = inlined_call_operand.hbm [shape: f32[1,128], index: 20, kind: input, shape index: {}]
  %s21 = inlined_call_operand.vmem [shape: f32[8,128], index: 21, kind: output, shape index: {}]
  %s22 = sld [smem:[#allocation0]]
  $region170: #{acnet_forward.1} parent=0
    _
  %s24 = ssub.s32 1, %s22
  %s25 = scalar_select 0, %s24, %s22
  $region1: #{acnet_forward.1} parent=0
    #allocation2 [shape = 'u8[1572864]{0}', space=vmem, size = 0x180000, scoped, tag = 'input window, operand 2, single buffered']
    #allocation3 [shape = 's32[1]{0}', space=sflag, size = 0x4, scoped, tag = 'scoped memory for acnet_forward.1']
    #allocation4 [shape = 'u8[4096]{0}', space=vmem, size = 0x1000, scoped, tag = 'input window, operand 3, single buffered']
    #allocation5 [shape = 's32[1]{0}', space=sflag, size = 0x4, scoped, tag = 'scoped memory for acnet_forward.1']
    #allocation6 [shape = 'u8[1048576]{0}', space=vmem, size = 0x100000, scoped, tag = 'input window, operand 4, single buffered']
    #allocation7 [shape = 'u8[2048]{0}', space=vmem, size = 0x800, scoped, tag = 'input window, operand 5, single buffered']
    #allocation8 [shape = 's32[1]{0}', space=sflag, size = 0x4, scoped, tag = 'scoped memory for acnet_forward.1']
    #allocation9 [shape = 'u8[262144]{0}', space=vmem, size = 0x40000, scoped, tag = 'input window, operand 6, single buffered']
    #allocation10 [shape = 'u8[1024]{0}', space=vmem, size = 0x400, scoped, tag = 'input window, operand 7, single buffered']
    #allocation11 [shape = 's32[1]{0}', space=sflag, size = 0x4, scoped, tag = 'scoped memory for acnet_forward.1']
    #allocation12 [shape = 'u8[32768]{0}', space=vmem, size = 0x8000, scoped, tag = 'input window, operand 8, single buffered']
    #allocation13 [shape = 'u8[512]{0}', space=vmem, size = 0x400, scoped, tag = 'input window, operand 9, single buffered']
    #allocation14 [shape = 's32[1]{0}', space=sflag, size = 0x4, scoped, tag = 'scoped memory for acnet_forward.1']
    #allocation15 [shape = 'u8[32768]{0}', space=vmem, size = 0x8000, scoped, tag = 'input window, operand 10, single buffered']
    #allocation16 [shape = 'u8[512]{0}', space=vmem, size = 0x400, scoped, tag = 'input window, operand 11, single buffered']
    #allocation17 [shape = 's32[1]{0}', space=sflag, size = 0x4, scoped, tag = 'scoped memory for acnet_forward.1']
    #allocation18 [shape = 'u8[196608]{0}', space=vmem, size = 0x30000, scoped, tag = 'input window, operand 12, single buffered']
    #allocation19 [shape = 'u8[98304]{0}', space=vmem, size = 0x18000, scoped, tag = 'input window, operand 13, single buffered']
    #allocation20 [shape = 's32[1]{0}', space=sflag, size = 0x4, scoped, tag = 'scoped memory for acnet_forward.1']
    #allocation21 [shape = 'u8[1536]{0}', space=vmem, size = 0x800, scoped, tag = 'input window, operand 14, single buffered']
    #allocation22 [shape = 'u8[294912]{0}', space=vmem, size = 0x48000, scoped, tag = 'input window, operand 15, single buffered']
    #allocation23 [shape = 's32[1]{0}', space=sflag, size = 0x4, scoped, tag = 'scoped memory for acnet_forward.1']
    #allocation24 [shape = 'u8[1536]{0}', space=vmem, size = 0x800, scoped, tag = 'input window, operand 16, single buffered']
    #allocation25 [shape = 'u8[294912]{0}', space=vmem, size = 0x48000, scoped, tag = 'input window, operand 17, single buffered']
    #allocation26 [shape = 's32[1]{0}', space=sflag, size = 0x4, scoped, tag = 'scoped memory for acnet_forward.1']
    #allocation27 [shape = 'u8[1536]{0}', space=vmem, size = 0x800, scoped, tag = 'input window, operand 18, single buffered']
    #allocation28 [shape = 'u8[98304]{0}', space=vmem, size = 0x18000, scoped, tag = 'input window, operand 19, single buffered']
    #allocation29 [shape = 's32[1]{0}', space=sflag, size = 0x4, scoped, tag = 'scoped memory for acnet_forward.1']
    #allocation30 [shape = 'u8[512]{0}', space=vmem, size = 0x400, scoped, tag = 'input window, operand 20, single buffered']
    %26 = vsyncpa [#allocation3], 0
    %27 = vsyncpa [#allocation5], 0
    %28 = vsyncpa [#allocation8], 0
    %29 = vsyncpa [#allocation11], 0
    %30 = vsyncpa [#allocation14], 0
    %31 = vsyncpa [#allocation17], 0
    %32 = vsyncpa [#allocation20], 0
    %33 = vsyncpa [#allocation23], 0
    %34 = vsyncpa [#allocation26], 0
    %35 = vsyncpa [#allocation29], 0
    // Predicated region
    $region2: #{acnet_forward.1} parent=1 // pred_check
      _
    $region3: #{acnet_forward.1} parent=1 // pred_check_branch
      %37 = sbr.rel (0) target = $region5
    $region4: #{acnet_forward.1} parent=1 // pred_region
      _
    $region5: #{acnet_forward.1} parent=1 // pred_fallthru
      _
    // Predicated region
    $region6: #{acnet_forward.1} parent=1 // pred_check
      _
    $region7: #{acnet_forward.1} parent=1 // pred_check_branch
      %39 = sbr.rel (0) target = $region9
    $region8: #{acnet_forward.1} parent=1 // pred_region
      _
    $region9: #{acnet_forward.1} parent=1 // pred_fallthru
      _
    // Predicated region
    $region10: #{acnet_forward.1} parent=1 // pred_check
      _
    $region11: #{acnet_forward.1} parent=1 // pred_check_branch
      %41 = sbr.rel (0) target = $region13
    $region12: #{acnet_forward.1} parent=1 // pred_region
      %s43 = ssub.s32 49152, 49152
      %44 = vsyncadd [#allocation3], %s43
      %s45 = sshll.u32 [#allocation2], 4
      %s46 = int_to_ptr.vmem [resolvable:$true] %s45
      %51 = dma.hbm_to_vmem [thread:$0]  %s2, 49152, %s46, [#allocation3], 512, 512, 32
    $region13: #{acnet_forward.1} parent=1 // pred_fallthru
      _
    // Predicated region
    $region14: #{acnet_forward.1} parent=1 // pred_check
      _
    $region15: #{acnet_forward.1} parent=1 // pred_check_branch
      %53 = sbr.rel (0) target = $region17
    $region16: #{acnet_forward.1} parent=1 // pred_region
      %s55 = ssub.s32 128, 128
      %56 = vsyncadd [#allocation5], %s55
      %s58 = sshll.u32 [#allocation4], 4
      %s59 = int_to_ptr.vmem [resolvable:$true] %s58
      %61 = dma.hbm_to_vmem [thread:$0]  %s3, 128, %s59, [#allocation5]
    $region17: #{acnet_forward.1} parent=1 // pred_fallthru
      _
    // Predicated region
    $region18: #{acnet_forward.1} parent=1 // pred_check
      _
    $region19: #{acnet_forward.1} parent=1 // pred_check_branch
      %63 = sbr.rel (0) target = $region21
    $region20: #{acnet_forward.1} parent=1 // pred_region
      %s65 = ssub.s32 32768, 32768
      %66 = vsyncadd [#allocation5], %s65
      %s67 = sshll.u32 [#allocation6], 4
      %s68 = int_to_ptr.vmem [resolvable:$true] %s67
      %73 = dma.hbm_to_vmem [thread:$0]  %s4, 32768, %s68, [#allocation5], 256, 256, 16
    $region21: #{acnet_forward.1} parent=1 // pred_fallthru
      _
    // Predicated region
    $region22: #{acnet_forward.1} parent=1 // pred_check
      _
    $region23: #{acnet_forward.1} parent=1 // pred_check_branch
      %75 = sbr.rel (0) target = $region25
    $region24: #{acnet_forward.1} parent=1 // pred_region
      %s77 = ssub.s32 64, 64
      %78 = vsyncadd [#allocation8], %s77
      %s80 = sshll.u32 [#allocation7], 4
      %s81 = int_to_ptr.vmem [resolvable:$true] %s80
      %83 = dma.hbm_to_vmem [thread:$0]  %s5, 64, %s81, [#allocation8]
    $region25: #{acnet_forward.1} parent=1 // pred_fallthru
      _
    // Predicated region
    $region26: #{acnet_forward.1} parent=1 // pred_check
      _
    $region27: #{acnet_forward.1} parent=1 // pred_check_branch
      %85 = sbr.rel (0) target = $region29
    $region28: #{acnet_forward.1} parent=1 // pred_region
      %s87 = ssub.s32 8192, 8192
      %88 = vsyncadd [#allocation8], %s87
      %s89 = sshll.u32 [#allocation9], 4
      %s90 = int_to_ptr.vmem [resolvable:$true] %s89
      %95 = dma.hbm_to_vmem [thread:$0]  %s6, 8192, %s90, [#allocation8], 128, 128, 8
    $region29: #{acnet_forward.1} parent=1 // pred_fallthru
      _
    // Predicated region
    $region30: #{acnet_forward.1} parent=1 // pred_check
      _
    $region31: #{acnet_forward.1} parent=1 // pred_check_branch
      %97 = sbr.rel (0) target = $region33
    $region32: #{acnet_forward.1} parent=1 // pred_region
      %s99 = ssub.s32 32, 32
      %100 = vsyncadd [#allocation11], %s99
      %s102 = sshll.u32 [#allocation10], 4
      %s103 = int_to_ptr.vmem [resolvable:$true] %s102
      %105 = dma.hbm_to_vmem [thread:$0]  %s7, 32, %s103, [#allocation11]
    $region33: #{acnet_forward.1} parent=1 // pred_fallthru
      _
    // Predicated region
    $region34: #{acnet_forward.1} parent=1 // pred_check
      _
    $region35: #{acnet_forward.1} parent=1 // pred_check_branch
      %107 = sbr.rel (0) target = $region37
    $region36: #{acnet_forward.1} parent=1 // pred_region
      %s109 = ssub.s32 1024, 1024
      %110 = vsyncadd [#allocation11], %s109
      %s111 = sshll.u32 [#allocation12], 4
      %s112 = int_to_ptr.vmem [resolvable:$true] %s111
      %117 = dma.hbm_to_vmem [thread:$0]  %s8, 1024, %s112, [#allocation11], 64, 64, 4
    $region37: #{acnet_forward.1} parent=1 // pred_fallthru
      _
    // Predicated region
    $region38: #{acnet_forward.1} parent=1 // pred_check
      _
    $region39: #{acnet_forward.1} parent=1 // pred_check_branch
      %119 = sbr.rel (0) target = $region41
    $region40: #{acnet_forward.1} parent=1 // pred_region
      %s121 = ssub.s32 16, 16
      %122 = vsyncadd [#allocation14], %s121
      %s124 = sshll.u32 [#allocation13], 4
      %s125 = int_to_ptr.vmem [resolvable:$true] %s124
      %127 = dma.hbm_to_vmem [thread:$0]  %s9, 16, %s125, [#allocation14]
    $region41: #{acnet_forward.1} parent=1 // pred_fallthru
      _
    // Predicated region
    $region42: #{acnet_forward.1} parent=1 // pred_check
      _
    $region43: #{acnet_forward.1} parent=1 // pred_check_branch
      %129 = sbr.rel (0) target = $region45
    $region44: #{acnet_forward.1} parent=1 // pred_region
      %s131 = ssub.s32 1024, 1024
      %132 = vsyncadd [#allocation14], %s131
      %s133 = sshll.u32 [#allocation15], 4
      %s134 = int_to_ptr.vmem [resolvable:$true] %s133
      %139 = dma.hbm_to_vmem [thread:$0]  %s10, 1024, %s134, [#allocation14], 64, 64, 4
    $region45: #{acnet_forward.1} parent=1 // pred_fallthru
      _
    // Predicated region
    $region46: #{acnet_forward.1} parent=1 // pred_check
      _
    $region47: #{acnet_forward.1} parent=1 // pred_check_branch
      %141 = sbr.rel (0) target = $region49
    $region48: #{acnet_forward.1} parent=1 // pred_region
      %s143 = ssub.s32 16, 16
      %144 = vsyncadd [#allocation17], %s143
      %s146 = sshll.u32 [#allocation16], 4
      %s147 = int_to_ptr.vmem [resolvable:$true] %s146
      %149 = dma.hbm_to_vmem [thread:$0]  %s11, 16, %s147, [#allocation17]
    $region49: #{acnet_forward.1} parent=1 // pred_fallthru
      _
    // Predicated region
    $region50: #{acnet_forward.1} parent=1 // pred_check
      _
    $region51: #{acnet_forward.1} parent=1 // pred_check_branch
      %151 = sbr.rel (0) target = $region53
    $region52: #{acnet_forward.1} parent=1 // pred_region
      %s153 = ssub.s32 6144, 6144
      %154 = vsyncadd [#allocation17], %s153
      %s155 = sshll.u32 [#allocation18], 4
      %s156 = int_to_ptr.vmem [resolvable:$true] %s155
      %161 = dma.hbm_to_vmem [thread:$0]  %s12, 6144, %s156, [#allocation17], 192, 192, 12
    $region53: #{acnet_forward.1} parent=1 // pred_fallthru
      _
    // Predicated region
    $region54: #{acnet_forward.1} parent=1 // pred_check
      _
    $region55: #{acnet_forward.1} parent=1 // pred_check_branch
      %163 = sbr.rel (0) target = $region57
    $region56: #{acnet_forward.1} parent=1 // pred_region
      %s165 = ssub.s32 3072, 3072
      %166 = vsyncadd [#allocation20], %s165
      %s167 = sshll.u32 [#allocation19], 4
      %s168 = int_to_ptr.vmem [resolvable:$true] %s167
      %173 = dma.hbm_to_vmem [thread:$0]  %s13, 3072, %s168, [#allocation20], 192, 192, 12
    $region57: #{acnet_forward.1} parent=1 // pred_fallthru
      _
    // Predicated region
    $region58: #{acnet_forward.1} parent=1 // pred_check
      _
    $region59: #{acnet_forward.1} parent=1 // pred_check_branch
      %175 = sbr.rel (0) target = $region61
    $region60: #{acnet_forward.1} parent=1 // pred_region
      %s177 = ssub.s32 48, 48
      %178 = vsyncadd [#allocation20], %s177
      %s180 = sshll.u32 [#allocation21], 4
      %s181 = int_to_ptr.vmem [resolvable:$true] %s180
      %183 = dma.hbm_to_vmem [thread:$0]  %s14, 48, %s181, [#allocation20]
    $region61: #{acnet_forward.1} parent=1 // pred_fallthru
      _
    // Predicated region
    $region62: #{acnet_forward.1} parent=1 // pred_check
      _
    $region63: #{acnet_forward.1} parent=1 // pred_check_branch
      %185 = sbr.rel (0) target = $region65
    $region64: #{acnet_forward.1} parent=1 // pred_region
      %s187 = ssub.s32 9216, 9216
      %188 = vsyncadd [#allocation23], %s187
      %s189 = sshll.u32 [#allocation22], 4
      %s190 = int_to_ptr.vmem [resolvable:$true] %s189
      %195 = dma.hbm_to_vmem [thread:$0]  %s15, 9216, %s190, [#allocation23], 192, 192, 12
    $region65: #{acnet_forward.1} parent=1 // pred_fallthru
      _
    // Predicated region
    $region66: #{acnet_forward.1} parent=1 // pred_check
      _
    $region67: #{acnet_forward.1} parent=1 // pred_check_branch
      %197 = sbr.rel (0) target = $region69
    $region68: #{acnet_forward.1} parent=1 // pred_region
      %s199 = ssub.s32 48, 48
      %200 = vsyncadd [#allocation23], %s199
      %s202 = sshll.u32 [#allocation24], 4
      %s203 = int_to_ptr.vmem [resolvable:$true] %s202
      %205 = dma.hbm_to_vmem [thread:$0]  %s16, 48, %s203, [#allocation23]
    $region69: #{acnet_forward.1} parent=1 // pred_fallthru
      _
    // Predicated region
    $region70: #{acnet_forward.1} parent=1 // pred_check
      _
    $region71: #{acnet_forward.1} parent=1 // pred_check_branch
      %207 = sbr.rel (0) target = $region73
    $region72: #{acnet_forward.1} parent=1 // pred_region
      %s209 = ssub.s32 9216, 9216
      %210 = vsyncadd [#allocation26], %s209
      %s211 = sshll.u32 [#allocation25], 4
      %s212 = int_to_ptr.vmem [resolvable:$true] %s211
      %217 = dma.hbm_to_vmem [thread:$0]  %s17, 9216, %s212, [#allocation26], 192, 192, 12
    $region73: #{acnet_forward.1} parent=1 // pred_fallthru
      _
    // Predicated region
    $region74: #{acnet_forward.1} parent=1 // pred_check
      _
    $region75: #{acnet_forward.1} parent=1 // pred_check_branch
      %219 = sbr.rel (0) target = $region77
    $region76: #{acnet_forward.1} parent=1 // pred_region
      %s221 = ssub.s32 48, 48
      %222 = vsyncadd [#allocation26], %s221
      %s224 = sshll.u32 [#allocation27], 4
      %s225 = int_to_ptr.vmem [resolvable:$true] %s224
      %227 = dma.hbm_to_vmem [thread:$0]  %s18, 48, %s225, [#allocation26]
    $region77: #{acnet_forward.1} parent=1 // pred_fallthru
      _
    // Predicated region
    $region78: #{acnet_forward.1} parent=1 // pred_check
      _
    $region79: #{acnet_forward.1} parent=1 // pred_check_branch
      %229 = sbr.rel (0) target = $region81
    $region80: #{acnet_forward.1} parent=1 // pred_region
      %s231 = ssub.s32 3072, 3072
      %232 = vsyncadd [#allocation29], %s231
      %s233 = sshll.u32 [#allocation28], 4
      %s234 = int_to_ptr.vmem [resolvable:$true] %s233
      %239 = dma.hbm_to_vmem [thread:$0]  %s19, 3072, %s234, [#allocation29], 64, 64, 4
    $region81: #{acnet_forward.1} parent=1 // pred_fallthru
      _
    // Predicated region
    $region82: #{acnet_forward.1} parent=1 // pred_check
      _
    $region83: #{acnet_forward.1} parent=1 // pred_check_branch
      %241 = sbr.rel (0) target = $region85
    $region84: #{acnet_forward.1} parent=1 // pred_region
      %s243 = ssub.s32 16, 16
      %244 = vsyncadd [#allocation29], %s243
      %s246 = sshll.u32 [#allocation30], 4
      %s247 = int_to_ptr.vmem [resolvable:$true] %s246
      %249 = dma.hbm_to_vmem [thread:$0]  %s20, 16, %s247, [#allocation29]
    $region85: #{acnet_forward.1} parent=1 // pred_fallthru
      _
    // Predicated region
    $region86: #{acnet_forward.1} parent=1 // pred_check
      _
    $region87: #{acnet_forward.1} parent=1 // pred_check_branch
      %251 = sbr.rel (0) target = $region89
    $region88: #{acnet_forward.1} parent=1 // pred_region
      %252 = dma.done [#allocation3], 49152
    $region89: #{acnet_forward.1} parent=1 // pred_fallthru
      _
    // Predicated region
    $region90: #{acnet_forward.1} parent=1 // pred_check
      _
    $region91: #{acnet_forward.1} parent=1 // pred_check_branch
      %254 = sbr.rel (0) target = $region93
    $region92: #{acnet_forward.1} parent=1 // pred_region
      %255 = dma.done [#allocation5], 128
    $region93: #{acnet_forward.1} parent=1 // pred_fallthru
      _
    // Predicated region
    $region94: #{acnet_forward.1} parent=1 // pred_check
      _
    $region95: #{acnet_forward.1} parent=1 // pred_check_branch
      %257 = sbr.rel (0) target = $region97
    $region96: #{acnet_forward.1} parent=1 // pred_region
      %258 = dma.done [#allocation5], 32768
    $region97: #{acnet_forward.1} parent=1 // pred_fallthru
      _
    // Predicated region
    $region98: #{acnet_forward.1} parent=1 // pred_check
      _
    $region99: #{acnet_forward.1} parent=1 // pred_check_branch
      %260 = sbr.rel (0) target = $region101
    $region100: #{acnet_forward.1} parent=1 // pred_region
      %261 = dma.done [#allocation8], 64
    $region101: #{acnet_forward.1} parent=1 // pred_fallthru
      _
    // Predicated region
    $region102: #{acnet_forward.1} parent=1 // pred_check
      _
    $region103: #{acnet_forward.1} parent=1 // pred_check_branch
      %263 = sbr.rel (0) target = $region105
    $region104: #{acnet_forward.1} parent=1 // pred_region
      %264 = dma.done [#allocation8], 8192
    $region105: #{acnet_forward.1} parent=1 // pred_fallthru
      _
    // Predicated region
    $region106: #{acnet_forward.1} parent=1 // pred_check
      _
    $region107: #{acnet_forward.1} parent=1 // pred_check_branch
      %266 = sbr.rel (0) target = $region109
    $region108: #{acnet_forward.1} parent=1 // pred_region
      %267 = dma.done [#allocation11], 32
    $region109: #{acnet_forward.1} parent=1 // pred_fallthru
      _
    // Predicated region
    $region110: #{acnet_forward.1} parent=1 // pred_check
      _
    $region111: #{acnet_forward.1} parent=1 // pred_check_branch
      %269 = sbr.rel (0) target = $region113
    $region112: #{acnet_forward.1} parent=1 // pred_region
      %270 = dma.done [#allocation11], 1024
    $region113: #{acnet_forward.1} parent=1 // pred_fallthru
      _
    // Predicated region
    $region114: #{acnet_forward.1} parent=1 // pred_check
      _
    $region115: #{acnet_forward.1} parent=1 // pred_check_branch
      %272 = sbr.rel (0) target = $region117
    $region116: #{acnet_forward.1} parent=1 // pred_region
      %273 = dma.done [#allocation14], 16
    $region117: #{acnet_forward.1} parent=1 // pred_fallthru
      _
    // Predicated region
    $region118: #{acnet_forward.1} parent=1 // pred_check
      _
    $region119: #{acnet_forward.1} parent=1 // pred_check_branch
      %275 = sbr.rel (0) target = $region121
    $region120: #{acnet_forward.1} parent=1 // pred_region
      %276 = dma.done [#allocation14], 1024
    $region121: #{acnet_forward.1} parent=1 // pred_fallthru
      _
    // Predicated region
    $region122: #{acnet_forward.1} parent=1 // pred_check
      _
    $region123: #{acnet_forward.1} parent=1 // pred_check_branch
      %278 = sbr.rel (0) target = $region125
    $region124: #{acnet_forward.1} parent=1 // pred_region
      %279 = dma.done [#allocation17], 16
    $region125: #{acnet_forward.1} parent=1 // pred_fallthru
      _
    // Predicated region
    $region126: #{acnet_forward.1} parent=1 // pred_check
      _
    $region127: #{acnet_forward.1} parent=1 // pred_check_branch
      %281 = sbr.rel (0) target = $region129
    $region128: #{acnet_forward.1} parent=1 // pred_region
      %282 = dma.done [#allocation17], 6144
    $region129: #{acnet_forward.1} parent=1 // pred_fallthru
      _
    // Predicated region
    $region130: #{acnet_forward.1} parent=1 // pred_check
      _
    $region131: #{acnet_forward.1} parent=1 // pred_check_branch
      %284 = sbr.rel (0) target = $region133
    $region132: #{acnet_forward.1} parent=1 // pred_region
      %285 = dma.done [#allocation20], 3072
    $region133: #{acnet_forward.1} parent=1 // pred_fallthru
      _
    // Predicated region
    $region134: #{acnet_forward.1} parent=1 // pred_check
      _
    $region135: #{acnet_forward.1} parent=1 // pred_check_branch
      %287 = sbr.rel (0) target = $region137
    $region136: #{acnet_forward.1} parent=1 // pred_region
      %288 = dma.done [#allocation20], 48
    $region137: #{acnet_forward.1} parent=1 // pred_fallthru
      _
    // Predicated region
    $region138: #{acnet_forward.1} parent=1 // pred_check
      _
    $region139: #{acnet_forward.1} parent=1 // pred_check_branch
      %290 = sbr.rel (0) target = $region141
    $region140: #{acnet_forward.1} parent=1 // pred_region
      %291 = dma.done [#allocation23], 9216
    $region141: #{acnet_forward.1} parent=1 // pred_fallthru
      _
    // Predicated region
    $region142: #{acnet_forward.1} parent=1 // pred_check
      _
    $region143: #{acnet_forward.1} parent=1 // pred_check_branch
      %293 = sbr.rel (0) target = $region145
    $region144: #{acnet_forward.1} parent=1 // pred_region
      %294 = dma.done [#allocation23], 48
    $region145: #{acnet_forward.1} parent=1 // pred_fallthru
      _
    // Predicated region
    $region146: #{acnet_forward.1} parent=1 // pred_check
      _
    $region147: #{acnet_forward.1} parent=1 // pred_check_branch
      %296 = sbr.rel (0) target = $region149
    $region148: #{acnet_forward.1} parent=1 // pred_region
      %297 = dma.done [#allocation26], 9216
    $region149: #{acnet_forward.1} parent=1 // pred_fallthru
      _
    // Predicated region
    $region150: #{acnet_forward.1} parent=1 // pred_check
      _
    $region151: #{acnet_forward.1} parent=1 // pred_check_branch
      %299 = sbr.rel (0) target = $region153
    $region152: #{acnet_forward.1} parent=1 // pred_region
      %300 = dma.done [#allocation26], 48
    $region153: #{acnet_forward.1} parent=1 // pred_fallthru
      _
    // Predicated region
    $region154: #{acnet_forward.1} parent=1 // pred_check
      _
    $region155: #{acnet_forward.1} parent=1 // pred_check_branch
      %302 = sbr.rel (0) target = $region157
    $region156: #{acnet_forward.1} parent=1 // pred_region
      %303 = dma.done [#allocation29], 3072
    $region157: #{acnet_forward.1} parent=1 // pred_fallthru
      _
    // Predicated region
    $region158: #{acnet_forward.1} parent=1 // pred_check
      _
    $region159: #{acnet_forward.1} parent=1 // pred_check_branch
      %305 = sbr.rel (0) target = $region161
    $region160: #{acnet_forward.1} parent=1 // pred_region
      %306 = dma.done [#allocation29], 16
    $region161: #{acnet_forward.1} parent=1 // pred_fallthru
      _
    %v308 = vld [vmem:[%s1] sm:$0xf]
    %v309 = vld [vmem:[#allocation12] sm:$0xf]
    %v310 = vld [vmem:[#allocation12 + $0x4] sm:$0xf]
    %v311 = vld [vmem:[#allocation12 + $0x8] sm:$0xf]
    %v312 = vld [vmem:[#allocation12 + $0xc] sm:$0xf]
    %v313 = vld [vmem:[#allocation12 + $0x10] sm:$0xf]
    %v314 = vld [vmem:[#allocation12 + $0x14] sm:$0xf]
    %v315 = vld [vmem:[#allocation12 + $0x18] sm:$0xf]
    %v316 = vld [vmem:[#allocation12 + $0x1c] sm:$0xf]
    %v317 = vld [vmem:[#allocation12 + $0x20] sm:$0xf]
    %v318 = vld [vmem:[#allocation12 + $0x24] sm:$0xf]
    %v319 = vld [vmem:[#allocation12 + $0x28] sm:$0xf]
    %v320 = vld [vmem:[#allocation12 + $0x2c] sm:$0xf]
    %v321 = vld [vmem:[#allocation12 + $0x30] sm:$0xf]
    %v322 = vld [vmem:[#allocation12 + $0x34] sm:$0xf]
    %v323 = vld [vmem:[#allocation12 + $0x38] sm:$0xf]
    %v324 = vld [vmem:[#allocation12 + $0x3c] sm:$0xf]
    %v325 = vld [vmem:[#allocation13] sm:$0x1]
    %v327 = vlaneseq
    %v328 = vshrl.u32 %v327, 7
    %v329 = vsub.s32 0, %v328
    %v330 = vrot.slane %v325, %v329
    %v348 = vunpack.c.l.b16 %v309
    %v349 = vunpack.c.l.b16 %v310
    %v350 = vunpack.c.l.b16 %v311
    %v351 = vunpack.c.l.b16 %v312
    %v352 = vunpack.c.l.b16 %v313
    %v353 = vunpack.c.l.b16 %v314
    %v354 = vunpack.c.l.b16 %v315
    %v355 = vunpack.c.l.b16 %v316
    %v356 = vunpack.c.l.b16 %v317
    %v357 = vunpack.c.l.b16 %v318
    %v358 = vunpack.c.l.b16 %v319
    %v359 = vunpack.c.l.b16 %v320
    %v360 = vunpack.c.l.b16 %v321
    %v361 = vunpack.c.l.b16 %v322
    %v362 = vunpack.c.l.b16 %v323
    %v363 = vunpack.c.l.b16 %v324
    %v364 = vpack.c.b16 %v349, %v348
    %v365 = vpack.c.b16 %v351, %v350
    %v366 = vpack.c.b16 %v353, %v352
    %v367 = vpack.c.b16 %v355, %v354
    %v368 = vpack.c.b16 %v357, %v356
    %v369 = vpack.c.b16 %v359, %v358
    %v370 = vpack.c.b16 %v361, %v360
    %v371 = vpack.c.b16 %v363, %v362
    %380 = vmatprep.subr.bf16.mxu0 0
    %381 = vmatpush1.bf16.msra.mxu0 %v364
    %382 = vmatprep.subr.bf16.mxu0 0
    %383 = vmatpush1.bf16.msra.mxu0 %v365
    %384 = vmatprep.subr.bf16.mxu0 0
    %385 = vmatpush1.bf16.msra.mxu0 %v366
    %386 = vmatprep.subr.bf16.mxu0 0
    %387 = vmatpush1.bf16.msra.mxu0 %v367
    %388 = vmatprep.subr.bf16.mxu0 0
    %389 = vmatpush1.bf16.msra.mxu0 %v368
    %390 = vmatprep.subr.bf16.mxu0 0
    %391 = vmatpush1.bf16.msra.mxu0 %v369
    %392 = vmatprep.subr.bf16.mxu0 0
    %393 = vmatpush1.bf16.msra.mxu0 %v370
    %394 = vmatprep.subr.bf16.mxu0 0
    %395 = vmatpush1.bf16.msra.mxu0 %v371
    %396 = vmatprep.subr.bf16.mxu0 0
    %397 = vmatpush1.bf16.msra.mxu0 0
    %398 = vmatprep.subr.bf16.mxu0 0
    %399 = vmatpush1.bf16.msra.mxu0 0
    %400 = vmatprep.subr.bf16.mxu0 0
    %401 = vmatpush1.bf16.msra.mxu0 0
    %402 = vmatprep.subr.bf16.mxu0 0
    %403 = vmatpush1.bf16.msra.mxu0 0
    %404 = vmatprep.subr.bf16.mxu0 0
    %405 = vmatpush1.bf16.msra.mxu0 0
    %406 = vmatprep.subr.bf16.mxu0 0
    %407 = vmatpush1.bf16.msra.mxu0 0
    %408 = vmatprep.subr.bf16.mxu0 0
    %409 = vmatpush1.bf16.msra.mxu0 0
    %410 = vmatprep.subr.bf16.mxu0 0
    %411 = vmatpush1.bf16.msra.mxu0 0
    %412 = vmatprep.mubr.bf16.mxu0 0
    %413 = vmatmul.mubr.bf16.gmra.mrb[0].mxu0 %v308
    %v414 = vpop.f32.mrb[0].mxu0
    %v415 = vadd.f32 %v330, %v414
    %v416 = vpop.f32.mrb[0].mxu0
    %v417 = vpop.f32.mrb[0].mxu0
    %v418 = vpop.f32.mrb[0].mxu0
    %419 = vdwg.mxu0
    %v420 = vmax.f32 %v415, 0.0
    %v421 = vpack.c.bf16 %v420, %v420
    %v422 = vld [vmem:[#allocation15] sm:$0xf]
    %v423 = vld [vmem:[#allocation15 + $0x4] sm:$0xf]
    %v424 = vld [vmem:[#allocation15 + $0x8] sm:$0xf]
    %v425 = vld [vmem:[#allocation15 + $0xc] sm:$0xf]
    %v426 = vld [vmem:[#allocation15 + $0x10] sm:$0xf]
    %v427 = vld [vmem:[#allocation15 + $0x14] sm:$0xf]
    %v428 = vld [vmem:[#allocation15 + $0x18] sm:$0xf]
    %v429 = vld [vmem:[#allocation15 + $0x1c] sm:$0xf]
    %v430 = vld [vmem:[#allocation15 + $0x20] sm:$0xf]
    %v431 = vld [vmem:[#allocation15 + $0x24] sm:$0xf]
    %v432 = vld [vmem:[#allocation15 + $0x28] sm:$0xf]
    %v433 = vld [vmem:[#allocation15 + $0x2c] sm:$0xf]
    %v434 = vld [vmem:[#allocation15 + $0x30] sm:$0xf]
    %v435 = vld [vmem:[#allocation15 + $0x34] sm:$0xf]
    %v436 = vld [vmem:[#allocation15 + $0x38] sm:$0xf]
    %v437 = vld [vmem:[#allocation15 + $0x3c] sm:$0xf]
    %v438 = vld [vmem:[#allocation16] sm:$0x1]
    %v440 = vlaneseq
    %v441 = vshrl.u32 %v440, 7
    %v442 = vsub.s32 0, %v441
    %v443 = vrot.slane %v438, %v442
    %v461 = vunpack.c.l.b16 %v422
    %v462 = vunpack.c.l.b16 %v423
    %v463 = vunpack.c.l.b16 %v424
    %v464 = vunpack.c.l.b16 %v425
    %v465 = vunpack.c.l.b16 %v426
    %v466 = vunpack.c.l.b16 %v427
    %v467 = vunpack.c.l.b16 %v428
    %v468 = vunpack.c.l.b16 %v429
    %v469 = vunpack.c.l.b16 %v430
    %v470 = vunpack.c.l.b16 %v431
    %v471 = vunpack.c.l.b16 %v432
    %v472 = vunpack.c.l.b16 %v433
    %v473 = vunpack.c.l.b16 %v434
    %v474 = vunpack.c.l.b16 %v435
    %v475 = vunpack.c.l.b16 %v436
    %v476 = vunpack.c.l.b16 %v437
    %v477 = vpack.c.b16 %v462, %v461
    %v478 = vpack.c.b16 %v464, %v463
    %v479 = vpack.c.b16 %v466, %v465
    %v480 = vpack.c.b16 %v468, %v467
    %v481 = vpack.c.b16 %v470, %v469
    %v482 = vpack.c.b16 %v472, %v471
    %v483 = vpack.c.b16 %v474, %v473
    %v484 = vpack.c.b16 %v476, %v475
    %493 = vmatprep.subr.bf16.mxu0 0
    %494 = vmatpush1.bf16.msra.mxu0 %v477
    %495 = vmatprep.subr.bf16.mxu0 0
    %496 = vmatpush1.bf16.msra.mxu0 %v478
    %497 = vmatprep.subr.bf16.mxu0 0
    %498 = vmatpush1.bf16.msra.mxu0 %v479
    %499 = vmatprep.subr.bf16.mxu0 0
    %500 = vmatpush1.bf16.msra.mxu0 %v480
    %501 = vmatprep.subr.bf16.mxu0 0
    %502 = vmatpush1.bf16.msra.mxu0 %v481
    %503 = vmatprep.subr.bf16.mxu0 0
    %504 = vmatpush1.bf16.msra.mxu0 %v482
    %505 = vmatprep.subr.bf16.mxu0 0
    %506 = vmatpush1.bf16.msra.mxu0 %v483
    %507 = vmatprep.subr.bf16.mxu0 0
    %508 = vmatpush1.bf16.msra.mxu0 %v484
    %509 = vmatprep.subr.bf16.mxu0 0
    %510 = vmatpush1.bf16.msra.mxu0 0
    %511 = vmatprep.subr.bf16.mxu0 0
    %512 = vmatpush1.bf16.msra.mxu0 0
    %513 = vmatprep.subr.bf16.mxu0 0
    %514 = vmatpush1.bf16.msra.mxu0 0
    %515 = vmatprep.subr.bf16.mxu0 0
    %516 = vmatpush1.bf16.msra.mxu0 0
    %517 = vmatprep.subr.bf16.mxu0 0
    %518 = vmatpush1.bf16.msra.mxu0 0
    %519 = vmatprep.subr.bf16.mxu0 0
    %520 = vmatpush1.bf16.msra.mxu0 0
    %521 = vmatprep.subr.bf16.mxu0 0
    %522 = vmatpush1.bf16.msra.mxu0 0
    %523 = vmatprep.subr.bf16.mxu0 0
    %524 = vmatpush1.bf16.msra.mxu0 0
    %525 = vmatprep.mubr.bf16.mxu0 0
    %526 = vmatmul.mubr.bf16.gmra.mrb[0].mxu0 %v421
    %v527 = vpop.f32.mrb[0].mxu0
    %v528 = vadd.f32 %v443, %v527
    %v529 = vpop.f32.mrb[0].mxu0
    %v530 = vpop.f32.mrb[0].mxu0
    %v531 = vpop.f32.mrb[0].mxu0
    %532 = vdwg.mxu0
    %v533 = vmax.f32 %v528, 0.0
    %v534 = vld [vmem:[%s0] sm:$0xff]
    %v535 = vld [vmem:[%s0 + $0x8] sm:$0xff]
    %v536 = vld [vmem:[%s0 + $0x10] sm:$0xff]
    %v537 = vld [vmem:[#allocation2] sm:$0xff]
    %v538 = vld [vmem:[#allocation2 + $0x8] sm:$0xff]
    %v539 = vld [vmem:[#allocation2 + $0x10] sm:$0xff]
    %v540 = vld [vmem:[#allocation2 + $0x18] sm:$0xff]
    %v541 = vld [vmem:[#allocation2 + $0x20] sm:$0xff]
    %v542 = vld [vmem:[#allocation2 + $0x28] sm:$0xff]
    %v543 = vld [vmem:[#allocation2 + $0x30] sm:$0xff]
    %v544 = vld [vmem:[#allocation2 + $0x38] sm:$0xff]
    %v545 = vld [vmem:[#allocation2 + $0x40] sm:$0xff]
    %v546 = vld [vmem:[#allocation2 + $0x48] sm:$0xff]
    %v547 = vld [vmem:[#allocation2 + $0x50] sm:$0xff]
    %v548 = vld [vmem:[#allocation2 + $0x58] sm:$0xff]
    %v549 = vld [vmem:[#allocation2 + $0x60] sm:$0xff]
    %v550 = vld [vmem:[#allocation2 + $0x68] sm:$0xff]
    %v551 = vld [vmem:[#allocation2 + $0x70] sm:$0xff]
    %v552 = vld [vmem:[#allocation2 + $0x78] sm:$0xff]
    %v553 = vld [vmem:[#allocation2 + $0x80] sm:$0xff]
    %v554 = vld [vmem:[#allocation2 + $0x88] sm:$0xff]
    %v555 = vld [vmem:[#allocation2 + $0x90] sm:$0xff]
    %v556 = vld [vmem:[#allocation2 + $0x98] sm:$0xff]
    %v557 = vld [vmem:[#allocation2 + $0xa0] sm:$0xff]
    %v558 = vld [vmem:[#allocation2 + $0xa8] sm:$0xff]
    %v559 = vld [vmem:[#allocation2 + $0xb0] sm:$0xff]
    %v560 = vld [vmem:[#allocation2 + $0xb8] sm:$0xff]
    %v561 = vld [vmem:[#allocation2 + $0xc0] sm:$0xff]
    %v562 = vld [vmem:[#allocation2 + $0xc8] sm:$0xff]
    %v563 = vld [vmem:[#allocation2 + $0xd0] sm:$0xff]
    %v564 = vld [vmem:[#allocation2 + $0xd8] sm:$0xff]
    %v565 = vld [vmem:[#allocation2 + $0xe0] sm:$0xff]
    %v566 = vld [vmem:[#allocation2 + $0xe8] sm:$0xff]
    %v567 = vld [vmem:[#allocation2 + $0xf0] sm:$0xff]
    %v568 = vld [vmem:[#allocation2 + $0xf8] sm:$0xff]
    %v569 = vld [vmem:[#allocation2 + $0x100] sm:$0xff]
    %v570 = vld [vmem:[#allocation2 + $0x108] sm:$0xff]
    %v571 = vld [vmem:[#allocation2 + $0x110] sm:$0xff]
    %v572 = vld [vmem:[#allocation2 + $0x118] sm:$0xff]
    %v573 = vld [vmem:[#allocation2 + $0x120] sm:$0xff]
    %v574 = vld [vmem:[#allocation2 + $0x128] sm:$0xff]
    %v575 = vld [vmem:[#allocation2 + $0x130] sm:$0xff]
    %v576 = vld [vmem:[#allocation2 + $0x138] sm:$0xff]
    %v577 = vld [vmem:[#allocation2 + $0x140] sm:$0xff]
    %v578 = vld [vmem:[#allocation2 + $0x148] sm:$0xff]
    %v579 = vld [vmem:[#allocation2 + $0x150] sm:$0xff]
    %v580 = vld [vmem:[#allocation2 + $0x158] sm:$0xff]
    %v581 = vld [vmem:[#allocation2 + $0x160] sm:$0xff]
    %v582 = vld [vmem:[#allocation2 + $0x168] sm:$0xff]
    %v583 = vld [vmem:[#allocation2 + $0x170] sm:$0xff]
    %v584 = vld [vmem:[#allocation2 + $0x178] sm:$0xff]
    %v585 = vld [vmem:[#allocation2 + $0x180] sm:$0xff]
    %v586 = vld [vmem:[#allocation2 + $0x188] sm:$0xff]
    %v587 = vld [vmem:[#allocation2 + $0x190] sm:$0xff]
    %v588 = vld [vmem:[#allocation2 + $0x198] sm:$0xff]
    %v589 = vld [vmem:[#allocation2 + $0x1a0] sm:$0xff]
    %v590 = vld [vmem:[#allocation2 + $0x1a8] sm:$0xff]
    %v591 = vld [vmem:[#allocation2 + $0x1b0] sm:$0xff]
    %v592 = vld [vmem:[#allocation2 + $0x1b8] sm:$0xff]
    %v593 = vld [vmem:[#allocation2 + $0x1c0] sm:$0xff]
    %v594 = vld [vmem:[#allocation2 + $0x1c8] sm:$0xff]
    %v595 = vld [vmem:[#allocation2 + $0x1d0] sm:$0xff]
    %v596 = vld [vmem:[#allocation2 + $0x1d8] sm:$0xff]
    %v597 = vld [vmem:[#allocation2 + $0x1e0] sm:$0xff]
    %v598 = vld [vmem:[#allocation2 + $0x1e8] sm:$0xff]
    %v599 = vld [vmem:[#allocation2 + $0x1f0] sm:$0xff]
    %v600 = vld [vmem:[#allocation2 + $0x1f8] sm:$0xff]
    %v601 = vld [vmem:[#allocation2 + $0x200] sm:$0xff]
    %v602 = vld [vmem:[#allocation2 + $0x208] sm:$0xff]
    %v603 = vld [vmem:[#allocation2 + $0x210] sm:$0xff]
    %v604 = vld [vmem:[#allocation2 + $0x218] sm:$0xff]
    %v605 = vld [vmem:[#allocation2 + $0x220] sm:$0xff]
    %v606 = vld [vmem:[#allocation2 + $0x228] sm:$0xff]
    %v607 = vld [vmem:[#allocation2 + $0x230] sm:$0xff]
    %v608 = vld [vmem:[#allocation2 + $0x238] sm:$0xff]
    %v609 = vld [vmem:[#allocation2 + $0x240] sm:$0xff]
    %v610 = vld [vmem:[#allocation2 + $0x248] sm:$0xff]
    %v611 = vld [vmem:[#allocation2 + $0x250] sm:$0xff]
    %v612 = vld [vmem:[#allocation2 + $0x258] sm:$0xff]
    %v613 = vld [vmem:[#allocation2 + $0x260] sm:$0xff]
    %v614 = vld [vmem:[#allocation2 + $0x268] sm:$0xff]
    %v615 = vld [vmem:[#allocation2 + $0x270] sm:$0xff]
    %v616 = vld [vmem:[#allocation2 + $0x278] sm:$0xff]
    %v617 = vld [vmem:[#allocation2 + $0x280] sm:$0xff]
    %v618 = vld [vmem:[#allocation2 + $0x288] sm:$0xff]
    %v619 = vld [vmem:[#allocation2 + $0x290] sm:$0xff]
    %v620 = vld [vmem:[#allocation2 + $0x298] sm:$0xff]
    %v621 = vld [vmem:[#allocation2 + $0x2a0] sm:$0xff]
    %v622 = vld [vmem:[#allocation2 + $0x2a8] sm:$0xff]
    %v623 = vld [vmem:[#allocation2 + $0x2b0] sm:$0xff]
    %v624 = vld [vmem:[#allocation2 + $0x2b8] sm:$0xff]
    %v625 = vld [vmem:[#allocation2 + $0x2c0] sm:$0xff]
    %v626 = vld [vmem:[#allocation2 + $0x2c8] sm:$0xff]
    %v627 = vld [vmem:[#allocation2 + $0x2d0] sm:$0xff]
    %v628 = vld [vmem:[#allocation2 + $0x2d8] sm:$0xff]
    %v629 = vld [vmem:[#allocation2 + $0x2e0] sm:$0xff]
    %v630 = vld [vmem:[#allocation2 + $0x2e8] sm:$0xff]
    %v631 = vld [vmem:[#allocation2 + $0x2f0] sm:$0xff]
    %v632 = vld [vmem:[#allocation2 + $0x2f8] sm:$0xff]
    %v633 = vld [vmem:[#allocation2 + $0x300] sm:$0xff]
    %v634 = vld [vmem:[#allocation2 + $0x308] sm:$0xff]
    %v635 = vld [vmem:[#allocation2 + $0x310] sm:$0xff]
    %v636 = vld [vmem:[#allocation2 + $0x318] sm:$0xff]
    %v637 = vld [vmem:[#allocation2 + $0x320] sm:$0xff]
    %v638 = vld [vmem:[#allocation2 + $0x328] sm:$0xff]
    %v639 = vld [vmem:[#allocation2 + $0x330] sm:$0xff]
    %v640 = vld [vmem:[#allocation2 + $0x338] sm:$0xff]
    %v641 = vld [vmem:[#allocation2 + $0x340] sm:$0xff]
    %v642 = vld [vmem:[#allocation2 + $0x348] sm:$0xff]
    %v643 = vld [vmem:[#allocation2 + $0x350] sm:$0xff]
    %v644 = vld [vmem:[#allocation2 + $0x358] sm:$0xff]
    %v645 = vld [vmem:[#allocation2 + $0x360] sm:$0xff]
    %v646 = vld [vmem:[#allocation2 + $0x368] sm:$0xff]
    %v647 = vld [vmem:[#allocation2 + $0x370] sm:$0xff]
    %v648 = vld [vmem:[#allocation2 + $0x378] sm:$0xff]
    %v649 = vld [vmem:[#allocation2 + $0x380] sm:$0xff]
    %v650 = vld [vmem:[#allocation2 + $0x388] sm:$0xff]
    %v651 = vld [vmem:[#allocation2 + $0x390] sm:$0xff]
    %v652 = vld [vmem:[#allocation2 + $0x398] sm:$0xff]
    %v653 = vld [vmem:[#allocation2 + $0x3a0] sm:$0xff]
    %v654 = vld [vmem:[#allocation2 + $0x3a8] sm:$0xff]
    %v655 = vld [vmem:[#allocation2 + $0x3b0] sm:$0xff]
    %v656 = vld [vmem:[#allocation2 + $0x3b8] sm:$0xff]
    %v657 = vld [vmem:[#allocation2 + $0x3c0] sm:$0xff]
    %v658 = vld [vmem:[#allocation2 + $0x3c8] sm:$0xff]
    %v659 = vld [vmem:[#allocation2 + $0x3d0] sm:$0xff]
    %v660 = vld [vmem:[#allocation2 + $0x3d8] sm:$0xff]
    %v661 = vld [vmem:[#allocation2 + $0x3e0] sm:$0xff]
    %v662 = vld [vmem:[#allocation2 + $0x3e8] sm:$0xff]
    %v663 = vld [vmem:[#allocation2 + $0x3f0] sm:$0xff]
    %v664 = vld [vmem:[#allocation2 + $0x3f8] sm:$0xff]
    %v665 = vld [vmem:[#allocation2 + $0x400] sm:$0xff]
    %v666 = vld [vmem:[#allocation2 + $0x408] sm:$0xff]
    %v667 = vld [vmem:[#allocation2 + $0x410] sm:$0xff]
    %v668 = vld [vmem:[#allocation2 + $0x418] sm:$0xff]
    %v669 = vld [vmem:[#allocation2 + $0x420] sm:$0xff]
    %v670 = vld [vmem:[#allocation2 + $0x428] sm:$0xff]
    %v671 = vld [vmem:[#allocation2 + $0x430] sm:$0xff]
    %v672 = vld [vmem:[#allocation2 + $0x438] sm:$0xff]
    %v673 = vld [vmem:[#allocation2 + $0x440] sm:$0xff]
    %v674 = vld [vmem:[#allocation2 + $0x448] sm:$0xff]
    %v675 = vld [vmem:[#allocation2 + $0x450] sm:$0xff]
    %v676 = vld [vmem:[#allocation2 + $0x458] sm:$0xff]
    %v677 = vld [vmem:[#allocation2 + $0x460] sm:$0xff]
    %v678 = vld [vmem:[#allocation2 + $0x468] sm:$0xff]
    %v679 = vld [vmem:[#allocation2 + $0x470] sm:$0xff]
    %v680 = vld [vmem:[#allocation2 + $0x478] sm:$0xff]
    %v681 = vld [vmem:[#allocation2 + $0x480] sm:$0xff]
    %v682 = vld [vmem:[#allocation2 + $0x488] sm:$0xff]
    %v683 = vld [vmem:[#allocation2 + $0x490] sm:$0xff]
    %v684 = vld [vmem:[#allocation2 + $0x498] sm:$0xff]
    %v685 = vld [vmem:[#allocation2 + $0x4a0] sm:$0xff]
    %v686 = vld [vmem:[#allocation2 + $0x4a8] sm:$0xff]
    %v687 = vld [vmem:[#allocation2 + $0x4b0] sm:$0xff]
    %v688 = vld [vmem:[#allocation2 + $0x4b8] sm:$0xff]
    %v689 = vld [vmem:[#allocation2 + $0x4c0] sm:$0xff]
    %v690 = vld [vmem:[#allocation2 + $0x4c8] sm:$0xff]
    %v691 = vld [vmem:[#allocation2 + $0x4d0] sm:$0xff]
    %v692 = vld [vmem:[#allocation2 + $0x4d8] sm:$0xff]
    %v693 = vld [vmem:[#allocation2 + $0x4e0] sm:$0xff]
    %v694 = vld [vmem:[#allocation2 + $0x4e8] sm:$0xff]
    %v695 = vld [vmem:[#allocation2 + $0x4f0] sm:$0xff]
    %v696 = vld [vmem:[#allocation2 + $0x4f8] sm:$0xff]
    %v697 = vld [vmem:[#allocation2 + $0x500] sm:$0xff]
    %v698 = vld [vmem:[#allocation2 + $0x508] sm:$0xff]
    %v699 = vld [vmem:[#allocation2 + $0x510] sm:$0xff]
    %v700 = vld [vmem:[#allocation2 + $0x518] sm:$0xff]
    %v701 = vld [vmem:[#allocation2 + $0x520] sm:$0xff]
    %v702 = vld [vmem:[#allocation2 + $0x528] sm:$0xff]
    %v703 = vld [vmem:[#allocation2 + $0x530] sm:$0xff]
    %v704 = vld [vmem:[#allocation2 + $0x538] sm:$0xff]
    %v705 = vld [vmem:[#allocation2 + $0x540] sm:$0xff]
    %v706 = vld [vmem:[#allocation2 + $0x548] sm:$0xff]
    %v707 = vld [vmem:[#allocation2 + $0x550] sm:$0xff]
    %v708 = vld [vmem:[#allocation2 + $0x558] sm:$0xff]
    %v709 = vld [vmem:[#allocation2 + $0x560] sm:$0xff]
    %v710 = vld [vmem:[#allocation2 + $0x568] sm:$0xff]
    %v711 = vld [vmem:[#allocation2 + $0x570] sm:$0xff]
    %v712 = vld [vmem:[#allocation2 + $0x578] sm:$0xff]
    %v713 = vld [vmem:[#allocation2 + $0x580] sm:$0xff]
    %v714 = vld [vmem:[#allocation2 + $0x588] sm:$0xff]
    %v715 = vld [vmem:[#allocation2 + $0x590] sm:$0xff]
    %v716 = vld [vmem:[#allocation2 + $0x598] sm:$0xff]
    %v717 = vld [vmem:[#allocation2 + $0x5a0] sm:$0xff]
    %v718 = vld [vmem:[#allocation2 + $0x5a8] sm:$0xff]
    %v719 = vld [vmem:[#allocation2 + $0x5b0] sm:$0xff]
    %v720 = vld [vmem:[#allocation2 + $0x5b8] sm:$0xff]
    %v721 = vld [vmem:[#allocation2 + $0x5c0] sm:$0xff]
    %v722 = vld [vmem:[#allocation2 + $0x5c8] sm:$0xff]
    %v723 = vld [vmem:[#allocation2 + $0x5d0] sm:$0xff]
    %v724 = vld [vmem:[#allocation2 + $0x5d8] sm:$0xff]
    %v725 = vld [vmem:[#allocation2 + $0x5e0] sm:$0xff]
    %v726 = vld [vmem:[#allocation2 + $0x5e8] sm:$0xff]
    %v727 = vld [vmem:[#allocation2 + $0x5f0] sm:$0xff]
    %v728 = vld [vmem:[#allocation2 + $0x5f8] sm:$0xff]
    %v729 = vld [vmem:[#allocation2 + $0x600] sm:$0xff]
    %v730 = vld [vmem:[#allocation2 + $0x608] sm:$0xff]
    %v731 = vld [vmem:[#allocation2 + $0x610] sm:$0xff]
    %v732 = vld [vmem:[#allocation2 + $0x618] sm:$0xff]
    %v733 = vld [vmem:[#allocation2 + $0x620] sm:$0xff]
    %v734 = vld [vmem:[#allocation2 + $0x628] sm:$0xff]
    %v735 = vld [vmem:[#allocation2 + $0x630] sm:$0xff]
    %v736 = vld [vmem:[#allocation2 + $0x638] sm:$0xff]
    %v737 = vld [vmem:[#allocation2 + $0x640] sm:$0xff]
    %v738 = vld [vmem:[#allocation2 + $0x648] sm:$0xff]
    %v739 = vld [vmem:[#allocation2 + $0x650] sm:$0xff]
    %v740 = vld [vmem:[#allocation2 + $0x658] sm:$0xff]
    %v741 = vld [vmem:[#allocation2 + $0x660] sm:$0xff]
    %v742 = vld [vmem:[#allocation2 + $0x668] sm:$0xff]
    %v743 = vld [vmem:[#allocation2 + $0x670] sm:$0xff]
    %v744 = vld [vmem:[#allocation2 + $0x678] sm:$0xff]
    %v745 = vld [vmem:[#allocation2 + $0x680] sm:$0xff]
    %v746 = vld [vmem:[#allocation2 + $0x688] sm:$0xff]
    %v747 = vld [vmem:[#allocation2 + $0x690] sm:$0xff]
    %v748 = vld [vmem:[#allocation2 + $0x698] sm:$0xff]
    %v749 = vld [vmem:[#allocation2 + $0x6a0] sm:$0xff]
    %v750 = vld [vmem:[#allocation2 + $0x6a8] sm:$0xff]
    %v751 = vld [vmem:[#allocation2 + $0x6b0] sm:$0xff]
    %v752 = vld [vmem:[#allocation2 + $0x6b8] sm:$0xff]
    %v753 = vld [vmem:[#allocation2 + $0x6c0] sm:$0xff]
    %v754 = vld [vmem:[#allocation2 + $0x6c8] sm:$0xff]
    %v755 = vld [vmem:[#allocation2 + $0x6d0] sm:$0xff]
    %v756 = vld [vmem:[#allocation2 + $0x6d8] sm:$0xff]
    %v757 = vld [vmem:[#allocation2 + $0x6e0] sm:$0xff]
    %v758 = vld [vmem:[#allocation2 + $0x6e8] sm:$0xff]
    %v759 = vld [vmem:[#allocation2 + $0x6f0] sm:$0xff]
    %v760 = vld [vmem:[#allocation2 + $0x6f8] sm:$0xff]
    %v761 = vld [vmem:[#allocation2 + $0x700] sm:$0xff]
    %v762 = vld [vmem:[#allocation2 + $0x708] sm:$0xff]
    %v763 = vld [vmem:[#allocation2 + $0x710] sm:$0xff]
    %v764 = vld [vmem:[#allocation2 + $0x718] sm:$0xff]
    %v765 = vld [vmem:[#allocation2 + $0x720] sm:$0xff]
    %v766 = vld [vmem:[#allocation2 + $0x728] sm:$0xff]
    %v767 = vld [vmem:[#allocation2 + $0x730] sm:$0xff]
    %v768 = vld [vmem:[#allocation2 + $0x738] sm:$0xff]
    %v769 = vld [vmem:[#allocation2 + $0x740] sm:$0xff]
    %v770 = vld [vmem:[#allocation2 + $0x748] sm:$0xff]
    %v771 = vld [vmem:[#allocation2 + $0x750] sm:$0xff]
    %v772 = vld [vmem:[#allocation2 + $0x758] sm:$0xff]
    %v773 = vld [vmem:[#allocation2 + $0x760] sm:$0xff]
    %v774 = vld [vmem:[#allocation2 + $0x768] sm:$0xff]
    %v775 = vld [vmem:[#allocation2 + $0x770] sm:$0xff]
    %v776 = vld [vmem:[#allocation2 + $0x778] sm:$0xff]
    %v777 = vld [vmem:[#allocation2 + $0x780] sm:$0xff]
    %v778 = vld [vmem:[#allocation2 + $0x788] sm:$0xff]
    %v779 = vld [vmem:[#allocation2 + $0x790] sm:$0xff]
    %v780 = vld [vmem:[#allocation2 + $0x798] sm:$0xff]
    %v781 = vld [vmem:[#allocation2 + $0x7a0] sm:$0xff]
    %v782 = vld [vmem:[#allocation2 + $0x7a8] sm:$0xff]
    %v783 = vld [vmem:[#allocation2 + $0x7b0] sm:$0xff]
    %v784 = vld [vmem:[#allocation2 + $0x7b8] sm:$0xff]
    %v785 = vld [vmem:[#allocation2 + $0x7c0] sm:$0xff]
    %v786 = vld [vmem:[#allocation2 + $0x7c8] sm:$0xff]
    %v787 = vld [vmem:[#allocation2 + $0x7d0] sm:$0xff]
    %v788 = vld [vmem:[#allocation2 + $0x7d8] sm:$0xff]
    %v789 = vld [vmem:[#allocation2 + $0x7e0] sm:$0xff]
    %v790 = vld [vmem:[#allocation2 + $0x7e8] sm:$0xff]
    %v791 = vld [vmem:[#allocation2 + $0x7f0] sm:$0xff]
    %v792 = vld [vmem:[#allocation2 + $0x7f8] sm:$0xff]
    %v793 = vld [vmem:[#allocation2 + $0x800] sm:$0xff]
    %v794 = vld [vmem:[#allocation2 + $0x808] sm:$0xff]
    %v795 = vld [vmem:[#allocation2 + $0x810] sm:$0xff]
    %v796 = vld [vmem:[#allocation2 + $0x818] sm:$0xff]
    %v797 = vld [vmem:[#allocation2 + $0x820] sm:$0xff]
    %v798 = vld [vmem:[#allocation2 + $0x828] sm:$0xff]
    %v799 = vld [vmem:[#allocation2 + $0x830] sm:$0xff]
    %v800 = vld [vmem:[#allocation2 + $0x838] sm:$0xff]
    %v801 = vld [vmem:[#allocation2 + $0x840] sm:$0xff]
    %v802 = vld [vmem:[#allocation2 + $0x848] sm:$0xff]
    %v803 = vld [vmem:[#allocation2 + $0x850] sm:$0xff]
    %v804 = vld [vmem:[#allocation2 + $0x858] sm:$0xff]
    %v805 = vld [vmem:[#allocation2 + $0x860] sm:$0xff]
    %v806 = vld [vmem:[#allocation2 + $0x868] sm:$0xff]
    %v807 = vld [vmem:[#allocation2 + $0x870] sm:$0xff]
    %v808 = vld [vmem:[#allocation2 + $0x878] sm:$0xff]
    %v809 = vld [vmem:[#allocation2 + $0x880] sm:$0xff]
    %v810 = vld [vmem:[#allocation2 + $0x888] sm:$0xff]
    %v811 = vld [vmem:[#allocation2 + $0x890] sm:$0xff]
    %v812 = vld [vmem:[#allocation2 + $0x898] sm:$0xff]
    %v813 = vld [vmem:[#allocation2 + $0x8a0] sm:$0xff]
    %v814 = vld [vmem:[#allocation2 + $0x8a8] sm:$0xff]
    %v815 = vld [vmem:[#allocation2 + $0x8b0] sm:$0xff]
    %v816 = vld [vmem:[#allocation2 + $0x8b8] sm:$0xff]
    %v817 = vld [vmem:[#allocation2 + $0x8c0] sm:$0xff]
    %v818 = vld [vmem:[#allocation2 + $0x8c8] sm:$0xff]
    %v819 = vld [vmem:[#allocation2 + $0x8d0] sm:$0xff]
    %v820 = vld [vmem:[#allocation2 + $0x8d8] sm:$0xff]
    %v821 = vld [vmem:[#allocation2 + $0x8e0] sm:$0xff]
    %v822 = vld [vmem:[#allocation2 + $0x8e8] sm:$0xff]
    %v823 = vld [vmem:[#allocation2 + $0x8f0] sm:$0xff]
    %v824 = vld [vmem:[#allocation2 + $0x8f8] sm:$0xff]
    %v825 = vld [vmem:[#allocation2 + $0x900] sm:$0xff]
    %v826 = vld [vmem:[#allocation2 + $0x908] sm:$0xff]
    %v827 = vld [vmem:[#allocation2 + $0x910] sm:$0xff]
    %v828 = vld [vmem:[#allocation2 + $0x918] sm:$0xff]
    %v829 = vld [vmem:[#allocation2 + $0x920] sm:$0xff]
    %v830 = vld [vmem:[#allocation2 + $0x928] sm:$0xff]
    %v831 = vld [vmem:[#allocation2 + $0x930] sm:$0xff]
    %v832 = vld [vmem:[#allocation2 + $0x938] sm:$0xff]
    %v833 = vld [vmem:[#allocation2 + $0x940] sm:$0xff]
    %v834 = vld [vmem:[#allocation2 + $0x948] sm:$0xff]
    %v835 = vld [vmem:[#allocation2 + $0x950] sm:$0xff]
    %v836 = vld [vmem:[#allocation2 + $0x958] sm:$0xff]
    %v837 = vld [vmem:[#allocation2 + $0x960] sm:$0xff]
    %v838 = vld [vmem:[#allocation2 + $0x968] sm:$0xff]
    %v839 = vld [vmem:[#allocation2 + $0x970] sm:$0xff]
    %v840 = vld [vmem:[#allocation2 + $0x978] sm:$0xff]
    %v841 = vld [vmem:[#allocation2 + $0x980] sm:$0xff]
    %v842 = vld [vmem:[#allocation2 + $0x988] sm:$0xff]
    %v843 = vld [vmem:[#allocation2 + $0x990] sm:$0xff]
    %v844 = vld [vmem:[#allocation2 + $0x998] sm:$0xff]
    %v845 = vld [vmem:[#allocation2 + $0x9a0] sm:$0xff]
    %v846 = vld [vmem:[#allocation2 + $0x9a8] sm:$0xff]
    %v847 = vld [vmem:[#allocation2 + $0x9b0] sm:$0xff]
    %v848 = vld [vmem:[#allocation2 + $0x9b8] sm:$0xff]
    %v849 = vld [vmem:[#allocation2 + $0x9c0] sm:$0xff]
    %v850 = vld [vmem:[#allocation2 + $0x9c8] sm:$0xff]
    %v851 = vld [vmem:[#allocation2 + $0x9d0] sm:$0xff]
    %v852 = vld [vmem:[#allocation2 + $0x9d8] sm:$0xff]
    %v853 = vld [vmem:[#allocation2 + $0x9e0] sm:$0xff]
    %v854 = vld [vmem:[#allocation2 + $0x9e8] sm:$0xff]
    %v855 = vld [vmem:[#allocation2 + $0x9f0] sm:$0xff]
    %v856 = vld [vmem:[#allocation2 + $0x9f8] sm:$0xff]
    %v857 = vld [vmem:[#allocation2 + $0xa00] sm:$0xff]
    %v858 = vld [vmem:[#allocation2 + $0xa08] sm:$0xff]
    %v859 = vld [vmem:[#allocation2 + $0xa10] sm:$0xff]
    %v860 = vld [vmem:[#allocation2 + $0xa18] sm:$0xff]
    %v861 = vld [vmem:[#allocation2 + $0xa20] sm:$0xff]
    %v862 = vld [vmem:[#allocation2 + $0xa28] sm:$0xff]
    %v863 = vld [vmem:[#allocation2 + $0xa30] sm:$0xff]
    %v864 = vld [vmem:[#allocation2 + $0xa38] sm:$0xff]
    %v865 = vld [vmem:[#allocation2 + $0xa40] sm:$0xff]
    %v866 = vld [vmem:[#allocation2 + $0xa48] sm:$0xff]
    %v867 = vld [vmem:[#allocation2 + $0xa50] sm:$0xff]
    %v868 = vld [vmem:[#allocation2 + $0xa58] sm:$0xff]
    %v869 = vld [vmem:[#allocation2 + $0xa60] sm:$0xff]
    %v870 = vld [vmem:[#allocation2 + $0xa68] sm:$0xff]
    %v871 = vld [vmem:[#allocation2 + $0xa70] sm:$0xff]
    %v872 = vld [vmem:[#allocation2 + $0xa78] sm:$0xff]
    %v873 = vld [vmem:[#allocation2 + $0xa80] sm:$0xff]
    %v874 = vld [vmem:[#allocation2 + $0xa88] sm:$0xff]
    %v875 = vld [vmem:[#allocation2 + $0xa90] sm:$0xff]
    %v876 = vld [vmem:[#allocation2 + $0xa98] sm:$0xff]
    %v877 = vld [vmem:[#allocation2 + $0xaa0] sm:$0xff]
    %v878 = vld [vmem:[#allocation2 + $0xaa8] sm:$0xff]
    %v879 = vld [vmem:[#allocation2 + $0xab0] sm:$0xff]
    %v880 = vld [vmem:[#allocation2 + $0xab8] sm:$0xff]
    %v881 = vld [vmem:[#allocation2 + $0xac0] sm:$0xff]
    %v882 = vld [vmem:[#allocation2 + $0xac8] sm:$0xff]
    %v883 = vld [vmem:[#allocation2 + $0xad0] sm:$0xff]
    %v884 = vld [vmem:[#allocation2 + $0xad8] sm:$0xff]
    %v885 = vld [vmem:[#allocation2 + $0xae0] sm:$0xff]
    %v886 = vld [vmem:[#allocation2 + $0xae8] sm:$0xff]
    %v887 = vld [vmem:[#allocation2 + $0xaf0] sm:$0xff]
    %v888 = vld [vmem:[#allocation2 + $0xaf8] sm:$0xff]
    %v889 = vld [vmem:[#allocation2 + $0xb00] sm:$0xff]
    %v890 = vld [vmem:[#allocation2 + $0xb08] sm:$0xff]
    %v891 = vld [vmem:[#allocation2 + $0xb10] sm:$0xff]
    %v892 = vld [vmem:[#allocation2 + $0xb18] sm:$0xff]
    %v893 = vld [vmem:[#allocation2 + $0xb20] sm:$0xff]
    %v894 = vld [vmem:[#allocation2 + $0xb28] sm:$0xff]
    %v895 = vld [vmem:[#allocation2 + $0xb30] sm:$0xff]
    %v896 = vld [vmem:[#allocation2 + $0xb38] sm:$0xff]
    %v897 = vld [vmem:[#allocation2 + $0xb40] sm:$0xff]
    %v898 = vld [vmem:[#allocation2 + $0xb48] sm:$0xff]
    %v899 = vld [vmem:[#allocation2 + $0xb50] sm:$0xff]
    %v900 = vld [vmem:[#allocation2 + $0xb58] sm:$0xff]
    %v901 = vld [vmem:[#allocation2 + $0xb60] sm:$0xff]
    %v902 = vld [vmem:[#allocation2 + $0xb68] sm:$0xff]
    %v903 = vld [vmem:[#allocation2 + $0xb70] sm:$0xff]
    %v904 = vld [vmem:[#allocation2 + $0xb78] sm:$0xff]
    %v905 = vld [vmem:[#allocation2 + $0xb80] sm:$0xff]
    %v906 = vld [vmem:[#allocation2 + $0xb88] sm:$0xff]
    %v907 = vld [vmem:[#allocation2 + $0xb90] sm:$0xff]
    %v908 = vld [vmem:[#allocation2 + $0xb98] sm:$0xff]
    %v909 = vld [vmem:[#allocation2 + $0xba0] sm:$0xff]
    %v910 = vld [vmem:[#allocation2 + $0xba8] sm:$0xff]
    %v911 = vld [vmem:[#allocation2 + $0xbb0] sm:$0xff]
    %v912 = vld [vmem:[#allocation2 + $0xbb8] sm:$0xff]
    %v913 = vld [vmem:[#allocation2 + $0xbc0] sm:$0xff]
    %v914 = vld [vmem:[#allocation2 + $0xbc8] sm:$0xff]
    %v915 = vld [vmem:[#allocation2 + $0xbd0] sm:$0xff]
    %v916 = vld [vmem:[#allocation2 + $0xbd8] sm:$0xff]
    %v917 = vld [vmem:[#allocation2 + $0xbe0] sm:$0xff]
    %v918 = vld [vmem:[#allocation2 + $0xbe8] sm:$0xff]
    %v919 = vld [vmem:[#allocation2 + $0xbf0] sm:$0xff]
    %v920 = vld [vmem:[#allocation2 + $0xbf8] sm:$0xff]
    %v921 = vld [vmem:[#allocation4] sm:$0xff]
    %v923 = vlaneseq
    %v924 = vshrl.u32 %v923, 7
    %v925 = vsub.s32 0, %v924
    %v926 = vrot.slane %v921, %v925
    %v927 = vlaneseq
    %v928 = vshrl.u32 %v927, 7
    %v929 = vsub.s32 1, %v928
    %v930 = vrot.slane %v921, %v929
    %v931 = vlaneseq
    %v932 = vshrl.u32 %v931, 7
    %v933 = vsub.s32 2, %v932
    %v934 = vrot.slane %v921, %v933
    %v935 = vlaneseq
    %v936 = vshrl.u32 %v935, 7
    %v937 = vsub.s32 3, %v936
    %v938 = vrot.slane %v921, %v937
    %v939 = vlaneseq
    %v940 = vshrl.u32 %v939, 7
    %v941 = vsub.s32 4, %v940
    %v942 = vrot.slane %v921, %v941
    %v943 = vlaneseq
    %v944 = vshrl.u32 %v943, 7
    %v945 = vsub.s32 5, %v944
    %v946 = vrot.slane %v921, %v945
    %v947 = vlaneseq
    %v948 = vshrl.u32 %v947, 7
    %v949 = vsub.s32 6, %v948
    %v950 = vrot.slane %v921, %v949
    %v951 = vlaneseq
    %v952 = vshrl.u32 %v951, 7
    %v953 = vsub.s32 7, %v952
    %v954 = vrot.slane %v921, %v953
    %v966 = vunpack.c.l.b16 %v534
    %v967 = vunpack.c.h.b16 %v534
    %v968 = vunpack.c.l.b16 %v535
    %v969 = vunpack.c.h.b16 %v535
    %v970 = vunpack.c.l.b16 %v536
    %v971 = vunpack.c.h.b16 %v536
    %v972 = vpack.c.b16 %v966, %v966
    %v973 = vpack.c.b16 %v967, %v967
    %v974 = vpack.c.b16 %v968, %v968
    %v975 = vpack.c.b16 %v969, %v969
    %v976 = vpack.c.b16 %v970, %v970
    %v977 = vpack.c.b16 %v971, %v971
    %v1368 = vunpack.c.l.b16 %v537
    %v1369 = vunpack.c.h.b16 %v537
    %v1370 = vunpack.c.l.b16 %v538
    %v1371 = vunpack.c.h.b16 %v538
    %v1372 = vunpack.c.l.b16 %v539
    %v1373 = vunpack.c.h.b16 %v539
    %v1374 = vunpack.c.l.b16 %v540
    %v1375 = vunpack.c.h.b16 %v540
    %v1376 = vunpack.c.l.b16 %v541
    %v1377 = vunpack.c.h.b16 %v541
    %v1378 = vunpack.c.l.b16 %v542
    %v1379 = vunpack.c.h.b16 %v542
    %v1380 = vunpack.c.l.b16 %v543
    %v1381 = vunpack.c.h.b16 %v543
    %v1382 = vunpack.c.l.b16 %v544
    %v1383 = vunpack.c.h.b16 %v544
    %v1384 = vunpack.c.l.b16 %v545
    %v1385 = vunpack.c.h.b16 %v545
    %v1386 = vunpack.c.l.b16 %v546
    %v1387 = vunpack.c.h.b16 %v546
    %v1388 = vunpack.c.l.b16 %v547
    %v1389 = vunpack.c.h.b16 %v547
    %v1390 = vunpack.c.l.b16 %v548
    %v1391 = vunpack.c.h.b16 %v548
    %v1392 = vunpack.c.l.b16 %v549
    %v1393 = vunpack.c.h.b16 %v549
    %v1394 = vunpack.c.l.b16 %v550
    %v1395 = vunpack.c.h.b16 %v550
    %v1396 = vunpack.c.l.b16 %v551
    %v1397 = vunpack.c.h.b16 %v551
    %v1398 = vunpack.c.l.b16 %v552
    %v1399 = vunpack.c.h.b16 %v552
    %v1400 = vunpack.c.l.b16 %v553
    %v1401 = vunpack.c.h.b16 %v553
    %v1402 = vunpack.c.l.b16 %v554
    %v1403 = vunpack.c.h.b16 %v554
    %v1404 = vunpack.c.l.b16 %v555
    %v1405 = vunpack.c.h.b16 %v555
    %v1406 = vunpack.c.l.b16 %v556
    %v1407 = vunpack.c.h.b16 %v556
    %v1408 = vunpack.c.l.b16 %v557
    %v1409 = vunpack.c.h.b16 %v557
    %v1410 = vunpack.c.l.b16 %v558
    %v1411 = vunpack.c.h.b16 %v558
    %v1412 = vunpack.c.l.b16 %v559
    %v1413 = vunpack.c.h.b16 %v559
    %v1414 = vunpack.c.l.b16 %v560
    %v1415 = vunpack.c.h.b16 %v560
    %v1416 = vunpack.c.l.b16 %v561
    %v1417 = vunpack.c.h.b16 %v561
    %v1418 = vunpack.c.l.b16 %v562
    %v1419 = vunpack.c.h.b16 %v562
    %v1420 = vunpack.c.l.b16 %v563
    %v1421 = vunpack.c.h.b16 %v563
    %v1422 = vunpack.c.l.b16 %v564
    %v1423 = vunpack.c.h.b16 %v564
    %v1424 = vunpack.c.l.b16 %v565
    %v1425 = vunpack.c.h.b16 %v565
    %v1426 = vunpack.c.l.b16 %v566
    %v1427 = vunpack.c.h.b16 %v566
    %v1428 = vunpack.c.l.b16 %v567
    %v1429 = vunpack.c.h.b16 %v567
    %v1430 = vunpack.c.l.b16 %v568
    %v1431 = vunpack.c.h.b16 %v568
    %v1432 = vunpack.c.l.b16 %v569
    %v1433 = vunpack.c.h.b16 %v569
    %v1434 = vunpack.c.l.b16 %v570
    %v1435 = vunpack.c.h.b16 %v570
    %v1436 = vunpack.c.l.b16 %v571
    %v1437 = vunpack.c.h.b16 %v571
    %v1438 = vunpack.c.l.b16 %v572
    %v1439 = vunpack.c.h.b16 %v572
    %v1440 = vunpack.c.l.b16 %v573
    %v1441 = vunpack.c.h.b16 %v573
    %v1442 = vunpack.c.l.b16 %v574
    %v1443 = vunpack.c.h.b16 %v574
    %v1444 = vunpack.c.l.b16 %v575
    %v1445 = vunpack.c.h.b16 %v575
    %v1446 = vunpack.c.l.b16 %v576
    %v1447 = vunpack.c.h.b16 %v576
    %v1448 = vunpack.c.l.b16 %v577
    %v1449 = vunpack.c.h.b16 %v577
    %v1450 = vunpack.c.l.b16 %v578
    %v1451 = vunpack.c.h.b16 %v578
    %v1452 = vunpack.c.l.b16 %v579
    %v1453 = vunpack.c.h.b16 %v579
    %v1454 = vunpack.c.l.b16 %v580
    %v1455 = vunpack.c.h.b16 %v580
    %v1456 = vunpack.c.l.b16 %v581
    %v1457 = vunpack.c.h.b16 %v581
    %v1458 = vunpack.c.l.b16 %v582
    %v1459 = vunpack.c.h.b16 %v582
    %v1460 = vunpack.c.l.b16 %v583
    %v1461 = vunpack.c.h.b16 %v583
    %v1462 = vunpack.c.l.b16 %v584
    %v1463 = vunpack.c.h.b16 %v584
    %v1464 = vunpack.c.l.b16 %v585
    %v1465 = vunpack.c.h.b16 %v585
    %v1466 = vunpack.c.l.b16 %v586
    %v1467 = vunpack.c.h.b16 %v586
    %v1468 = vunpack.c.l.b16 %v587
    %v1469 = vunpack.c.h.b16 %v587
    %v1470 = vunpack.c.l.b16 %v588
    %v1471 = vunpack.c.h.b16 %v588
    %v1472 = vunpack.c.l.b16 %v589
    %v1473 = vunpack.c.h.b16 %v589
    %v1474 = vunpack.c.l.b16 %v590
    %v1475 = vunpack.c.h.b16 %v590
    %v1476 = vunpack.c.l.b16 %v591
    %v1477 = vunpack.c.h.b16 %v591
    %v1478 = vunpack.c.l.b16 %v592
    %v1479 = vunpack.c.h.b16 %v592
    %v1480 = vunpack.c.l.b16 %v593
    %v1481 = vunpack.c.h.b16 %v593
    %v1482 = vunpack.c.l.b16 %v594
    %v1483 = vunpack.c.h.b16 %v594
    %v1484 = vunpack.c.l.b16 %v595
    %v1485 = vunpack.c.h.b16 %v595
    %v1486 = vunpack.c.l.b16 %v596
    %v1487 = vunpack.c.h.b16 %v596
    %v1488 = vunpack.c.l.b16 %v597
    %v1489 = vunpack.c.h.b16 %v597
    %v1490 = vunpack.c.l.b16 %v598
    %v1491 = vunpack.c.h.b16 %v598
    %v1492 = vunpack.c.l.b16 %v599
    %v1493 = vunpack.c.h.b16 %v599
    %v1494 = vunpack.c.l.b16 %v600
    %v1495 = vunpack.c.h.b16 %v600
    %v1496 = vunpack.c.l.b16 %v601
    %v1497 = vunpack.c.h.b16 %v601
    %v1498 = vunpack.c.l.b16 %v602
    %v1499 = vunpack.c.h.b16 %v602
    %v1500 = vunpack.c.l.b16 %v603
    %v1501 = vunpack.c.h.b16 %v603
    %v1502 = vunpack.c.l.b16 %v604
    %v1503 = vunpack.c.h.b16 %v604
    %v1504 = vunpack.c.l.b16 %v605
    %v1505 = vunpack.c.h.b16 %v605
    %v1506 = vunpack.c.l.b16 %v606
    %v1507 = vunpack.c.h.b16 %v606
    %v1508 = vunpack.c.l.b16 %v607
    %v1509 = vunpack.c.h.b16 %v607
    %v1510 = vunpack.c.l.b16 %v608
    %v1511 = vunpack.c.h.b16 %v608
    %v1512 = vunpack.c.l.b16 %v609
    %v1513 = vunpack.c.h.b16 %v609
    %v1514 = vunpack.c.l.b16 %v610
    %v1515 = vunpack.c.h.b16 %v610
    %v1516 = vunpack.c.l.b16 %v611
    %v1517 = vunpack.c.h.b16 %v611
    %v1518 = vunpack.c.l.b16 %v612
    %v1519 = vunpack.c.h.b16 %v612
    %v1520 = vunpack.c.l.b16 %v613
    %v1521 = vunpack.c.h.b16 %v613
    %v1522 = vunpack.c.l.b16 %v614
    %v1523 = vunpack.c.h.b16 %v614
    %v1524 = vunpack.c.l.b16 %v615
    %v1525 = vunpack.c.h.b16 %v615
    %v1526 = vunpack.c.l.b16 %v616
    %v1527 = vunpack.c.h.b16 %v616
    %v1528 = vunpack.c.l.b16 %v617
    %v1529 = vunpack.c.h.b16 %v617
    %v1530 = vunpack.c.l.b16 %v618
    %v1531 = vunpack.c.h.b16 %v618
    %v1532 = vunpack.c.l.b16 %v619
    %v1533 = vunpack.c.h.b16 %v619
    %v1534 = vunpack.c.l.b16 %v620
    %v1535 = vunpack.c.h.b16 %v620
    %v1536 = vunpack.c.l.b16 %v621
    %v1537 = vunpack.c.h.b16 %v621
    %v1538 = vunpack.c.l.b16 %v622
    %v1539 = vunpack.c.h.b16 %v622
    %v1540 = vunpack.c.l.b16 %v623
    %v1541 = vunpack.c.h.b16 %v623
    %v1542 = vunpack.c.l.b16 %v624
    %v1543 = vunpack.c.h.b16 %v624
    %v1544 = vunpack.c.l.b16 %v625
    %v1545 = vunpack.c.h.b16 %v625
    %v1546 = vunpack.c.l.b16 %v626
    %v1547 = vunpack.c.h.b16 %v626
    %v1548 = vunpack.c.l.b16 %v627
    %v1549 = vunpack.c.h.b16 %v627
    %v1550 = vunpack.c.l.b16 %v628
    %v1551 = vunpack.c.h.b16 %v628
    %v1552 = vunpack.c.l.b16 %v629
    %v1553 = vunpack.c.h.b16 %v629
    %v1554 = vunpack.c.l.b16 %v630
    %v1555 = vunpack.c.h.b16 %v630
    %v1556 = vunpack.c.l.b16 %v631
    %v1557 = vunpack.c.h.b16 %v631
    %v1558 = vunpack.c.l.b16 %v632
    %v1559 = vunpack.c.h.b16 %v632
    %v1560 = vunpack.c.l.b16 %v633
    %v1561 = vunpack.c.h.b16 %v633
    %v1562 = vunpack.c.l.b16 %v634
    %v1563 = vunpack.c.h.b16 %v634
    %v1564 = vunpack.c.l.b16 %v635
    %v1565 = vunpack.c.h.b16 %v635
    %v1566 = vunpack.c.l.b16 %v636
    %v1567 = vunpack.c.h.b16 %v636
    %v1568 = vunpack.c.l.b16 %v637
    %v1569 = vunpack.c.h.b16 %v637
    %v1570 = vunpack.c.l.b16 %v638
    %v1571 = vunpack.c.h.b16 %v638
    %v1572 = vunpack.c.l.b16 %v639
    %v1573 = vunpack.c.h.b16 %v639
    %v1574 = vunpack.c.l.b16 %v640
    %v1575 = vunpack.c.h.b16 %v640
    %v1576 = vunpack.c.l.b16 %v641
    %v1577 = vunpack.c.h.b16 %v641
    %v1578 = vunpack.c.l.b16 %v642
    %v1579 = vunpack.c.h.b16 %v642
    %v1580 = vunpack.c.l.b16 %v643
    %v1581 = vunpack.c.h.b16 %v643
    %v1582 = vunpack.c.l.b16 %v644
    %v1583 = vunpack.c.h.b16 %v644
    %v1584 = vunpack.c.l.b16 %v645
    %v1585 = vunpack.c.h.b16 %v645
    %v1586 = vunpack.c.l.b16 %v646
    %v1587 = vunpack.c.h.b16 %v646
    %v1588 = vunpack.c.l.b16 %v647
    %v1589 = vunpack.c.h.b16 %v647
    %v1590 = vunpack.c.l.b16 %v648
    %v1591 = vunpack.c.h.b16 %v648
    %v1592 = vunpack.c.l.b16 %v649
    %v1593 = vunpack.c.h.b16 %v649
    %v1594 = vunpack.c.l.b16 %v650
    %v1595 = vunpack.c.h.b16 %v650
    %v1596 = vunpack.c.l.b16 %v651
    %v1597 = vunpack.c.h.b16 %v651
    %v1598 = vunpack.c.l.b16 %v652
    %v1599 = vunpack.c.h.b16 %v652
    %v1600 = vunpack.c.l.b16 %v653
    %v1601 = vunpack.c.h.b16 %v653
    %v1602 = vunpack.c.l.b16 %v654
    %v1603 = vunpack.c.h.b16 %v654
    %v1604 = vunpack.c.l.b16 %v655
    %v1605 = vunpack.c.h.b16 %v655
    %v1606 = vunpack.c.l.b16 %v656
    %v1607 = vunpack.c.h.b16 %v656
    %v1608 = vunpack.c.l.b16 %v657
    %v1609 = vunpack.c.h.b16 %v657
    %v1610 = vunpack.c.l.b16 %v658
    %v1611 = vunpack.c.h.b16 %v658
    %v1612 = vunpack.c.l.b16 %v659
    %v1613 = vunpack.c.h.b16 %v659
    %v1614 = vunpack.c.l.b16 %v660
    %v1615 = vunpack.c.h.b16 %v660
    %v1616 = vunpack.c.l.b16 %v661
    %v1617 = vunpack.c.h.b16 %v661
    %v1618 = vunpack.c.l.b16 %v662
    %v1619 = vunpack.c.h.b16 %v662
    %v1620 = vunpack.c.l.b16 %v663
    %v1621 = vunpack.c.h.b16 %v663
    %v1622 = vunpack.c.l.b16 %v664
    %v1623 = vunpack.c.h.b16 %v664
    %v1624 = vunpack.c.l.b16 %v665
    %v1625 = vunpack.c.h.b16 %v665
    %v1626 = vunpack.c.l.b16 %v666
    %v1627 = vunpack.c.h.b16 %v666
    %v1628 = vunpack.c.l.b16 %v667
    %v1629 = vunpack.c.h.b16 %v667
    %v1630 = vunpack.c.l.b16 %v668
    %v1631 = vunpack.c.h.b16 %v668
    %v1632 = vunpack.c.l.b16 %v669
    %v1633 = vunpack.c.h.b16 %v669
    %v1634 = vunpack.c.l.b16 %v670
    %v1635 = vunpack.c.h.b16 %v670
    %v1636 = vunpack.c.l.b16 %v671
    %v1637 = vunpack.c.h.b16 %v671
    %v1638 = vunpack.c.l.b16 %v672
    %v1639 = vunpack.c.h.b16 %v672
    %v1640 = vunpack.c.l.b16 %v673
    %v1641 = vunpack.c.h.b16 %v673
    %v1642 = vunpack.c.l.b16 %v674
    %v1643 = vunpack.c.h.b16 %v674
    %v1644 = vunpack.c.l.b16 %v675
    %v1645 = vunpack.c.h.b16 %v675
    %v1646 = vunpack.c.l.b16 %v676
    %v1647 = vunpack.c.h.b16 %v676
    %v1648 = vunpack.c.l.b16 %v677
    %v1649 = vunpack.c.h.b16 %v677
    %v1650 = vunpack.c.l.b16 %v678
    %v1651 = vunpack.c.h.b16 %v678
    %v1652 = vunpack.c.l.b16 %v679
    %v1653 = vunpack.c.h.b16 %v679
    %v1654 = vunpack.c.l.b16 %v680
    %v1655 = vunpack.c.h.b16 %v680
    %v1656 = vunpack.c.l.b16 %v681
    %v1657 = vunpack.c.h.b16 %v681
    %v1658 = vunpack.c.l.b16 %v682
    %v1659 = vunpack.c.h.b16 %v682
    %v1660 = vunpack.c.l.b16 %v683
    %v1661 = vunpack.c.h.b16 %v683
    %v1662 = vunpack.c.l.b16 %v684
    %v1663 = vunpack.c.h.b16 %v684
    %v1664 = vunpack.c.l.b16 %v685
    %v1665 = vunpack.c.h.b16 %v685
    %v1666 = vunpack.c.l.b16 %v686
    %v1667 = vunpack.c.h.b16 %v686
    %v1668 = vunpack.c.l.b16 %v687
    %v1669 = vunpack.c.h.b16 %v687
    %v1670 = vunpack.c.l.b16 %v688
    %v1671 = vunpack.c.h.b16 %v688
    %v1672 = vunpack.c.l.b16 %v689
    %v1673 = vunpack.c.h.b16 %v689
    %v1674 = vunpack.c.l.b16 %v690
    %v1675 = vunpack.c.h.b16 %v690
    %v1676 = vunpack.c.l.b16 %v691
    %v1677 = vunpack.c.h.b16 %v691
    %v1678 = vunpack.c.l.b16 %v692
    %v1679 = vunpack.c.h.b16 %v692
    %v1680 = vunpack.c.l.b16 %v693
    %v1681 = vunpack.c.h.b16 %v693
    %v1682 = vunpack.c.l.b16 %v694
    %v1683 = vunpack.c.h.b16 %v694
    %v1684 = vunpack.c.l.b16 %v695
    %v1685 = vunpack.c.h.b16 %v695
    %v1686 = vunpack.c.l.b16 %v696
    %v1687 = vunpack.c.h.b16 %v696
    %v1688 = vunpack.c.l.b16 %v697
    %v1689 = vunpack.c.h.b16 %v697
    %v1690 = vunpack.c.l.b16 %v698
    %v1691 = vunpack.c.h.b16 %v698
    %v1692 = vunpack.c.l.b16 %v699
    %v1693 = vunpack.c.h.b16 %v699
    %v1694 = vunpack.c.l.b16 %v700
    %v1695 = vunpack.c.h.b16 %v700
    %v1696 = vunpack.c.l.b16 %v701
    %v1697 = vunpack.c.h.b16 %v701
    %v1698 = vunpack.c.l.b16 %v702
    %v1699 = vunpack.c.h.b16 %v702
    %v1700 = vunpack.c.l.b16 %v703
    %v1701 = vunpack.c.h.b16 %v703
    %v1702 = vunpack.c.l.b16 %v704
    %v1703 = vunpack.c.h.b16 %v704
    %v1704 = vunpack.c.l.b16 %v705
    %v1705 = vunpack.c.h.b16 %v705
    %v1706 = vunpack.c.l.b16 %v706
    %v1707 = vunpack.c.h.b16 %v706
    %v1708 = vunpack.c.l.b16 %v707
    %v1709 = vunpack.c.h.b16 %v707
    %v1710 = vunpack.c.l.b16 %v708
    %v1711 = vunpack.c.h.b16 %v708
    %v1712 = vunpack.c.l.b16 %v709
    %v1713 = vunpack.c.h.b16 %v709
    %v1714 = vunpack.c.l.b16 %v710
    %v1715 = vunpack.c.h.b16 %v710
    %v1716 = vunpack.c.l.b16 %v711
    %v1717 = vunpack.c.h.b16 %v711
    %v1718 = vunpack.c.l.b16 %v712
    %v1719 = vunpack.c.h.b16 %v712
    %v1720 = vunpack.c.l.b16 %v713
    %v1721 = vunpack.c.h.b16 %v713
    %v1722 = vunpack.c.l.b16 %v714
    %v1723 = vunpack.c.h.b16 %v714
    %v1724 = vunpack.c.l.b16 %v715
    %v1725 = vunpack.c.h.b16 %v715
    %v1726 = vunpack.c.l.b16 %v716
    %v1727 = vunpack.c.h.b16 %v716
    %v1728 = vunpack.c.l.b16 %v717
    %v1729 = vunpack.c.h.b16 %v717
    %v1730 = vunpack.c.l.b16 %v718
    %v1731 = vunpack.c.h.b16 %v718
    %v1732 = vunpack.c.l.b16 %v719
    %v1733 = vunpack.c.h.b16 %v719
    %v1734 = vunpack.c.l.b16 %v720
    %v1735 = vunpack.c.h.b16 %v720
    %v1736 = vunpack.c.l.b16 %v721
    %v1737 = vunpack.c.h.b16 %v721
    %v1738 = vunpack.c.l.b16 %v722
    %v1739 = vunpack.c.h.b16 %v722
    %v1740 = vunpack.c.l.b16 %v723
    %v1741 = vunpack.c.h.b16 %v723
    %v1742 = vunpack.c.l.b16 %v724
    %v1743 = vunpack.c.h.b16 %v724
    %v1744 = vunpack.c.l.b16 %v725
    %v1745 = vunpack.c.h.b16 %v725
    %v1746 = vunpack.c.l.b16 %v726
    %v1747 = vunpack.c.h.b16 %v726
    %v1748 = vunpack.c.l.b16 %v727
    %v1749 = vunpack.c.h.b16 %v727
    %v1750 = vunpack.c.l.b16 %v728
    %v1751 = vunpack.c.h.b16 %v728
    %v1752 = vunpack.c.l.b16 %v729
    %v1753 = vunpack.c.h.b16 %v729
    %v1754 = vunpack.c.l.b16 %v730
    %v1755 = vunpack.c.h.b16 %v730
    %v1756 = vunpack.c.l.b16 %v731
    %v1757 = vunpack.c.h.b16 %v731
    %v1758 = vunpack.c.l.b16 %v732
    %v1759 = vunpack.c.h.b16 %v732
    %v1760 = vunpack.c.l.b16 %v733
    %v1761 = vunpack.c.h.b16 %v733
    %v1762 = vunpack.c.l.b16 %v734
    %v1763 = vunpack.c.h.b16 %v734
    %v1764 = vunpack.c.l.b16 %v735
    %v1765 = vunpack.c.h.b16 %v735
    %v1766 = vunpack.c.l.b16 %v736
    %v1767 = vunpack.c.h.b16 %v736
    %v1768 = vunpack.c.l.b16 %v737
    %v1769 = vunpack.c.h.b16 %v737
    %v1770 = vunpack.c.l.b16 %v738
    %v1771 = vunpack.c.h.b16 %v738
    %v1772 = vunpack.c.l.b16 %v739
    %v1773 = vunpack.c.h.b16 %v739
    %v1774 = vunpack.c.l.b16 %v740
    %v1775 = vunpack.c.h.b16 %v740
    %v1776 = vunpack.c.l.b16 %v741
    %v1777 = vunpack.c.h.b16 %v741
    %v1778 = vunpack.c.l.b16 %v742
    %v1779 = vunpack.c.h.b16 %v742
    %v1780 = vunpack.c.l.b16 %v743
    %v1781 = vunpack.c.h.b16 %v743
    %v1782 = vunpack.c.l.b16 %v744
    %v1783 = vunpack.c.h.b16 %v744
    %v1784 = vunpack.c.l.b16 %v745
    %v1785 = vunpack.c.h.b16 %v745
    %v1786 = vunpack.c.l.b16 %v746
    %v1787 = vunpack.c.h.b16 %v746
    %v1788 = vunpack.c.l.b16 %v747
    %v1789 = vunpack.c.h.b16 %v747
    %v1790 = vunpack.c.l.b16 %v748
    %v1791 = vunpack.c.h.b16 %v748
    %v1792 = vunpack.c.l.b16 %v749
    %v1793 = vunpack.c.h.b16 %v749
    %v1794 = vunpack.c.l.b16 %v750
    %v1795 = vunpack.c.h.b16 %v750
    %v1796 = vunpack.c.l.b16 %v751
    %v1797 = vunpack.c.h.b16 %v751
    %v1798 = vunpack.c.l.b16 %v752
    %v1799 = vunpack.c.h.b16 %v752
    %v1800 = vunpack.c.l.b16 %v753
    %v1801 = vunpack.c.h.b16 %v753
    %v1802 = vunpack.c.l.b16 %v754
    %v1803 = vunpack.c.h.b16 %v754
    %v1804 = vunpack.c.l.b16 %v755
    %v1805 = vunpack.c.h.b16 %v755
    %v1806 = vunpack.c.l.b16 %v756
    %v1807 = vunpack.c.h.b16 %v756
    %v1808 = vunpack.c.l.b16 %v757
    %v1809 = vunpack.c.h.b16 %v757
    %v1810 = vunpack.c.l.b16 %v758
    %v1811 = vunpack.c.h.b16 %v758
    %v1812 = vunpack.c.l.b16 %v759
    %v1813 = vunpack.c.h.b16 %v759
    %v1814 = vunpack.c.l.b16 %v760
    %v1815 = vunpack.c.h.b16 %v760
    %v1816 = vunpack.c.l.b16 %v761
    %v1817 = vunpack.c.h.b16 %v761
    %v1818 = vunpack.c.l.b16 %v762
    %v1819 = vunpack.c.h.b16 %v762
    %v1820 = vunpack.c.l.b16 %v763
    %v1821 = vunpack.c.h.b16 %v763
    %v1822 = vunpack.c.l.b16 %v764
    %v1823 = vunpack.c.h.b16 %v764
    %v1824 = vunpack.c.l.b16 %v765
    %v1825 = vunpack.c.h.b16 %v765
    %v1826 = vunpack.c.l.b16 %v766
    %v1827 = vunpack.c.h.b16 %v766
    %v1828 = vunpack.c.l.b16 %v767
    %v1829 = vunpack.c.h.b16 %v767
    %v1830 = vunpack.c.l.b16 %v768
    %v1831 = vunpack.c.h.b16 %v768
    %v1832 = vunpack.c.l.b16 %v769
    %v1833 = vunpack.c.h.b16 %v769
    %v1834 = vunpack.c.l.b16 %v770
    %v1835 = vunpack.c.h.b16 %v770
    %v1836 = vunpack.c.l.b16 %v771
    %v1837 = vunpack.c.h.b16 %v771
    %v1838 = vunpack.c.l.b16 %v772
    %v1839 = vunpack.c.h.b16 %v772
    %v1840 = vunpack.c.l.b16 %v773
    %v1841 = vunpack.c.h.b16 %v773
    %v1842 = vunpack.c.l.b16 %v774
    %v1843 = vunpack.c.h.b16 %v774
    %v1844 = vunpack.c.l.b16 %v775
    %v1845 = vunpack.c.h.b16 %v775
    %v1846 = vunpack.c.l.b16 %v776
    %v1847 = vunpack.c.h.b16 %v776
    %v1848 = vunpack.c.l.b16 %v777
    %v1849 = vunpack.c.h.b16 %v777
    %v1850 = vunpack.c.l.b16 %v778
    %v1851 = vunpack.c.h.b16 %v778
    %v1852 = vunpack.c.l.b16 %v779
    %v1853 = vunpack.c.h.b16 %v779
    %v1854 = vunpack.c.l.b16 %v780
    %v1855 = vunpack.c.h.b16 %v780
    %v1856 = vunpack.c.l.b16 %v781
    %v1857 = vunpack.c.h.b16 %v781
    %v1858 = vunpack.c.l.b16 %v782
    %v1859 = vunpack.c.h.b16 %v782
    %v1860 = vunpack.c.l.b16 %v783
    %v1861 = vunpack.c.h.b16 %v783
    %v1862 = vunpack.c.l.b16 %v784
    %v1863 = vunpack.c.h.b16 %v784
    %v1864 = vunpack.c.l.b16 %v785
    %v1865 = vunpack.c.h.b16 %v785
    %v1866 = vunpack.c.l.b16 %v786
    %v1867 = vunpack.c.h.b16 %v786
    %v1868 = vunpack.c.l.b16 %v787
    %v1869 = vunpack.c.h.b16 %v787
    %v1870 = vunpack.c.l.b16 %v788
    %v1871 = vunpack.c.h.b16 %v788
    %v1872 = vunpack.c.l.b16 %v789
    %v1873 = vunpack.c.h.b16 %v789
    %v1874 = vunpack.c.l.b16 %v790
    %v1875 = vunpack.c.h.b16 %v790
    %v1876 = vunpack.c.l.b16 %v791
    %v1877 = vunpack.c.h.b16 %v791
    %v1878 = vunpack.c.l.b16 %v792
    %v1879 = vunpack.c.h.b16 %v792
    %v1880 = vunpack.c.l.b16 %v793
    %v1881 = vunpack.c.h.b16 %v793
    %v1882 = vunpack.c.l.b16 %v794
    %v1883 = vunpack.c.h.b16 %v794
    %v1884 = vunpack.c.l.b16 %v795
    %v1885 = vunpack.c.h.b16 %v795
    %v1886 = vunpack.c.l.b16 %v796
    %v1887 = vunpack.c.h.b16 %v796
    %v1888 = vunpack.c.l.b16 %v797
    %v1889 = vunpack.c.h.b16 %v797
    %v1890 = vunpack.c.l.b16 %v798
    %v1891 = vunpack.c.h.b16 %v798
    %v1892 = vunpack.c.l.b16 %v799
    %v1893 = vunpack.c.h.b16 %v799
    %v1894 = vunpack.c.l.b16 %v800
    %v1895 = vunpack.c.h.b16 %v800
    %v1896 = vunpack.c.l.b16 %v801
    %v1897 = vunpack.c.h.b16 %v801
    %v1898 = vunpack.c.l.b16 %v802
    %v1899 = vunpack.c.h.b16 %v802
    %v1900 = vunpack.c.l.b16 %v803
    %v1901 = vunpack.c.h.b16 %v803
    %v1902 = vunpack.c.l.b16 %v804
    %v1903 = vunpack.c.h.b16 %v804
    %v1904 = vunpack.c.l.b16 %v805
    %v1905 = vunpack.c.h.b16 %v805
    %v1906 = vunpack.c.l.b16 %v806
    %v1907 = vunpack.c.h.b16 %v806
    %v1908 = vunpack.c.l.b16 %v807
    %v1909 = vunpack.c.h.b16 %v807
    %v1910 = vunpack.c.l.b16 %v808
    %v1911 = vunpack.c.h.b16 %v808
    %v1912 = vunpack.c.l.b16 %v809
    %v1913 = vunpack.c.h.b16 %v809
    %v1914 = vunpack.c.l.b16 %v810
    %v1915 = vunpack.c.h.b16 %v810
    %v1916 = vunpack.c.l.b16 %v811
    %v1917 = vunpack.c.h.b16 %v811
    %v1918 = vunpack.c.l.b16 %v812
    %v1919 = vunpack.c.h.b16 %v812
    %v1920 = vunpack.c.l.b16 %v813
    %v1921 = vunpack.c.h.b16 %v813
    %v1922 = vunpack.c.l.b16 %v814
    %v1923 = vunpack.c.h.b16 %v814
    %v1924 = vunpack.c.l.b16 %v815
    %v1925 = vunpack.c.h.b16 %v815
    %v1926 = vunpack.c.l.b16 %v816
    %v1927 = vunpack.c.h.b16 %v816
    %v1928 = vunpack.c.l.b16 %v817
    %v1929 = vunpack.c.h.b16 %v817
    %v1930 = vunpack.c.l.b16 %v818
    %v1931 = vunpack.c.h.b16 %v818
    %v1932 = vunpack.c.l.b16 %v819
    %v1933 = vunpack.c.h.b16 %v819
    %v1934 = vunpack.c.l.b16 %v820
    %v1935 = vunpack.c.h.b16 %v820
    %v1936 = vunpack.c.l.b16 %v821
    %v1937 = vunpack.c.h.b16 %v821
    %v1938 = vunpack.c.l.b16 %v822
    %v1939 = vunpack.c.h.b16 %v822
    %v1940 = vunpack.c.l.b16 %v823
    %v1941 = vunpack.c.h.b16 %v823
    %v1942 = vunpack.c.l.b16 %v824
    %v1943 = vunpack.c.h.b16 %v824
    %v1944 = vunpack.c.l.b16 %v825
    %v1945 = vunpack.c.h.b16 %v825
    %v1946 = vunpack.c.l.b16 %v826
    %v1947 = vunpack.c.h.b16 %v826
    %v1948 = vunpack.c.l.b16 %v827
    %v1949 = vunpack.c.h.b16 %v827
    %v1950 = vunpack.c.l.b16 %v828
    %v1951 = vunpack.c.h.b16 %v828
    %v1952 = vunpack.c.l.b16 %v829
    %v1953 = vunpack.c.h.b16 %v829
    %v1954 = vunpack.c.l.b16 %v830
    %v1955 = vunpack.c.h.b16 %v830
    %v1956 = vunpack.c.l.b16 %v831
    %v1957 = vunpack.c.h.b16 %v831
    %v1958 = vunpack.c.l.b16 %v832
    %v1959 = vunpack.c.h.b16 %v832
    %v1960 = vunpack.c.l.b16 %v833
    %v1961 = vunpack.c.h.b16 %v833
    %v1962 = vunpack.c.l.b16 %v834
    %v1963 = vunpack.c.h.b16 %v834
    %v1964 = vunpack.c.l.b16 %v835
    %v1965 = vunpack.c.h.b16 %v835
    %v1966 = vunpack.c.l.b16 %v836
    %v1967 = vunpack.c.h.b16 %v836
    %v1968 = vunpack.c.l.b16 %v837
    %v1969 = vunpack.c.h.b16 %v837
    %v1970 = vunpack.c.l.b16 %v838
    %v1971 = vunpack.c.h.b16 %v838
    %v1972 = vunpack.c.l.b16 %v839
    %v1973 = vunpack.c.h.b16 %v839
    %v1974 = vunpack.c.l.b16 %v840
    %v1975 = vunpack.c.h.b16 %v840
    %v1976 = vunpack.c.l.b16 %v841
    %v1977 = vunpack.c.h.b16 %v841
    %v1978 = vunpack.c.l.b16 %v842
    %v1979 = vunpack.c.h.b16 %v842
    %v1980 = vunpack.c.l.b16 %v843
    %v1981 = vunpack.c.h.b16 %v843
    %v1982 = vunpack.c.l.b16 %v844
    %v1983 = vunpack.c.h.b16 %v844
    %v1984 = vunpack.c.l.b16 %v845
    %v1985 = vunpack.c.h.b16 %v845
    %v1986 = vunpack.c.l.b16 %v846
    %v1987 = vunpack.c.h.b16 %v846
    %v1988 = vunpack.c.l.b16 %v847
    %v1989 = vunpack.c.h.b16 %v847
    %v1990 = vunpack.c.l.b16 %v848
    %v1991 = vunpack.c.h.b16 %v848
    %v1992 = vunpack.c.l.b16 %v849
    %v1993 = vunpack.c.h.b16 %v849
    %v1994 = vunpack.c.l.b16 %v850
    %v1995 = vunpack.c.h.b16 %v850
    %v1996 = vunpack.c.l.b16 %v851
    %v1997 = vunpack.c.h.b16 %v851
    %v1998 = vunpack.c.l.b16 %v852
    %v1999 = vunpack.c.h.b16 %v852
    %v2000 = vunpack.c.l.b16 %v853
    %v2001 = vunpack.c.h.b16 %v853
    %v2002 = vunpack.c.l.b16 %v854
    %v2003 = vunpack.c.h.b16 %v854
    %v2004 = vunpack.c.l.b16 %v855
    %v2005 = vunpack.c.h.b16 %v855
    %v2006 = vunpack.c.l.b16 %v856
    %v2007 = vunpack.c.h.b16 %v856
    %v2008 = vunpack.c.l.b16 %v857
    %v2009 = vunpack.c.h.b16 %v857
    %v2010 = vunpack.c.l.b16 %v858
    %v2011 = vunpack.c.h.b16 %v858
    %v2012 = vunpack.c.l.b16 %v859
    %v2013 = vunpack.c.h.b16 %v859
    %v2014 = vunpack.c.l.b16 %v860
    %v2015 = vunpack.c.h.b16 %v860
    %v2016 = vunpack.c.l.b16 %v861
    %v2017 = vunpack.c.h.b16 %v861
    %v2018 = vunpack.c.l.b16 %v862
    %v2019 = vunpack.c.h.b16 %v862
    %v2020 = vunpack.c.l.b16 %v863
    %v2021 = vunpack.c.h.b16 %v863
    %v2022 = vunpack.c.l.b16 %v864
    %v2023 = vunpack.c.h.b16 %v864
    %v2024 = vunpack.c.l.b16 %v865
    %v2025 = vunpack.c.h.b16 %v865
    %v2026 = vunpack.c.l.b16 %v866
    %v2027 = vunpack.c.h.b16 %v866
    %v2028 = vunpack.c.l.b16 %v867
    %v2029 = vunpack.c.h.b16 %v867
    %v2030 = vunpack.c.l.b16 %v868
    %v2031 = vunpack.c.h.b16 %v868
    %v2032 = vunpack.c.l.b16 %v869
    %v2033 = vunpack.c.h.b16 %v869
    %v2034 = vunpack.c.l.b16 %v870
    %v2035 = vunpack.c.h.b16 %v870
    %v2036 = vunpack.c.l.b16 %v871
    %v2037 = vunpack.c.h.b16 %v871
    %v2038 = vunpack.c.l.b16 %v872
    %v2039 = vunpack.c.h.b16 %v872
    %v2040 = vunpack.c.l.b16 %v873
    %v2041 = vunpack.c.h.b16 %v873
    %v2042 = vunpack.c.l.b16 %v874
    %v2043 = vunpack.c.h.b16 %v874
    %v2044 = vunpack.c.l.b16 %v875
    %v2045 = vunpack.c.h.b16 %v875
    %v2046 = vunpack.c.l.b16 %v876
    %v2047 = vunpack.c.h.b16 %v876
    %v2048 = vunpack.c.l.b16 %v877
    %v2049 = vunpack.c.h.b16 %v877
    %v2050 = vunpack.c.l.b16 %v878
    %v2051 = vunpack.c.h.b16 %v878
    %v2052 = vunpack.c.l.b16 %v879
    %v2053 = vunpack.c.h.b16 %v879
    %v2054 = vunpack.c.l.b16 %v880
    %v2055 = vunpack.c.h.b16 %v880
    %v2056 = vunpack.c.l.b16 %v881
    %v2057 = vunpack.c.h.b16 %v881
    %v2058 = vunpack.c.l.b16 %v882
    %v2059 = vunpack.c.h.b16 %v882
    %v2060 = vunpack.c.l.b16 %v883
    %v2061 = vunpack.c.h.b16 %v883
    %v2062 = vunpack.c.l.b16 %v884
    %v2063 = vunpack.c.h.b16 %v884
    %v2064 = vunpack.c.l.b16 %v885
    %v2065 = vunpack.c.h.b16 %v885
    %v2066 = vunpack.c.l.b16 %v886
    %v2067 = vunpack.c.h.b16 %v886
    %v2068 = vunpack.c.l.b16 %v887
    %v2069 = vunpack.c.h.b16 %v887
    %v2070 = vunpack.c.l.b16 %v888
    %v2071 = vunpack.c.h.b16 %v888
    %v2072 = vunpack.c.l.b16 %v889
    %v2073 = vunpack.c.h.b16 %v889
    %v2074 = vunpack.c.l.b16 %v890
    %v2075 = vunpack.c.h.b16 %v890
    %v2076 = vunpack.c.l.b16 %v891
    %v2077 = vunpack.c.h.b16 %v891
    %v2078 = vunpack.c.l.b16 %v892
    %v2079 = vunpack.c.h.b16 %v892
    %v2080 = vunpack.c.l.b16 %v893
    %v2081 = vunpack.c.h.b16 %v893
    %v2082 = vunpack.c.l.b16 %v894
    %v2083 = vunpack.c.h.b16 %v894
    %v2084 = vunpack.c.l.b16 %v895
    %v2085 = vunpack.c.h.b16 %v895
    %v2086 = vunpack.c.l.b16 %v896
    %v2087 = vunpack.c.h.b16 %v896
    %v2088 = vunpack.c.l.b16 %v897
    %v2089 = vunpack.c.h.b16 %v897
    %v2090 = vunpack.c.l.b16 %v898
    %v2091 = vunpack.c.h.b16 %v898
    %v2092 = vunpack.c.l.b16 %v899
    %v2093 = vunpack.c.h.b16 %v899
    %v2094 = vunpack.c.l.b16 %v900
    %v2095 = vunpack.c.h.b16 %v900
    %v2096 = vunpack.c.l.b16 %v901
    %v2097 = vunpack.c.h.b16 %v901
    %v2098 = vunpack.c.l.b16 %v902
    %v2099 = vunpack.c.h.b16 %v902
    %v2100 = vunpack.c.l.b16 %v903
    %v2101 = vunpack.c.h.b16 %v903
    %v2102 = vunpack.c.l.b16 %v904
    %v2103 = vunpack.c.h.b16 %v904
    %v2104 = vunpack.c.l.b16 %v905
    %v2105 = vunpack.c.h.b16 %v905
    %v2106 = vunpack.c.l.b16 %v906
    %v2107 = vunpack.c.h.b16 %v906
    %v2108 = vunpack.c.l.b16 %v907
    %v2109 = vunpack.c.h.b16 %v907
    %v2110 = vunpack.c.l.b16 %v908
    %v2111 = vunpack.c.h.b16 %v908
    %v2112 = vunpack.c.l.b16 %v909
    %v2113 = vunpack.c.h.b16 %v909
    %v2114 = vunpack.c.l.b16 %v910
    %v2115 = vunpack.c.h.b16 %v910
    %v2116 = vunpack.c.l.b16 %v911
    %v2117 = vunpack.c.h.b16 %v911
    %v2118 = vunpack.c.l.b16 %v912
    %v2119 = vunpack.c.h.b16 %v912
    %v2120 = vunpack.c.l.b16 %v913
    %v2121 = vunpack.c.h.b16 %v913
    %v2122 = vunpack.c.l.b16 %v914
    %v2123 = vunpack.c.h.b16 %v914
    %v2124 = vunpack.c.l.b16 %v915
    %v2125 = vunpack.c.h.b16 %v915
    %v2126 = vunpack.c.l.b16 %v916
    %v2127 = vunpack.c.h.b16 %v916
    %v2128 = vunpack.c.l.b16 %v917
    %v2129 = vunpack.c.h.b16 %v917
    %v2130 = vunpack.c.l.b16 %v918
    %v2131 = vunpack.c.h.b16 %v918
    %v2132 = vunpack.c.l.b16 %v919
    %v2133 = vunpack.c.h.b16 %v919
    %v2134 = vunpack.c.l.b16 %v920
    %v2135 = vunpack.c.h.b16 %v920
    %v2136 = vpack.c.b16 %v1376, %v1368
    %v2137 = vpack.c.b16 %v1377, %v1369
    %v2138 = vpack.c.b16 %v1378, %v1370
    %v2139 = vpack.c.b16 %v1379, %v1371
    %v2140 = vpack.c.b16 %v1380, %v1372
    %v2141 = vpack.c.b16 %v1381, %v1373
    %v2142 = vpack.c.b16 %v1382, %v1374
    %v2143 = vpack.c.b16 %v1383, %v1375
    %v2144 = vpack.c.b16 %v1392, %v1384
    %v2145 = vpack.c.b16 %v1393, %v1385
    %v2146 = vpack.c.b16 %v1394, %v1386
    %v2147 = vpack.c.b16 %v1395, %v1387
    %v2148 = vpack.c.b16 %v1396, %v1388
    %v2149 = vpack.c.b16 %v1397, %v1389
    %v2150 = vpack.c.b16 %v1398, %v1390
    %v2151 = vpack.c.b16 %v1399, %v1391
    %v2152 = vpack.c.b16 %v1408, %v1400
    %v2153 = vpack.c.b16 %v1409, %v1401
    %v2154 = vpack.c.b16 %v1410, %v1402
    %v2155 = vpack.c.b16 %v1411, %v1403
    %v2156 = vpack.c.b16 %v1412, %v1404
    %v2157 = vpack.c.b16 %v1413, %v1405
    %v2158 = vpack.c.b16 %v1414, %v1406
    %v2159 = vpack.c.b16 %v1415, %v1407
    %v2160 = vpack.c.b16 %v1424, %v1416
    %v2161 = vpack.c.b16 %v1425, %v1417
    %v2162 = vpack.c.b16 %v1426, %v1418
    %v2163 = vpack.c.b16 %v1427, %v1419
    %v2164 = vpack.c.b16 %v1428, %v1420
    %v2165 = vpack.c.b16 %v1429, %v1421
    %v2166 = vpack.c.b16 %v1430, %v1422
    %v2167 = vpack.c.b16 %v1431, %v1423
    %v2168 = vpack.c.b16 %v1440, %v1432
    %v2169 = vpack.c.b16 %v1441, %v1433
    %v2170 = vpack.c.b16 %v1442, %v1434
    %v2171 = vpack.c.b16 %v1443, %v1435
    %v2172 = vpack.c.b16 %v1444, %v1436
    %v2173 = vpack.c.b16 %v1445, %v1437
    %v2174 = vpack.c.b16 %v1446, %v1438
    %v2175 = vpack.c.b16 %v1447, %v1439
    %v2176 = vpack.c.b16 %v1456, %v1448
    %v2177 = vpack.c.b16 %v1457, %v1449
    %v2178 = vpack.c.b16 %v1458, %v1450
    %v2179 = vpack.c.b16 %v1459, %v1451
    %v2180 = vpack.c.b16 %v1460, %v1452
    %v2181 = vpack.c.b16 %v1461, %v1453
    %v2182 = vpack.c.b16 %v1462, %v1454
    %v2183 = vpack.c.b16 %v1463, %v1455
    %v2184 = vpack.c.b16 %v1472, %v1464
    %v2185 = vpack.c.b16 %v1473, %v1465
    %v2186 = vpack.c.b16 %v1474, %v1466
    %v2187 = vpack.c.b16 %v1475, %v1467
    %v2188 = vpack.c.b16 %v1476, %v1468
    %v2189 = vpack.c.b16 %v1477, %v1469
    %v2190 = vpack.c.b16 %v1478, %v1470
    %v2191 = vpack.c.b16 %v1479, %v1471
    %v2192 = vpack.c.b16 %v1488, %v1480
    %v2193 = vpack.c.b16 %v1489, %v1481
    %v2194 = vpack.c.b16 %v1490, %v1482
    %v2195 = vpack.c.b16 %v1491, %v1483
    %v2196 = vpack.c.b16 %v1492, %v1484
    %v2197 = vpack.c.b16 %v1493, %v1485
    %v2198 = vpack.c.b16 %v1494, %v1486
    %v2199 = vpack.c.b16 %v1495, %v1487
    %v2200 = vpack.c.b16 %v1504, %v1496
    %v2201 = vpack.c.b16 %v1505, %v1497
    %v2202 = vpack.c.b16 %v1506, %v1498
    %v2203 = vpack.c.b16 %v1507, %v1499
    %v2204 = vpack.c.b16 %v1508, %v1500
    %v2205 = vpack.c.b16 %v1509, %v1501
    %v2206 = vpack.c.b16 %v1510, %v1502
    %v2207 = vpack.c.b16 %v1511, %v1503
    %v2208 = vpack.c.b16 %v1520, %v1512
    %v2209 = vpack.c.b16 %v1521, %v1513
    %v2210 = vpack.c.b16 %v1522, %v1514
    %v2211 = vpack.c.b16 %v1523, %v1515
    %v2212 = vpack.c.b16 %v1524, %v1516
    %v2213 = vpack.c.b16 %v1525, %v1517
    %v2214 = vpack.c.b16 %v1526, %v1518
    %v2215 = vpack.c.b16 %v1527, %v1519
    %v2216 = vpack.c.b16 %v1536, %v1528
    %v2217 = vpack.c.b16 %v1537, %v1529
    %v2218 = vpack.c.b16 %v1538, %v1530
    %v2219 = vpack.c.b16 %v1539, %v1531
    %v2220 = vpack.c.b16 %v1540, %v1532
    %v2221 = vpack.c.b16 %v1541, %v1533
    %v2222 = vpack.c.b16 %v1542, %v1534
    %v2223 = vpack.c.b16 %v1543, %v1535
    %v2224 = vpack.c.b16 %v1552, %v1544
    %v2225 = vpack.c.b16 %v1553, %v1545
    %v2226 = vpack.c.b16 %v1554, %v1546
    %v2227 = vpack.c.b16 %v1555, %v1547
    %v2228 = vpack.c.b16 %v1556, %v1548
    %v2229 = vpack.c.b16 %v1557, %v1549
    %v2230 = vpack.c.b16 %v1558, %v1550
    %v2231 = vpack.c.b16 %v1559, %v1551
    %v2232 = vpack.c.b16 %v1568, %v1560
    %v2233 = vpack.c.b16 %v1569, %v1561
    %v2234 = vpack.c.b16 %v1570, %v1562
    %v2235 = vpack.c.b16 %v1571, %v1563
    %v2236 = vpack.c.b16 %v1572, %v1564
    %v2237 = vpack.c.b16 %v1573, %v1565
    %v2238 = vpack.c.b16 %v1574, %v1566
    %v2239 = vpack.c.b16 %v1575, %v1567
    %v2240 = vpack.c.b16 %v1584, %v1576
    %v2241 = vpack.c.b16 %v1585, %v1577
    %v2242 = vpack.c.b16 %v1586, %v1578
    %v2243 = vpack.c.b16 %v1587, %v1579
    %v2244 = vpack.c.b16 %v1588, %v1580
    %v2245 = vpack.c.b16 %v1589, %v1581
    %v2246 = vpack.c.b16 %v1590, %v1582
    %v2247 = vpack.c.b16 %v1591, %v1583
    %v2248 = vpack.c.b16 %v1600, %v1592
    %v2249 = vpack.c.b16 %v1601, %v1593
    %v2250 = vpack.c.b16 %v1602, %v1594
    %v2251 = vpack.c.b16 %v1603, %v1595
    %v2252 = vpack.c.b16 %v1604, %v1596
    %v2253 = vpack.c.b16 %v1605, %v1597
    %v2254 = vpack.c.b16 %v1606, %v1598
    %v2255 = vpack.c.b16 %v1607, %v1599
    %v2256 = vpack.c.b16 %v1616, %v1608
    %v2257 = vpack.c.b16 %v1617, %v1609
    %v2258 = vpack.c.b16 %v1618, %v1610
    %v2259 = vpack.c.b16 %v1619, %v1611
    %v2260 = vpack.c.b16 %v1620, %v1612
    %v2261 = vpack.c.b16 %v1621, %v1613
    %v2262 = vpack.c.b16 %v1622, %v1614
    %v2263 = vpack.c.b16 %v1623, %v1615
    %v2264 = vpack.c.b16 %v1632, %v1624
    %v2265 = vpack.c.b16 %v1633, %v1625
    %v2266 = vpack.c.b16 %v1634, %v1626
    %v2267 = vpack.c.b16 %v1635, %v1627
    %v2268 = vpack.c.b16 %v1636, %v1628
    %v2269 = vpack.c.b16 %v1637, %v1629
    %v2270 = vpack.c.b16 %v1638, %v1630
    %v2271 = vpack.c.b16 %v1639, %v1631
    %v2272 = vpack.c.b16 %v1648, %v1640
    %v2273 = vpack.c.b16 %v1649, %v1641
    %v2274 = vpack.c.b16 %v1650, %v1642
    %v2275 = vpack.c.b16 %v1651, %v1643
    %v2276 = vpack.c.b16 %v1652, %v1644
    %v2277 = vpack.c.b16 %v1653, %v1645
    %v2278 = vpack.c.b16 %v1654, %v1646
    %v2279 = vpack.c.b16 %v1655, %v1647
    %v2280 = vpack.c.b16 %v1664, %v1656
    %v2281 = vpack.c.b16 %v1665, %v1657
    %v2282 = vpack.c.b16 %v1666, %v1658
    %v2283 = vpack.c.b16 %v1667, %v1659
    %v2284 = vpack.c.b16 %v1668, %v1660
    %v2285 = vpack.c.b16 %v1669, %v1661
    %v2286 = vpack.c.b16 %v1670, %v1662
    %v2287 = vpack.c.b16 %v1671, %v1663
    %v2288 = vpack.c.b16 %v1680, %v1672
    %v2289 = vpack.c.b16 %v1681, %v1673
    %v2290 = vpack.c.b16 %v1682, %v1674
    %v2291 = vpack.c.b16 %v1683, %v1675
    %v2292 = vpack.c.b16 %v1684, %v1676
    %v2293 = vpack.c.b16 %v1685, %v1677
    %v2294 = vpack.c.b16 %v1686, %v1678
    %v2295 = vpack.c.b16 %v1687, %v1679
    %v2296 = vpack.c.b16 %v1696, %v1688
    %v2297 = vpack.c.b16 %v1697, %v1689
    %v2298 = vpack.c.b16 %v1698, %v1690
    %v2299 = vpack.c.b16 %v1699, %v1691
    %v2300 = vpack.c.b16 %v1700, %v1692
    %v2301 = vpack.c.b16 %v1701, %v1693
    %v2302 = vpack.c.b16 %v1702, %v1694
    %v2303 = vpack.c.b16 %v1703, %v1695
    %v2304 = vpack.c.b16 %v1712, %v1704
    %v2305 = vpack.c.b16 %v1713, %v1705
    %v2306 = vpack.c.b16 %v1714, %v1706
    %v2307 = vpack.c.b16 %v1715, %v1707
    %v2308 = vpack.c.b16 %v1716, %v1708
    %v2309 = vpack.c.b16 %v1717, %v1709
    %v2310 = vpack.c.b16 %v1718, %v1710
    %v2311 = vpack.c.b16 %v1719, %v1711
    %v2312 = vpack.c.b16 %v1728, %v1720
    %v2313 = vpack.c.b16 %v1729, %v1721
    %v2314 = vpack.c.b16 %v1730, %v1722
    %v2315 = vpack.c.b16 %v1731, %v1723
    %v2316 = vpack.c.b16 %v1732, %v1724
    %v2317 = vpack.c.b16 %v1733, %v1725
    %v2318 = vpack.c.b16 %v1734, %v1726
    %v2319 = vpack.c.b16 %v1735, %v1727
    %v2320 = vpack.c.b16 %v1744, %v1736
    %v2321 = vpack.c.b16 %v1745, %v1737
    %v2322 = vpack.c.b16 %v1746, %v1738
    %v2323 = vpack.c.b16 %v1747, %v1739
    %v2324 = vpack.c.b16 %v1748, %v1740
    %v2325 = vpack.c.b16 %v1749, %v1741
    %v2326 = vpack.c.b16 %v1750, %v1742
    %v2327 = vpack.c.b16 %v1751, %v1743
    %v2328 = vpack.c.b16 %v1760, %v1752
    %v2329 = vpack.c.b16 %v1761, %v1753
    %v2330 = vpack.c.b16 %v1762, %v1754
    %v2331 = vpack.c.b16 %v1763, %v1755
    %v2332 = vpack.c.b16 %v1764, %v1756
    %v2333 = vpack.c.b16 %v1765, %v1757
    %v2334 = vpack.c.b16 %v1766, %v1758
    %v2335 = vpack.c.b16 %v1767, %v1759
    %v2336 = vpack.c.b16 %v1776, %v1768
    %v2337 = vpack.c.b16 %v1777, %v1769
    %v2338 = vpack.c.b16 %v1778, %v1770
    %v2339 = vpack.c.b16 %v1779, %v1771
    %v2340 = vpack.c.b16 %v1780, %v1772
    %v2341 = vpack.c.b16 %v1781, %v1773
    %v2342 = vpack.c.b16 %v1782, %v1774
    %v2343 = vpack.c.b16 %v1783, %v1775
    %v2344 = vpack.c.b16 %v1792, %v1784
    %v2345 = vpack.c.b16 %v1793, %v1785
    %v2346 = vpack.c.b16 %v1794, %v1786
    %v2347 = vpack.c.b16 %v1795, %v1787
    %v2348 = vpack.c.b16 %v1796, %v1788
    %v2349 = vpack.c.b16 %v1797, %v1789
    %v2350 = vpack.c.b16 %v1798, %v1790
    %v2351 = vpack.c.b16 %v1799, %v1791
    %v2352 = vpack.c.b16 %v1808, %v1800
    %v2353 = vpack.c.b16 %v1809, %v1801
    %v2354 = vpack.c.b16 %v1810, %v1802
    %v2355 = vpack.c.b16 %v1811, %v1803
    %v2356 = vpack.c.b16 %v1812, %v1804
    %v2357 = vpack.c.b16 %v1813, %v1805
    %v2358 = vpack.c.b16 %v1814, %v1806
    %v2359 = vpack.c.b16 %v1815, %v1807
    %v2360 = vpack.c.b16 %v1824, %v1816
    %v2361 = vpack.c.b16 %v1825, %v1817
    %v2362 = vpack.c.b16 %v1826, %v1818
    %v2363 = vpack.c.b16 %v1827, %v1819
    %v2364 = vpack.c.b16 %v1828, %v1820
    %v2365 = vpack.c.b16 %v1829, %v1821
    %v2366 = vpack.c.b16 %v1830, %v1822
    %v2367 = vpack.c.b16 %v1831, %v1823
    %v2368 = vpack.c.b16 %v1840, %v1832
    %v2369 = vpack.c.b16 %v1841, %v1833
    %v2370 = vpack.c.b16 %v1842, %v1834
    %v2371 = vpack.c.b16 %v1843, %v1835
    %v2372 = vpack.c.b16 %v1844, %v1836
    %v2373 = vpack.c.b16 %v1845, %v1837
    %v2374 = vpack.c.b16 %v1846, %v1838
    %v2375 = vpack.c.b16 %v1847, %v1839
    %v2376 = vpack.c.b16 %v1856, %v1848
    %v2377 = vpack.c.b16 %v1857, %v1849
    %v2378 = vpack.c.b16 %v1858, %v1850
    %v2379 = vpack.c.b16 %v1859, %v1851
    %v2380 = vpack.c.b16 %v1860, %v1852
    %v2381 = vpack.c.b16 %v1861, %v1853
    %v2382 = vpack.c.b16 %v1862, %v1854
    %v2383 = vpack.c.b16 %v1863, %v1855
    %v2384 = vpack.c.b16 %v1872, %v1864
    %v2385 = vpack.c.b16 %v1873, %v1865
    %v2386 = vpack.c.b16 %v1874, %v1866
    %v2387 = vpack.c.b16 %v1875, %v1867
    %v2388 = vpack.c.b16 %v1876, %v1868
    %v2389 = vpack.c.b16 %v1877, %v1869
    %v2390 = vpack.c.b16 %v1878, %v1870
    %v2391 = vpack.c.b16 %v1879, %v1871
    %v2392 = vpack.c.b16 %v1888, %v1880
    %v2393 = vpack.c.b16 %v1889, %v1881
    %v2394 = vpack.c.b16 %v1890, %v1882
    %v2395 = vpack.c.b16 %v1891, %v1883
    %v2396 = vpack.c.b16 %v1892, %v1884
    %v2397 = vpack.c.b16 %v1893, %v1885
    %v2398 = vpack.c.b16 %v1894, %v1886
    %v2399 = vpack.c.b16 %v1895, %v1887
    %v2400 = vpack.c.b16 %v1904, %v1896
    %v2401 = vpack.c.b16 %v1905, %v1897
    %v2402 = vpack.c.b16 %v1906, %v1898
    %v2403 = vpack.c.b16 %v1907, %v1899
    %v2404 = vpack.c.b16 %v1908, %v1900
    %v2405 = vpack.c.b16 %v1909, %v1901
    %v2406 = vpack.c.b16 %v1910, %v1902
    %v2407 = vpack.c.b16 %v1911, %v1903
    %v2408 = vpack.c.b16 %v1920, %v1912
    %v2409 = vpack.c.b16 %v1921, %v1913
    %v2410 = vpack.c.b16 %v1922, %v1914
    %v2411 = vpack.c.b16 %v1923, %v1915
    %v2412 = vpack.c.b16 %v1924, %v1916
    %v2413 = vpack.c.b16 %v1925, %v1917
    %v2414 = vpack.c.b16 %v1926, %v1918
    %v2415 = vpack.c.b16 %v1927, %v1919
    %v2416 = vpack.c.b16 %v1936, %v1928
    %v2417 = vpack.c.b16 %v1937, %v1929
    %v2418 = vpack.c.b16 %v1938, %v1930
    %v2419 = vpack.c.b16 %v1939, %v1931
    %v2420 = vpack.c.b16 %v1940, %v1932
    %v2421 = vpack.c.b16 %v1941, %v1933
    %v2422 = vpack.c.b16 %v1942, %v1934
    %v2423 = vpack.c.b16 %v1943, %v1935
    %v2424 = vpack.c.b16 %v1952, %v1944
    %v2425 = vpack.c.b16 %v1953, %v1945
    %v2426 = vpack.c.b16 %v1954, %v1946
    %v2427 = vpack.c.b16 %v1955, %v1947
    %v2428 = vpack.c.b16 %v1956, %v1948
    %v2429 = vpack.c.b16 %v1957, %v1949
    %v2430 = vpack.c.b16 %v1958, %v1950
    %v2431 = vpack.c.b16 %v1959, %v1951
    %v2432 = vpack.c.b16 %v1968, %v1960
    %v2433 = vpack.c.b16 %v1969, %v1961
    %v2434 = vpack.c.b16 %v1970, %v1962
    %v2435 = vpack.c.b16 %v1971, %v1963
    %v2436 = vpack.c.b16 %v1972, %v1964
    %v2437 = vpack.c.b16 %v1973, %v1965
    %v2438 = vpack.c.b16 %v1974, %v1966
    %v2439 = vpack.c.b16 %v1975, %v1967
    %v2440 = vpack.c.b16 %v1984, %v1976
    %v2441 = vpack.c.b16 %v1985, %v1977
    %v2442 = vpack.c.b16 %v1986, %v1978
    %v2443 = vpack.c.b16 %v1987, %v1979
    %v2444 = vpack.c.b16 %v1988, %v1980
    %v2445 = vpack.c.b16 %v1989, %v1981
    %v2446 = vpack.c.b16 %v1990, %v1982
    %v2447 = vpack.c.b16 %v1991, %v1983
    %v2448 = vpack.c.b16 %v2000, %v1992
    %v2449 = vpack.c.b16 %v2001, %v1993
    %v2450 = vpack.c.b16 %v2002, %v1994
    %v2451 = vpack.c.b16 %v2003, %v1995
    %v2452 = vpack.c.b16 %v2004, %v1996
    %v2453 = vpack.c.b16 %v2005, %v1997
    %v2454 = vpack.c.b16 %v2006, %v1998
    %v2455 = vpack.c.b16 %v2007, %v1999
    %v2456 = vpack.c.b16 %v2016, %v2008
    %v2457 = vpack.c.b16 %v2017, %v2009
    %v2458 = vpack.c.b16 %v2018, %v2010
    %v2459 = vpack.c.b16 %v2019, %v2011
    %v2460 = vpack.c.b16 %v2020, %v2012
    %v2461 = vpack.c.b16 %v2021, %v2013
    %v2462 = vpack.c.b16 %v2022, %v2014
    %v2463 = vpack.c.b16 %v2023, %v2015
    %v2464 = vpack.c.b16 %v2032, %v2024
    %v2465 = vpack.c.b16 %v2033, %v2025
    %v2466 = vpack.c.b16 %v2034, %v2026
    %v2467 = vpack.c.b16 %v2035, %v2027
    %v2468 = vpack.c.b16 %v2036, %v2028
    %v2469 = vpack.c.b16 %v2037, %v2029
    %v2470 = vpack.c.b16 %v2038, %v2030
    %v2471 = vpack.c.b16 %v2039, %v2031
    %v2472 = vpack.c.b16 %v2048, %v2040
    %v2473 = vpack.c.b16 %v2049, %v2041
    %v2474 = vpack.c.b16 %v2050, %v2042
    %v2475 = vpack.c.b16 %v2051, %v2043
    %v2476 = vpack.c.b16 %v2052, %v2044
    %v2477 = vpack.c.b16 %v2053, %v2045
    %v2478 = vpack.c.b16 %v2054, %v2046
    %v2479 = vpack.c.b16 %v2055, %v2047
    %v2480 = vpack.c.b16 %v2064, %v2056
    %v2481 = vpack.c.b16 %v2065, %v2057
    %v2482 = vpack.c.b16 %v2066, %v2058
    %v2483 = vpack.c.b16 %v2067, %v2059
    %v2484 = vpack.c.b16 %v2068, %v2060
    %v2485 = vpack.c.b16 %v2069, %v2061
    %v2486 = vpack.c.b16 %v2070, %v2062
    %v2487 = vpack.c.b16 %v2071, %v2063
    %v2488 = vpack.c.b16 %v2080, %v2072
    %v2489 = vpack.c.b16 %v2081, %v2073
    %v2490 = vpack.c.b16 %v2082, %v2074
    %v2491 = vpack.c.b16 %v2083, %v2075
    %v2492 = vpack.c.b16 %v2084, %v2076
    %v2493 = vpack.c.b16 %v2085, %v2077
    %v2494 = vpack.c.b16 %v2086, %v2078
    %v2495 = vpack.c.b16 %v2087, %v2079
    %v2496 = vpack.c.b16 %v2096, %v2088
    %v2497 = vpack.c.b16 %v2097, %v2089
    %v2498 = vpack.c.b16 %v2098, %v2090
    %v2499 = vpack.c.b16 %v2099, %v2091
    %v2500 = vpack.c.b16 %v2100, %v2092
    %v2501 = vpack.c.b16 %v2101, %v2093
    %v2502 = vpack.c.b16 %v2102, %v2094
    %v2503 = vpack.c.b16 %v2103, %v2095
    %v2504 = vpack.c.b16 %v2112, %v2104
    %v2505 = vpack.c.b16 %v2113, %v2105
    %v2506 = vpack.c.b16 %v2114, %v2106
    %v2507 = vpack.c.b16 %v2115, %v2107
    %v2508 = vpack.c.b16 %v2116, %v2108
    %v2509 = vpack.c.b16 %v2117, %v2109
    %v2510 = vpack.c.b16 %v2118, %v2110
    %v2511 = vpack.c.b16 %v2119, %v2111
    %v2512 = vpack.c.b16 %v2128, %v2120
    %v2513 = vpack.c.b16 %v2129, %v2121
    %v2514 = vpack.c.b16 %v2130, %v2122
    %v2515 = vpack.c.b16 %v2131, %v2123
    %v2516 = vpack.c.b16 %v2132, %v2124
    %v2517 = vpack.c.b16 %v2133, %v2125
    %v2518 = vpack.c.b16 %v2134, %v2126
    %v2519 = vpack.c.b16 %v2135, %v2127
    %2904 = vmatprep.subr.bf16.mxu0 %v2137
    %2905 = vmatpush1.bf16.msra.mxu0 %v2136
    %2906 = vmatprep.subr.bf16.mxu0 %v2145
    %2907 = vmatpush1.bf16.msra.mxu0 %v2144
    %2908 = vmatprep.subr.bf16.mxu0 %v2153
    %2909 = vmatpush1.bf16.msra.mxu0 %v2152
    %2910 = vmatprep.subr.bf16.mxu0 %v2161
    %2911 = vmatpush1.bf16.msra.mxu0 %v2160
    %2912 = vmatprep.subr.bf16.mxu0 %v2169
    %2913 = vmatpush1.bf16.msra.mxu0 %v2168
    %2914 = vmatprep.subr.bf16.mxu0 %v2177
    %2915 = vmatpush1.bf16.msra.mxu0 %v2176
    %2916 = vmatprep.subr.bf16.mxu0 %v2185
    %2917 = vmatpush1.bf16.msra.mxu0 %v2184
    %2918 = vmatprep.subr.bf16.mxu0 %v2193
    %2919 = vmatpush1.bf16.msra.mxu0 %v2192
    %2920 = vmatprep.subr.bf16.mxu0 %v2201
    %2921 = vmatpush1.bf16.msra.mxu0 %v2200
    %2922 = vmatprep.subr.bf16.mxu0 %v2209
    %2923 = vmatpush1.bf16.msra.mxu0 %v2208
    %2924 = vmatprep.subr.bf16.mxu0 %v2217
    %2925 = vmatpush1.bf16.msra.mxu0 %v2216
    %2926 = vmatprep.subr.bf16.mxu0 %v2225
    %2927 = vmatpush1.bf16.msra.mxu0 %v2224
    %2928 = vmatprep.subr.bf16.mxu0 %v2233
    %2929 = vmatpush1.bf16.msra.mxu0 %v2232
    %2930 = vmatprep.subr.bf16.mxu0 %v2241
    %2931 = vmatpush1.bf16.msra.mxu0 %v2240
    %2932 = vmatprep.subr.bf16.mxu0 %v2249
    %2933 = vmatpush1.bf16.msra.mxu0 %v2248
    %2934 = vmatprep.subr.bf16.mxu0 %v2257
    %2935 = vmatpush1.bf16.msra.mxu0 %v2256
    %2936 = vmatprep.mubr.bf16.mxu0 %v973
    %2937 = vmatmul.mubr.bf16.gmra.mrb[0].mxu0 %v972
    %v2938 = vpop.f32.mrb[0].mxu0
    %v2939 = vadd.f32 %v926, %v2938
    %v2940 = vpop.f32.mrb[0].mxu0
    %v2941 = vadd.f32 %v930, %v2940
    %v2942 = vpop.f32.mrb[0].mxu0
    %v2943 = vpop.f32.mrb[0].mxu0
    %2944 = vdwg.mxu0
    %2945 = vmatprep.subr.bf16.mxu0 %v2265
    %2946 = vmatpush1.bf16.msra.mxu0 %v2264
    %2947 = vmatprep.subr.bf16.mxu0 %v2273
    %2948 = vmatpush1.bf16.msra.mxu0 %v2272
    %2949 = vmatprep.subr.bf16.mxu0 %v2281
    %2950 = vmatpush1.bf16.msra.mxu0 %v2280
    %2951 = vmatprep.subr.bf16.mxu0 %v2289
    %2952 = vmatpush1.bf16.msra.mxu0 %v2288
    %2953 = vmatprep.subr.bf16.mxu0 %v2297
    %2954 = vmatpush1.bf16.msra.mxu0 %v2296
    %2955 = vmatprep.subr.bf16.mxu0 %v2305
    %2956 = vmatpush1.bf16.msra.mxu0 %v2304
    %2957 = vmatprep.subr.bf16.mxu0 %v2313
    %2958 = vmatpush1.bf16.msra.mxu0 %v2312
    %2959 = vmatprep.subr.bf16.mxu0 %v2321
    %2960 = vmatpush1.bf16.msra.mxu0 %v2320
    %2961 = vmatprep.subr.bf16.mxu0 %v2329
    %2962 = vmatpush1.bf16.msra.mxu0 %v2328
    %2963 = vmatprep.subr.bf16.mxu0 %v2337
    %2964 = vmatpush1.bf16.msra.mxu0 %v2336
    %2965 = vmatprep.subr.bf16.mxu0 %v2345
    %2966 = vmatpush1.bf16.msra.mxu0 %v2344
    %2967 = vmatprep.subr.bf16.mxu0 %v2353
    %2968 = vmatpush1.bf16.msra.mxu0 %v2352
    %2969 = vmatprep.subr.bf16.mxu0 %v2361
    %2970 = vmatpush1.bf16.msra.mxu0 %v2360
    %2971 = vmatprep.subr.bf16.mxu0 %v2369
    %2972 = vmatpush1.bf16.msra.mxu0 %v2368
    %2973 = vmatprep.subr.bf16.mxu0 %v2377
    %2974 = vmatpush1.bf16.msra.mxu0 %v2376
    %2975 = vmatprep.subr.bf16.mxu0 %v2385
    %2976 = vmatpush1.bf16.msra.mxu0 %v2384
    %2977 = vmatprep.mubr.bf16.mxu0 %v975
    %2978 = vmatmul.mubr.bf16.gmra.mrb[0].mxu0 %v974
    %v2979 = vpop.f32.mrb[0].mxu0
    %v2980 = vadd.f32 %v2939, %v2979
    %v2981 = vpop.f32.mrb[0].mxu0
    %v2982 = vadd.f32 %v2941, %v2981
    %v2983 = vpop.f32.mrb[0].mxu0
    %v2984 = vpop.f32.mrb[0].mxu0
    %2985 = vdwg.mxu0
    %2986 = vmatprep.subr.bf16.mxu0 %v2393
    %2987 = vmatpush1.bf16.msra.mxu0 %v2392
    %2988 = vmatprep.subr.bf16.mxu0 %v2401
    %2989 = vmatpush1.bf16.msra.mxu0 %v2400
    %2990 = vmatprep.subr.bf16.mxu0 %v2409
    %2991 = vmatpush1.bf16.msra.mxu0 %v2408
    %2992 = vmatprep.subr.bf16.mxu0 %v2417
    %2993 = vmatpush1.bf16.msra.mxu0 %v2416
    %2994 = vmatprep.subr.bf16.mxu0 %v2425
    %2995 = vmatpush1.bf16.msra.mxu0 %v2424
    %2996 = vmatprep.subr.bf16.mxu0 %v2433
    %2997 = vmatpush1.bf16.msra.mxu0 %v2432
    %2998 = vmatprep.subr.bf16.mxu0 %v2441
    %2999 = vmatpush1.bf16.msra.mxu0 %v2440
    %3000 = vmatprep.subr.bf16.mxu0 %v2449
    %3001 = vmatpush1.bf16.msra.mxu0 %v2448
    %3002 = vmatprep.subr.bf16.mxu0 %v2457
    %3003 = vmatpush1.bf16.msra.mxu0 %v2456
    %3004 = vmatprep.subr.bf16.mxu0 %v2465
    %3005 = vmatpush1.bf16.msra.mxu0 %v2464
    %3006 = vmatprep.subr.bf16.mxu0 %v2473
    %3007 = vmatpush1.bf16.msra.mxu0 %v2472
    %3008 = vmatprep.subr.bf16.mxu0 %v2481
    %3009 = vmatpush1.bf16.msra.mxu0 %v2480
    %3010 = vmatprep.subr.bf16.mxu0 %v2489
    %3011 = vmatpush1.bf16.msra.mxu0 %v2488
    %3012 = vmatprep.subr.bf16.mxu0 %v2497
    %3013 = vmatpush1.bf16.msra.mxu0 %v2496
    %3014 = vmatprep.subr.bf16.mxu0 %v2505
    %3015 = vmatpush1.bf16.msra.mxu0 %v2504
    %3016 = vmatprep.subr.bf16.mxu0 %v2513
    %3017 = vmatpush1.bf16.msra.mxu0 %v2512
    %3018 = vmatprep.mubr.bf16.mxu0 %v977
    %3019 = vmatmul.mubr.bf16.gmra.mrb[0].mxu0 %v976
    %v3020 = vpop.f32.mrb[0].mxu0
    %v3021 = vadd.f32 %v2980, %v3020
    %v3022 = vpop.f32.mrb[0].mxu0
    %v3023 = vadd.f32 %v2982, %v3022
    %v3024 = vpop.f32.mrb[0].mxu0
    %v3025 = vpop.f32.mrb[0].mxu0
    %3026 = vdwg.mxu0
    %3027 = vmatprep.subr.bf16.mxu0 %v2139
    %3028 = vmatpush1.bf16.msra.mxu0 %v2138
    %3029 = vmatprep.subr.bf16.mxu0 %v2147
    %3030 = vmatpush1.bf16.msra.mxu0 %v2146
    %3031 = vmatprep.subr.bf16.mxu0 %v2155
    %3032 = vmatpush1.bf16.msra.mxu0 %v2154
    %3033 = vmatprep.subr.bf16.mxu0 %v2163
    %3034 = vmatpush1.bf16.msra.mxu0 %v2162
    %3035 = vmatprep.subr.bf16.mxu0 %v2171
    %3036 = vmatpush1.bf16.msra.mxu0 %v2170
    %3037 = vmatprep.subr.bf16.mxu0 %v2179
    %3038 = vmatpush1.bf16.msra.mxu0 %v2178
    %3039 = vmatprep.subr.bf16.mxu0 %v2187
    %3040 = vmatpush1.bf16.msra.mxu0 %v2186
    %3041 = vmatprep.subr.bf16.mxu0 %v2195
    %3042 = vmatpush1.bf16.msra.mxu0 %v2194
    %3043 = vmatprep.subr.bf16.mxu0 %v2203
    %3044 = vmatpush1.bf16.msra.mxu0 %v2202
    %3045 = vmatprep.subr.bf16.mxu0 %v2211
    %3046 = vmatpush1.bf16.msra.mxu0 %v2210
    %3047 = vmatprep.subr.bf16.mxu0 %v2219
    %3048 = vmatpush1.bf16.msra.mxu0 %v2218
    %3049 = vmatprep.subr.bf16.mxu0 %v2227
    %3050 = vmatpush1.bf16.msra.mxu0 %v2226
    %3051 = vmatprep.subr.bf16.mxu0 %v2235
    %3052 = vmatpush1.bf16.msra.mxu0 %v2234
    %3053 = vmatprep.subr.bf16.mxu0 %v2243
    %3054 = vmatpush1.bf16.msra.mxu0 %v2242
    %3055 = vmatprep.subr.bf16.mxu0 %v2251
    %3056 = vmatpush1.bf16.msra.mxu0 %v2250
    %3057 = vmatprep.subr.bf16.mxu0 %v2259
    %3058 = vmatpush1.bf16.msra.mxu0 %v2258
    %3059 = vmatprep.mubr.bf16.mxu0 %v973
    %3060 = vmatmul.mubr.bf16.gmra.mrb[0].mxu0 %v972
    %v3061 = vpop.f32.mrb[0].mxu0
    %v3062 = vadd.f32 %v934, %v3061
    %v3063 = vpop.f32.mrb[0].mxu0
    %v3064 = vadd.f32 %v938, %v3063
    %v3065 = vpop.f32.mrb[0].mxu0
    %v3066 = vpop.f32.mrb[0].mxu0
    %3067 = vdwg.mxu0
    %3068 = vmatprep.subr.bf16.mxu0 %v2267
    %3069 = vmatpush1.bf16.msra.mxu0 %v2266
    %3070 = vmatprep.subr.bf16.mxu0 %v2275
    %3071 = vmatpush1.bf16.msra.mxu0 %v2274
    %3072 = vmatprep.subr.bf16.mxu0 %v2283
    %3073 = vmatpush1.bf16.msra.mxu0 %v2282
    %3074 = vmatprep.subr.bf16.mxu0 %v2291
    %3075 = vmatpush1.bf16.msra.mxu0 %v2290
    %3076 = vmatprep.subr.bf16.mxu0 %v2299
    %3077 = vmatpush1.bf16.msra.mxu0 %v2298
    %3078 = vmatprep.subr.bf16.mxu0 %v2307
    %3079 = vmatpush1.bf16.msra.mxu0 %v2306
    %3080 = vmatprep.subr.bf16.mxu0 %v2315
    %3081 = vmatpush1.bf16.msra.mxu0 %v2314
    %3082 = vmatprep.subr.bf16.mxu0 %v2323
    %3083 = vmatpush1.bf16.msra.mxu0 %v2322
    %3084 = vmatprep.subr.bf16.mxu0 %v2331
    %3085 = vmatpush1.bf16.msra.mxu0 %v2330
    %3086 = vmatprep.subr.bf16.mxu0 %v2339
    %3087 = vmatpush1.bf16.msra.mxu0 %v2338
    %3088 = vmatprep.subr.bf16.mxu0 %v2347
    %3089 = vmatpush1.bf16.msra.mxu0 %v2346
    %3090 = vmatprep.subr.bf16.mxu0 %v2355
    %3091 = vmatpush1.bf16.msra.mxu0 %v2354
    %3092 = vmatprep.subr.bf16.mxu0 %v2363
    %3093 = vmatpush1.bf16.msra.mxu0 %v2362
    %3094 = vmatprep.subr.bf16.mxu0 %v2371
    %3095 = vmatpush1.bf16.msra.mxu0 %v2370
    %3096 = vmatprep.subr.bf16.mxu0 %v2379
    %3097 = vmatpush1.bf16.msra.mxu0 %v2378
    %3098 = vmatprep.subr.bf16.mxu0 %v2387
    %3099 = vmatpush1.bf16.msra.mxu0 %v2386
    %3100 = vmatprep.mubr.bf16.mxu0 %v975
    %3101 = vmatmul.mubr.bf16.gmra.mrb[0].mxu0 %v974
    %v3102 = vpop.f32.mrb[0].mxu0
    %v3103 = vadd.f32 %v3062, %v3102
    %v3104 = vpop.f32.mrb[0].mxu0
    %v3105 = vadd.f32 %v3064, %v3104
    %v3106 = vpop.f32.mrb[0].mxu0
    %v3107 = vpop.f32.mrb[0].mxu0
    %3108 = vdwg.mxu0
    %3109 = vmatprep.subr.bf16.mxu0 %v2395
    %3110 = vmatpush1.bf16.msra.mxu0 %v2394
    %3111 = vmatprep.subr.bf16.mxu0 %v2403
    %3112 = vmatpush1.bf16.msra.mxu0 %v2402
    %3113 = vmatprep.subr.bf16.mxu0 %v2411
    %3114 = vmatpush1.bf16.msra.mxu0 %v2410
    %3115 = vmatprep.subr.bf16.mxu0 %v2419
    %3116 = vmatpush1.bf16.msra.mxu0 %v2418
    %3117 = vmatprep.subr.bf16.mxu0 %v2427
    %3118 = vmatpush1.bf16.msra.mxu0 %v2426
    %3119 = vmatprep.subr.bf16.mxu0 %v2435
    %3120 = vmatpush1.bf16.msra.mxu0 %v2434
    %3121 = vmatprep.subr.bf16.mxu0 %v2443
    %3122 = vmatpush1.bf16.msra.mxu0 %v2442
    %3123 = vmatprep.subr.bf16.mxu0 %v2451
    %3124 = vmatpush1.bf16.msra.mxu0 %v2450
    %3125 = vmatprep.subr.bf16.mxu0 %v2459
    %3126 = vmatpush1.bf16.msra.mxu0 %v2458
    %3127 = vmatprep.subr.bf16.mxu0 %v2467
    %3128 = vmatpush1.bf16.msra.mxu0 %v2466
    %3129 = vmatprep.subr.bf16.mxu0 %v2475
    %3130 = vmatpush1.bf16.msra.mxu0 %v2474
    %3131 = vmatprep.subr.bf16.mxu0 %v2483
    %3132 = vmatpush1.bf16.msra.mxu0 %v2482
    %3133 = vmatprep.subr.bf16.mxu0 %v2491
    %3134 = vmatpush1.bf16.msra.mxu0 %v2490
    %3135 = vmatprep.subr.bf16.mxu0 %v2499
    %3136 = vmatpush1.bf16.msra.mxu0 %v2498
    %3137 = vmatprep.subr.bf16.mxu0 %v2507
    %3138 = vmatpush1.bf16.msra.mxu0 %v2506
    %3139 = vmatprep.subr.bf16.mxu0 %v2515
    %3140 = vmatpush1.bf16.msra.mxu0 %v2514
    %3141 = vmatprep.mubr.bf16.mxu0 %v977
    %3142 = vmatmul.mubr.bf16.gmra.mrb[0].mxu0 %v976
    %v3143 = vpop.f32.mrb[0].mxu0
    %v3144 = vadd.f32 %v3103, %v3143
    %v3145 = vpop.f32.mrb[0].mxu0
    %v3146 = vadd.f32 %v3105, %v3145
    %v3147 = vpop.f32.mrb[0].mxu0
    %v3148 = vpop.f32.mrb[0].mxu0
    %3149 = vdwg.mxu0
    %3150 = vmatprep.subr.bf16.mxu0 %v2141
    %3151 = vmatpush1.bf16.msra.mxu0 %v2140
    %3152 = vmatprep.subr.bf16.mxu0 %v2149
    %3153 = vmatpush1.bf16.msra.mxu0 %v2148
    %3154 = vmatprep.subr.bf16.mxu0 %v2157
    %3155 = vmatpush1.bf16.msra.mxu0 %v2156
    %3156 = vmatprep.subr.bf16.mxu0 %v2165
    %3157 = vmatpush1.bf16.msra.mxu0 %v2164
    %3158 = vmatprep.subr.bf16.mxu0 %v2173
    %3159 = vmatpush1.bf16.msra.mxu0 %v2172
    %3160 = vmatprep.subr.bf16.mxu0 %v2181
    %3161 = vmatpush1.bf16.msra.mxu0 %v2180
    %3162 = vmatprep.subr.bf16.mxu0 %v2189
    %3163 = vmatpush1.bf16.msra.mxu0 %v2188
    %3164 = vmatprep.subr.bf16.mxu0 %v2197
    %3165 = vmatpush1.bf16.msra.mxu0 %v2196
    %3166 = vmatprep.subr.bf16.mxu0 %v2205
    %3167 = vmatpush1.bf16.msra.mxu0 %v2204
    %3168 = vmatprep.subr.bf16.mxu0 %v2213
    %3169 = vmatpush1.bf16.msra.mxu0 %v2212
    %3170 = vmatprep.subr.bf16.mxu0 %v2221
    %3171 = vmatpush1.bf16.msra.mxu0 %v2220
    %3172 = vmatprep.subr.bf16.mxu0 %v2229
    %3173 = vmatpush1.bf16.msra.mxu0 %v2228
    %3174 = vmatprep.subr.bf16.mxu0 %v2237
    %3175 = vmatpush1.bf16.msra.mxu0 %v2236
    %3176 = vmatprep.subr.bf16.mxu0 %v2245
    %3177 = vmatpush1.bf16.msra.mxu0 %v2244
    %3178 = vmatprep.subr.bf16.mxu0 %v2253
    %3179 = vmatpush1.bf16.msra.mxu0 %v2252
    %3180 = vmatprep.subr.bf16.mxu0 %v2261
    %3181 = vmatpush1.bf16.msra.mxu0 %v2260
    %3182 = vmatprep.mubr.bf16.mxu0 %v973
    %3183 = vmatmul.mubr.bf16.gmra.mrb[0].mxu0 %v972
    %v3184 = vpop.f32.mrb[0].mxu0
    %v3185 = vadd.f32 %v942, %v3184
    %v3186 = vpop.f32.mrb[0].mxu0
    %v3187 = vadd.f32 %v946, %v3186
    %v3188 = vpop.f32.mrb[0].mxu0
    %v3189 = vpop.f32.mrb[0].mxu0
    %3190 = vdwg.mxu0
    %3191 = vmatprep.subr.bf16.mxu0 %v2269
    %3192 = vmatpush1.bf16.msra.mxu0 %v2268
    %3193 = vmatprep.subr.bf16.mxu0 %v2277
    %3194 = vmatpush1.bf16.msra.mxu0 %v2276
    %3195 = vmatprep.subr.bf16.mxu0 %v2285
    %3196 = vmatpush1.bf16.msra.mxu0 %v2284
    %3197 = vmatprep.subr.bf16.mxu0 %v2293
    %3198 = vmatpush1.bf16.msra.mxu0 %v2292
    %3199 = vmatprep.subr.bf16.mxu0 %v2301
    %3200 = vmatpush1.bf16.msra.mxu0 %v2300
    %3201 = vmatprep.subr.bf16.mxu0 %v2309
    %3202 = vmatpush1.bf16.msra.mxu0 %v2308
    %3203 = vmatprep.subr.bf16.mxu0 %v2317
    %3204 = vmatpush1.bf16.msra.mxu0 %v2316
    %3205 = vmatprep.subr.bf16.mxu0 %v2325
    %3206 = vmatpush1.bf16.msra.mxu0 %v2324
    %3207 = vmatprep.subr.bf16.mxu0 %v2333
    %3208 = vmatpush1.bf16.msra.mxu0 %v2332
    %3209 = vmatprep.subr.bf16.mxu0 %v2341
    %3210 = vmatpush1.bf16.msra.mxu0 %v2340
    %3211 = vmatprep.subr.bf16.mxu0 %v2349
    %3212 = vmatpush1.bf16.msra.mxu0 %v2348
    %3213 = vmatprep.subr.bf16.mxu0 %v2357
    %3214 = vmatpush1.bf16.msra.mxu0 %v2356
    %3215 = vmatprep.subr.bf16.mxu0 %v2365
    %3216 = vmatpush1.bf16.msra.mxu0 %v2364
    %3217 = vmatprep.subr.bf16.mxu0 %v2373
    %3218 = vmatpush1.bf16.msra.mxu0 %v2372
    %3219 = vmatprep.subr.bf16.mxu0 %v2381
    %3220 = vmatpush1.bf16.msra.mxu0 %v2380
    %3221 = vmatprep.subr.bf16.mxu0 %v2389
    %3222 = vmatpush1.bf16.msra.mxu0 %v2388
    %3223 = vmatprep.mubr.bf16.mxu0 %v975
    %3224 = vmatmul.mubr.bf16.gmra.mrb[0].mxu0 %v974
    %v3225 = vpop.f32.mrb[0].mxu0
    %v3226 = vadd.f32 %v3185, %v3225
    %v3227 = vpop.f32.mrb[0].mxu0
    %v3228 = vadd.f32 %v3187, %v3227
    %v3229 = vpop.f32.mrb[0].mxu0
    %v3230 = vpop.f32.mrb[0].mxu0
    %3231 = vdwg.mxu0
    %3232 = vmatprep.subr.bf16.mxu0 %v2397
    %3233 = vmatpush1.bf16.msra.mxu0 %v2396
    %3234 = vmatprep.subr.bf16.mxu0 %v2405
    %3235 = vmatpush1.bf16.msra.mxu0 %v2404
    %3236 = vmatprep.subr.bf16.mxu0 %v2413
    %3237 = vmatpush1.bf16.msra.mxu0 %v2412
    %3238 = vmatprep.subr.bf16.mxu0 %v2421
    %3239 = vmatpush1.bf16.msra.mxu0 %v2420
    %3240 = vmatprep.subr.bf16.mxu0 %v2429
    %3241 = vmatpush1.bf16.msra.mxu0 %v2428
    %3242 = vmatprep.subr.bf16.mxu0 %v2437
    %3243 = vmatpush1.bf16.msra.mxu0 %v2436
    %3244 = vmatprep.subr.bf16.mxu0 %v2445
    %3245 = vmatpush1.bf16.msra.mxu0 %v2444
    %3246 = vmatprep.subr.bf16.mxu0 %v2453
    %3247 = vmatpush1.bf16.msra.mxu0 %v2452
    %3248 = vmatprep.subr.bf16.mxu0 %v2461
    %3249 = vmatpush1.bf16.msra.mxu0 %v2460
    %3250 = vmatprep.subr.bf16.mxu0 %v2469
    %3251 = vmatpush1.bf16.msra.mxu0 %v2468
    %3252 = vmatprep.subr.bf16.mxu0 %v2477
    %3253 = vmatpush1.bf16.msra.mxu0 %v2476
    %3254 = vmatprep.subr.bf16.mxu0 %v2485
    %3255 = vmatpush1.bf16.msra.mxu0 %v2484
    %3256 = vmatprep.subr.bf16.mxu0 %v2493
    %3257 = vmatpush1.bf16.msra.mxu0 %v2492
    %3258 = vmatprep.subr.bf16.mxu0 %v2501
    %3259 = vmatpush1.bf16.msra.mxu0 %v2500
    %3260 = vmatprep.subr.bf16.mxu0 %v2509
    %3261 = vmatpush1.bf16.msra.mxu0 %v2508
    %3262 = vmatprep.subr.bf16.mxu0 %v2517
    %3263 = vmatpush1.bf16.msra.mxu0 %v2516
    %3264 = vmatprep.mubr.bf16.mxu0 %v977
    %3265 = vmatmul.mubr.bf16.gmra.mrb[0].mxu0 %v976
    %v3266 = vpop.f32.mrb[0].mxu0
    %v3267 = vadd.f32 %v3226, %v3266
    %v3268 = vpop.f32.mrb[0].mxu0
    %v3269 = vadd.f32 %v3228, %v3268
    %v3270 = vpop.f32.mrb[0].mxu0
    %v3271 = vpop.f32.mrb[0].mxu0
    %3272 = vdwg.mxu0
    %3273 = vmatprep.subr.bf16.mxu0 %v2143
    %3274 = vmatpush1.bf16.msra.mxu0 %v2142
    %3275 = vmatprep.subr.bf16.mxu0 %v2151
    %3276 = vmatpush1.bf16.msra.mxu0 %v2150
    %3277 = vmatprep.subr.bf16.mxu0 %v2159
    %3278 = vmatpush1.bf16.msra.mxu0 %v2158
    %3279 = vmatprep.subr.bf16.mxu0 %v2167
    %3280 = vmatpush1.bf16.msra.mxu0 %v2166
    %3281 = vmatprep.subr.bf16.mxu0 %v2175
    %3282 = vmatpush1.bf16.msra.mxu0 %v2174
    %3283 = vmatprep.subr.bf16.mxu0 %v2183
    %3284 = vmatpush1.bf16.msra.mxu0 %v2182
    %3285 = vmatprep.subr.bf16.mxu0 %v2191
    %3286 = vmatpush1.bf16.msra.mxu0 %v2190
    %3287 = vmatprep.subr.bf16.mxu0 %v2199
    %3288 = vmatpush1.bf16.msra.mxu0 %v2198
    %3289 = vmatprep.subr.bf16.mxu0 %v2207
    %3290 = vmatpush1.bf16.msra.mxu0 %v2206
    %3291 = vmatprep.subr.bf16.mxu0 %v2215
    %3292 = vmatpush1.bf16.msra.mxu0 %v2214
    %3293 = vmatprep.subr.bf16.mxu0 %v2223
    %3294 = vmatpush1.bf16.msra.mxu0 %v2222
    %3295 = vmatprep.subr.bf16.mxu0 %v2231
    %3296 = vmatpush1.bf16.msra.mxu0 %v2230
    %3297 = vmatprep.subr.bf16.mxu0 %v2239
    %3298 = vmatpush1.bf16.msra.mxu0 %v2238
    %3299 = vmatprep.subr.bf16.mxu0 %v2247
    %3300 = vmatpush1.bf16.msra.mxu0 %v2246
    %3301 = vmatprep.subr.bf16.mxu0 %v2255
    %3302 = vmatpush1.bf16.msra.mxu0 %v2254
    %3303 = vmatprep.subr.bf16.mxu0 %v2263
    %3304 = vmatpush1.bf16.msra.mxu0 %v2262
    %3305 = vmatprep.mubr.bf16.mxu0 %v973
    %3306 = vmatmul.mubr.bf16.gmra.mrb[0].mxu0 %v972
    %v3307 = vpop.f32.mrb[0].mxu0
    %v3308 = vadd.f32 %v950, %v3307
    %v3309 = vpop.f32.mrb[0].mxu0
    %v3310 = vadd.f32 %v954, %v3309
    %v3311 = vpop.f32.mrb[0].mxu0
    %v3312 = vpop.f32.mrb[0].mxu0
    %3313 = vdwg.mxu0
    %3314 = vmatprep.subr.bf16.mxu0 %v2271
    %3315 = vmatpush1.bf16.msra.mxu0 %v2270
    %3316 = vmatprep.subr.bf16.mxu0 %v2279
    %3317 = vmatpush1.bf16.msra.mxu0 %v2278
    %3318 = vmatprep.subr.bf16.mxu0 %v2287
    %3319 = vmatpush1.bf16.msra.mxu0 %v2286
    %3320 = vmatprep.subr.bf16.mxu0 %v2295
    %3321 = vmatpush1.bf16.msra.mxu0 %v2294
    %3322 = vmatprep.subr.bf16.mxu0 %v2303
    %3323 = vmatpush1.bf16.msra.mxu0 %v2302
    %3324 = vmatprep.subr.bf16.mxu0 %v2311
    %3325 = vmatpush1.bf16.msra.mxu0 %v2310
    %3326 = vmatprep.subr.bf16.mxu0 %v2319
    %3327 = vmatpush1.bf16.msra.mxu0 %v2318
    %3328 = vmatprep.subr.bf16.mxu0 %v2327
    %3329 = vmatpush1.bf16.msra.mxu0 %v2326
    %3330 = vmatprep.subr.bf16.mxu0 %v2335
    %3331 = vmatpush1.bf16.msra.mxu0 %v2334
    %3332 = vmatprep.subr.bf16.mxu0 %v2343
    %3333 = vmatpush1.bf16.msra.mxu0 %v2342
    %3334 = vmatprep.subr.bf16.mxu0 %v2351
    %3335 = vmatpush1.bf16.msra.mxu0 %v2350
    %3336 = vmatprep.subr.bf16.mxu0 %v2359
    %3337 = vmatpush1.bf16.msra.mxu0 %v2358
    %3338 = vmatprep.subr.bf16.mxu0 %v2367
    %3339 = vmatpush1.bf16.msra.mxu0 %v2366
    %3340 = vmatprep.subr.bf16.mxu0 %v2375
    %3341 = vmatpush1.bf16.msra.mxu0 %v2374
    %3342 = vmatprep.subr.bf16.mxu0 %v2383
    %3343 = vmatpush1.bf16.msra.mxu0 %v2382
    %3344 = vmatprep.subr.bf16.mxu0 %v2391
    %3345 = vmatpush1.bf16.msra.mxu0 %v2390
    %3346 = vmatprep.mubr.bf16.mxu0 %v975
    %3347 = vmatmul.mubr.bf16.gmra.mrb[0].mxu0 %v974
    %v3348 = vpop.f32.mrb[0].mxu0
    %v3349 = vadd.f32 %v3308, %v3348
    %v3350 = vpop.f32.mrb[0].mxu0
    %v3351 = vadd.f32 %v3310, %v3350
    %v3352 = vpop.f32.mrb[0].mxu0
    %v3353 = vpop.f32.mrb[0].mxu0
    %3354 = vdwg.mxu0
    %3355 = vmatprep.subr.bf16.mxu0 %v2399
    %3356 = vmatpush1.bf16.msra.mxu0 %v2398
    %3357 = vmatprep.subr.bf16.mxu0 %v2407
    %3358 = vmatpush1.bf16.msra.mxu0 %v2406
    %3359 = vmatprep.subr.bf16.mxu0 %v2415
    %3360 = vmatpush1.bf16.msra.mxu0 %v2414
    %3361 = vmatprep.subr.bf16.mxu0 %v2423
    %3362 = vmatpush1.bf16.msra.mxu0 %v2422
    %3363 = vmatprep.subr.bf16.mxu0 %v2431
    %3364 = vmatpush1.bf16.msra.mxu0 %v2430
    %3365 = vmatprep.subr.bf16.mxu0 %v2439
    %3366 = vmatpush1.bf16.msra.mxu0 %v2438
    %3367 = vmatprep.subr.bf16.mxu0 %v2447
    %3368 = vmatpush1.bf16.msra.mxu0 %v2446
    %3369 = vmatprep.subr.bf16.mxu0 %v2455
    %3370 = vmatpush1.bf16.msra.mxu0 %v2454
    %3371 = vmatprep.subr.bf16.mxu0 %v2463
    %3372 = vmatpush1.bf16.msra.mxu0 %v2462
    %3373 = vmatprep.subr.bf16.mxu0 %v2471
    %3374 = vmatpush1.bf16.msra.mxu0 %v2470
    %3375 = vmatprep.subr.bf16.mxu0 %v2479
    %3376 = vmatpush1.bf16.msra.mxu0 %v2478
    %3377 = vmatprep.subr.bf16.mxu0 %v2487
    %3378 = vmatpush1.bf16.msra.mxu0 %v2486
    %3379 = vmatprep.subr.bf16.mxu0 %v2495
    %3380 = vmatpush1.bf16.msra.mxu0 %v2494
    %3381 = vmatprep.subr.bf16.mxu0 %v2503
    %3382 = vmatpush1.bf16.msra.mxu0 %v2502
    %3383 = vmatprep.subr.bf16.mxu0 %v2511
    %3384 = vmatpush1.bf16.msra.mxu0 %v2510
    %3385 = vmatprep.subr.bf16.mxu0 %v2519
    %3386 = vmatpush1.bf16.msra.mxu0 %v2518
    %3387 = vmatprep.mubr.bf16.mxu0 %v977
    %3388 = vmatmul.mubr.bf16.gmra.mrb[0].mxu0 %v976
    %v3389 = vpop.f32.mrb[0].mxu0
    %v3390 = vadd.f32 %v3349, %v3389
    %v3391 = vpop.f32.mrb[0].mxu0
    %v3392 = vadd.f32 %v3351, %v3391
    %v3393 = vpop.f32.mrb[0].mxu0
    %v3394 = vpop.f32.mrb[0].mxu0
    %3395 = vdwg.mxu0
    %v3396 = vpack.c.bf16 %v3021, %v3021
    %v3397 = vpack.c.bf16 %v3023, %v3023
    %v3398 = vpack.c.bf16 %v3144, %v3144
    %v3399 = vpack.c.bf16 %v3146, %v3146
    %v3400 = vpack.c.bf16 %v3267, %v3267
    %v3401 = vpack.c.bf16 %v3269, %v3269
    %v3402 = vpack.c.bf16 %v3390, %v3390
    %v3403 = vpack.c.bf16 %v3392, %v3392
    %v3404 = vld [vmem:[#allocation6] sm:$0xff]
    %v3405 = vld [vmem:[#allocation6 + $0x8] sm:$0xff]
    %v3406 = vld [vmem:[#allocation6 + $0x10] sm:$0xff]
    %v3407 = vld [vmem:[#allocation6 + $0x18] sm:$0xff]
    %v3408 = vld [vmem:[#allocation6 + $0x20] sm:$0xff]
    %v3409 = vld [vmem:[#allocation6 + $0x28] sm:$0xff]
    %v3410 = vld [vmem:[#allocation6 + $0x30] sm:$0xff]
    %v3411 = vld [vmem:[#allocation6 + $0x38] sm:$0xff]
    %v3412 = vld [vmem:[#allocation6 + $0x40] sm:$0xff]
    %v3413 = vld [vmem:[#allocation6 + $0x48] sm:$0xff]
    %v3414 = vld [vmem:[#allocation6 + $0x50] sm:$0xff]
    %v3415 = vld [vmem:[#allocation6 + $0x58] sm:$0xff]
    %v3416 = vld [vmem:[#allocation6 + $0x60] sm:$0xff]
    %v3417 = vld [vmem:[#allocation6 + $0x68] sm:$0xff]
    %v3418 = vld [vmem:[#allocation6 + $0x70] sm:$0xff]
    %v3419 = vld [vmem:[#allocation6 + $0x78] sm:$0xff]
    %v3420 = vld [vmem:[#allocation6 + $0x80] sm:$0xff]
    %v3421 = vld [vmem:[#allocation6 + $0x88] sm:$0xff]
    %v3422 = vld [vmem:[#allocation6 + $0x90] sm:$0xff]
    %v3423 = vld [vmem:[#allocation6 + $0x98] sm:$0xff]
    %v3424 = vld [vmem:[#allocation6 + $0xa0] sm:$0xff]
    %v3425 = vld [vmem:[#allocation6 + $0xa8] sm:$0xff]
    %v3426 = vld [vmem:[#allocation6 + $0xb0] sm:$0xff]
    %v3427 = vld [vmem:[#allocation6 + $0xb8] sm:$0xff]
    %v3428 = vld [vmem:[#allocation6 + $0xc0] sm:$0xff]
    %v3429 = vld [vmem:[#allocation6 + $0xc8] sm:$0xff]
    %v3430 = vld [vmem:[#allocation6 + $0xd0] sm:$0xff]
    %v3431 = vld [vmem:[#allocation6 + $0xd8] sm:$0xff]
    %v3432 = vld [vmem:[#allocation6 + $0xe0] sm:$0xff]
    %v3433 = vld [vmem:[#allocation6 + $0xe8] sm:$0xff]
    %v3434 = vld [vmem:[#allocation6 + $0xf0] sm:$0xff]
    %v3435 = vld [vmem:[#allocation6 + $0xf8] sm:$0xff]
    %v3436 = vld [vmem:[#allocation6 + $0x100] sm:$0xff]
    %v3437 = vld [vmem:[#allocation6 + $0x108] sm:$0xff]
    %v3438 = vld [vmem:[#allocation6 + $0x110] sm:$0xff]
    %v3439 = vld [vmem:[#allocation6 + $0x118] sm:$0xff]
    %v3440 = vld [vmem:[#allocation6 + $0x120] sm:$0xff]
    %v3441 = vld [vmem:[#allocation6 + $0x128] sm:$0xff]
    %v3442 = vld [vmem:[#allocation6 + $0x130] sm:$0xff]
    %v3443 = vld [vmem:[#allocation6 + $0x138] sm:$0xff]
    %v3444 = vld [vmem:[#allocation6 + $0x140] sm:$0xff]
    %v3445 = vld [vmem:[#allocation6 + $0x148] sm:$0xff]
    %v3446 = vld [vmem:[#allocation6 + $0x150] sm:$0xff]
    %v3447 = vld [vmem:[#allocation6 + $0x158] sm:$0xff]
    %v3448 = vld [vmem:[#allocation6 + $0x160] sm:$0xff]
    %v3449 = vld [vmem:[#allocation6 + $0x168] sm:$0xff]
    %v3450 = vld [vmem:[#allocation6 + $0x170] sm:$0xff]
    %v3451 = vld [vmem:[#allocation6 + $0x178] sm:$0xff]
    %v3452 = vld [vmem:[#allocation6 + $0x180] sm:$0xff]
    %v3453 = vld [vmem:[#allocation6 + $0x188] sm:$0xff]
    %v3454 = vld [vmem:[#allocation6 + $0x190] sm:$0xff]
    %v3455 = vld [vmem:[#allocation6 + $0x198] sm:$0xff]
    %v3456 = vld [vmem:[#allocation6 + $0x1a0] sm:$0xff]
    %v3457 = vld [vmem:[#allocation6 + $0x1a8] sm:$0xff]
    %v3458 = vld [vmem:[#allocation6 + $0x1b0] sm:$0xff]
    %v3459 = vld [vmem:[#allocation6 + $0x1b8] sm:$0xff]
    %v3460 = vld [vmem:[#allocation6 + $0x1c0] sm:$0xff]
    %v3461 = vld [vmem:[#allocation6 + $0x1c8] sm:$0xff]
    %v3462 = vld [vmem:[#allocation6 + $0x1d0] sm:$0xff]
    %v3463 = vld [vmem:[#allocation6 + $0x1d8] sm:$0xff]
    %v3464 = vld [vmem:[#allocation6 + $0x1e0] sm:$0xff]
    %v3465 = vld [vmem:[#allocation6 + $0x1e8] sm:$0xff]
    %v3466 = vld [vmem:[#allocation6 + $0x1f0] sm:$0xff]
    %v3467 = vld [vmem:[#allocation6 + $0x1f8] sm:$0xff]
    %v3468 = vld [vmem:[#allocation6 + $0x200] sm:$0xff]
    %v3469 = vld [vmem:[#allocation6 + $0x208] sm:$0xff]
    %v3470 = vld [vmem:[#allocation6 + $0x210] sm:$0xff]
    %v3471 = vld [vmem:[#allocation6 + $0x218] sm:$0xff]
    %v3472 = vld [vmem:[#allocation6 + $0x220] sm:$0xff]
    %v3473 = vld [vmem:[#allocation6 + $0x228] sm:$0xff]
    %v3474 = vld [vmem:[#allocation6 + $0x230] sm:$0xff]
    %v3475 = vld [vmem:[#allocation6 + $0x238] sm:$0xff]
    %v3476 = vld [vmem:[#allocation6 + $0x240] sm:$0xff]
    %v3477 = vld [vmem:[#allocation6 + $0x248] sm:$0xff]
    %v3478 = vld [vmem:[#allocation6 + $0x250] sm:$0xff]
    %v3479 = vld [vmem:[#allocation6 + $0x258] sm:$0xff]
    %v3480 = vld [vmem:[#allocation6 + $0x260] sm:$0xff]
    %v3481 = vld [vmem:[#allocation6 + $0x268] sm:$0xff]
    %v3482 = vld [vmem:[#allocation6 + $0x270] sm:$0xff]
    %v3483 = vld [vmem:[#allocation6 + $0x278] sm:$0xff]
    %v3484 = vld [vmem:[#allocation6 + $0x280] sm:$0xff]
    %v3485 = vld [vmem:[#allocation6 + $0x288] sm:$0xff]
    %v3486 = vld [vmem:[#allocation6 + $0x290] sm:$0xff]
    %v3487 = vld [vmem:[#allocation6 + $0x298] sm:$0xff]
    %v3488 = vld [vmem:[#allocation6 + $0x2a0] sm:$0xff]
    %v3489 = vld [vmem:[#allocation6 + $0x2a8] sm:$0xff]
    %v3490 = vld [vmem:[#allocation6 + $0x2b0] sm:$0xff]
    %v3491 = vld [vmem:[#allocation6 + $0x2b8] sm:$0xff]
    %v3492 = vld [vmem:[#allocation6 + $0x2c0] sm:$0xff]
    %v3493 = vld [vmem:[#allocation6 + $0x2c8] sm:$0xff]
    %v3494 = vld [vmem:[#allocation6 + $0x2d0] sm:$0xff]
    %v3495 = vld [vmem:[#allocation6 + $0x2d8] sm:$0xff]
    %v3496 = vld [vmem:[#allocation6 + $0x2e0] sm:$0xff]
    %v3497 = vld [vmem:[#allocation6 + $0x2e8] sm:$0xff]
    %v3498 = vld [vmem:[#allocation6 + $0x2f0] sm:$0xff]
    %v3499 = vld [vmem:[#allocation6 + $0x2f8] sm:$0xff]
    %v3500 = vld [vmem:[#allocation6 + $0x300] sm:$0xff]
    %v3501 = vld [vmem:[#allocation6 + $0x308] sm:$0xff]
    %v3502 = vld [vmem:[#allocation6 + $0x310] sm:$0xff]
    %v3503 = vld [vmem:[#allocation6 + $0x318] sm:$0xff]
    %v3504 = vld [vmem:[#allocation6 + $0x320] sm:$0xff]
    %v3505 = vld [vmem:[#allocation6 + $0x328] sm:$0xff]
    %v3506 = vld [vmem:[#allocation6 + $0x330] sm:$0xff]
    %v3507 = vld [vmem:[#allocation6 + $0x338] sm:$0xff]
    %v3508 = vld [vmem:[#allocation6 + $0x340] sm:$0xff]
    %v3509 = vld [vmem:[#allocation6 + $0x348] sm:$0xff]
    %v3510 = vld [vmem:[#allocation6 + $0x350] sm:$0xff]
    %v3511 = vld [vmem:[#allocation6 + $0x358] sm:$0xff]
    %v3512 = vld [vmem:[#allocation6 + $0x360] sm:$0xff]
    %v3513 = vld [vmem:[#allocation6 + $0x368] sm:$0xff]
    %v3514 = vld [vmem:[#allocation6 + $0x370] sm:$0xff]
    %v3515 = vld [vmem:[#allocation6 + $0x378] sm:$0xff]
    %v3516 = vld [vmem:[#allocation6 + $0x380] sm:$0xff]
    %v3517 = vld [vmem:[#allocation6 + $0x388] sm:$0xff]
    %v3518 = vld [vmem:[#allocation6 + $0x390] sm:$0xff]
    %v3519 = vld [vmem:[#allocation6 + $0x398] sm:$0xff]
    %v3520 = vld [vmem:[#allocation6 + $0x3a0] sm:$0xff]
    %v3521 = vld [vmem:[#allocation6 + $0x3a8] sm:$0xff]
    %v3522 = vld [vmem:[#allocation6 + $0x3b0] sm:$0xff]
    %v3523 = vld [vmem:[#allocation6 + $0x3b8] sm:$0xff]
    %v3524 = vld [vmem:[#allocation6 + $0x3c0] sm:$0xff]
    %v3525 = vld [vmem:[#allocation6 + $0x3c8] sm:$0xff]
    %v3526 = vld [vmem:[#allocation6 + $0x3d0] sm:$0xff]
    %v3527 = vld [vmem:[#allocation6 + $0x3d8] sm:$0xff]
    %v3528 = vld [vmem:[#allocation6 + $0x3e0] sm:$0xff]
    %v3529 = vld [vmem:[#allocation6 + $0x3e8] sm:$0xff]
    %v3530 = vld [vmem:[#allocation6 + $0x3f0] sm:$0xff]
    %v3531 = vld [vmem:[#allocation6 + $0x3f8] sm:$0xff]
    %v3532 = vld [vmem:[#allocation6 + $0x400] sm:$0xff]
    %v3533 = vld [vmem:[#allocation6 + $0x408] sm:$0xff]
    %v3534 = vld [vmem:[#allocation6 + $0x410] sm:$0xff]
    %v3535 = vld [vmem:[#allocation6 + $0x418] sm:$0xff]
    %v3536 = vld [vmem:[#allocation6 + $0x420] sm:$0xff]
    %v3537 = vld [vmem:[#allocation6 + $0x428] sm:$0xff]
    %v3538 = vld [vmem:[#allocation6 + $0x430] sm:$0xff]
    %v3539 = vld [vmem:[#allocation6 + $0x438] sm:$0xff]
    %v3540 = vld [vmem:[#allocation6 + $0x440] sm:$0xff]
    %v3541 = vld [vmem:[#allocation6 + $0x448] sm:$0xff]
    %v3542 = vld [vmem:[#allocation6 + $0x450] sm:$0xff]
    %v3543 = vld [vmem:[#allocation6 + $0x458] sm:$0xff]
    %v3544 = vld [vmem:[#allocation6 + $0x460] sm:$0xff]
    %v3545 = vld [vmem:[#allocation6 + $0x468] sm:$0xff]
    %v3546 = vld [vmem:[#allocation6 + $0x470] sm:$0xff]
    %v3547 = vld [vmem:[#allocation6 + $0x478] sm:$0xff]
    %v3548 = vld [vmem:[#allocation6 + $0x480] sm:$0xff]
    %v3549 = vld [vmem:[#allocation6 + $0x488] sm:$0xff]
    %v3550 = vld [vmem:[#allocation6 + $0x490] sm:$0xff]
    %v3551 = vld [vmem:[#allocation6 + $0x498] sm:$0xff]
    %v3552 = vld [vmem:[#allocation6 + $0x4a0] sm:$0xff]
    %v3553 = vld [vmem:[#allocation6 + $0x4a8] sm:$0xff]
    %v3554 = vld [vmem:[#allocation6 + $0x4b0] sm:$0xff]
    %v3555 = vld [vmem:[#allocation6 + $0x4b8] sm:$0xff]
    %v3556 = vld [vmem:[#allocation6 + $0x4c0] sm:$0xff]
    %v3557 = vld [vmem:[#allocation6 + $0x4c8] sm:$0xff]
    %v3558 = vld [vmem:[#allocation6 + $0x4d0] sm:$0xff]
    %v3559 = vld [vmem:[#allocation6 + $0x4d8] sm:$0xff]
    %v3560 = vld [vmem:[#allocation6 + $0x4e0] sm:$0xff]
    %v3561 = vld [vmem:[#allocation6 + $0x4e8] sm:$0xff]
    %v3562 = vld [vmem:[#allocation6 + $0x4f0] sm:$0xff]
    %v3563 = vld [vmem:[#allocation6 + $0x4f8] sm:$0xff]
    %v3564 = vld [vmem:[#allocation6 + $0x500] sm:$0xff]
    %v3565 = vld [vmem:[#allocation6 + $0x508] sm:$0xff]
    %v3566 = vld [vmem:[#allocation6 + $0x510] sm:$0xff]
    %v3567 = vld [vmem:[#allocation6 + $0x518] sm:$0xff]
    %v3568 = vld [vmem:[#allocation6 + $0x520] sm:$0xff]
    %v3569 = vld [vmem:[#allocation6 + $0x528] sm:$0xff]
    %v3570 = vld [vmem:[#allocation6 + $0x530] sm:$0xff]
    %v3571 = vld [vmem:[#allocation6 + $0x538] sm:$0xff]
    %v3572 = vld [vmem:[#allocation6 + $0x540] sm:$0xff]
    %v3573 = vld [vmem:[#allocation6 + $0x548] sm:$0xff]
    %v3574 = vld [vmem:[#allocation6 + $0x550] sm:$0xff]
    %v3575 = vld [vmem:[#allocation6 + $0x558] sm:$0xff]
    %v3576 = vld [vmem:[#allocation6 + $0x560] sm:$0xff]
    %v3577 = vld [vmem:[#allocation6 + $0x568] sm:$0xff]
    %v3578 = vld [vmem:[#allocation6 + $0x570] sm:$0xff]
    %v3579 = vld [vmem:[#allocation6 + $0x578] sm:$0xff]
    %v3580 = vld [vmem:[#allocation6 + $0x580] sm:$0xff]
    %v3581 = vld [vmem:[#allocation6 + $0x588] sm:$0xff]
    %v3582 = vld [vmem:[#allocation6 + $0x590] sm:$0xff]
    %v3583 = vld [vmem:[#allocation6 + $0x598] sm:$0xff]
    %v3584 = vld [vmem:[#allocation6 + $0x5a0] sm:$0xff]
    %v3585 = vld [vmem:[#allocation6 + $0x5a8] sm:$0xff]
    %v3586 = vld [vmem:[#allocation6 + $0x5b0] sm:$0xff]
    %v3587 = vld [vmem:[#allocation6 + $0x5b8] sm:$0xff]
    %v3588 = vld [vmem:[#allocation6 + $0x5c0] sm:$0xff]
    %v3589 = vld [vmem:[#allocation6 + $0x5c8] sm:$0xff]
    %v3590 = vld [vmem:[#allocation6 + $0x5d0] sm:$0xff]
    %v3591 = vld [vmem:[#allocation6 + $0x5d8] sm:$0xff]
    %v3592 = vld [vmem:[#allocation6 + $0x5e0] sm:$0xff]
    %v3593 = vld [vmem:[#allocation6 + $0x5e8] sm:$0xff]
    %v3594 = vld [vmem:[#allocation6 + $0x5f0] sm:$0xff]
    %v3595 = vld [vmem:[#allocation6 + $0x5f8] sm:$0xff]
    %v3596 = vld [vmem:[#allocation6 + $0x600] sm:$0xff]
    %v3597 = vld [vmem:[#allocation6 + $0x608] sm:$0xff]
    %v3598 = vld [vmem:[#allocation6 + $0x610] sm:$0xff]
    %v3599 = vld [vmem:[#allocation6 + $0x618] sm:$0xff]
    %v3600 = vld [vmem:[#allocation6 + $0x620] sm:$0xff]
    %v3601 = vld [vmem:[#allocation6 + $0x628] sm:$0xff]
    %v3602 = vld [vmem:[#allocation6 + $0x630] sm:$0xff]
    %v3603 = vld [vmem:[#allocation6 + $0x638] sm:$0xff]
    %v3604 = vld [vmem:[#allocation6 + $0x640] sm:$0xff]
    %v3605 = vld [vmem:[#allocation6 + $0x648] sm:$0xff]
    %v3606 = vld [vmem:[#allocation6 + $0x650] sm:$0xff]
    %v3607 = vld [vmem:[#allocation6 + $0x658] sm:$0xff]
    %v3608 = vld [vmem:[#allocation6 + $0x660] sm:$0xff]
    %v3609 = vld [vmem:[#allocation6 + $0x668] sm:$0xff]
    %v3610 = vld [vmem:[#allocation6 + $0x670] sm:$0xff]
    %v3611 = vld [vmem:[#allocation6 + $0x678] sm:$0xff]
    %v3612 = vld [vmem:[#allocation6 + $0x680] sm:$0xff]
    %v3613 = vld [vmem:[#allocation6 + $0x688] sm:$0xff]
    %v3614 = vld [vmem:[#allocation6 + $0x690] sm:$0xff]
    %v3615 = vld [vmem:[#allocation6 + $0x698] sm:$0xff]
    %v3616 = vld [vmem:[#allocation6 + $0x6a0] sm:$0xff]
    %v3617 = vld [vmem:[#allocation6 + $0x6a8] sm:$0xff]
    %v3618 = vld [vmem:[#allocation6 + $0x6b0] sm:$0xff]
    %v3619 = vld [vmem:[#allocation6 + $0x6b8] sm:$0xff]
    %v3620 = vld [vmem:[#allocation6 + $0x6c0] sm:$0xff]
    %v3621 = vld [vmem:[#allocation6 + $0x6c8] sm:$0xff]
    %v3622 = vld [vmem:[#allocation6 + $0x6d0] sm:$0xff]
    %v3623 = vld [vmem:[#allocation6 + $0x6d8] sm:$0xff]
    %v3624 = vld [vmem:[#allocation6 + $0x6e0] sm:$0xff]
    %v3625 = vld [vmem:[#allocation6 + $0x6e8] sm:$0xff]
    %v3626 = vld [vmem:[#allocation6 + $0x6f0] sm:$0xff]
    %v3627 = vld [vmem:[#allocation6 + $0x6f8] sm:$0xff]
    %v3628 = vld [vmem:[#allocation6 + $0x700] sm:$0xff]
    %v3629 = vld [vmem:[#allocation6 + $0x708] sm:$0xff]
    %v3630 = vld [vmem:[#allocation6 + $0x710] sm:$0xff]
    %v3631 = vld [vmem:[#allocation6 + $0x718] sm:$0xff]
    %v3632 = vld [vmem:[#allocation6 + $0x720] sm:$0xff]
    %v3633 = vld [vmem:[#allocation6 + $0x728] sm:$0xff]
    %v3634 = vld [vmem:[#allocation6 + $0x730] sm:$0xff]
    %v3635 = vld [vmem:[#allocation6 + $0x738] sm:$0xff]
    %v3636 = vld [vmem:[#allocation6 + $0x740] sm:$0xff]
    %v3637 = vld [vmem:[#allocation6 + $0x748] sm:$0xff]
    %v3638 = vld [vmem:[#allocation6 + $0x750] sm:$0xff]
    %v3639 = vld [vmem:[#allocation6 + $0x758] sm:$0xff]
    %v3640 = vld [vmem:[#allocation6 + $0x760] sm:$0xff]
    %v3641 = vld [vmem:[#allocation6 + $0x768] sm:$0xff]
    %v3642 = vld [vmem:[#allocation6 + $0x770] sm:$0xff]
    %v3643 = vld [vmem:[#allocation6 + $0x778] sm:$0xff]
    %v3644 = vld [vmem:[#allocation6 + $0x780] sm:$0xff]
    %v3645 = vld [vmem:[#allocation6 + $0x788] sm:$0xff]
    %v3646 = vld [vmem:[#allocation6 + $0x790] sm:$0xff]
    %v3647 = vld [vmem:[#allocation6 + $0x798] sm:$0xff]
    %v3648 = vld [vmem:[#allocation6 + $0x7a0] sm:$0xff]
    %v3649 = vld [vmem:[#allocation6 + $0x7a8] sm:$0xff]
    %v3650 = vld [vmem:[#allocation6 + $0x7b0] sm:$0xff]
    %v3651 = vld [vmem:[#allocation6 + $0x7b8] sm:$0xff]
    %v3652 = vld [vmem:[#allocation6 + $0x7c0] sm:$0xff]
    %v3653 = vld [vmem:[#allocation6 + $0x7c8] sm:$0xff]
    %v3654 = vld [vmem:[#allocation6 + $0x7d0] sm:$0xff]
    %v3655 = vld [vmem:[#allocation6 + $0x7d8] sm:$0xff]
    %v3656 = vld [vmem:[#allocation6 + $0x7e0] sm:$0xff]
    %v3657 = vld [vmem:[#allocation6 + $0x7e8] sm:$0xff]
    %v3658 = vld [vmem:[#allocation6 + $0x7f0] sm:$0xff]
    %v3659 = vld [vmem:[#allocation6 + $0x7f8] sm:$0xff]
    %v3660 = vld [vmem:[#allocation7] sm:$0xf]
    %v3662 = vlaneseq
    %v3663 = vshrl.u32 %v3662, 7
    %v3664 = vsub.s32 0, %v3663
    %v3665 = vrot.slane %v3660, %v3664
    %v3666 = vlaneseq
    %v3667 = vshrl.u32 %v3666, 7
    %v3668 = vsub.s32 1, %v3667
    %v3669 = vrot.slane %v3660, %v3668
    %v3670 = vlaneseq
    %v3671 = vshrl.u32 %v3670, 7
    %v3672 = vsub.s32 2, %v3671
    %v3673 = vrot.slane %v3660, %v3672
    %v3674 = vlaneseq
    %v3675 = vshrl.u32 %v3674, 7
    %v3676 = vsub.s32 3, %v3675
    %v3677 = vrot.slane %v3660, %v3676
    %v3938 = vunpack.c.l.b16 %v3404
    %v3939 = vunpack.c.h.b16 %v3404
    %v3940 = vunpack.c.l.b16 %v3405
    %v3941 = vunpack.c.h.b16 %v3405
    %v3942 = vunpack.c.l.b16 %v3406
    %v3943 = vunpack.c.h.b16 %v3406
    %v3944 = vunpack.c.l.b16 %v3407
    %v3945 = vunpack.c.h.b16 %v3407
    %v3946 = vunpack.c.l.b16 %v3408
    %v3947 = vunpack.c.h.b16 %v3408
    %v3948 = vunpack.c.l.b16 %v3409
    %v3949 = vunpack.c.h.b16 %v3409
    %v3950 = vunpack.c.l.b16 %v3410
    %v3951 = vunpack.c.h.b16 %v3410
    %v3952 = vunpack.c.l.b16 %v3411
    %v3953 = vunpack.c.h.b16 %v3411
    %v3954 = vunpack.c.l.b16 %v3412
    %v3955 = vunpack.c.h.b16 %v3412
    %v3956 = vunpack.c.l.b16 %v3413
    %v3957 = vunpack.c.h.b16 %v3413
    %v3958 = vunpack.c.l.b16 %v3414
    %v3959 = vunpack.c.h.b16 %v3414
    %v3960 = vunpack.c.l.b16 %v3415
    %v3961 = vunpack.c.h.b16 %v3415
    %v3962 = vunpack.c.l.b16 %v3416
    %v3963 = vunpack.c.h.b16 %v3416
    %v3964 = vunpack.c.l.b16 %v3417
    %v3965 = vunpack.c.h.b16 %v3417
    %v3966 = vunpack.c.l.b16 %v3418
    %v3967 = vunpack.c.h.b16 %v3418
    %v3968 = vunpack.c.l.b16 %v3419
    %v3969 = vunpack.c.h.b16 %v3419
    %v3970 = vunpack.c.l.b16 %v3420
    %v3971 = vunpack.c.h.b16 %v3420
    %v3972 = vunpack.c.l.b16 %v3421
    %v3973 = vunpack.c.h.b16 %v3421
    %v3974 = vunpack.c.l.b16 %v3422
    %v3975 = vunpack.c.h.b16 %v3422
    %v3976 = vunpack.c.l.b16 %v3423
    %v3977 = vunpack.c.h.b16 %v3423
    %v3978 = vunpack.c.l.b16 %v3424
    %v3979 = vunpack.c.h.b16 %v3424
    %v3980 = vunpack.c.l.b16 %v3425
    %v3981 = vunpack.c.h.b16 %v3425
    %v3982 = vunpack.c.l.b16 %v3426
    %v3983 = vunpack.c.h.b16 %v3426
    %v3984 = vunpack.c.l.b16 %v3427
    %v3985 = vunpack.c.h.b16 %v3427
    %v3986 = vunpack.c.l.b16 %v3428
    %v3987 = vunpack.c.h.b16 %v3428
    %v3988 = vunpack.c.l.b16 %v3429
    %v3989 = vunpack.c.h.b16 %v3429
    %v3990 = vunpack.c.l.b16 %v3430
    %v3991 = vunpack.c.h.b16 %v3430
    %v3992 = vunpack.c.l.b16 %v3431
    %v3993 = vunpack.c.h.b16 %v3431
    %v3994 = vunpack.c.l.b16 %v3432
    %v3995 = vunpack.c.h.b16 %v3432
    %v3996 = vunpack.c.l.b16 %v3433
    %v3997 = vunpack.c.h.b16 %v3433
    %v3998 = vunpack.c.l.b16 %v3434
    %v3999 = vunpack.c.h.b16 %v3434
    %v4000 = vunpack.c.l.b16 %v3435
    %v4001 = vunpack.c.h.b16 %v3435
    %v4002 = vunpack.c.l.b16 %v3436
    %v4003 = vunpack.c.h.b16 %v3436
    %v4004 = vunpack.c.l.b16 %v3437
    %v4005 = vunpack.c.h.b16 %v3437
    %v4006 = vunpack.c.l.b16 %v3438
    %v4007 = vunpack.c.h.b16 %v3438
    %v4008 = vunpack.c.l.b16 %v3439
    %v4009 = vunpack.c.h.b16 %v3439
    %v4010 = vunpack.c.l.b16 %v3440
    %v4011 = vunpack.c.h.b16 %v3440
    %v4012 = vunpack.c.l.b16 %v3441
    %v4013 = vunpack.c.h.b16 %v3441
    %v4014 = vunpack.c.l.b16 %v3442
    %v4015 = vunpack.c.h.b16 %v3442
    %v4016 = vunpack.c.l.b16 %v3443
    %v4017 = vunpack.c.h.b16 %v3443
    %v4018 = vunpack.c.l.b16 %v3444
    %v4019 = vunpack.c.h.b16 %v3444
    %v4020 = vunpack.c.l.b16 %v3445
    %v4021 = vunpack.c.h.b16 %v3445
    %v4022 = vunpack.c.l.b16 %v3446
    %v4023 = vunpack.c.h.b16 %v3446
    %v4024 = vunpack.c.l.b16 %v3447
    %v4025 = vunpack.c.h.b16 %v3447
    %v4026 = vunpack.c.l.b16 %v3448
    %v4027 = vunpack.c.h.b16 %v3448
    %v4028 = vunpack.c.l.b16 %v3449
    %v4029 = vunpack.c.h.b16 %v3449
    %v4030 = vunpack.c.l.b16 %v3450
    %v4031 = vunpack.c.h.b16 %v3450
    %v4032 = vunpack.c.l.b16 %v3451
    %v4033 = vunpack.c.h.b16 %v3451
    %v4034 = vunpack.c.l.b16 %v3452
    %v4035 = vunpack.c.h.b16 %v3452
    %v4036 = vunpack.c.l.b16 %v3453
    %v4037 = vunpack.c.h.b16 %v3453
    %v4038 = vunpack.c.l.b16 %v3454
    %v4039 = vunpack.c.h.b16 %v3454
    %v4040 = vunpack.c.l.b16 %v3455
    %v4041 = vunpack.c.h.b16 %v3455
    %v4042 = vunpack.c.l.b16 %v3456
    %v4043 = vunpack.c.h.b16 %v3456
    %v4044 = vunpack.c.l.b16 %v3457
    %v4045 = vunpack.c.h.b16 %v3457
    %v4046 = vunpack.c.l.b16 %v3458
    %v4047 = vunpack.c.h.b16 %v3458
    %v4048 = vunpack.c.l.b16 %v3459
    %v4049 = vunpack.c.h.b16 %v3459
    %v4050 = vunpack.c.l.b16 %v3460
    %v4051 = vunpack.c.h.b16 %v3460
    %v4052 = vunpack.c.l.b16 %v3461
    %v4053 = vunpack.c.h.b16 %v3461
    %v4054 = vunpack.c.l.b16 %v3462
    %v4055 = vunpack.c.h.b16 %v3462
    %v4056 = vunpack.c.l.b16 %v3463
    %v4057 = vunpack.c.h.b16 %v3463
    %v4058 = vunpack.c.l.b16 %v3464
    %v4059 = vunpack.c.h.b16 %v3464
    %v4060 = vunpack.c.l.b16 %v3465
    %v4061 = vunpack.c.h.b16 %v3465
    %v4062 = vunpack.c.l.b16 %v3466
    %v4063 = vunpack.c.h.b16 %v3466
    %v4064 = vunpack.c.l.b16 %v3467
    %v4065 = vunpack.c.h.b16 %v3467
    %v4066 = vunpack.c.l.b16 %v3468
    %v4067 = vunpack.c.h.b16 %v3468
    %v4068 = vunpack.c.l.b16 %v3469
    %v4069 = vunpack.c.h.b16 %v3469
    %v4070 = vunpack.c.l.b16 %v3470
    %v4071 = vunpack.c.h.b16 %v3470
    %v4072 = vunpack.c.l.b16 %v3471
    %v4073 = vunpack.c.h.b16 %v3471
    %v4074 = vunpack.c.l.b16 %v3472
    %v4075 = vunpack.c.h.b16 %v3472
    %v4076 = vunpack.c.l.b16 %v3473
    %v4077 = vunpack.c.h.b16 %v3473
    %v4078 = vunpack.c.l.b16 %v3474
    %v4079 = vunpack.c.h.b16 %v3474
    %v4080 = vunpack.c.l.b16 %v3475
    %v4081 = vunpack.c.h.b16 %v3475
    %v4082 = vunpack.c.l.b16 %v3476
    %v4083 = vunpack.c.h.b16 %v3476
    %v4084 = vunpack.c.l.b16 %v3477
    %v4085 = vunpack.c.h.b16 %v3477
    %v4086 = vunpack.c.l.b16 %v3478
    %v4087 = vunpack.c.h.b16 %v3478
    %v4088 = vunpack.c.l.b16 %v3479
    %v4089 = vunpack.c.h.b16 %v3479
    %v4090 = vunpack.c.l.b16 %v3480
    %v4091 = vunpack.c.h.b16 %v3480
    %v4092 = vunpack.c.l.b16 %v3481
    %v4093 = vunpack.c.h.b16 %v3481
    %v4094 = vunpack.c.l.b16 %v3482
    %v4095 = vunpack.c.h.b16 %v3482
    %v4096 = vunpack.c.l.b16 %v3483
    %v4097 = vunpack.c.h.b16 %v3483
    %v4098 = vunpack.c.l.b16 %v3484
    %v4099 = vunpack.c.h.b16 %v3484
    %v4100 = vunpack.c.l.b16 %v3485
    %v4101 = vunpack.c.h.b16 %v3485
    %v4102 = vunpack.c.l.b16 %v3486
    %v4103 = vunpack.c.h.b16 %v3486
    %v4104 = vunpack.c.l.b16 %v3487
    %v4105 = vunpack.c.h.b16 %v3487
    %v4106 = vunpack.c.l.b16 %v3488
    %v4107 = vunpack.c.h.b16 %v3488
    %v4108 = vunpack.c.l.b16 %v3489
    %v4109 = vunpack.c.h.b16 %v3489
    %v4110 = vunpack.c.l.b16 %v3490
    %v4111 = vunpack.c.h.b16 %v3490
    %v4112 = vunpack.c.l.b16 %v3491
    %v4113 = vunpack.c.h.b16 %v3491
    %v4114 = vunpack.c.l.b16 %v3492
    %v4115 = vunpack.c.h.b16 %v3492
    %v4116 = vunpack.c.l.b16 %v3493
    %v4117 = vunpack.c.h.b16 %v3493
    %v4118 = vunpack.c.l.b16 %v3494
    %v4119 = vunpack.c.h.b16 %v3494
    %v4120 = vunpack.c.l.b16 %v3495
    %v4121 = vunpack.c.h.b16 %v3495
    %v4122 = vunpack.c.l.b16 %v3496
    %v4123 = vunpack.c.h.b16 %v3496
    %v4124 = vunpack.c.l.b16 %v3497
    %v4125 = vunpack.c.h.b16 %v3497
    %v4126 = vunpack.c.l.b16 %v3498
    %v4127 = vunpack.c.h.b16 %v3498
    %v4128 = vunpack.c.l.b16 %v3499
    %v4129 = vunpack.c.h.b16 %v3499
    %v4130 = vunpack.c.l.b16 %v3500
    %v4131 = vunpack.c.h.b16 %v3500
    %v4132 = vunpack.c.l.b16 %v3501
    %v4133 = vunpack.c.h.b16 %v3501
    %v4134 = vunpack.c.l.b16 %v3502
    %v4135 = vunpack.c.h.b16 %v3502
    %v4136 = vunpack.c.l.b16 %v3503
    %v4137 = vunpack.c.h.b16 %v3503
    %v4138 = vunpack.c.l.b16 %v3504
    %v4139 = vunpack.c.h.b16 %v3504
    %v4140 = vunpack.c.l.b16 %v3505
    %v4141 = vunpack.c.h.b16 %v3505
    %v4142 = vunpack.c.l.b16 %v3506
    %v4143 = vunpack.c.h.b16 %v3506
    %v4144 = vunpack.c.l.b16 %v3507
    %v4145 = vunpack.c.h.b16 %v3507
    %v4146 = vunpack.c.l.b16 %v3508
    %v4147 = vunpack.c.h.b16 %v3508
    %v4148 = vunpack.c.l.b16 %v3509
    %v4149 = vunpack.c.h.b16 %v3509
    %v4150 = vunpack.c.l.b16 %v3510
    %v4151 = vunpack.c.h.b16 %v3510
    %v4152 = vunpack.c.l.b16 %v3511
    %v4153 = vunpack.c.h.b16 %v3511
    %v4154 = vunpack.c.l.b16 %v3512
    %v4155 = vunpack.c.h.b16 %v3512
    %v4156 = vunpack.c.l.b16 %v3513
    %v4157 = vunpack.c.h.b16 %v3513
    %v4158 = vunpack.c.l.b16 %v3514
    %v4159 = vunpack.c.h.b16 %v3514
    %v4160 = vunpack.c.l.b16 %v3515
    %v4161 = vunpack.c.h.b16 %v3515
    %v4162 = vunpack.c.l.b16 %v3516
    %v4163 = vunpack.c.h.b16 %v3516
    %v4164 = vunpack.c.l.b16 %v3517
    %v4165 = vunpack.c.h.b16 %v3517
    %v4166 = vunpack.c.l.b16 %v3518
    %v4167 = vunpack.c.h.b16 %v3518
    %v4168 = vunpack.c.l.b16 %v3519
    %v4169 = vunpack.c.h.b16 %v3519
    %v4170 = vunpack.c.l.b16 %v3520
    %v4171 = vunpack.c.h.b16 %v3520
    %v4172 = vunpack.c.l.b16 %v3521
    %v4173 = vunpack.c.h.b16 %v3521
    %v4174 = vunpack.c.l.b16 %v3522
    %v4175 = vunpack.c.h.b16 %v3522
    %v4176 = vunpack.c.l.b16 %v3523
    %v4177 = vunpack.c.h.b16 %v3523
    %v4178 = vunpack.c.l.b16 %v3524
    %v4179 = vunpack.c.h.b16 %v3524
    %v4180 = vunpack.c.l.b16 %v3525
    %v4181 = vunpack.c.h.b16 %v3525
    %v4182 = vunpack.c.l.b16 %v3526
    %v4183 = vunpack.c.h.b16 %v3526
    %v4184 = vunpack.c.l.b16 %v3527
    %v4185 = vunpack.c.h.b16 %v3527
    %v4186 = vunpack.c.l.b16 %v3528
    %v4187 = vunpack.c.h.b16 %v3528
    %v4188 = vunpack.c.l.b16 %v3529
    %v4189 = vunpack.c.h.b16 %v3529
    %v4190 = vunpack.c.l.b16 %v3530
    %v4191 = vunpack.c.h.b16 %v3530
    %v4192 = vunpack.c.l.b16 %v3531
    %v4193 = vunpack.c.h.b16 %v3531
    %v4194 = vunpack.c.l.b16 %v3532
    %v4195 = vunpack.c.h.b16 %v3532
    %v4196 = vunpack.c.l.b16 %v3533
    %v4197 = vunpack.c.h.b16 %v3533
    %v4198 = vunpack.c.l.b16 %v3534
    %v4199 = vunpack.c.h.b16 %v3534
    %v4200 = vunpack.c.l.b16 %v3535
    %v4201 = vunpack.c.h.b16 %v3535
    %v4202 = vunpack.c.l.b16 %v3536
    %v4203 = vunpack.c.h.b16 %v3536
    %v4204 = vunpack.c.l.b16 %v3537
    %v4205 = vunpack.c.h.b16 %v3537
    %v4206 = vunpack.c.l.b16 %v3538
    %v4207 = vunpack.c.h.b16 %v3538
    %v4208 = vunpack.c.l.b16 %v3539
    %v4209 = vunpack.c.h.b16 %v3539
    %v4210 = vunpack.c.l.b16 %v3540
    %v4211 = vunpack.c.h.b16 %v3540
    %v4212 = vunpack.c.l.b16 %v3541
    %v4213 = vunpack.c.h.b16 %v3541
    %v4214 = vunpack.c.l.b16 %v3542
    %v4215 = vunpack.c.h.b16 %v3542
    %v4216 = vunpack.c.l.b16 %v3543
    %v4217 = vunpack.c.h.b16 %v3543
    %v4218 = vunpack.c.l.b16 %v3544
    %v4219 = vunpack.c.h.b16 %v3544
    %v4220 = vunpack.c.l.b16 %v3545
    %v4221 = vunpack.c.h.b16 %v3545
    %v4222 = vunpack.c.l.b16 %v3546
    %v4223 = vunpack.c.h.b16 %v3546
    %v4224 = vunpack.c.l.b16 %v3547
    %v4225 = vunpack.c.h.b16 %v3547
    %v4226 = vunpack.c.l.b16 %v3548
    %v4227 = vunpack.c.h.b16 %v3548
    %v4228 = vunpack.c.l.b16 %v3549
    %v4229 = vunpack.c.h.b16 %v3549
    %v4230 = vunpack.c.l.b16 %v3550
    %v4231 = vunpack.c.h.b16 %v3550
    %v4232 = vunpack.c.l.b16 %v3551
    %v4233 = vunpack.c.h.b16 %v3551
    %v4234 = vunpack.c.l.b16 %v3552
    %v4235 = vunpack.c.h.b16 %v3552
    %v4236 = vunpack.c.l.b16 %v3553
    %v4237 = vunpack.c.h.b16 %v3553
    %v4238 = vunpack.c.l.b16 %v3554
    %v4239 = vunpack.c.h.b16 %v3554
    %v4240 = vunpack.c.l.b16 %v3555
    %v4241 = vunpack.c.h.b16 %v3555
    %v4242 = vunpack.c.l.b16 %v3556
    %v4243 = vunpack.c.h.b16 %v3556
    %v4244 = vunpack.c.l.b16 %v3557
    %v4245 = vunpack.c.h.b16 %v3557
    %v4246 = vunpack.c.l.b16 %v3558
    %v4247 = vunpack.c.h.b16 %v3558
    %v4248 = vunpack.c.l.b16 %v3559
    %v4249 = vunpack.c.h.b16 %v3559
    %v4250 = vunpack.c.l.b16 %v3560
    %v4251 = vunpack.c.h.b16 %v3560
    %v4252 = vunpack.c.l.b16 %v3561
    %v4253 = vunpack.c.h.b16 %v3561
    %v4254 = vunpack.c.l.b16 %v3562
    %v4255 = vunpack.c.h.b16 %v3562
    %v4256 = vunpack.c.l.b16 %v3563
    %v4257 = vunpack.c.h.b16 %v3563
    %v4258 = vunpack.c.l.b16 %v3564
    %v4259 = vunpack.c.h.b16 %v3564
    %v4260 = vunpack.c.l.b16 %v3565
    %v4261 = vunpack.c.h.b16 %v3565
    %v4262 = vunpack.c.l.b16 %v3566
    %v4263 = vunpack.c.h.b16 %v3566
    %v4264 = vunpack.c.l.b16 %v3567
    %v4265 = vunpack.c.h.b16 %v3567
    %v4266 = vunpack.c.l.b16 %v3568
    %v4267 = vunpack.c.h.b16 %v3568
    %v4268 = vunpack.c.l.b16 %v3569
    %v4269 = vunpack.c.h.b16 %v3569
    %v4270 = vunpack.c.l.b16 %v3570
    %v4271 = vunpack.c.h.b16 %v3570
    %v4272 = vunpack.c.l.b16 %v3571
    %v4273 = vunpack.c.h.b16 %v3571
    %v4274 = vunpack.c.l.b16 %v3572
    %v4275 = vunpack.c.h.b16 %v3572
    %v4276 = vunpack.c.l.b16 %v3573
    %v4277 = vunpack.c.h.b16 %v3573
    %v4278 = vunpack.c.l.b16 %v3574
    %v4279 = vunpack.c.h.b16 %v3574
    %v4280 = vunpack.c.l.b16 %v3575
    %v4281 = vunpack.c.h.b16 %v3575
    %v4282 = vunpack.c.l.b16 %v3576
    %v4283 = vunpack.c.h.b16 %v3576
    %v4284 = vunpack.c.l.b16 %v3577
    %v4285 = vunpack.c.h.b16 %v3577
    %v4286 = vunpack.c.l.b16 %v3578
    %v4287 = vunpack.c.h.b16 %v3578
    %v4288 = vunpack.c.l.b16 %v3579
    %v4289 = vunpack.c.h.b16 %v3579
    %v4290 = vunpack.c.l.b16 %v3580
    %v4291 = vunpack.c.h.b16 %v3580
    %v4292 = vunpack.c.l.b16 %v3581
    %v4293 = vunpack.c.h.b16 %v3581
    %v4294 = vunpack.c.l.b16 %v3582
    %v4295 = vunpack.c.h.b16 %v3582
    %v4296 = vunpack.c.l.b16 %v3583
    %v4297 = vunpack.c.h.b16 %v3583
    %v4298 = vunpack.c.l.b16 %v3584
    %v4299 = vunpack.c.h.b16 %v3584
    %v4300 = vunpack.c.l.b16 %v3585
    %v4301 = vunpack.c.h.b16 %v3585
    %v4302 = vunpack.c.l.b16 %v3586
    %v4303 = vunpack.c.h.b16 %v3586
    %v4304 = vunpack.c.l.b16 %v3587
    %v4305 = vunpack.c.h.b16 %v3587
    %v4306 = vunpack.c.l.b16 %v3588
    %v4307 = vunpack.c.h.b16 %v3588
    %v4308 = vunpack.c.l.b16 %v3589
    %v4309 = vunpack.c.h.b16 %v3589
    %v4310 = vunpack.c.l.b16 %v3590
    %v4311 = vunpack.c.h.b16 %v3590
    %v4312 = vunpack.c.l.b16 %v3591
    %v4313 = vunpack.c.h.b16 %v3591
    %v4314 = vunpack.c.l.b16 %v3592
    %v4315 = vunpack.c.h.b16 %v3592
    %v4316 = vunpack.c.l.b16 %v3593
    %v4317 = vunpack.c.h.b16 %v3593
    %v4318 = vunpack.c.l.b16 %v3594
    %v4319 = vunpack.c.h.b16 %v3594
    %v4320 = vunpack.c.l.b16 %v3595
    %v4321 = vunpack.c.h.b16 %v3595
    %v4322 = vunpack.c.l.b16 %v3596
    %v4323 = vunpack.c.h.b16 %v3596
    %v4324 = vunpack.c.l.b16 %v3597
    %v4325 = vunpack.c.h.b16 %v3597
    %v4326 = vunpack.c.l.b16 %v3598
    %v4327 = vunpack.c.h.b16 %v3598
    %v4328 = vunpack.c.l.b16 %v3599
    %v4329 = vunpack.c.h.b16 %v3599
    %v4330 = vunpack.c.l.b16 %v3600
    %v4331 = vunpack.c.h.b16 %v3600
    %v4332 = vunpack.c.l.b16 %v3601
    %v4333 = vunpack.c.h.b16 %v3601
    %v4334 = vunpack.c.l.b16 %v3602
    %v4335 = vunpack.c.h.b16 %v3602
    %v4336 = vunpack.c.l.b16 %v3603
    %v4337 = vunpack.c.h.b16 %v3603
    %v4338 = vunpack.c.l.b16 %v3604
    %v4339 = vunpack.c.h.b16 %v3604
    %v4340 = vunpack.c.l.b16 %v3605
    %v4341 = vunpack.c.h.b16 %v3605
    %v4342 = vunpack.c.l.b16 %v3606
    %v4343 = vunpack.c.h.b16 %v3606
    %v4344 = vunpack.c.l.b16 %v3607
    %v4345 = vunpack.c.h.b16 %v3607
    %v4346 = vunpack.c.l.b16 %v3608
    %v4347 = vunpack.c.h.b16 %v3608
    %v4348 = vunpack.c.l.b16 %v3609
    %v4349 = vunpack.c.h.b16 %v3609
    %v4350 = vunpack.c.l.b16 %v3610
    %v4351 = vunpack.c.h.b16 %v3610
    %v4352 = vunpack.c.l.b16 %v3611
    %v4353 = vunpack.c.h.b16 %v3611
    %v4354 = vunpack.c.l.b16 %v3612
    %v4355 = vunpack.c.h.b16 %v3612
    %v4356 = vunpack.c.l.b16 %v3613
    %v4357 = vunpack.c.h.b16 %v3613
    %v4358 = vunpack.c.l.b16 %v3614
    %v4359 = vunpack.c.h.b16 %v3614
    %v4360 = vunpack.c.l.b16 %v3615
    %v4361 = vunpack.c.h.b16 %v3615
    %v4362 = vunpack.c.l.b16 %v3616
    %v4363 = vunpack.c.h.b16 %v3616
    %v4364 = vunpack.c.l.b16 %v3617
    %v4365 = vunpack.c.h.b16 %v3617
    %v4366 = vunpack.c.l.b16 %v3618
    %v4367 = vunpack.c.h.b16 %v3618
    %v4368 = vunpack.c.l.b16 %v3619
    %v4369 = vunpack.c.h.b16 %v3619
    %v4370 = vunpack.c.l.b16 %v3620
    %v4371 = vunpack.c.h.b16 %v3620
    %v4372 = vunpack.c.l.b16 %v3621
    %v4373 = vunpack.c.h.b16 %v3621
    %v4374 = vunpack.c.l.b16 %v3622
    %v4375 = vunpack.c.h.b16 %v3622
    %v4376 = vunpack.c.l.b16 %v3623
    %v4377 = vunpack.c.h.b16 %v3623
    %v4378 = vunpack.c.l.b16 %v3624
    %v4379 = vunpack.c.h.b16 %v3624
    %v4380 = vunpack.c.l.b16 %v3625
    %v4381 = vunpack.c.h.b16 %v3625
    %v4382 = vunpack.c.l.b16 %v3626
    %v4383 = vunpack.c.h.b16 %v3626
    %v4384 = vunpack.c.l.b16 %v3627
    %v4385 = vunpack.c.h.b16 %v3627
    %v4386 = vunpack.c.l.b16 %v3628
    %v4387 = vunpack.c.h.b16 %v3628
    %v4388 = vunpack.c.l.b16 %v3629
    %v4389 = vunpack.c.h.b16 %v3629
    %v4390 = vunpack.c.l.b16 %v3630
    %v4391 = vunpack.c.h.b16 %v3630
    %v4392 = vunpack.c.l.b16 %v3631
    %v4393 = vunpack.c.h.b16 %v3631
    %v4394 = vunpack.c.l.b16 %v3632
    %v4395 = vunpack.c.h.b16 %v3632
    %v4396 = vunpack.c.l.b16 %v3633
    %v4397 = vunpack.c.h.b16 %v3633
    %v4398 = vunpack.c.l.b16 %v3634
    %v4399 = vunpack.c.h.b16 %v3634
    %v4400 = vunpack.c.l.b16 %v3635
    %v4401 = vunpack.c.h.b16 %v3635
    %v4402 = vunpack.c.l.b16 %v3636
    %v4403 = vunpack.c.h.b16 %v3636
    %v4404 = vunpack.c.l.b16 %v3637
    %v4405 = vunpack.c.h.b16 %v3637
    %v4406 = vunpack.c.l.b16 %v3638
    %v4407 = vunpack.c.h.b16 %v3638
    %v4408 = vunpack.c.l.b16 %v3639
    %v4409 = vunpack.c.h.b16 %v3639
    %v4410 = vunpack.c.l.b16 %v3640
    %v4411 = vunpack.c.h.b16 %v3640
    %v4412 = vunpack.c.l.b16 %v3641
    %v4413 = vunpack.c.h.b16 %v3641
    %v4414 = vunpack.c.l.b16 %v3642
    %v4415 = vunpack.c.h.b16 %v3642
    %v4416 = vunpack.c.l.b16 %v3643
    %v4417 = vunpack.c.h.b16 %v3643
    %v4418 = vunpack.c.l.b16 %v3644
    %v4419 = vunpack.c.h.b16 %v3644
    %v4420 = vunpack.c.l.b16 %v3645
    %v4421 = vunpack.c.h.b16 %v3645
    %v4422 = vunpack.c.l.b16 %v3646
    %v4423 = vunpack.c.h.b16 %v3646
    %v4424 = vunpack.c.l.b16 %v3647
    %v4425 = vunpack.c.h.b16 %v3647
    %v4426 = vunpack.c.l.b16 %v3648
    %v4427 = vunpack.c.h.b16 %v3648
    %v4428 = vunpack.c.l.b16 %v3649
    %v4429 = vunpack.c.h.b16 %v3649
    %v4430 = vunpack.c.l.b16 %v3650
    %v4431 = vunpack.c.h.b16 %v3650
    %v4432 = vunpack.c.l.b16 %v3651
    %v4433 = vunpack.c.h.b16 %v3651
    %v4434 = vunpack.c.l.b16 %v3652
    %v4435 = vunpack.c.h.b16 %v3652
    %v4436 = vunpack.c.l.b16 %v3653
    %v4437 = vunpack.c.h.b16 %v3653
    %v4438 = vunpack.c.l.b16 %v3654
    %v4439 = vunpack.c.h.b16 %v3654
    %v4440 = vunpack.c.l.b16 %v3655
    %v4441 = vunpack.c.h.b16 %v3655
    %v4442 = vunpack.c.l.b16 %v3656
    %v4443 = vunpack.c.h.b16 %v3656
    %v4444 = vunpack.c.l.b16 %v3657
    %v4445 = vunpack.c.h.b16 %v3657
    %v4446 = vunpack.c.l.b16 %v3658
    %v4447 = vunpack.c.h.b16 %v3658
    %v4448 = vunpack.c.l.b16 %v3659
    %v4449 = vunpack.c.h.b16 %v3659
    %v4450 = vpack.c.b16 %v3942, %v3938
    %v4451 = vpack.c.b16 %v3943, %v3939
    %v4452 = vpack.c.b16 %v3944, %v3940
    %v4453 = vpack.c.b16 %v3945, %v3941
    %v4454 = vpack.c.b16 %v3950, %v3946
    %v4455 = vpack.c.b16 %v3951, %v3947
    %v4456 = vpack.c.b16 %v3952, %v3948
    %v4457 = vpack.c.b16 %v3953, %v3949
    %v4458 = vpack.c.b16 %v3958, %v3954
    %v4459 = vpack.c.b16 %v3959, %v3955
    %v4460 = vpack.c.b16 %v3960, %v3956
    %v4461 = vpack.c.b16 %v3961, %v3957
    %v4462 = vpack.c.b16 %v3966, %v3962
    %v4463 = vpack.c.b16 %v3967, %v3963
    %v4464 = vpack.c.b16 %v3968, %v3964
    %v4465 = vpack.c.b16 %v3969, %v3965
    %v4466 = vpack.c.b16 %v3974, %v3970
    %v4467 = vpack.c.b16 %v3975, %v3971
    %v4468 = vpack.c.b16 %v3976, %v3972
    %v4469 = vpack.c.b16 %v3977, %v3973
    %v4470 = vpack.c.b16 %v3982, %v3978
    %v4471 = vpack.c.b16 %v3983, %v3979
    %v4472 = vpack.c.b16 %v3984, %v3980
    %v4473 = vpack.c.b16 %v3985, %v3981
    %v4474 = vpack.c.b16 %v3990, %v3986
    %v4475 = vpack.c.b16 %v3991, %v3987
    %v4476 = vpack.c.b16 %v3992, %v3988
    %v4477 = vpack.c.b16 %v3993, %v3989
    %v4478 = vpack.c.b16 %v3998, %v3994
    %v4479 = vpack.c.b16 %v3999, %v3995
    %v4480 = vpack.c.b16 %v4000, %v3996
    %v4481 = vpack.c.b16 %v4001, %v3997
    %v4482 = vpack.c.b16 %v4006, %v4002
    %v4483 = vpack.c.b16 %v4007, %v4003
    %v4484 = vpack.c.b16 %v4008, %v4004
    %v4485 = vpack.c.b16 %v4009, %v4005
    %v4486 = vpack.c.b16 %v4014, %v4010
    %v4487 = vpack.c.b16 %v4015, %v4011
    %v4488 = vpack.c.b16 %v4016, %v4012
    %v4489 = vpack.c.b16 %v4017, %v4013
    %v4490 = vpack.c.b16 %v4022, %v4018
    %v4491 = vpack.c.b16 %v4023, %v4019
    %v4492 = vpack.c.b16 %v4024, %v4020
    %v4493 = vpack.c.b16 %v4025, %v4021
    %v4494 = vpack.c.b16 %v4030, %v4026
    %v4495 = vpack.c.b16 %v4031, %v4027
    %v4496 = vpack.c.b16 %v4032, %v4028
    %v4497 = vpack.c.b16 %v4033, %v4029
    %v4498 = vpack.c.b16 %v4038, %v4034
    %v4499 = vpack.c.b16 %v4039, %v4035
    %v4500 = vpack.c.b16 %v4040, %v4036
    %v4501 = vpack.c.b16 %v4041, %v4037
    %v4502 = vpack.c.b16 %v4046, %v4042
    %v4503 = vpack.c.b16 %v4047, %v4043
    %v4504 = vpack.c.b16 %v4048, %v4044
    %v4505 = vpack.c.b16 %v4049, %v4045
    %v4506 = vpack.c.b16 %v4054, %v4050
    %v4507 = vpack.c.b16 %v4055, %v4051
    %v4508 = vpack.c.b16 %v4056, %v4052
    %v4509 = vpack.c.b16 %v4057, %v4053
    %v4510 = vpack.c.b16 %v4062, %v4058
    %v4511 = vpack.c.b16 %v4063, %v4059
    %v4512 = vpack.c.b16 %v4064, %v4060
    %v4513 = vpack.c.b16 %v4065, %v4061
    %v4514 = vpack.c.b16 %v4070, %v4066
    %v4515 = vpack.c.b16 %v4071, %v4067
    %v4516 = vpack.c.b16 %v4072, %v4068
    %v4517 = vpack.c.b16 %v4073, %v4069
    %v4518 = vpack.c.b16 %v4078, %v4074
    %v4519 = vpack.c.b16 %v4079, %v4075
    %v4520 = vpack.c.b16 %v4080, %v4076
    %v4521 = vpack.c.b16 %v4081, %v4077
    %v4522 = vpack.c.b16 %v4086, %v4082
    %v4523 = vpack.c.b16 %v4087, %v4083
    %v4524 = vpack.c.b16 %v4088, %v4084
    %v4525 = vpack.c.b16 %v4089, %v4085
    %v4526 = vpack.c.b16 %v4094, %v4090
    %v4527 = vpack.c.b16 %v4095, %v4091
    %v4528 = vpack.c.b16 %v4096, %v4092
    %v4529 = vpack.c.b16 %v4097, %v4093
    %v4530 = vpack.c.b16 %v4102, %v4098
    %v4531 = vpack.c.b16 %v4103, %v4099
    %v4532 = vpack.c.b16 %v4104, %v4100
    %v4533 = vpack.c.b16 %v4105, %v4101
    %v4534 = vpack.c.b16 %v4110, %v4106
    %v4535 = vpack.c.b16 %v4111, %v4107
    %v4536 = vpack.c.b16 %v4112, %v4108
    %v4537 = vpack.c.b16 %v4113, %v4109
    %v4538 = vpack.c.b16 %v4118, %v4114
    %v4539 = vpack.c.b16 %v4119, %v4115
    %v4540 = vpack.c.b16 %v4120, %v4116
    %v4541 = vpack.c.b16 %v4121, %v4117
    %v4542 = vpack.c.b16 %v4126, %v4122
    %v4543 = vpack.c.b16 %v4127, %v4123
    %v4544 = vpack.c.b16 %v4128, %v4124
    %v4545 = vpack.c.b16 %v4129, %v4125
    %v4546 = vpack.c.b16 %v4134, %v4130
    %v4547 = vpack.c.b16 %v4135, %v4131
    %v4548 = vpack.c.b16 %v4136, %v4132
    %v4549 = vpack.c.b16 %v4137, %v4133
    %v4550 = vpack.c.b16 %v4142, %v4138
    %v4551 = vpack.c.b16 %v4143, %v4139
    %v4552 = vpack.c.b16 %v4144, %v4140
    %v4553 = vpack.c.b16 %v4145, %v4141
    %v4554 = vpack.c.b16 %v4150, %v4146
    %v4555 = vpack.c.b16 %v4151, %v4147
    %v4556 = vpack.c.b16 %v4152, %v4148
    %v4557 = vpack.c.b16 %v4153, %v4149
    %v4558 = vpack.c.b16 %v4158, %v4154
    %v4559 = vpack.c.b16 %v4159, %v4155
    %v4560 = vpack.c.b16 %v4160, %v4156
    %v4561 = vpack.c.b16 %v4161, %v4157
    %v4562 = vpack.c.b16 %v4166, %v4162
    %v4563 = vpack.c.b16 %v4167, %v4163
    %v4564 = vpack.c.b16 %v4168, %v4164
    %v4565 = vpack.c.b16 %v4169, %v4165
    %v4566 = vpack.c.b16 %v4174, %v4170
    %v4567 = vpack.c.b16 %v4175, %v4171
    %v4568 = vpack.c.b16 %v4176, %v4172
    %v4569 = vpack.c.b16 %v4177, %v4173
    %v4570 = vpack.c.b16 %v4182, %v4178
    %v4571 = vpack.c.b16 %v4183, %v4179
    %v4572 = vpack.c.b16 %v4184, %v4180
    %v4573 = vpack.c.b16 %v4185, %v4181
    %v4574 = vpack.c.b16 %v4190, %v4186
    %v4575 = vpack.c.b16 %v4191, %v4187
    %v4576 = vpack.c.b16 %v4192, %v4188
    %v4577 = vpack.c.b16 %v4193, %v4189
    %v4578 = vpack.c.b16 %v4198, %v4194
    %v4579 = vpack.c.b16 %v4199, %v4195
    %v4580 = vpack.c.b16 %v4200, %v4196
    %v4581 = vpack.c.b16 %v4201, %v4197
    %v4582 = vpack.c.b16 %v4206, %v4202
    %v4583 = vpack.c.b16 %v4207, %v4203
    %v4584 = vpack.c.b16 %v4208, %v4204
    %v4585 = vpack.c.b16 %v4209, %v4205
    %v4586 = vpack.c.b16 %v4214, %v4210
    %v4587 = vpack.c.b16 %v4215, %v4211
    %v4588 = vpack.c.b16 %v4216, %v4212
    %v4589 = vpack.c.b16 %v4217, %v4213
    %v4590 = vpack.c.b16 %v4222, %v4218
    %v4591 = vpack.c.b16 %v4223, %v4219
    %v4592 = vpack.c.b16 %v4224, %v4220
    %v4593 = vpack.c.b16 %v4225, %v4221
    %v4594 = vpack.c.b16 %v4230, %v4226
    %v4595 = vpack.c.b16 %v4231, %v4227
    %v4596 = vpack.c.b16 %v4232, %v4228
    %v4597 = vpack.c.b16 %v4233, %v4229
    %v4598 = vpack.c.b16 %v4238, %v4234
    %v4599 = vpack.c.b16 %v4239, %v4235
    %v4600 = vpack.c.b16 %v4240, %v4236
    %v4601 = vpack.c.b16 %v4241, %v4237
    %v4602 = vpack.c.b16 %v4246, %v4242
    %v4603 = vpack.c.b16 %v4247, %v4243
    %v4604 = vpack.c.b16 %v4248, %v4244
    %v4605 = vpack.c.b16 %v4249, %v4245
    %v4606 = vpack.c.b16 %v4254, %v4250
    %v4607 = vpack.c.b16 %v4255, %v4251
    %v4608 = vpack.c.b16 %v4256, %v4252
    %v4609 = vpack.c.b16 %v4257, %v4253
    %v4610 = vpack.c.b16 %v4262, %v4258
    %v4611 = vpack.c.b16 %v4263, %v4259
    %v4612 = vpack.c.b16 %v4264, %v4260
    %v4613 = vpack.c.b16 %v4265, %v4261
    %v4614 = vpack.c.b16 %v4270, %v4266
    %v4615 = vpack.c.b16 %v4271, %v4267
    %v4616 = vpack.c.b16 %v4272, %v4268
    %v4617 = vpack.c.b16 %v4273, %v4269
    %v4618 = vpack.c.b16 %v4278, %v4274
    %v4619 = vpack.c.b16 %v4279, %v4275
    %v4620 = vpack.c.b16 %v4280, %v4276
    %v4621 = vpack.c.b16 %v4281, %v4277
    %v4622 = vpack.c.b16 %v4286, %v4282
    %v4623 = vpack.c.b16 %v4287, %v4283
    %v4624 = vpack.c.b16 %v4288, %v4284
    %v4625 = vpack.c.b16 %v4289, %v4285
    %v4626 = vpack.c.b16 %v4294, %v4290
    %v4627 = vpack.c.b16 %v4295, %v4291
    %v4628 = vpack.c.b16 %v4296, %v4292
    %v4629 = vpack.c.b16 %v4297, %v4293
    %v4630 = vpack.c.b16 %v4302, %v4298
    %v4631 = vpack.c.b16 %v4303, %v4299
    %v4632 = vpack.c.b16 %v4304, %v4300
    %v4633 = vpack.c.b16 %v4305, %v4301
    %v4634 = vpack.c.b16 %v4310, %v4306
    %v4635 = vpack.c.b16 %v4311, %v4307
    %v4636 = vpack.c.b16 %v4312, %v4308
    %v4637 = vpack.c.b16 %v4313, %v4309
    %v4638 = vpack.c.b16 %v4318, %v4314
    %v4639 = vpack.c.b16 %v4319, %v4315
    %v4640 = vpack.c.b16 %v4320, %v4316
    %v4641 = vpack.c.b16 %v4321, %v4317
    %v4642 = vpack.c.b16 %v4326, %v4322
    %v4643 = vpack.c.b16 %v4327, %v4323
    %v4644 = vpack.c.b16 %v4328, %v4324
    %v4645 = vpack.c.b16 %v4329, %v4325
    %v4646 = vpack.c.b16 %v4334, %v4330
    %v4647 = vpack.c.b16 %v4335, %v4331
    %v4648 = vpack.c.b16 %v4336, %v4332
    %v4649 = vpack.c.b16 %v4337, %v4333
    %v4650 = vpack.c.b16 %v4342, %v4338
    %v4651 = vpack.c.b16 %v4343, %v4339
    %v4652 = vpack.c.b16 %v4344, %v4340
    %v4653 = vpack.c.b16 %v4345, %v4341
    %v4654 = vpack.c.b16 %v4350, %v4346
    %v4655 = vpack.c.b16 %v4351, %v4347
    %v4656 = vpack.c.b16 %v4352, %v4348
    %v4657 = vpack.c.b16 %v4353, %v4349
    %v4658 = vpack.c.b16 %v4358, %v4354
    %v4659 = vpack.c.b16 %v4359, %v4355
    %v4660 = vpack.c.b16 %v4360, %v4356
    %v4661 = vpack.c.b16 %v4361, %v4357
    %v4662 = vpack.c.b16 %v4366, %v4362
    %v4663 = vpack.c.b16 %v4367, %v4363
    %v4664 = vpack.c.b16 %v4368, %v4364
    %v4665 = vpack.c.b16 %v4369, %v4365
    %v4666 = vpack.c.b16 %v4374, %v4370
    %v4667 = vpack.c.b16 %v4375, %v4371
    %v4668 = vpack.c.b16 %v4376, %v4372
    %v4669 = vpack.c.b16 %v4377, %v4373
    %v4670 = vpack.c.b16 %v4382, %v4378
    %v4671 = vpack.c.b16 %v4383, %v4379
    %v4672 = vpack.c.b16 %v4384, %v4380
    %v4673 = vpack.c.b16 %v4385, %v4381
    %v4674 = vpack.c.b16 %v4390, %v4386
    %v4675 = vpack.c.b16 %v4391, %v4387
    %v4676 = vpack.c.b16 %v4392, %v4388
    %v4677 = vpack.c.b16 %v4393, %v4389
    %v4678 = vpack.c.b16 %v4398, %v4394
    %v4679 = vpack.c.b16 %v4399, %v4395
    %v4680 = vpack.c.b16 %v4400, %v4396
    %v4681 = vpack.c.b16 %v4401, %v4397
    %v4682 = vpack.c.b16 %v4406, %v4402
    %v4683 = vpack.c.b16 %v4407, %v4403
    %v4684 = vpack.c.b16 %v4408, %v4404
    %v4685 = vpack.c.b16 %v4409, %v4405
    %v4686 = vpack.c.b16 %v4414, %v4410
    %v4687 = vpack.c.b16 %v4415, %v4411
    %v4688 = vpack.c.b16 %v4416, %v4412
    %v4689 = vpack.c.b16 %v4417, %v4413
    %v4690 = vpack.c.b16 %v4422, %v4418
    %v4691 = vpack.c.b16 %v4423, %v4419
    %v4692 = vpack.c.b16 %v4424, %v4420
    %v4693 = vpack.c.b16 %v4425, %v4421
    %v4694 = vpack.c.b16 %v4430, %v4426
    %v4695 = vpack.c.b16 %v4431, %v4427
    %v4696 = vpack.c.b16 %v4432, %v4428
    %v4697 = vpack.c.b16 %v4433, %v4429
    %v4698 = vpack.c.b16 %v4438, %v4434
    %v4699 = vpack.c.b16 %v4439, %v4435
    %v4700 = vpack.c.b16 %v4440, %v4436
    %v4701 = vpack.c.b16 %v4441, %v4437
    %v4702 = vpack.c.b16 %v4446, %v4442
    %v4703 = vpack.c.b16 %v4447, %v4443
    %v4704 = vpack.c.b16 %v4448, %v4444
    %v4705 = vpack.c.b16 %v4449, %v4445
    %4962 = vmatprep.subr.bf16.mxu0 %v4451
    %4963 = vmatpush1.bf16.msra.mxu0 %v4450
    %4964 = vmatprep.subr.bf16.mxu0 %v4455
    %4965 = vmatpush1.bf16.msra.mxu0 %v4454
    %4966 = vmatprep.subr.bf16.mxu0 %v4459
    %4967 = vmatpush1.bf16.msra.mxu0 %v4458
    %4968 = vmatprep.subr.bf16.mxu0 %v4463
    %4969 = vmatpush1.bf16.msra.mxu0 %v4462
    %4970 = vmatprep.subr.bf16.mxu0 %v4467
    %4971 = vmatpush1.bf16.msra.mxu0 %v4466
    %4972 = vmatprep.subr.bf16.mxu0 %v4471
    %4973 = vmatpush1.bf16.msra.mxu0 %v4470
    %4974 = vmatprep.subr.bf16.mxu0 %v4475
    %4975 = vmatpush1.bf16.msra.mxu0 %v4474
    %4976 = vmatprep.subr.bf16.mxu0 %v4479
    %4977 = vmatpush1.bf16.msra.mxu0 %v4478
    %4978 = vmatprep.subr.bf16.mxu0 %v4483
    %4979 = vmatpush1.bf16.msra.mxu0 %v4482
    %4980 = vmatprep.subr.bf16.mxu0 %v4487
    %4981 = vmatpush1.bf16.msra.mxu0 %v4486
    %4982 = vmatprep.subr.bf16.mxu0 %v4491
    %4983 = vmatpush1.bf16.msra.mxu0 %v4490
    %4984 = vmatprep.subr.bf16.mxu0 %v4495
    %4985 = vmatpush1.bf16.msra.mxu0 %v4494
    %4986 = vmatprep.subr.bf16.mxu0 %v4499
    %4987 = vmatpush1.bf16.msra.mxu0 %v4498
    %4988 = vmatprep.subr.bf16.mxu0 %v4503
    %4989 = vmatpush1.bf16.msra.mxu0 %v4502
    %4990 = vmatprep.subr.bf16.mxu0 %v4507
    %4991 = vmatpush1.bf16.msra.mxu0 %v4506
    %4992 = vmatprep.subr.bf16.mxu0 %v4511
    %4993 = vmatpush1.bf16.msra.mxu0 %v4510
    %4994 = vmatprep.mubr.bf16.mxu0 %v3397
    %4995 = vmatmul.mubr.bf16.gmra.mrb[0].mxu0 %v3396
    %v4996 = vpop.f32.mrb[0].mxu0
    %v4997 = vadd.f32 %v3665, %v4996
    %v4998 = vpop.f32.mrb[0].mxu0
    %v4999 = vadd.f32 %v3669, %v4998
    %v5000 = vpop.f32.mrb[0].mxu0
    %v5001 = vpop.f32.mrb[0].mxu0
    %5002 = vdwg.mxu0
    %5003 = vmatprep.subr.bf16.mxu0 %v4515
    %5004 = vmatpush1.bf16.msra.mxu0 %v4514
    %5005 = vmatprep.subr.bf16.mxu0 %v4519
    %5006 = vmatpush1.bf16.msra.mxu0 %v4518
    %5007 = vmatprep.subr.bf16.mxu0 %v4523
    %5008 = vmatpush1.bf16.msra.mxu0 %v4522
    %5009 = vmatprep.subr.bf16.mxu0 %v4527
    %5010 = vmatpush1.bf16.msra.mxu0 %v4526
    %5011 = vmatprep.subr.bf16.mxu0 %v4531
    %5012 = vmatpush1.bf16.msra.mxu0 %v4530
    %5013 = vmatprep.subr.bf16.mxu0 %v4535
    %5014 = vmatpush1.bf16.msra.mxu0 %v4534
    %5015 = vmatprep.subr.bf16.mxu0 %v4539
    %5016 = vmatpush1.bf16.msra.mxu0 %v4538
    %5017 = vmatprep.subr.bf16.mxu0 %v4543
    %5018 = vmatpush1.bf16.msra.mxu0 %v4542
    %5019 = vmatprep.subr.bf16.mxu0 %v4547
    %5020 = vmatpush1.bf16.msra.mxu0 %v4546
    %5021 = vmatprep.subr.bf16.mxu0 %v4551
    %5022 = vmatpush1.bf16.msra.mxu0 %v4550
    %5023 = vmatprep.subr.bf16.mxu0 %v4555
    %5024 = vmatpush1.bf16.msra.mxu0 %v4554
    %5025 = vmatprep.subr.bf16.mxu0 %v4559
    %5026 = vmatpush1.bf16.msra.mxu0 %v4558
    %5027 = vmatprep.subr.bf16.mxu0 %v4563
    %5028 = vmatpush1.bf16.msra.mxu0 %v4562
    %5029 = vmatprep.subr.bf16.mxu0 %v4567
    %5030 = vmatpush1.bf16.msra.mxu0 %v4566
    %5031 = vmatprep.subr.bf16.mxu0 %v4571
    %5032 = vmatpush1.bf16.msra.mxu0 %v4570
    %5033 = vmatprep.subr.bf16.mxu0 %v4575
    %5034 = vmatpush1.bf16.msra.mxu0 %v4574
    %5035 = vmatprep.mubr.bf16.mxu0 %v3399
    %5036 = vmatmul.mubr.bf16.gmra.mrb[0].mxu0 %v3398
    %v5037 = vpop.f32.mrb[0].mxu0
    %v5038 = vadd.f32 %v4997, %v5037
    %v5039 = vpop.f32.mrb[0].mxu0
    %v5040 = vadd.f32 %v4999, %v5039
    %v5041 = vpop.f32.mrb[0].mxu0
    %v5042 = vpop.f32.mrb[0].mxu0
    %5043 = vdwg.mxu0
    %5044 = vmatprep.subr.bf16.mxu0 %v4579
    %5045 = vmatpush1.bf16.msra.mxu0 %v4578
    %5046 = vmatprep.subr.bf16.mxu0 %v4583
    %5047 = vmatpush1.bf16.msra.mxu0 %v4582
    %5048 = vmatprep.subr.bf16.mxu0 %v4587
    %5049 = vmatpush1.bf16.msra.mxu0 %v4586
    %5050 = vmatprep.subr.bf16.mxu0 %v4591
    %5051 = vmatpush1.bf16.msra.mxu0 %v4590
    %5052 = vmatprep.subr.bf16.mxu0 %v4595
    %5053 = vmatpush1.bf16.msra.mxu0 %v4594
    %5054 = vmatprep.subr.bf16.mxu0 %v4599
    %5055 = vmatpush1.bf16.msra.mxu0 %v4598
    %5056 = vmatprep.subr.bf16.mxu0 %v4603
    %5057 = vmatpush1.bf16.msra.mxu0 %v4602
    %5058 = vmatprep.subr.bf16.mxu0 %v4607
    %5059 = vmatpush1.bf16.msra.mxu0 %v4606
    %5060 = vmatprep.subr.bf16.mxu0 %v4611
    %5061 = vmatpush1.bf16.msra.mxu0 %v4610
    %5062 = vmatprep.subr.bf16.mxu0 %v4615
    %5063 = vmatpush1.bf16.msra.mxu0 %v4614
    %5064 = vmatprep.subr.bf16.mxu0 %v4619
    %5065 = vmatpush1.bf16.msra.mxu0 %v4618
    %5066 = vmatprep.subr.bf16.mxu0 %v4623
    %5067 = vmatpush1.bf16.msra.mxu0 %v4622
    %5068 = vmatprep.subr.bf16.mxu0 %v4627
    %5069 = vmatpush1.bf16.msra.mxu0 %v4626
    %5070 = vmatprep.subr.bf16.mxu0 %v4631
    %5071 = vmatpush1.bf16.msra.mxu0 %v4630
    %5072 = vmatprep.subr.bf16.mxu0 %v4635
    %5073 = vmatpush1.bf16.msra.mxu0 %v4634
    %5074 = vmatprep.subr.bf16.mxu0 %v4639
    %5075 = vmatpush1.bf16.msra.mxu0 %v4638
    %5076 = vmatprep.mubr.bf16.mxu0 %v3401
    %5077 = vmatmul.mubr.bf16.gmra.mrb[0].mxu0 %v3400
    %v5078 = vpop.f32.mrb[0].mxu0
    %v5079 = vadd.f32 %v5038, %v5078
    %v5080 = vpop.f32.mrb[0].mxu0
    %v5081 = vadd.f32 %v5040, %v5080
    %v5082 = vpop.f32.mrb[0].mxu0
    %v5083 = vpop.f32.mrb[0].mxu0
    %5084 = vdwg.mxu0
    %5085 = vmatprep.subr.bf16.mxu0 %v4643
    %5086 = vmatpush1.bf16.msra.mxu0 %v4642
    %5087 = vmatprep.subr.bf16.mxu0 %v4647
    %5088 = vmatpush1.bf16.msra.mxu0 %v4646
    %5089 = vmatprep.subr.bf16.mxu0 %v4651
    %5090 = vmatpush1.bf16.msra.mxu0 %v4650
    %5091 = vmatprep.subr.bf16.mxu0 %v4655
    %5092 = vmatpush1.bf16.msra.mxu0 %v4654
    %5093 = vmatprep.subr.bf16.mxu0 %v4659
    %5094 = vmatpush1.bf16.msra.mxu0 %v4658
    %5095 = vmatprep.subr.bf16.mxu0 %v4663
    %5096 = vmatpush1.bf16.msra.mxu0 %v4662
    %5097 = vmatprep.subr.bf16.mxu0 %v4667
    %5098 = vmatpush1.bf16.msra.mxu0 %v4666
    %5099 = vmatprep.subr.bf16.mxu0 %v4671
    %5100 = vmatpush1.bf16.msra.mxu0 %v4670
    %5101 = vmatprep.subr.bf16.mxu0 %v4675
    %5102 = vmatpush1.bf16.msra.mxu0 %v4674
    %5103 = vmatprep.subr.bf16.mxu0 %v4679
    %5104 = vmatpush1.bf16.msra.mxu0 %v4678
    %5105 = vmatprep.subr.bf16.mxu0 %v4683
    %5106 = vmatpush1.bf16.msra.mxu0 %v4682
    %5107 = vmatprep.subr.bf16.mxu0 %v4687
    %5108 = vmatpush1.bf16.msra.mxu0 %v4686
    %5109 = vmatprep.subr.bf16.mxu0 %v4691
    %5110 = vmatpush1.bf16.msra.mxu0 %v4690
    %5111 = vmatprep.subr.bf16.mxu0 %v4695
    %5112 = vmatpush1.bf16.msra.mxu0 %v4694
    %5113 = vmatprep.subr.bf16.mxu0 %v4699
    %5114 = vmatpush1.bf16.msra.mxu0 %v4698
    %5115 = vmatprep.subr.bf16.mxu0 %v4703
    %5116 = vmatpush1.bf16.msra.mxu0 %v4702
    %5117 = vmatprep.mubr.bf16.mxu0 %v3403
    %5118 = vmatmul.mubr.bf16.gmra.mrb[0].mxu0 %v3402
    %v5119 = vpop.f32.mrb[0].mxu0
    %v5120 = vadd.f32 %v5079, %v5119
    %v5121 = vpop.f32.mrb[0].mxu0
    %v5122 = vadd.f32 %v5081, %v5121
    %v5123 = vpop.f32.mrb[0].mxu0
    %v5124 = vpop.f32.mrb[0].mxu0
    %5125 = vdwg.mxu0
    %5126 = vmatprep.subr.bf16.mxu0 %v4453
    %5127 = vmatpush1.bf16.msra.mxu0 %v4452
    %5128 = vmatprep.subr.bf16.mxu0 %v4457
    %5129 = vmatpush1.bf16.msra.mxu0 %v4456
    %5130 = vmatprep.subr.bf16.mxu0 %v4461
    %5131 = vmatpush1.bf16.msra.mxu0 %v4460
    %5132 = vmatprep.subr.bf16.mxu0 %v4465
    %5133 = vmatpush1.bf16.msra.mxu0 %v4464
    %5134 = vmatprep.subr.bf16.mxu0 %v4469
    %5135 = vmatpush1.bf16.msra.mxu0 %v4468
    %5136 = vmatprep.subr.bf16.mxu0 %v4473
    %5137 = vmatpush1.bf16.msra.mxu0 %v4472
    %5138 = vmatprep.subr.bf16.mxu0 %v4477
    %5139 = vmatpush1.bf16.msra.mxu0 %v4476
    %5140 = vmatprep.subr.bf16.mxu0 %v4481
    %5141 = vmatpush1.bf16.msra.mxu0 %v4480
    %5142 = vmatprep.subr.bf16.mxu0 %v4485
    %5143 = vmatpush1.bf16.msra.mxu0 %v4484
    %5144 = vmatprep.subr.bf16.mxu0 %v4489
    %5145 = vmatpush1.bf16.msra.mxu0 %v4488
    %5146 = vmatprep.subr.bf16.mxu0 %v4493
    %5147 = vmatpush1.bf16.msra.mxu0 %v4492
    %5148 = vmatprep.subr.bf16.mxu0 %v4497
    %5149 = vmatpush1.bf16.msra.mxu0 %v4496
    %5150 = vmatprep.subr.bf16.mxu0 %v4501
    %5151 = vmatpush1.bf16.msra.mxu0 %v4500
    %5152 = vmatprep.subr.bf16.mxu0 %v4505
    %5153 = vmatpush1.bf16.msra.mxu0 %v4504
    %5154 = vmatprep.subr.bf16.mxu0 %v4509
    %5155 = vmatpush1.bf16.msra.mxu0 %v4508
    %5156 = vmatprep.subr.bf16.mxu0 %v4513
    %5157 = vmatpush1.bf16.msra.mxu0 %v4512
    %5158 = vmatprep.mubr.bf16.mxu0 %v3397
    %5159 = vmatmul.mubr.bf16.gmra.mrb[0].mxu0 %v3396
    %v5160 = vpop.f32.mrb[0].mxu0
    %v5161 = vadd.f32 %v3673, %v5160
    %v5162 = vpop.f32.mrb[0].mxu0
    %v5163 = vadd.f32 %v3677, %v5162
    %v5164 = vpop.f32.mrb[0].mxu0
    %v5165 = vpop.f32.mrb[0].mxu0
    %5166 = vdwg.mxu0
    %5167 = vmatprep.subr.bf16.mxu0 %v4517
    %5168 = vmatpush1.bf16.msra.mxu0 %v4516
    %5169 = vmatprep.subr.bf16.mxu0 %v4521
    %5170 = vmatpush1.bf16.msra.mxu0 %v4520
    %5171 = vmatprep.subr.bf16.mxu0 %v4525
    %5172 = vmatpush1.bf16.msra.mxu0 %v4524
    %5173 = vmatprep.subr.bf16.mxu0 %v4529
    %5174 = vmatpush1.bf16.msra.mxu0 %v4528
    %5175 = vmatprep.subr.bf16.mxu0 %v4533
    %5176 = vmatpush1.bf16.msra.mxu0 %v4532
    %5177 = vmatprep.subr.bf16.mxu0 %v4537
    %5178 = vmatpush1.bf16.msra.mxu0 %v4536
    %5179 = vmatprep.subr.bf16.mxu0 %v4541
    %5180 = vmatpush1.bf16.msra.mxu0 %v4540
    %5181 = vmatprep.subr.bf16.mxu0 %v4545
    %5182 = vmatpush1.bf16.msra.mxu0 %v4544
    %5183 = vmatprep.subr.bf16.mxu0 %v4549
    %5184 = vmatpush1.bf16.msra.mxu0 %v4548
    %5185 = vmatprep.subr.bf16.mxu0 %v4553
    %5186 = vmatpush1.bf16.msra.mxu0 %v4552
    %5187 = vmatprep.subr.bf16.mxu0 %v4557
    %5188 = vmatpush1.bf16.msra.mxu0 %v4556
    %5189 = vmatprep.subr.bf16.mxu0 %v4561
    %5190 = vmatpush1.bf16.msra.mxu0 %v4560
    %5191 = vmatprep.subr.bf16.mxu0 %v4565
    %5192 = vmatpush1.bf16.msra.mxu0 %v4564
    %5193 = vmatprep.subr.bf16.mxu0 %v4569
    %5194 = vmatpush1.bf16.msra.mxu0 %v4568
    %5195 = vmatprep.subr.bf16.mxu0 %v4573
    %5196 = vmatpush1.bf16.msra.mxu0 %v4572
    %5197 = vmatprep.subr.bf16.mxu0 %v4577
    %5198 = vmatpush1.bf16.msra.mxu0 %v4576
    %5199 = vmatprep.mubr.bf16.mxu0 %v3399
    %5200 = vmatmul.mubr.bf16.gmra.mrb[0].mxu0 %v3398
    %v5201 = vpop.f32.mrb[0].mxu0
    %v5202 = vadd.f32 %v5161, %v5201
    %v5203 = vpop.f32.mrb[0].mxu0
    %v5204 = vadd.f32 %v5163, %v5203
    %v5205 = vpop.f32.mrb[0].mxu0
    %v5206 = vpop.f32.mrb[0].mxu0
    %5207 = vdwg.mxu0
    %5208 = vmatprep.subr.bf16.mxu0 %v4581
    %5209 = vmatpush1.bf16.msra.mxu0 %v4580
    %5210 = vmatprep.subr.bf16.mxu0 %v4585
    %5211 = vmatpush1.bf16.msra.mxu0 %v4584
    %5212 = vmatprep.subr.bf16.mxu0 %v4589
    %5213 = vmatpush1.bf16.msra.mxu0 %v4588
    %5214 = vmatprep.subr.bf16.mxu0 %v4593
    %5215 = vmatpush1.bf16.msra.mxu0 %v4592
    %5216 = vmatprep.subr.bf16.mxu0 %v4597
    %5217 = vmatpush1.bf16.msra.mxu0 %v4596
    %5218 = vmatprep.subr.bf16.mxu0 %v4601
    %5219 = vmatpush1.bf16.msra.mxu0 %v4600
    %5220 = vmatprep.subr.bf16.mxu0 %v4605
    %5221 = vmatpush1.bf16.msra.mxu0 %v4604
    %5222 = vmatprep.subr.bf16.mxu0 %v4609
    %5223 = vmatpush1.bf16.msra.mxu0 %v4608
    %5224 = vmatprep.subr.bf16.mxu0 %v4613
    %5225 = vmatpush1.bf16.msra.mxu0 %v4612
    %5226 = vmatprep.subr.bf16.mxu0 %v4617
    %5227 = vmatpush1.bf16.msra.mxu0 %v4616
    %5228 = vmatprep.subr.bf16.mxu0 %v4621
    %5229 = vmatpush1.bf16.msra.mxu0 %v4620
    %5230 = vmatprep.subr.bf16.mxu0 %v4625
    %5231 = vmatpush1.bf16.msra.mxu0 %v4624
    %5232 = vmatprep.subr.bf16.mxu0 %v4629
    %5233 = vmatpush1.bf16.msra.mxu0 %v4628
    %5234 = vmatprep.subr.bf16.mxu0 %v4633
    %5235 = vmatpush1.bf16.msra.mxu0 %v4632
    %5236 = vmatprep.subr.bf16.mxu0 %v4637
    %5237 = vmatpush1.bf16.msra.mxu0 %v4636
    %5238 = vmatprep.subr.bf16.mxu0 %v4641
    %5239 = vmatpush1.bf16.msra.mxu0 %v4640
    %5240 = vmatprep.mubr.bf16.mxu0 %v3401
    %5241 = vmatmul.mubr.bf16.gmra.mrb[0].mxu0 %v3400
    %v5242 = vpop.f32.mrb[0].mxu0
    %v5243 = vadd.f32 %v5202, %v5242
    %v5244 = vpop.f32.mrb[0].mxu0
    %v5245 = vadd.f32 %v5204, %v5244
    %v5246 = vpop.f32.mrb[0].mxu0
    %v5247 = vpop.f32.mrb[0].mxu0
    %5248 = vdwg.mxu0
    %5249 = vmatprep.subr.bf16.mxu0 %v4645
    %5250 = vmatpush1.bf16.msra.mxu0 %v4644
    %5251 = vmatprep.subr.bf16.mxu0 %v4649
    %5252 = vmatpush1.bf16.msra.mxu0 %v4648
    %5253 = vmatprep.subr.bf16.mxu0 %v4653
    %5254 = vmatpush1.bf16.msra.mxu0 %v4652
    %5255 = vmatprep.subr.bf16.mxu0 %v4657
    %5256 = vmatpush1.bf16.msra.mxu0 %v4656
    %5257 = vmatprep.subr.bf16.mxu0 %v4661
    %5258 = vmatpush1.bf16.msra.mxu0 %v4660
    %5259 = vmatprep.subr.bf16.mxu0 %v4665
    %5260 = vmatpush1.bf16.msra.mxu0 %v4664
    %5261 = vmatprep.subr.bf16.mxu0 %v4669
    %5262 = vmatpush1.bf16.msra.mxu0 %v4668
    %5263 = vmatprep.subr.bf16.mxu0 %v4673
    %5264 = vmatpush1.bf16.msra.mxu0 %v4672
    %5265 = vmatprep.subr.bf16.mxu0 %v4677
    %5266 = vmatpush1.bf16.msra.mxu0 %v4676
    %5267 = vmatprep.subr.bf16.mxu0 %v4681
    %5268 = vmatpush1.bf16.msra.mxu0 %v4680
    %5269 = vmatprep.subr.bf16.mxu0 %v4685
    %5270 = vmatpush1.bf16.msra.mxu0 %v4684
    %5271 = vmatprep.subr.bf16.mxu0 %v4689
    %5272 = vmatpush1.bf16.msra.mxu0 %v4688
    %5273 = vmatprep.subr.bf16.mxu0 %v4693
    %5274 = vmatpush1.bf16.msra.mxu0 %v4692
    %5275 = vmatprep.subr.bf16.mxu0 %v4697
    %5276 = vmatpush1.bf16.msra.mxu0 %v4696
    %5277 = vmatprep.subr.bf16.mxu0 %v4701
    %5278 = vmatpush1.bf16.msra.mxu0 %v4700
    %5279 = vmatprep.subr.bf16.mxu0 %v4705
    %5280 = vmatpush1.bf16.msra.mxu0 %v4704
    %5281 = vmatprep.mubr.bf16.mxu0 %v3403
    %5282 = vmatmul.mubr.bf16.gmra.mrb[0].mxu0 %v3402
    %v5283 = vpop.f32.mrb[0].mxu0
    %v5284 = vadd.f32 %v5243, %v5283
    %v5285 = vpop.f32.mrb[0].mxu0
    %v5286 = vadd.f32 %v5245, %v5285
    %v5287 = vpop.f32.mrb[0].mxu0
    %v5288 = vpop.f32.mrb[0].mxu0
    %5289 = vdwg.mxu0
    %v5290 = vmax.f32 %v5120, 0.0
    %v5291 = vmax.f32 %v5122, 0.0
    %v5292 = vmax.f32 %v5284, 0.0
    %v5293 = vmax.f32 %v5286, 0.0
    %v5294 = vpack.c.bf16 %v5290, %v5290
    %v5295 = vpack.c.bf16 %v5291, %v5291
    %v5296 = vpack.c.bf16 %v5292, %v5292
    %v5297 = vpack.c.bf16 %v5293, %v5293
    %v5298 = vld [vmem:[#allocation9] sm:$0xff]
    %v5299 = vld [vmem:[#allocation9 + $0x8] sm:$0xff]
    %v5300 = vld [vmem:[#allocation9 + $0x10] sm:$0xff]
    %v5301 = vld [vmem:[#allocation9 + $0x18] sm:$0xff]
    %v5302 = vld [vmem:[#allocation9 + $0x20] sm:$0xff]
    %v5303 = vld [vmem:[#allocation9 + $0x28] sm:$0xff]
    %v5304 = vld [vmem:[#allocation9 + $0x30] sm:$0xff]
    %v5305 = vld [vmem:[#allocation9 + $0x38] sm:$0xff]
    %v5306 = vld [vmem:[#allocation9 + $0x40] sm:$0xff]
    %v5307 = vld [vmem:[#allocation9 + $0x48] sm:$0xff]
    %v5308 = vld [vmem:[#allocation9 + $0x50] sm:$0xff]
    %v5309 = vld [vmem:[#allocation9 + $0x58] sm:$0xff]
    %v5310 = vld [vmem:[#allocation9 + $0x60] sm:$0xff]
    %v5311 = vld [vmem:[#allocation9 + $0x68] sm:$0xff]
    %v5312 = vld [vmem:[#allocation9 + $0x70] sm:$0xff]
    %v5313 = vld [vmem:[#allocation9 + $0x78] sm:$0xff]
    %v5314 = vld [vmem:[#allocation9 + $0x80] sm:$0xff]
    %v5315 = vld [vmem:[#allocation9 + $0x88] sm:$0xff]
    %v5316 = vld [vmem:[#allocation9 + $0x90] sm:$0xff]
    %v5317 = vld [vmem:[#allocation9 + $0x98] sm:$0xff]
    %v5318 = vld [vmem:[#allocation9 + $0xa0] sm:$0xff]
    %v5319 = vld [vmem:[#allocation9 + $0xa8] sm:$0xff]
    %v5320 = vld [vmem:[#allocation9 + $0xb0] sm:$0xff]
    %v5321 = vld [vmem:[#allocation9 + $0xb8] sm:$0xff]
    %v5322 = vld [vmem:[#allocation9 + $0xc0] sm:$0xff]
    %v5323 = vld [vmem:[#allocation9 + $0xc8] sm:$0xff]
    %v5324 = vld [vmem:[#allocation9 + $0xd0] sm:$0xff]
    %v5325 = vld [vmem:[#allocation9 + $0xd8] sm:$0xff]
    %v5326 = vld [vmem:[#allocation9 + $0xe0] sm:$0xff]
    %v5327 = vld [vmem:[#allocation9 + $0xe8] sm:$0xff]
    %v5328 = vld [vmem:[#allocation9 + $0xf0] sm:$0xff]
    %v5329 = vld [vmem:[#allocation9 + $0xf8] sm:$0xff]
    %v5330 = vld [vmem:[#allocation9 + $0x100] sm:$0xff]
    %v5331 = vld [vmem:[#allocation9 + $0x108] sm:$0xff]
    %v5332 = vld [vmem:[#allocation9 + $0x110] sm:$0xff]
    %v5333 = vld [vmem:[#allocation9 + $0x118] sm:$0xff]
    %v5334 = vld [vmem:[#allocation9 + $0x120] sm:$0xff]
    %v5335 = vld [vmem:[#allocation9 + $0x128] sm:$0xff]
    %v5336 = vld [vmem:[#allocation9 + $0x130] sm:$0xff]
    %v5337 = vld [vmem:[#allocation9 + $0x138] sm:$0xff]
    %v5338 = vld [vmem:[#allocation9 + $0x140] sm:$0xff]
    %v5339 = vld [vmem:[#allocation9 + $0x148] sm:$0xff]
    %v5340 = vld [vmem:[#allocation9 + $0x150] sm:$0xff]
    %v5341 = vld [vmem:[#allocation9 + $0x158] sm:$0xff]
    %v5342 = vld [vmem:[#allocation9 + $0x160] sm:$0xff]
    %v5343 = vld [vmem:[#allocation9 + $0x168] sm:$0xff]
    %v5344 = vld [vmem:[#allocation9 + $0x170] sm:$0xff]
    %v5345 = vld [vmem:[#allocation9 + $0x178] sm:$0xff]
    %v5346 = vld [vmem:[#allocation9 + $0x180] sm:$0xff]
    %v5347 = vld [vmem:[#allocation9 + $0x188] sm:$0xff]
    %v5348 = vld [vmem:[#allocation9 + $0x190] sm:$0xff]
    %v5349 = vld [vmem:[#allocation9 + $0x198] sm:$0xff]
    %v5350 = vld [vmem:[#allocation9 + $0x1a0] sm:$0xff]
    %v5351 = vld [vmem:[#allocation9 + $0x1a8] sm:$0xff]
    %v5352 = vld [vmem:[#allocation9 + $0x1b0] sm:$0xff]
    %v5353 = vld [vmem:[#allocation9 + $0x1b8] sm:$0xff]
    %v5354 = vld [vmem:[#allocation9 + $0x1c0] sm:$0xff]
    %v5355 = vld [vmem:[#allocation9 + $0x1c8] sm:$0xff]
    %v5356 = vld [vmem:[#allocation9 + $0x1d0] sm:$0xff]
    %v5357 = vld [vmem:[#allocation9 + $0x1d8] sm:$0xff]
    %v5358 = vld [vmem:[#allocation9 + $0x1e0] sm:$0xff]
    %v5359 = vld [vmem:[#allocation9 + $0x1e8] sm:$0xff]
    %v5360 = vld [vmem:[#allocation9 + $0x1f0] sm:$0xff]
    %v5361 = vld [vmem:[#allocation9 + $0x1f8] sm:$0xff]
    %v5362 = vld [vmem:[#allocation10] sm:$0x3]
    %v5364 = vlaneseq
    %v5365 = vshrl.u32 %v5364, 7
    %v5366 = vsub.s32 0, %v5365
    %v5367 = vrot.slane %v5362, %v5366
    %v5368 = vlaneseq
    %v5369 = vshrl.u32 %v5368, 7
    %v5370 = vsub.s32 1, %v5369
    %v5371 = vrot.slane %v5362, %v5370
    %v5438 = vunpack.c.l.b16 %v5298
    %v5439 = vunpack.c.h.b16 %v5298
    %v5440 = vunpack.c.l.b16 %v5299
    %v5441 = vunpack.c.h.b16 %v5299
    %v5442 = vunpack.c.l.b16 %v5300
    %v5443 = vunpack.c.h.b16 %v5300
    %v5444 = vunpack.c.l.b16 %v5301
    %v5445 = vunpack.c.h.b16 %v5301
    %v5446 = vunpack.c.l.b16 %v5302
    %v5447 = vunpack.c.h.b16 %v5302
    %v5448 = vunpack.c.l.b16 %v5303
    %v5449 = vunpack.c.h.b16 %v5303
    %v5450 = vunpack.c.l.b16 %v5304
    %v5451 = vunpack.c.h.b16 %v5304
    %v5452 = vunpack.c.l.b16 %v5305
    %v5453 = vunpack.c.h.b16 %v5305
    %v5454 = vunpack.c.l.b16 %v5306
    %v5455 = vunpack.c.h.b16 %v5306
    %v5456 = vunpack.c.l.b16 %v5307
    %v5457 = vunpack.c.h.b16 %v5307
    %v5458 = vunpack.c.l.b16 %v5308
    %v5459 = vunpack.c.h.b16 %v5308
    %v5460 = vunpack.c.l.b16 %v5309
    %v5461 = vunpack.c.h.b16 %v5309
    %v5462 = vunpack.c.l.b16 %v5310
    %v5463 = vunpack.c.h.b16 %v5310
    %v5464 = vunpack.c.l.b16 %v5311
    %v5465 = vunpack.c.h.b16 %v5311
    %v5466 = vunpack.c.l.b16 %v5312
    %v5467 = vunpack.c.h.b16 %v5312
    %v5468 = vunpack.c.l.b16 %v5313
    %v5469 = vunpack.c.h.b16 %v5313
    %v5470 = vunpack.c.l.b16 %v5314
    %v5471 = vunpack.c.h.b16 %v5314
    %v5472 = vunpack.c.l.b16 %v5315
    %v5473 = vunpack.c.h.b16 %v5315
    %v5474 = vunpack.c.l.b16 %v5316
    %v5475 = vunpack.c.h.b16 %v5316
    %v5476 = vunpack.c.l.b16 %v5317
    %v5477 = vunpack.c.h.b16 %v5317
    %v5478 = vunpack.c.l.b16 %v5318
    %v5479 = vunpack.c.h.b16 %v5318
    %v5480 = vunpack.c.l.b16 %v5319
    %v5481 = vunpack.c.h.b16 %v5319
    %v5482 = vunpack.c.l.b16 %v5320
    %v5483 = vunpack.c.h.b16 %v5320
    %v5484 = vunpack.c.l.b16 %v5321
    %v5485 = vunpack.c.h.b16 %v5321
    %v5486 = vunpack.c.l.b16 %v5322
    %v5487 = vunpack.c.h.b16 %v5322
    %v5488 = vunpack.c.l.b16 %v5323
    %v5489 = vunpack.c.h.b16 %v5323
    %v5490 = vunpack.c.l.b16 %v5324
    %v5491 = vunpack.c.h.b16 %v5324
    %v5492 = vunpack.c.l.b16 %v5325
    %v5493 = vunpack.c.h.b16 %v5325
    %v5494 = vunpack.c.l.b16 %v5326
    %v5495 = vunpack.c.h.b16 %v5326
    %v5496 = vunpack.c.l.b16 %v5327
    %v5497 = vunpack.c.h.b16 %v5327
    %v5498 = vunpack.c.l.b16 %v5328
    %v5499 = vunpack.c.h.b16 %v5328
    %v5500 = vunpack.c.l.b16 %v5329
    %v5501 = vunpack.c.h.b16 %v5329
    %v5502 = vunpack.c.l.b16 %v5330
    %v5503 = vunpack.c.h.b16 %v5330
    %v5504 = vunpack.c.l.b16 %v5331
    %v5505 = vunpack.c.h.b16 %v5331
    %v5506 = vunpack.c.l.b16 %v5332
    %v5507 = vunpack.c.h.b16 %v5332
    %v5508 = vunpack.c.l.b16 %v5333
    %v5509 = vunpack.c.h.b16 %v5333
    %v5510 = vunpack.c.l.b16 %v5334
    %v5511 = vunpack.c.h.b16 %v5334
    %v5512 = vunpack.c.l.b16 %v5335
    %v5513 = vunpack.c.h.b16 %v5335
    %v5514 = vunpack.c.l.b16 %v5336
    %v5515 = vunpack.c.h.b16 %v5336
    %v5516 = vunpack.c.l.b16 %v5337
    %v5517 = vunpack.c.h.b16 %v5337
    %v5518 = vunpack.c.l.b16 %v5338
    %v5519 = vunpack.c.h.b16 %v5338
    %v5520 = vunpack.c.l.b16 %v5339
    %v5521 = vunpack.c.h.b16 %v5339
    %v5522 = vunpack.c.l.b16 %v5340
    %v5523 = vunpack.c.h.b16 %v5340
    %v5524 = vunpack.c.l.b16 %v5341
    %v5525 = vunpack.c.h.b16 %v5341
    %v5526 = vunpack.c.l.b16 %v5342
    %v5527 = vunpack.c.h.b16 %v5342
    %v5528 = vunpack.c.l.b16 %v5343
    %v5529 = vunpack.c.h.b16 %v5343
    %v5530 = vunpack.c.l.b16 %v5344
    %v5531 = vunpack.c.h.b16 %v5344
    %v5532 = vunpack.c.l.b16 %v5345
    %v5533 = vunpack.c.h.b16 %v5345
    %v5534 = vunpack.c.l.b16 %v5346
    %v5535 = vunpack.c.h.b16 %v5346
    %v5536 = vunpack.c.l.b16 %v5347
    %v5537 = vunpack.c.h.b16 %v5347
    %v5538 = vunpack.c.l.b16 %v5348
    %v5539 = vunpack.c.h.b16 %v5348
    %v5540 = vunpack.c.l.b16 %v5349
    %v5541 = vunpack.c.h.b16 %v5349
    %v5542 = vunpack.c.l.b16 %v5350
    %v5543 = vunpack.c.h.b16 %v5350
    %v5544 = vunpack.c.l.b16 %v5351
    %v5545 = vunpack.c.h.b16 %v5351
    %v5546 = vunpack.c.l.b16 %v5352
    %v5547 = vunpack.c.h.b16 %v5352
    %v5548 = vunpack.c.l.b16 %v5353
    %v5549 = vunpack.c.h.b16 %v5353
    %v5550 = vunpack.c.l.b16 %v5354
    %v5551 = vunpack.c.h.b16 %v5354
    %v5552 = vunpack.c.l.b16 %v5355
    %v5553 = vunpack.c.h.b16 %v5355
    %v5554 = vunpack.c.l.b16 %v5356
    %v5555 = vunpack.c.h.b16 %v5356
    %v5556 = vunpack.c.l.b16 %v5357
    %v5557 = vunpack.c.h.b16 %v5357
    %v5558 = vunpack.c.l.b16 %v5358
    %v5559 = vunpack.c.h.b16 %v5358
    %v5560 = vunpack.c.l.b16 %v5359
    %v5561 = vunpack.c.h.b16 %v5359
    %v5562 = vunpack.c.l.b16 %v5360
    %v5563 = vunpack.c.h.b16 %v5360
    %v5564 = vunpack.c.l.b16 %v5361
    %v5565 = vunpack.c.h.b16 %v5361
    %v5566 = vpack.c.b16 %v5440, %v5438
    %v5567 = vpack.c.b16 %v5441, %v5439
    %v5568 = vpack.c.b16 %v5444, %v5442
    %v5569 = vpack.c.b16 %v5445, %v5443
    %v5570 = vpack.c.b16 %v5448, %v5446
    %v5571 = vpack.c.b16 %v5449, %v5447
    %v5572 = vpack.c.b16 %v5452, %v5450
    %v5573 = vpack.c.b16 %v5453, %v5451
    %v5574 = vpack.c.b16 %v5456, %v5454
    %v5575 = vpack.c.b16 %v5457, %v5455
    %v5576 = vpack.c.b16 %v5460, %v5458
    %v5577 = vpack.c.b16 %v5461, %v5459
    %v5578 = vpack.c.b16 %v5464, %v5462
    %v5579 = vpack.c.b16 %v5465, %v5463
    %v5580 = vpack.c.b16 %v5468, %v5466
    %v5581 = vpack.c.b16 %v5469, %v5467
    %v5582 = vpack.c.b16 %v5472, %v5470
    %v5583 = vpack.c.b16 %v5473, %v5471
    %v5584 = vpack.c.b16 %v5476, %v5474
    %v5585 = vpack.c.b16 %v5477, %v5475
    %v5586 = vpack.c.b16 %v5480, %v5478
    %v5587 = vpack.c.b16 %v5481, %v5479
    %v5588 = vpack.c.b16 %v5484, %v5482
    %v5589 = vpack.c.b16 %v5485, %v5483
    %v5590 = vpack.c.b16 %v5488, %v5486
    %v5591 = vpack.c.b16 %v5489, %v5487
    %v5592 = vpack.c.b16 %v5492, %v5490
    %v5593 = vpack.c.b16 %v5493, %v5491
    %v5594 = vpack.c.b16 %v5496, %v5494
    %v5595 = vpack.c.b16 %v5497, %v5495
    %v5596 = vpack.c.b16 %v5500, %v5498
    %v5597 = vpack.c.b16 %v5501, %v5499
    %v5598 = vpack.c.b16 %v5504, %v5502
    %v5599 = vpack.c.b16 %v5505, %v5503
    %v5600 = vpack.c.b16 %v5508, %v5506
    %v5601 = vpack.c.b16 %v5509, %v5507
    %v5602 = vpack.c.b16 %v5512, %v5510
    %v5603 = vpack.c.b16 %v5513, %v5511
    %v5604 = vpack.c.b16 %v5516, %v5514
    %v5605 = vpack.c.b16 %v5517, %v5515
    %v5606 = vpack.c.b16 %v5520, %v5518
    %v5607 = vpack.c.b16 %v5521, %v5519
    %v5608 = vpack.c.b16 %v5524, %v5522
    %v5609 = vpack.c.b16 %v5525, %v5523
    %v5610 = vpack.c.b16 %v5528, %v5526
    %v5611 = vpack.c.b16 %v5529, %v5527
    %v5612 = vpack.c.b16 %v5532, %v5530
    %v5613 = vpack.c.b16 %v5533, %v5531
    %v5614 = vpack.c.b16 %v5536, %v5534
    %v5615 = vpack.c.b16 %v5537, %v5535
    %v5616 = vpack.c.b16 %v5540, %v5538
    %v5617 = vpack.c.b16 %v5541, %v5539
    %v5618 = vpack.c.b16 %v5544, %v5542
    %v5619 = vpack.c.b16 %v5545, %v5543
    %v5620 = vpack.c.b16 %v5548, %v5546
    %v5621 = vpack.c.b16 %v5549, %v5547
    %v5622 = vpack.c.b16 %v5552, %v5550
    %v5623 = vpack.c.b16 %v5553, %v5551
    %v5624 = vpack.c.b16 %v5556, %v5554
    %v5625 = vpack.c.b16 %v5557, %v5555
    %v5626 = vpack.c.b16 %v5560, %v5558
    %v5627 = vpack.c.b16 %v5561, %v5559
    %v5628 = vpack.c.b16 %v5564, %v5562
    %v5629 = vpack.c.b16 %v5565, %v5563
    %5694 = vmatprep.subr.bf16.mxu0 %v5567
    %5695 = vmatpush1.bf16.msra.mxu0 %v5566
    %5696 = vmatprep.subr.bf16.mxu0 %v5569
    %5697 = vmatpush1.bf16.msra.mxu0 %v5568
    %5698 = vmatprep.subr.bf16.mxu0 %v5571
    %5699 = vmatpush1.bf16.msra.mxu0 %v5570
    %5700 = vmatprep.subr.bf16.mxu0 %v5573
    %5701 = vmatpush1.bf16.msra.mxu0 %v5572
    %5702 = vmatprep.subr.bf16.mxu0 %v5575
    %5703 = vmatpush1.bf16.msra.mxu0 %v5574
    %5704 = vmatprep.subr.bf16.mxu0 %v5577
    %5705 = vmatpush1.bf16.msra.mxu0 %v5576
    %5706 = vmatprep.subr.bf16.mxu0 %v5579
    %5707 = vmatpush1.bf16.msra.mxu0 %v5578
    %5708 = vmatprep.subr.bf16.mxu0 %v5581
    %5709 = vmatpush1.bf16.msra.mxu0 %v5580
    %5710 = vmatprep.subr.bf16.mxu0 %v5583
    %5711 = vmatpush1.bf16.msra.mxu0 %v5582
    %5712 = vmatprep.subr.bf16.mxu0 %v5585
    %5713 = vmatpush1.bf16.msra.mxu0 %v5584
    %5714 = vmatprep.subr.bf16.mxu0 %v5587
    %5715 = vmatpush1.bf16.msra.mxu0 %v5586
    %5716 = vmatprep.subr.bf16.mxu0 %v5589
    %5717 = vmatpush1.bf16.msra.mxu0 %v5588
    %5718 = vmatprep.subr.bf16.mxu0 %v5591
    %5719 = vmatpush1.bf16.msra.mxu0 %v5590
    %5720 = vmatprep.subr.bf16.mxu0 %v5593
    %5721 = vmatpush1.bf16.msra.mxu0 %v5592
    %5722 = vmatprep.subr.bf16.mxu0 %v5595
    %5723 = vmatpush1.bf16.msra.mxu0 %v5594
    %5724 = vmatprep.subr.bf16.mxu0 %v5597
    %5725 = vmatpush1.bf16.msra.mxu0 %v5596
    %5726 = vmatprep.mubr.bf16.mxu0 %v5295
    %5727 = vmatmul.mubr.bf16.gmra.mrb[0].mxu0 %v5294
    %v5728 = vpop.f32.mrb[0].mxu0
    %v5729 = vadd.f32 %v5367, %v5728
    %v5730 = vpop.f32.mrb[0].mxu0
    %v5731 = vadd.f32 %v5371, %v5730
    %v5732 = vpop.f32.mrb[0].mxu0
    %v5733 = vpop.f32.mrb[0].mxu0
    %5734 = vdwg.mxu0
    %5735 = vmatprep.subr.bf16.mxu0 %v5599
    %5736 = vmatpush1.bf16.msra.mxu0 %v5598
    %5737 = vmatprep.subr.bf16.mxu0 %v5601
    %5738 = vmatpush1.bf16.msra.mxu0 %v5600
    %5739 = vmatprep.subr.bf16.mxu0 %v5603
    %5740 = vmatpush1.bf16.msra.mxu0 %v5602
    %5741 = vmatprep.subr.bf16.mxu0 %v5605
    %5742 = vmatpush1.bf16.msra.mxu0 %v5604
    %5743 = vmatprep.subr.bf16.mxu0 %v5607
    %5744 = vmatpush1.bf16.msra.mxu0 %v5606
    %5745 = vmatprep.subr.bf16.mxu0 %v5609
    %5746 = vmatpush1.bf16.msra.mxu0 %v5608
    %5747 = vmatprep.subr.bf16.mxu0 %v5611
    %5748 = vmatpush1.bf16.msra.mxu0 %v5610
    %5749 = vmatprep.subr.bf16.mxu0 %v5613
    %5750 = vmatpush1.bf16.msra.mxu0 %v5612
    %5751 = vmatprep.subr.bf16.mxu0 %v5615
    %5752 = vmatpush1.bf16.msra.mxu0 %v5614
    %5753 = vmatprep.subr.bf16.mxu0 %v5617
    %5754 = vmatpush1.bf16.msra.mxu0 %v5616
    %5755 = vmatprep.subr.bf16.mxu0 %v5619
    %5756 = vmatpush1.bf16.msra.mxu0 %v5618
    %5757 = vmatprep.subr.bf16.mxu0 %v5621
    %5758 = vmatpush1.bf16.msra.mxu0 %v5620
    %5759 = vmatprep.subr.bf16.mxu0 %v5623
    %5760 = vmatpush1.bf16.msra.mxu0 %v5622
    %5761 = vmatprep.subr.bf16.mxu0 %v5625
    %5762 = vmatpush1.bf16.msra.mxu0 %v5624
    %5763 = vmatprep.subr.bf16.mxu0 %v5627
    %5764 = vmatpush1.bf16.msra.mxu0 %v5626
    %5765 = vmatprep.subr.bf16.mxu0 %v5629
    %5766 = vmatpush1.bf16.msra.mxu0 %v5628
    %5767 = vmatprep.mubr.bf16.mxu0 %v5297
    %5768 = vmatmul.mubr.bf16.gmra.mrb[0].mxu0 %v5296
    %v5769 = vpop.f32.mrb[0].mxu0
    %v5770 = vadd.f32 %v5729, %v5769
    %v5771 = vpop.f32.mrb[0].mxu0
    %v5772 = vadd.f32 %v5731, %v5771
    %v5773 = vpop.f32.mrb[0].mxu0
    %v5774 = vpop.f32.mrb[0].mxu0
    %5775 = vdwg.mxu0
    %v5776 = vmax.f32 %v5770, 0.0
    %v5777 = vmax.f32 %v5772, 0.0
    %v5778 = vpack.c.bf16 %v5776, %v5776
    %v5779 = vpack.c.bf16 %v5777, %v5777
    %v5780 = vld [vmem:[#allocation18] sm:$0xff]
    %v5781 = vld [vmem:[#allocation18 + $0x8] sm:$0xf]
    %v5782 = vld [vmem:[#allocation18 + $0xc] sm:$0xff]
    %v5783 = vld [vmem:[#allocation18 + $0x14] sm:$0xf]
    %v5784 = vld [vmem:[#allocation18 + $0x18] sm:$0xff]
    %v5785 = vld [vmem:[#allocation18 + $0x20] sm:$0xf]
    %v5786 = vld [vmem:[#allocation18 + $0x24] sm:$0xff]
    %v5787 = vld [vmem:[#allocation18 + $0x2c] sm:$0xf]
    %v5788 = vld [vmem:[#allocation18 + $0x30] sm:$0xff]
    %v5789 = vld [vmem:[#allocation18 + $0x38] sm:$0xf]
    %v5790 = vld [vmem:[#allocation18 + $0x3c] sm:$0xff]
    %v5791 = vld [vmem:[#allocation18 + $0x44] sm:$0xf]
    %v5792 = vld [vmem:[#allocation18 + $0x48] sm:$0xff]
    %v5793 = vld [vmem:[#allocation18 + $0x50] sm:$0xf]
    %v5794 = vld [vmem:[#allocation18 + $0x54] sm:$0xff]
    %v5795 = vld [vmem:[#allocation18 + $0x5c] sm:$0xf]
    %v5796 = vld [vmem:[#allocation18 + $0x60] sm:$0xff]
    %v5797 = vld [vmem:[#allocation18 + $0x68] sm:$0xf]
    %v5798 = vld [vmem:[#allocation18 + $0x6c] sm:$0xff]
    %v5799 = vld [vmem:[#allocation18 + $0x74] sm:$0xf]
    %v5800 = vld [vmem:[#allocation18 + $0x78] sm:$0xff]
    %v5801 = vld [vmem:[#allocation18 + $0x80] sm:$0xf]
    %v5802 = vld [vmem:[#allocation18 + $0x84] sm:$0xff]
    %v5803 = vld [vmem:[#allocation18 + $0x8c] sm:$0xf]
    %v5804 = vld [vmem:[#allocation18 + $0x90] sm:$0xff]
    %v5805 = vld [vmem:[#allocation18 + $0x98] sm:$0xf]
    %v5806 = vld [vmem:[#allocation18 + $0x9c] sm:$0xff]
    %v5807 = vld [vmem:[#allocation18 + $0xa4] sm:$0xf]
    %v5808 = vld [vmem:[#allocation18 + $0xa8] sm:$0xff]
    %v5809 = vld [vmem:[#allocation18 + $0xb0] sm:$0xf]
    %v5810 = vld [vmem:[#allocation18 + $0xb4] sm:$0xff]
    %v5811 = vld [vmem:[#allocation18 + $0xbc] sm:$0xf]
    %v5812 = vld [vmem:[#allocation18 + $0xc0] sm:$0xff]
    %v5813 = vld [vmem:[#allocation18 + $0xc8] sm:$0xf]
    %v5814 = vld [vmem:[#allocation18 + $0xcc] sm:$0xff]
    %v5815 = vld [vmem:[#allocation18 + $0xd4] sm:$0xf]
    %v5816 = vld [vmem:[#allocation18 + $0xd8] sm:$0xff]
    %v5817 = vld [vmem:[#allocation18 + $0xe0] sm:$0xf]
    %v5818 = vld [vmem:[#allocation18 + $0xe4] sm:$0xff]
    %v5819 = vld [vmem:[#allocation18 + $0xec] sm:$0xf]
    %v5820 = vld [vmem:[#allocation18 + $0xf0] sm:$0xff]
    %v5821 = vld [vmem:[#allocation18 + $0xf8] sm:$0xf]
    %v5822 = vld [vmem:[#allocation18 + $0xfc] sm:$0xff]
    %v5823 = vld [vmem:[#allocation18 + $0x104] sm:$0xf]
    %v5824 = vld [vmem:[#allocation18 + $0x108] sm:$0xff]
    %v5825 = vld [vmem:[#allocation18 + $0x110] sm:$0xf]
    %v5826 = vld [vmem:[#allocation18 + $0x114] sm:$0xff]
    %v5827 = vld [vmem:[#allocation18 + $0x11c] sm:$0xf]
    %v5828 = vld [vmem:[#allocation18 + $0x120] sm:$0xff]
    %v5829 = vld [vmem:[#allocation18 + $0x128] sm:$0xf]
    %v5830 = vld [vmem:[#allocation18 + $0x12c] sm:$0xff]
    %v5831 = vld [vmem:[#allocation18 + $0x134] sm:$0xf]
    %v5832 = vld [vmem:[#allocation18 + $0x138] sm:$0xff]
    %v5833 = vld [vmem:[#allocation18 + $0x140] sm:$0xf]
    %v5834 = vld [vmem:[#allocation18 + $0x144] sm:$0xff]
    %v5835 = vld [vmem:[#allocation18 + $0x14c] sm:$0xf]
    %v5836 = vld [vmem:[#allocation18 + $0x150] sm:$0xff]
    %v5837 = vld [vmem:[#allocation18 + $0x158] sm:$0xf]
    %v5838 = vld [vmem:[#allocation18 + $0x15c] sm:$0xff]
    %v5839 = vld [vmem:[#allocation18 + $0x164] sm:$0xf]
    %v5840 = vld [vmem:[#allocation18 + $0x168] sm:$0xff]
    %v5841 = vld [vmem:[#allocation18 + $0x170] sm:$0xf]
    %v5842 = vld [vmem:[#allocation18 + $0x174] sm:$0xff]
    %v5843 = vld [vmem:[#allocation18 + $0x17c] sm:$0xf]
    %v5844 = vpack.c.bf16 %v533, %v533
    %v5845 = vld [vmem:[#allocation19] sm:$0xff]
    %v5846 = vld [vmem:[#allocation19 + $0x8] sm:$0xf]
    %v5847 = vld [vmem:[#allocation19 + $0xc] sm:$0xff]
    %v5848 = vld [vmem:[#allocation19 + $0x14] sm:$0xf]
    %v5849 = vld [vmem:[#allocation19 + $0x18] sm:$0xff]
    %v5850 = vld [vmem:[#allocation19 + $0x20] sm:$0xf]
    %v5851 = vld [vmem:[#allocation19 + $0x24] sm:$0xff]
    %v5852 = vld [vmem:[#allocation19 + $0x2c] sm:$0xf]
    %v5853 = vld [vmem:[#allocation19 + $0x30] sm:$0xff]
    %v5854 = vld [vmem:[#allocation19 + $0x38] sm:$0xf]
    %v5855 = vld [vmem:[#allocation19 + $0x3c] sm:$0xff]
    %v5856 = vld [vmem:[#allocation19 + $0x44] sm:$0xf]
    %v5857 = vld [vmem:[#allocation19 + $0x48] sm:$0xff]
    %v5858 = vld [vmem:[#allocation19 + $0x50] sm:$0xf]
    %v5859 = vld [vmem:[#allocation19 + $0x54] sm:$0xff]
    %v5860 = vld [vmem:[#allocation19 + $0x5c] sm:$0xf]
    %v5861 = vld [vmem:[#allocation19 + $0x60] sm:$0xff]
    %v5862 = vld [vmem:[#allocation19 + $0x68] sm:$0xf]
    %v5863 = vld [vmem:[#allocation19 + $0x6c] sm:$0xff]
    %v5864 = vld [vmem:[#allocation19 + $0x74] sm:$0xf]
    %v5865 = vld [vmem:[#allocation19 + $0x78] sm:$0xff]
    %v5866 = vld [vmem:[#allocation19 + $0x80] sm:$0xf]
    %v5867 = vld [vmem:[#allocation19 + $0x84] sm:$0xff]
    %v5868 = vld [vmem:[#allocation19 + $0x8c] sm:$0xf]
    %v5869 = vld [vmem:[#allocation19 + $0x90] sm:$0xff]
    %v5870 = vld [vmem:[#allocation19 + $0x98] sm:$0xf]
    %v5871 = vld [vmem:[#allocation19 + $0x9c] sm:$0xff]
    %v5872 = vld [vmem:[#allocation19 + $0xa4] sm:$0xf]
    %v5873 = vld [vmem:[#allocation19 + $0xa8] sm:$0xff]
    %v5874 = vld [vmem:[#allocation19 + $0xb0] sm:$0xf]
    %v5875 = vld [vmem:[#allocation19 + $0xb4] sm:$0xff]
    %v5876 = vld [vmem:[#allocation19 + $0xbc] sm:$0xf]
    %v5909 = vunpack.c.l.b16 %v5845
    %v5910 = vunpack.c.h.b16 %v5845
    %v5911 = vunpack.c.l.b16 %v5846
    %v5912 = vunpack.c.l.b16 %v5847
    %v5913 = vunpack.c.h.b16 %v5847
    %v5914 = vunpack.c.l.b16 %v5848
    %v5915 = vunpack.c.l.b16 %v5849
    %v5916 = vunpack.c.h.b16 %v5849
    %v5917 = vunpack.c.l.b16 %v5850
    %v5918 = vunpack.c.l.b16 %v5851
    %v5919 = vunpack.c.h.b16 %v5851
    %v5920 = vunpack.c.l.b16 %v5852
    %v5921 = vunpack.c.l.b16 %v5853
    %v5922 = vunpack.c.h.b16 %v5853
    %v5923 = vunpack.c.l.b16 %v5854
    %v5924 = vunpack.c.l.b16 %v5855
    %v5925 = vunpack.c.h.b16 %v5855
    %v5926 = vunpack.c.l.b16 %v5856
    %v5927 = vunpack.c.l.b16 %v5857
    %v5928 = vunpack.c.h.b16 %v5857
    %v5929 = vunpack.c.l.b16 %v5858
    %v5930 = vunpack.c.l.b16 %v5859
    %v5931 = vunpack.c.h.b16 %v5859
    %v5932 = vunpack.c.l.b16 %v5860
    %v5933 = vunpack.c.l.b16 %v5861
    %v5934 = vunpack.c.h.b16 %v5861
    %v5935 = vunpack.c.l.b16 %v5862
    %v5936 = vunpack.c.l.b16 %v5863
    %v5937 = vunpack.c.h.b16 %v5863
    %v5938 = vunpack.c.l.b16 %v5864
    %v5939 = vunpack.c.l.b16 %v5865
    %v5940 = vunpack.c.h.b16 %v5865
    %v5941 = vunpack.c.l.b16 %v5866
    %v5942 = vunpack.c.l.b16 %v5867
    %v5943 = vunpack.c.h.b16 %v5867
    %v5944 = vunpack.c.l.b16 %v5868
    %v5945 = vunpack.c.l.b16 %v5869
    %v5946 = vunpack.c.h.b16 %v5869
    %v5947 = vunpack.c.l.b16 %v5870
    %v5948 = vunpack.c.l.b16 %v5871
    %v5949 = vunpack.c.h.b16 %v5871
    %v5950 = vunpack.c.l.b16 %v5872
    %v5951 = vunpack.c.l.b16 %v5873
    %v5952 = vunpack.c.h.b16 %v5873
    %v5953 = vunpack.c.l.b16 %v5874
    %v5954 = vunpack.c.l.b16 %v5875
    %v5955 = vunpack.c.h.b16 %v5875
    %v5956 = vunpack.c.l.b16 %v5876
    %v5957 = vpack.c.b16 %v5912, %v5909
    %v5958 = vpack.c.b16 %v5913, %v5910
    %v5959 = vpack.c.b16 %v5914, %v5911
    %v5960 = vpack.c.b16 %v5918, %v5915
    %v5961 = vpack.c.b16 %v5919, %v5916
    %v5962 = vpack.c.b16 %v5920, %v5917
    %v5963 = vpack.c.b16 %v5924, %v5921
    %v5964 = vpack.c.b16 %v5925, %v5922
    %v5965 = vpack.c.b16 %v5926, %v5923
    %v5966 = vpack.c.b16 %v5930, %v5927
    %v5967 = vpack.c.b16 %v5931, %v5928
    %v5968 = vpack.c.b16 %v5932, %v5929
    %v5969 = vpack.c.b16 %v5936, %v5933
    %v5970 = vpack.c.b16 %v5937, %v5934
    %v5971 = vpack.c.b16 %v5938, %v5935
    %v5972 = vpack.c.b16 %v5942, %v5939
    %v5973 = vpack.c.b16 %v5943, %v5940
    %v5974 = vpack.c.b16 %v5944, %v5941
    %v5975 = vpack.c.b16 %v5948, %v5945
    %v5976 = vpack.c.b16 %v5949, %v5946
    %v5977 = vpack.c.b16 %v5950, %v5947
    %v5978 = vpack.c.b16 %v5954, %v5951
    %v5979 = vpack.c.b16 %v5955, %v5952
    %v5980 = vpack.c.b16 %v5956, %v5953
    %6005 = vmatprep.subr.bf16.mxu0 %v5958
    %6006 = vmatpush1.bf16.msra.mxu0 %v5957
    %6007 = vmatprep.subr.bf16.mxu0 %v5961
    %6008 = vmatpush1.bf16.msra.mxu0 %v5960
    %6009 = vmatprep.subr.bf16.mxu0 %v5964
    %6010 = vmatpush1.bf16.msra.mxu0 %v5963
    %6011 = vmatprep.subr.bf16.mxu0 %v5967
    %6012 = vmatpush1.bf16.msra.mxu0 %v5966
    %6013 = vmatprep.subr.bf16.mxu0 %v5970
    %6014 = vmatpush1.bf16.msra.mxu0 %v5969
    %6015 = vmatprep.subr.bf16.mxu0 %v5973
    %6016 = vmatpush1.bf16.msra.mxu0 %v5972
    %6017 = vmatprep.subr.bf16.mxu0 %v5976
    %6018 = vmatpush1.bf16.msra.mxu0 %v5975
    %6019 = vmatprep.subr.bf16.mxu0 %v5979
    %6020 = vmatpush1.bf16.msra.mxu0 %v5978
    %6021 = vmatprep.subr.bf16.mxu0 0
    %6022 = vmatpush1.bf16.msra.mxu0 0
    %6023 = vmatprep.subr.bf16.mxu0 0
    %6024 = vmatpush1.bf16.msra.mxu0 0
    %6025 = vmatprep.subr.bf16.mxu0 0
    %6026 = vmatpush1.bf16.msra.mxu0 0
    %6027 = vmatprep.subr.bf16.mxu0 0
    %6028 = vmatpush1.bf16.msra.mxu0 0
    %6029 = vmatprep.subr.bf16.mxu0 0
    %6030 = vmatpush1.bf16.msra.mxu0 0
    %6031 = vmatprep.subr.bf16.mxu0 0
    %6032 = vmatpush1.bf16.msra.mxu0 0
    %6033 = vmatprep.subr.bf16.mxu0 0
    %6034 = vmatpush1.bf16.msra.mxu0 0
    %6035 = vmatprep.subr.bf16.mxu0 0
    %6036 = vmatpush1.bf16.msra.mxu0 0
    %6037 = vmatprep.mubr.bf16.mxu0 0
    %6038 = vmatmul.mubr.bf16.gmra.mrb[0].mxu0 %v5844
    %v6039 = vpop.f32.mrb[0].mxu0
    %v6040 = vadd.f32 0.0, %v6039
    %v6041 = vpop.f32.mrb[0].mxu0
    %v6042 = vadd.f32 0.0, %v6041
    %v6043 = vpop.f32.mrb[0].mxu0
    %v6044 = vpop.f32.mrb[0].mxu0
    %6045 = vdwg.mxu0
    %6046 = vmatprep.subr.bf16.mxu0 0
    %6047 = vmatpush1.bf16.msra.mxu0 %v5959
    %6048 = vmatprep.subr.bf16.mxu0 0
    %6049 = vmatpush1.bf16.msra.mxu0 %v5962
    %6050 = vmatprep.subr.bf16.mxu0 0
    %6051 = vmatpush1.bf16.msra.mxu0 %v5965
    %6052 = vmatprep.subr.bf16.mxu0 0
    %6053 = vmatpush1.bf16.msra.mxu0 %v5968
    %6054 = vmatprep.subr.bf16.mxu0 0
    %6055 = vmatpush1.bf16.msra.mxu0 %v5971
    %6056 = vmatprep.subr.bf16.mxu0 0
    %6057 = vmatpush1.bf16.msra.mxu0 %v5974
    %6058 = vmatprep.subr.bf16.mxu0 0
    %6059 = vmatpush1.bf16.msra.mxu0 %v5977
    %6060 = vmatprep.subr.bf16.mxu0 0
    %6061 = vmatpush1.bf16.msra.mxu0 %v5980
    %6062 = vmatprep.subr.bf16.mxu0 0
    %6063 = vmatpush1.bf16.msra.mxu0 0
    %6064 = vmatprep.subr.bf16.mxu0 0
    %6065 = vmatpush1.bf16.msra.mxu0 0
    %6066 = vmatprep.subr.bf16.mxu0 0
    %6067 = vmatpush1.bf16.msra.mxu0 0
    %6068 = vmatprep.subr.bf16.mxu0 0
    %6069 = vmatpush1.bf16.msra.mxu0 0
    %6070 = vmatprep.subr.bf16.mxu0 0
    %6071 = vmatpush1.bf16.msra.mxu0 0
    %6072 = vmatprep.subr.bf16.mxu0 0
    %6073 = vmatpush1.bf16.msra.mxu0 0
    %6074 = vmatprep.subr.bf16.mxu0 0
    %6075 = vmatpush1.bf16.msra.mxu0 0
    %6076 = vmatprep.subr.bf16.mxu0 0
    %6077 = vmatpush1.bf16.msra.mxu0 0
    %6078 = vmatprep.mubr.bf16.mxu0 0
    %6079 = vmatmul.mubr.bf16.gmra.mrb[0].mxu0 %v5844
    %v6080 = vpop.f32.mrb[0].mxu0
    %v6081 = vadd.f32 0.0, %v6080
    %v6082 = vpop.f32.mrb[0].mxu0
    %v6083 = vpop.f32.mrb[0].mxu0
    %v6084 = vpop.f32.mrb[0].mxu0
    %6085 = vdwg.mxu0
    %v6150 = vunpack.c.l.b16 %v5780
    %v6151 = vunpack.c.h.b16 %v5780
    %v6152 = vunpack.c.l.b16 %v5781
    %v6153 = vunpack.c.l.b16 %v5782
    %v6154 = vunpack.c.h.b16 %v5782
    %v6155 = vunpack.c.l.b16 %v5783
    %v6156 = vunpack.c.l.b16 %v5784
    %v6157 = vunpack.c.h.b16 %v5784
    %v6158 = vunpack.c.l.b16 %v5785
    %v6159 = vunpack.c.l.b16 %v5786
    %v6160 = vunpack.c.h.b16 %v5786
    %v6161 = vunpack.c.l.b16 %v5787
    %v6162 = vunpack.c.l.b16 %v5788
    %v6163 = vunpack.c.h.b16 %v5788
    %v6164 = vunpack.c.l.b16 %v5789
    %v6165 = vunpack.c.l.b16 %v5790
    %v6166 = vunpack.c.h.b16 %v5790
    %v6167 = vunpack.c.l.b16 %v5791
    %v6168 = vunpack.c.l.b16 %v5792
    %v6169 = vunpack.c.h.b16 %v5792
    %v6170 = vunpack.c.l.b16 %v5793
    %v6171 = vunpack.c.l.b16 %v5794
    %v6172 = vunpack.c.h.b16 %v5794
    %v6173 = vunpack.c.l.b16 %v5795
    %v6174 = vunpack.c.l.b16 %v5796
    %v6175 = vunpack.c.h.b16 %v5796
    %v6176 = vunpack.c.l.b16 %v5797
    %v6177 = vunpack.c.l.b16 %v5798
    %v6178 = vunpack.c.h.b16 %v5798
    %v6179 = vunpack.c.l.b16 %v5799
    %v6180 = vunpack.c.l.b16 %v5800
    %v6181 = vunpack.c.h.b16 %v5800
    %v6182 = vunpack.c.l.b16 %v5801
    %v6183 = vunpack.c.l.b16 %v5802
    %v6184 = vunpack.c.h.b16 %v5802
    %v6185 = vunpack.c.l.b16 %v5803
    %v6186 = vunpack.c.l.b16 %v5804
    %v6187 = vunpack.c.h.b16 %v5804
    %v6188 = vunpack.c.l.b16 %v5805
    %v6189 = vunpack.c.l.b16 %v5806
    %v6190 = vunpack.c.h.b16 %v5806
    %v6191 = vunpack.c.l.b16 %v5807
    %v6192 = vunpack.c.l.b16 %v5808
    %v6193 = vunpack.c.h.b16 %v5808
    %v6194 = vunpack.c.l.b16 %v5809
    %v6195 = vunpack.c.l.b16 %v5810
    %v6196 = vunpack.c.h.b16 %v5810
    %v6197 = vunpack.c.l.b16 %v5811
    %v6198 = vunpack.c.l.b16 %v5812
    %v6199 = vunpack.c.h.b16 %v5812
    %v6200 = vunpack.c.l.b16 %v5813
    %v6201 = vunpack.c.l.b16 %v5814
    %v6202 = vunpack.c.h.b16 %v5814
    %v6203 = vunpack.c.l.b16 %v5815
    %v6204 = vunpack.c.l.b16 %v5816
    %v6205 = vunpack.c.h.b16 %v5816
    %v6206 = vunpack.c.l.b16 %v5817
    %v6207 = vunpack.c.l.b16 %v5818
    %v6208 = vunpack.c.h.b16 %v5818
    %v6209 = vunpack.c.l.b16 %v5819
    %v6210 = vunpack.c.l.b16 %v5820
    %v6211 = vunpack.c.h.b16 %v5820
    %v6212 = vunpack.c.l.b16 %v5821
    %v6213 = vunpack.c.l.b16 %v5822
    %v6214 = vunpack.c.h.b16 %v5822
    %v6215 = vunpack.c.l.b16 %v5823
    %v6216 = vunpack.c.l.b16 %v5824
    %v6217 = vunpack.c.h.b16 %v5824
    %v6218 = vunpack.c.l.b16 %v5825
    %v6219 = vunpack.c.l.b16 %v5826
    %v6220 = vunpack.c.h.b16 %v5826
    %v6221 = vunpack.c.l.b16 %v5827
    %v6222 = vunpack.c.l.b16 %v5828
    %v6223 = vunpack.c.h.b16 %v5828
    %v6224 = vunpack.c.l.b16 %v5829
    %v6225 = vunpack.c.l.b16 %v5830
    %v6226 = vunpack.c.h.b16 %v5830
    %v6227 = vunpack.c.l.b16 %v5831
    %v6228 = vunpack.c.l.b16 %v5832
    %v6229 = vunpack.c.h.b16 %v5832
    %v6230 = vunpack.c.l.b16 %v5833
    %v6231 = vunpack.c.l.b16 %v5834
    %v6232 = vunpack.c.h.b16 %v5834
    %v6233 = vunpack.c.l.b16 %v5835
    %v6234 = vunpack.c.l.b16 %v5836
    %v6235 = vunpack.c.h.b16 %v5836
    %v6236 = vunpack.c.l.b16 %v5837
    %v6237 = vunpack.c.l.b16 %v5838
    %v6238 = vunpack.c.h.b16 %v5838
    %v6239 = vunpack.c.l.b16 %v5839
    %v6240 = vunpack.c.l.b16 %v5840
    %v6241 = vunpack.c.h.b16 %v5840
    %v6242 = vunpack.c.l.b16 %v5841
    %v6243 = vunpack.c.l.b16 %v5842
    %v6244 = vunpack.c.h.b16 %v5842
    %v6245 = vunpack.c.l.b16 %v5843
    %v6246 = vpack.c.b16 %v6153, %v6150
    %v6247 = vpack.c.b16 %v6154, %v6151
    %v6248 = vpack.c.b16 %v6155, %v6152
    %v6249 = vpack.c.b16 %v6159, %v6156
    %v6250 = vpack.c.b16 %v6160, %v6157
    %v6251 = vpack.c.b16 %v6161, %v6158
    %v6252 = vpack.c.b16 %v6165, %v6162
    %v6253 = vpack.c.b16 %v6166, %v6163
    %v6254 = vpack.c.b16 %v6167, %v6164
    %v6255 = vpack.c.b16 %v6171, %v6168
    %v6256 = vpack.c.b16 %v6172, %v6169
    %v6257 = vpack.c.b16 %v6173, %v6170
    %v6258 = vpack.c.b16 %v6177, %v6174
    %v6259 = vpack.c.b16 %v6178, %v6175
    %v6260 = vpack.c.b16 %v6179, %v6176
    %v6261 = vpack.c.b16 %v6183, %v6180
    %v6262 = vpack.c.b16 %v6184, %v6181
    %v6263 = vpack.c.b16 %v6185, %v6182
    %v6264 = vpack.c.b16 %v6189, %v6186
    %v6265 = vpack.c.b16 %v6190, %v6187
    %v6266 = vpack.c.b16 %v6191, %v6188
    %v6267 = vpack.c.b16 %v6195, %v6192
    %v6268 = vpack.c.b16 %v6196, %v6193
    %v6269 = vpack.c.b16 %v6197, %v6194
    %v6270 = vpack.c.b16 %v6201, %v6198
    %v6271 = vpack.c.b16 %v6202, %v6199
    %v6272 = vpack.c.b16 %v6203, %v6200
    %v6273 = vpack.c.b16 %v6207, %v6204
    %v6274 = vpack.c.b16 %v6208, %v6205
    %v6275 = vpack.c.b16 %v6209, %v6206
    %v6276 = vpack.c.b16 %v6213, %v6210
    %v6277 = vpack.c.b16 %v6214, %v6211
    %v6278 = vpack.c.b16 %v6215, %v6212
    %v6279 = vpack.c.b16 %v6219, %v6216
    %v6280 = vpack.c.b16 %v6220, %v6217
    %v6281 = vpack.c.b16 %v6221, %v6218
    %v6282 = vpack.c.b16 %v6225, %v6222
    %v6283 = vpack.c.b16 %v6226, %v6223
    %v6284 = vpack.c.b16 %v6227, %v6224
    %v6285 = vpack.c.b16 %v6231, %v6228
    %v6286 = vpack.c.b16 %v6232, %v6229
    %v6287 = vpack.c.b16 %v6233, %v6230
    %v6288 = vpack.c.b16 %v6237, %v6234
    %v6289 = vpack.c.b16 %v6238, %v6235
    %v6290 = vpack.c.b16 %v6239, %v6236
    %v6291 = vpack.c.b16 %v6243, %v6240
    %v6292 = vpack.c.b16 %v6244, %v6241
    %v6293 = vpack.c.b16 %v6245, %v6242
    %6342 = vmatprep.subr.bf16.mxu0 %v6247
    %6343 = vmatpush1.bf16.msra.mxu0 %v6246
    %6344 = vmatprep.subr.bf16.mxu0 %v6250
    %6345 = vmatpush1.bf16.msra.mxu0 %v6249
    %6346 = vmatprep.subr.bf16.mxu0 %v6253
    %6347 = vmatpush1.bf16.msra.mxu0 %v6252
    %6348 = vmatprep.subr.bf16.mxu0 %v6256
    %6349 = vmatpush1.bf16.msra.mxu0 %v6255
    %6350 = vmatprep.subr.bf16.mxu0 %v6259
    %6351 = vmatpush1.bf16.msra.mxu0 %v6258
    %6352 = vmatprep.subr.bf16.mxu0 %v6262
    %6353 = vmatpush1.bf16.msra.mxu0 %v6261
    %6354 = vmatprep.subr.bf16.mxu0 %v6265
    %6355 = vmatpush1.bf16.msra.mxu0 %v6264
    %6356 = vmatprep.subr.bf16.mxu0 %v6268
    %6357 = vmatpush1.bf16.msra.mxu0 %v6267
    %6358 = vmatprep.subr.bf16.mxu0 %v6271
    %6359 = vmatpush1.bf16.msra.mxu0 %v6270
    %6360 = vmatprep.subr.bf16.mxu0 %v6274
    %6361 = vmatpush1.bf16.msra.mxu0 %v6273
    %6362 = vmatprep.subr.bf16.mxu0 %v6277
    %6363 = vmatpush1.bf16.msra.mxu0 %v6276
    %6364 = vmatprep.subr.bf16.mxu0 %v6280
    %6365 = vmatpush1.bf16.msra.mxu0 %v6279
    %6366 = vmatprep.subr.bf16.mxu0 %v6283
    %6367 = vmatpush1.bf16.msra.mxu0 %v6282
    %6368 = vmatprep.subr.bf16.mxu0 %v6286
    %6369 = vmatpush1.bf16.msra.mxu0 %v6285
    %6370 = vmatprep.subr.bf16.mxu0 %v6289
    %6371 = vmatpush1.bf16.msra.mxu0 %v6288
    %6372 = vmatprep.subr.bf16.mxu0 %v6292
    %6373 = vmatpush1.bf16.msra.mxu0 %v6291
    %6374 = vmatprep.mubr.bf16.mxu0 %v5779
    %6375 = vmatmul.mubr.bf16.gmra.mrb[0].mxu0 %v5778
    %v6376 = vpop.f32.mrb[0].mxu0
    %v6377 = vadd.f32 %v6040, %v6376
    %v6378 = vpop.f32.mrb[0].mxu0
    %v6379 = vadd.f32 %v6042, %v6378
    %v6380 = vpop.f32.mrb[0].mxu0
    %v6381 = vpop.f32.mrb[0].mxu0
    %6382 = vdwg.mxu0
    %6383 = vmatprep.subr.bf16.mxu0 0
    %6384 = vmatpush1.bf16.msra.mxu0 %v6248
    %6385 = vmatprep.subr.bf16.mxu0 0
    %6386 = vmatpush1.bf16.msra.mxu0 %v6251
    %6387 = vmatprep.subr.bf16.mxu0 0
    %6388 = vmatpush1.bf16.msra.mxu0 %v6254
    %6389 = vmatprep.subr.bf16.mxu0 0
    %6390 = vmatpush1.bf16.msra.mxu0 %v6257
    %6391 = vmatprep.subr.bf16.mxu0 0
    %6392 = vmatpush1.bf16.msra.mxu0 %v6260
    %6393 = vmatprep.subr.bf16.mxu0 0
    %6394 = vmatpush1.bf16.msra.mxu0 %v6263
    %6395 = vmatprep.subr.bf16.mxu0 0
    %6396 = vmatpush1.bf16.msra.mxu0 %v6266
    %6397 = vmatprep.subr.bf16.mxu0 0
    %6398 = vmatpush1.bf16.msra.mxu0 %v6269
    %6399 = vmatprep.subr.bf16.mxu0 0
    %6400 = vmatpush1.bf16.msra.mxu0 %v6272
    %6401 = vmatprep.subr.bf16.mxu0 0
    %6402 = vmatpush1.bf16.msra.mxu0 %v6275
    %6403 = vmatprep.subr.bf16.mxu0 0
    %6404 = vmatpush1.bf16.msra.mxu0 %v6278
    %6405 = vmatprep.subr.bf16.mxu0 0
    %6406 = vmatpush1.bf16.msra.mxu0 %v6281
    %6407 = vmatprep.subr.bf16.mxu0 0
    %6408 = vmatpush1.bf16.msra.mxu0 %v6284
    %6409 = vmatprep.subr.bf16.mxu0 0
    %6410 = vmatpush1.bf16.msra.mxu0 %v6287
    %6411 = vmatprep.subr.bf16.mxu0 0
    %6412 = vmatpush1.bf16.msra.mxu0 %v6290
    %6413 = vmatprep.subr.bf16.mxu0 0
    %6414 = vmatpush1.bf16.msra.mxu0 %v6293
    %6415 = vmatprep.mubr.bf16.mxu0 %v5779
    %6416 = vmatmul.mubr.bf16.gmra.mrb[0].mxu0 %v5778
    %v6417 = vpop.f32.mrb[0].mxu0
    %v6418 = vadd.f32 %v6081, %v6417
    %v6419 = vpop.f32.mrb[0].mxu0
    %v6420 = vpop.f32.mrb[0].mxu0
    %v6421 = vpop.f32.mrb[0].mxu0
    %6422 = vdwg.mxu0
    %v6423 = vld [vmem:[#allocation21] sm:$0x7]
    %v6425 = vlaneseq
    %v6426 = vshrl.u32 %v6425, 7
    %v6427 = vsub.s32 0, %v6426
    %v6428 = vrot.slane %v6423, %v6427
    %v6429 = vlaneseq
    %v6430 = vshrl.u32 %v6429, 7
    %v6431 = vsub.s32 1, %v6430
    %v6432 = vrot.slane %v6423, %v6431
    %v6433 = vlaneseq
    %v6434 = vshrl.u32 %v6433, 7
    %v6435 = vsub.s32 2, %v6434
    %v6436 = vrot.slane %v6423, %v6435
    %v6440 = vadd.f32 %v6377, %v6428
    %v6441 = vadd.f32 %v6379, %v6432
    %v6442 = vadd.f32 %v6418, %v6436
    %v6443 = vmax.f32 %v6440, 0.0
    %v6444 = vmax.f32 %v6441, 0.0
    %v6445 = vmax.f32 %v6442, 0.0
    %v6446 = vpack.c.bf16 %v6443, %v6443
    %v6447 = vpack.c.bf16 %v6444, %v6444
    %v6448 = vpack.c.bf16 %v6445, %v6445
    %v6449 = vld [vmem:[#allocation22] sm:$0xff]
    %v6450 = vld [vmem:[#allocation22 + $0x8] sm:$0xf]
    %v6451 = vld [vmem:[#allocation22 + $0xc] sm:$0xff]
    %v6452 = vld [vmem:[#allocation22 + $0x14] sm:$0xf]
    %v6453 = vld [vmem:[#allocation22 + $0x18] sm:$0xff]
    %v6454 = vld [vmem:[#allocation22 + $0x20] sm:$0xf]
    %v6455 = vld [vmem:[#allocation22 + $0x24] sm:$0xff]
    %v6456 = vld [vmem:[#allocation22 + $0x2c] sm:$0xf]
    %v6457 = vld [vmem:[#allocation22 + $0x30] sm:$0xff]
    %v6458 = vld [vmem:[#allocation22 + $0x38] sm:$0xf]
    %v6459 = vld [vmem:[#allocation22 + $0x3c] sm:$0xff]
    %v6460 = vld [vmem:[#allocation22 + $0x44] sm:$0xf]
    %v6461 = vld [vmem:[#allocation22 + $0x48] sm:$0xff]
    %v6462 = vld [vmem:[#allocation22 + $0x50] sm:$0xf]
    %v6463 = vld [vmem:[#allocation22 + $0x54] sm:$0xff]
    %v6464 = vld [vmem:[#allocation22 + $0x5c] sm:$0xf]
    %v6465 = vld [vmem:[#allocation22 + $0x60] sm:$0xff]
    %v6466 = vld [vmem:[#allocation22 + $0x68] sm:$0xf]
    %v6467 = vld [vmem:[#allocation22 + $0x6c] sm:$0xff]
    %v6468 = vld [vmem:[#allocation22 + $0x74] sm:$0xf]
    %v6469 = vld [vmem:[#allocation22 + $0x78] sm:$0xff]
    %v6470 = vld [vmem:[#allocation22 + $0x80] sm:$0xf]
    %v6471 = vld [vmem:[#allocation22 + $0x84] sm:$0xff]
    %v6472 = vld [vmem:[#allocation22 + $0x8c] sm:$0xf]
    %v6473 = vld [vmem:[#allocation22 + $0x90] sm:$0xff]
    %v6474 = vld [vmem:[#allocation22 + $0x98] sm:$0xf]
    %v6475 = vld [vmem:[#allocation22 + $0x9c] sm:$0xff]
    %v6476 = vld [vmem:[#allocation22 + $0xa4] sm:$0xf]
    %v6477 = vld [vmem:[#allocation22 + $0xa8] sm:$0xff]
    %v6478 = vld [vmem:[#allocation22 + $0xb0] sm:$0xf]
    %v6479 = vld [vmem:[#allocation22 + $0xb4] sm:$0xff]
    %v6480 = vld [vmem:[#allocation22 + $0xbc] sm:$0xf]
    %v6481 = vld [vmem:[#allocation22 + $0xc0] sm:$0xff]
    %v6482 = vld [vmem:[#allocation22 + $0xc8] sm:$0xf]
    %v6483 = vld [vmem:[#allocation22 + $0xcc] sm:$0xff]
    %v6484 = vld [vmem:[#allocation22 + $0xd4] sm:$0xf]
    %v6485 = vld [vmem:[#allocation22 + $0xd8] sm:$0xff]
    %v6486 = vld [vmem:[#allocation22 + $0xe0] sm:$0xf]
    %v6487 = vld [vmem:[#allocation22 + $0xe4] sm:$0xff]
    %v6488 = vld [vmem:[#allocation22 + $0xec] sm:$0xf]
    %v6489 = vld [vmem:[#allocation22 + $0xf0] sm:$0xff]
    %v6490 = vld [vmem:[#allocation22 + $0xf8] sm:$0xf]
    %v6491 = vld [vmem:[#allocation22 + $0xfc] sm:$0xff]
    %v6492 = vld [vmem:[#allocation22 + $0x104] sm:$0xf]
    %v6493 = vld [vmem:[#allocation22 + $0x108] sm:$0xff]
    %v6494 = vld [vmem:[#allocation22 + $0x110] sm:$0xf]
    %v6495 = vld [vmem:[#allocation22 + $0x114] sm:$0xff]
    %v6496 = vld [vmem:[#allocation22 + $0x11c] sm:$0xf]
    %v6497 = vld [vmem:[#allocation22 + $0x120] sm:$0xff]
    %v6498 = vld [vmem:[#allocation22 + $0x128] sm:$0xf]
    %v6499 = vld [vmem:[#allocation22 + $0x12c] sm:$0xff]
    %v6500 = vld [vmem:[#allocation22 + $0x134] sm:$0xf]
    %v6501 = vld [vmem:[#allocation22 + $0x138] sm:$0xff]
    %v6502 = vld [vmem:[#allocation22 + $0x140] sm:$0xf]
    %v6503 = vld [vmem:[#allocation22 + $0x144] sm:$0xff]
    %v6504 = vld [vmem:[#allocation22 + $0x14c] sm:$0xf]
    %v6505 = vld [vmem:[#allocation22 + $0x150] sm:$0xff]
    %v6506 = vld [vmem:[#allocation22 + $0x158] sm:$0xf]
    %v6507 = vld [vmem:[#allocation22 + $0x15c] sm:$0xff]
    %v6508 = vld [vmem:[#allocation22 + $0x164] sm:$0xf]
    %v6509 = vld [vmem:[#allocation22 + $0x168] sm:$0xff]
    %v6510 = vld [vmem:[#allocation22 + $0x170] sm:$0xf]
    %v6511 = vld [vmem:[#allocation22 + $0x174] sm:$0xff]
    %v6512 = vld [vmem:[#allocation22 + $0x17c] sm:$0xf]
    %v6513 = vld [vmem:[#allocation22 + $0x180] sm:$0xff]
    %v6514 = vld [vmem:[#allocation22 + $0x188] sm:$0xf]
    %v6515 = vld [vmem:[#allocation22 + $0x18c] sm:$0xff]
    %v6516 = vld [vmem:[#allocation22 + $0x194] sm:$0xf]
    %v6517 = vld [vmem:[#allocation22 + $0x198] sm:$0xff]
    %v6518 = vld [vmem:[#allocation22 + $0x1a0] sm:$0xf]
    %v6519 = vld [vmem:[#allocation22 + $0x1a4] sm:$0xff]
    %v6520 = vld [vmem:[#allocation22 + $0x1ac] sm:$0xf]
    %v6521 = vld [vmem:[#allocation22 + $0x1b0] sm:$0xff]
    %v6522 = vld [vmem:[#allocation22 + $0x1b8] sm:$0xf]
    %v6523 = vld [vmem:[#allocation22 + $0x1bc] sm:$0xff]
    %v6524 = vld [vmem:[#allocation22 + $0x1c4] sm:$0xf]
    %v6525 = vld [vmem:[#allocation22 + $0x1c8] sm:$0xff]
    %v6526 = vld [vmem:[#allocation22 + $0x1d0] sm:$0xf]
    %v6527 = vld [vmem:[#allocation22 + $0x1d4] sm:$0xff]
    %v6528 = vld [vmem:[#allocation22 + $0x1dc] sm:$0xf]
    %v6529 = vld [vmem:[#allocation22 + $0x1e0] sm:$0xff]
    %v6530 = vld [vmem:[#allocation22 + $0x1e8] sm:$0xf]
    %v6531 = vld [vmem:[#allocation22 + $0x1ec] sm:$0xff]
    %v6532 = vld [vmem:[#allocation22 + $0x1f4] sm:$0xf]
    %v6533 = vld [vmem:[#allocation22 + $0x1f8] sm:$0xff]
    %v6534 = vld [vmem:[#allocation22 + $0x200] sm:$0xf]
    %v6535 = vld [vmem:[#allocation22 + $0x204] sm:$0xff]
    %v6536 = vld [vmem:[#allocation22 + $0x20c] sm:$0xf]
    %v6537 = vld [vmem:[#allocation22 + $0x210] sm:$0xff]
    %v6538 = vld [vmem:[#allocation22 + $0x218] sm:$0xf]
    %v6539 = vld [vmem:[#allocation22 + $0x21c] sm:$0xff]
    %v6540 = vld [vmem:[#allocation22 + $0x224] sm:$0xf]
    %v6541 = vld [vmem:[#allocation22 + $0x228] sm:$0xff]
    %v6542 = vld [vmem:[#allocation22 + $0x230] sm:$0xf]
    %v6543 = vld [vmem:[#allocation22 + $0x234] sm:$0xff]
    %v6544 = vld [vmem:[#allocation22 + $0x23c] sm:$0xf]
    %v6545 = vld [vmem:[#allocation24] sm:$0x7]
    %v6547 = vlaneseq
    %v6548 = vshrl.u32 %v6547, 7
    %v6549 = vsub.s32 0, %v6548
    %v6550 = vrot.slane %v6545, %v6549
    %v6551 = vlaneseq
    %v6552 = vshrl.u32 %v6551, 7
    %v6553 = vsub.s32 1, %v6552
    %v6554 = vrot.slane %v6545, %v6553
    %v6555 = vlaneseq
    %v6556 = vshrl.u32 %v6555, 7
    %v6557 = vsub.s32 2, %v6556
    %v6558 = vrot.slane %v6545, %v6557
    %v6658 = vunpack.c.l.b16 %v6449
    %v6659 = vunpack.c.h.b16 %v6449
    %v6660 = vunpack.c.l.b16 %v6450
    %v6661 = vunpack.c.l.b16 %v6451
    %v6662 = vunpack.c.h.b16 %v6451
    %v6663 = vunpack.c.l.b16 %v6452
    %v6664 = vunpack.c.l.b16 %v6453
    %v6665 = vunpack.c.h.b16 %v6453
    %v6666 = vunpack.c.l.b16 %v6454
    %v6667 = vunpack.c.l.b16 %v6455
    %v6668 = vunpack.c.h.b16 %v6455
    %v6669 = vunpack.c.l.b16 %v6456
    %v6670 = vunpack.c.l.b16 %v6457
    %v6671 = vunpack.c.h.b16 %v6457
    %v6672 = vunpack.c.l.b16 %v6458
    %v6673 = vunpack.c.l.b16 %v6459
    %v6674 = vunpack.c.h.b16 %v6459
    %v6675 = vunpack.c.l.b16 %v6460
    %v6676 = vunpack.c.l.b16 %v6461
    %v6677 = vunpack.c.h.b16 %v6461
    %v6678 = vunpack.c.l.b16 %v6462
    %v6679 = vunpack.c.l.b16 %v6463
    %v6680 = vunpack.c.h.b16 %v6463
    %v6681 = vunpack.c.l.b16 %v6464
    %v6682 = vunpack.c.l.b16 %v6465
    %v6683 = vunpack.c.h.b16 %v6465
    %v6684 = vunpack.c.l.b16 %v6466
    %v6685 = vunpack.c.l.b16 %v6467
    %v6686 = vunpack.c.h.b16 %v6467
    %v6687 = vunpack.c.l.b16 %v6468
    %v6688 = vunpack.c.l.b16 %v6469
    %v6689 = vunpack.c.h.b16 %v6469
    %v6690 = vunpack.c.l.b16 %v6470
    %v6691 = vunpack.c.l.b16 %v6471
    %v6692 = vunpack.c.h.b16 %v6471
    %v6693 = vunpack.c.l.b16 %v6472
    %v6694 = vunpack.c.l.b16 %v6473
    %v6695 = vunpack.c.h.b16 %v6473
    %v6696 = vunpack.c.l.b16 %v6474
    %v6697 = vunpack.c.l.b16 %v6475
    %v6698 = vunpack.c.h.b16 %v6475
    %v6699 = vunpack.c.l.b16 %v6476
    %v6700 = vunpack.c.l.b16 %v6477
    %v6701 = vunpack.c.h.b16 %v6477
    %v6702 = vunpack.c.l.b16 %v6478
    %v6703 = vunpack.c.l.b16 %v6479
    %v6704 = vunpack.c.h.b16 %v6479
    %v6705 = vunpack.c.l.b16 %v6480
    %v6706 = vunpack.c.l.b16 %v6481
    %v6707 = vunpack.c.h.b16 %v6481
    %v6708 = vunpack.c.l.b16 %v6482
    %v6709 = vunpack.c.l.b16 %v6483
    %v6710 = vunpack.c.h.b16 %v6483
    %v6711 = vunpack.c.l.b16 %v6484
    %v6712 = vunpack.c.l.b16 %v6485
    %v6713 = vunpack.c.h.b16 %v6485
    %v6714 = vunpack.c.l.b16 %v6486
    %v6715 = vunpack.c.l.b16 %v6487
    %v6716 = vunpack.c.h.b16 %v6487
    %v6717 = vunpack.c.l.b16 %v6488
    %v6718 = vunpack.c.l.b16 %v6489
    %v6719 = vunpack.c.h.b16 %v6489
    %v6720 = vunpack.c.l.b16 %v6490
    %v6721 = vunpack.c.l.b16 %v6491
    %v6722 = vunpack.c.h.b16 %v6491
    %v6723 = vunpack.c.l.b16 %v6492
    %v6724 = vunpack.c.l.b16 %v6493
    %v6725 = vunpack.c.h.b16 %v6493
    %v6726 = vunpack.c.l.b16 %v6494
    %v6727 = vunpack.c.l.b16 %v6495
    %v6728 = vunpack.c.h.b16 %v6495
    %v6729 = vunpack.c.l.b16 %v6496
    %v6730 = vunpack.c.l.b16 %v6497
    %v6731 = vunpack.c.h.b16 %v6497
    %v6732 = vunpack.c.l.b16 %v6498
    %v6733 = vunpack.c.l.b16 %v6499
    %v6734 = vunpack.c.h.b16 %v6499
    %v6735 = vunpack.c.l.b16 %v6500
    %v6736 = vunpack.c.l.b16 %v6501
    %v6737 = vunpack.c.h.b16 %v6501
    %v6738 = vunpack.c.l.b16 %v6502
    %v6739 = vunpack.c.l.b16 %v6503
    %v6740 = vunpack.c.h.b16 %v6503
    %v6741 = vunpack.c.l.b16 %v6504
    %v6742 = vunpack.c.l.b16 %v6505
    %v6743 = vunpack.c.h.b16 %v6505
    %v6744 = vunpack.c.l.b16 %v6506
    %v6745 = vunpack.c.l.b16 %v6507
    %v6746 = vunpack.c.h.b16 %v6507
    %v6747 = vunpack.c.l.b16 %v6508
    %v6748 = vunpack.c.l.b16 %v6509
    %v6749 = vunpack.c.h.b16 %v6509
    %v6750 = vunpack.c.l.b16 %v6510
    %v6751 = vunpack.c.l.b16 %v6511
    %v6752 = vunpack.c.h.b16 %v6511
    %v6753 = vunpack.c.l.b16 %v6512
    %v6754 = vunpack.c.l.b16 %v6513
    %v6755 = vunpack.c.h.b16 %v6513
    %v6756 = vunpack.c.l.b16 %v6514
    %v6757 = vunpack.c.l.b16 %v6515
    %v6758 = vunpack.c.h.b16 %v6515
    %v6759 = vunpack.c.l.b16 %v6516
    %v6760 = vunpack.c.l.b16 %v6517
    %v6761 = vunpack.c.h.b16 %v6517
    %v6762 = vunpack.c.l.b16 %v6518
    %v6763 = vunpack.c.l.b16 %v6519
    %v6764 = vunpack.c.h.b16 %v6519
    %v6765 = vunpack.c.l.b16 %v6520
    %v6766 = vunpack.c.l.b16 %v6521
    %v6767 = vunpack.c.h.b16 %v6521
    %v6768 = vunpack.c.l.b16 %v6522
    %v6769 = vunpack.c.l.b16 %v6523
    %v6770 = vunpack.c.h.b16 %v6523
    %v6771 = vunpack.c.l.b16 %v6524
    %v6772 = vunpack.c.l.b16 %v6525
    %v6773 = vunpack.c.h.b16 %v6525
    %v6774 = vunpack.c.l.b16 %v6526
    %v6775 = vunpack.c.l.b16 %v6527
    %v6776 = vunpack.c.h.b16 %v6527
    %v6777 = vunpack.c.l.b16 %v6528
    %v6778 = vunpack.c.l.b16 %v6529
    %v6779 = vunpack.c.h.b16 %v6529
    %v6780 = vunpack.c.l.b16 %v6530
    %v6781 = vunpack.c.l.b16 %v6531
    %v6782 = vunpack.c.h.b16 %v6531
    %v6783 = vunpack.c.l.b16 %v6532
    %v6784 = vunpack.c.l.b16 %v6533
    %v6785 = vunpack.c.h.b16 %v6533
    %v6786 = vunpack.c.l.b16 %v6534
    %v6787 = vunpack.c.l.b16 %v6535
    %v6788 = vunpack.c.h.b16 %v6535
    %v6789 = vunpack.c.l.b16 %v6536
    %v6790 = vunpack.c.l.b16 %v6537
    %v6791 = vunpack.c.h.b16 %v6537
    %v6792 = vunpack.c.l.b16 %v6538
    %v6793 = vunpack.c.l.b16 %v6539
    %v6794 = vunpack.c.h.b16 %v6539
    %v6795 = vunpack.c.l.b16 %v6540
    %v6796 = vunpack.c.l.b16 %v6541
    %v6797 = vunpack.c.h.b16 %v6541
    %v6798 = vunpack.c.l.b16 %v6542
    %v6799 = vunpack.c.l.b16 %v6543
    %v6800 = vunpack.c.h.b16 %v6543
    %v6801 = vunpack.c.l.b16 %v6544
    %v6802 = vpack.c.b16 %v6661, %v6658
    %v6803 = vpack.c.b16 %v6662, %v6659
    %v6804 = vpack.c.b16 %v6663, %v6660
    %v6805 = vpack.c.b16 %v6667, %v6664
    %v6806 = vpack.c.b16 %v6668, %v6665
    %v6807 = vpack.c.b16 %v6669, %v6666
    %v6808 = vpack.c.b16 %v6673, %v6670
    %v6809 = vpack.c.b16 %v6674, %v6671
    %v6810 = vpack.c.b16 %v6675, %v6672
    %v6811 = vpack.c.b16 %v6679, %v6676
    %v6812 = vpack.c.b16 %v6680, %v6677
    %v6813 = vpack.c.b16 %v6681, %v6678
    %v6814 = vpack.c.b16 %v6685, %v6682
    %v6815 = vpack.c.b16 %v6686, %v6683
    %v6816 = vpack.c.b16 %v6687, %v6684
    %v6817 = vpack.c.b16 %v6691, %v6688
    %v6818 = vpack.c.b16 %v6692, %v6689
    %v6819 = vpack.c.b16 %v6693, %v6690
    %v6820 = vpack.c.b16 %v6697, %v6694
    %v6821 = vpack.c.b16 %v6698, %v6695
    %v6822 = vpack.c.b16 %v6699, %v6696
    %v6823 = vpack.c.b16 %v6703, %v6700
    %v6824 = vpack.c.b16 %v6704, %v6701
    %v6825 = vpack.c.b16 %v6705, %v6702
    %v6826 = vpack.c.b16 %v6709, %v6706
    %v6827 = vpack.c.b16 %v6710, %v6707
    %v6828 = vpack.c.b16 %v6711, %v6708
    %v6829 = vpack.c.b16 %v6715, %v6712
    %v6830 = vpack.c.b16 %v6716, %v6713
    %v6831 = vpack.c.b16 %v6717, %v6714
    %v6832 = vpack.c.b16 %v6721, %v6718
    %v6833 = vpack.c.b16 %v6722, %v6719
    %v6834 = vpack.c.b16 %v6723, %v6720
    %v6835 = vpack.c.b16 %v6727, %v6724
    %v6836 = vpack.c.b16 %v6728, %v6725
    %v6837 = vpack.c.b16 %v6729, %v6726
    %v6838 = vpack.c.b16 %v6733, %v6730
    %v6839 = vpack.c.b16 %v6734, %v6731
    %v6840 = vpack.c.b16 %v6735, %v6732
    %v6841 = vpack.c.b16 %v6739, %v6736
    %v6842 = vpack.c.b16 %v6740, %v6737
    %v6843 = vpack.c.b16 %v6741, %v6738
    %v6844 = vpack.c.b16 %v6745, %v6742
    %v6845 = vpack.c.b16 %v6746, %v6743
    %v6846 = vpack.c.b16 %v6747, %v6744
    %v6847 = vpack.c.b16 %v6751, %v6748
    %v6848 = vpack.c.b16 %v6752, %v6749
    %v6849 = vpack.c.b16 %v6753, %v6750
    %v6850 = vpack.c.b16 %v6757, %v6754
    %v6851 = vpack.c.b16 %v6758, %v6755
    %v6852 = vpack.c.b16 %v6759, %v6756
    %v6853 = vpack.c.b16 %v6763, %v6760
    %v6854 = vpack.c.b16 %v6764, %v6761
    %v6855 = vpack.c.b16 %v6765, %v6762
    %v6856 = vpack.c.b16 %v6769, %v6766
    %v6857 = vpack.c.b16 %v6770, %v6767
    %v6858 = vpack.c.b16 %v6771, %v6768
    %v6859 = vpack.c.b16 %v6775, %v6772
    %v6860 = vpack.c.b16 %v6776, %v6773
    %v6861 = vpack.c.b16 %v6777, %v6774
    %v6862 = vpack.c.b16 %v6781, %v6778
    %v6863 = vpack.c.b16 %v6782, %v6779
    %v6864 = vpack.c.b16 %v6783, %v6780
    %v6865 = vpack.c.b16 %v6787, %v6784
    %v6866 = vpack.c.b16 %v6788, %v6785
    %v6867 = vpack.c.b16 %v6789, %v6786
    %v6868 = vpack.c.b16 %v6793, %v6790
    %v6869 = vpack.c.b16 %v6794, %v6791
    %v6870 = vpack.c.b16 %v6795, %v6792
    %v6871 = vpack.c.b16 %v6799, %v6796
    %v6872 = vpack.c.b16 %v6800, %v6797
    %v6873 = vpack.c.b16 %v6801, %v6798
    %6946 = vmatprep.subr.bf16.mxu0 %v6803
    %6947 = vmatpush1.bf16.msra.mxu0 %v6802
    %6948 = vmatprep.subr.bf16.mxu0 %v6806
    %6949 = vmatpush1.bf16.msra.mxu0 %v6805
    %6950 = vmatprep.subr.bf16.mxu0 %v6809
    %6951 = vmatpush1.bf16.msra.mxu0 %v6808
    %6952 = vmatprep.subr.bf16.mxu0 %v6812
    %6953 = vmatpush1.bf16.msra.mxu0 %v6811
    %6954 = vmatprep.subr.bf16.mxu0 %v6815
    %6955 = vmatpush1.bf16.msra.mxu0 %v6814
    %6956 = vmatprep.subr.bf16.mxu0 %v6818
    %6957 = vmatpush1.bf16.msra.mxu0 %v6817
    %6958 = vmatprep.subr.bf16.mxu0 %v6821
    %6959 = vmatpush1.bf16.msra.mxu0 %v6820
    %6960 = vmatprep.subr.bf16.mxu0 %v6824
    %6961 = vmatpush1.bf16.msra.mxu0 %v6823
    %6962 = vmatprep.subr.bf16.mxu0 %v6827
    %6963 = vmatpush1.bf16.msra.mxu0 %v6826
    %6964 = vmatprep.subr.bf16.mxu0 %v6830
    %6965 = vmatpush1.bf16.msra.mxu0 %v6829
    %6966 = vmatprep.subr.bf16.mxu0 %v6833
    %6967 = vmatpush1.bf16.msra.mxu0 %v6832
    %6968 = vmatprep.subr.bf16.mxu0 %v6836
    %6969 = vmatpush1.bf16.msra.mxu0 %v6835
    %6970 = vmatprep.subr.bf16.mxu0 %v6839
    %6971 = vmatpush1.bf16.msra.mxu0 %v6838
    %6972 = vmatprep.subr.bf16.mxu0 %v6842
    %6973 = vmatpush1.bf16.msra.mxu0 %v6841
    %6974 = vmatprep.subr.bf16.mxu0 %v6845
    %6975 = vmatpush1.bf16.msra.mxu0 %v6844
    %6976 = vmatprep.subr.bf16.mxu0 %v6848
    %6977 = vmatpush1.bf16.msra.mxu0 %v6847
    %6978 = vmatprep.mubr.bf16.mxu0 %v6447
    %6979 = vmatmul.mubr.bf16.gmra.mrb[0].mxu0 %v6446
    %v6980 = vpop.f32.mrb[0].mxu0
    %v6981 = vadd.f32 %v6550, %v6980
    %v6982 = vpop.f32.mrb[0].mxu0
    %v6983 = vadd.f32 %v6554, %v6982
    %v6984 = vpop.f32.mrb[0].mxu0
    %v6985 = vpop.f32.mrb[0].mxu0
    %6986 = vdwg.mxu0
    %6987 = vmatprep.subr.bf16.mxu0 %v6851
    %6988 = vmatpush1.bf16.msra.mxu0 %v6850
    %6989 = vmatprep.subr.bf16.mxu0 %v6854
    %6990 = vmatpush1.bf16.msra.mxu0 %v6853
    %6991 = vmatprep.subr.bf16.mxu0 %v6857
    %6992 = vmatpush1.bf16.msra.mxu0 %v6856
    %6993 = vmatprep.subr.bf16.mxu0 %v6860
    %6994 = vmatpush1.bf16.msra.mxu0 %v6859
    %6995 = vmatprep.subr.bf16.mxu0 %v6863
    %6996 = vmatpush1.bf16.msra.mxu0 %v6862
    %6997 = vmatprep.subr.bf16.mxu0 %v6866
    %6998 = vmatpush1.bf16.msra.mxu0 %v6865
    %6999 = vmatprep.subr.bf16.mxu0 %v6869
    %7000 = vmatpush1.bf16.msra.mxu0 %v6868
    %7001 = vmatprep.subr.bf16.mxu0 %v6872
    %7002 = vmatpush1.bf16.msra.mxu0 %v6871
    %7003 = vmatprep.subr.bf16.mxu0 0
    %7004 = vmatpush1.bf16.msra.mxu0 0
    %7005 = vmatprep.subr.bf16.mxu0 0
    %7006 = vmatpush1.bf16.msra.mxu0 0
    %7007 = vmatprep.subr.bf16.mxu0 0
    %7008 = vmatpush1.bf16.msra.mxu0 0
    %7009 = vmatprep.subr.bf16.mxu0 0
    %7010 = vmatpush1.bf16.msra.mxu0 0
    %7011 = vmatprep.subr.bf16.mxu0 0
    %7012 = vmatpush1.bf16.msra.mxu0 0
    %7013 = vmatprep.subr.bf16.mxu0 0
    %7014 = vmatpush1.bf16.msra.mxu0 0
    %7015 = vmatprep.subr.bf16.mxu0 0
    %7016 = vmatpush1.bf16.msra.mxu0 0
    %7017 = vmatprep.subr.bf16.mxu0 0
    %7018 = vmatpush1.bf16.msra.mxu0 0
    %7019 = vmatprep.mubr.bf16.mxu0 0
    %7020 = vmatmul.mubr.bf16.gmra.mrb[0].mxu0 %v6448
    %v7021 = vpop.f32.mrb[0].mxu0
    %v7022 = vadd.f32 %v6981, %v7021
    %v7023 = vpop.f32.mrb[0].mxu0
    %v7024 = vadd.f32 %v6983, %v7023
    %v7025 = vpop.f32.mrb[0].mxu0
    %v7026 = vpop.f32.mrb[0].mxu0
    %7027 = vdwg.mxu0
    %7028 = vmatprep.subr.bf16.mxu0 0
    %7029 = vmatpush1.bf16.msra.mxu0 %v6804
    %7030 = vmatprep.subr.bf16.mxu0 0
    %7031 = vmatpush1.bf16.msra.mxu0 %v6807
    %7032 = vmatprep.subr.bf16.mxu0 0
    %7033 = vmatpush1.bf16.msra.mxu0 %v6810
    %7034 = vmatprep.subr.bf16.mxu0 0
    %7035 = vmatpush1.bf16.msra.mxu0 %v6813
    %7036 = vmatprep.subr.bf16.mxu0 0
    %7037 = vmatpush1.bf16.msra.mxu0 %v6816
    %7038 = vmatprep.subr.bf16.mxu0 0
    %7039 = vmatpush1.bf16.msra.mxu0 %v6819
    %7040 = vmatprep.subr.bf16.mxu0 0
    %7041 = vmatpush1.bf16.msra.mxu0 %v6822
    %7042 = vmatprep.subr.bf16.mxu0 0
    %7043 = vmatpush1.bf16.msra.mxu0 %v6825
    %7044 = vmatprep.subr.bf16.mxu0 0
    %7045 = vmatpush1.bf16.msra.mxu0 %v6828
    %7046 = vmatprep.subr.bf16.mxu0 0
    %7047 = vmatpush1.bf16.msra.mxu0 %v6831
    %7048 = vmatprep.subr.bf16.mxu0 0
    %7049 = vmatpush1.bf16.msra.mxu0 %v6834
    %7050 = vmatprep.subr.bf16.mxu0 0
    %7051 = vmatpush1.bf16.msra.mxu0 %v6837
    %7052 = vmatprep.subr.bf16.mxu0 0
    %7053 = vmatpush1.bf16.msra.mxu0 %v6840
    %7054 = vmatprep.subr.bf16.mxu0 0
    %7055 = vmatpush1.bf16.msra.mxu0 %v6843
    %7056 = vmatprep.subr.bf16.mxu0 0
    %7057 = vmatpush1.bf16.msra.mxu0 %v6846
    %7058 = vmatprep.subr.bf16.mxu0 0
    %7059 = vmatpush1.bf16.msra.mxu0 %v6849
    %7060 = vmatprep.mubr.bf16.mxu0 %v6447
    %7061 = vmatmul.mubr.bf16.gmra.mrb[0].mxu0 %v6446
    %v7062 = vpop.f32.mrb[0].mxu0
    %v7063 = vadd.f32 %v6558, %v7062
    %v7064 = vpop.f32.mrb[0].mxu0
    %v7065 = vpop.f32.mrb[0].mxu0
    %v7066 = vpop.f32.mrb[0].mxu0
    %7067 = vdwg.mxu0
    %7068 = vmatprep.subr.bf16.mxu0 0
    %7069 = vmatpush1.bf16.msra.mxu0 %v6852
    %7070 = vmatprep.subr.bf16.mxu0 0
    %7071 = vmatpush1.bf16.msra.mxu0 %v6855
    %7072 = vmatprep.subr.bf16.mxu0 0
    %7073 = vmatpush1.bf16.msra.mxu0 %v6858
    %7074 = vmatprep.subr.bf16.mxu0 0
    %7075 = vmatpush1.bf16.msra.mxu0 %v6861
    %7076 = vmatprep.subr.bf16.mxu0 0
    %7077 = vmatpush1.bf16.msra.mxu0 %v6864
    %7078 = vmatprep.subr.bf16.mxu0 0
    %7079 = vmatpush1.bf16.msra.mxu0 %v6867
    %7080 = vmatprep.subr.bf16.mxu0 0
    %7081 = vmatpush1.bf16.msra.mxu0 %v6870
    %7082 = vmatprep.subr.bf16.mxu0 0
    %7083 = vmatpush1.bf16.msra.mxu0 %v6873
    %7084 = vmatprep.subr.bf16.mxu0 0
    %7085 = vmatpush1.bf16.msra.mxu0 0
    %7086 = vmatprep.subr.bf16.mxu0 0
    %7087 = vmatpush1.bf16.msra.mxu0 0
    %7088 = vmatprep.subr.bf16.mxu0 0
    %7089 = vmatpush1.bf16.msra.mxu0 0
    %7090 = vmatprep.subr.bf16.mxu0 0
    %7091 = vmatpush1.bf16.msra.mxu0 0
    %7092 = vmatprep.subr.bf16.mxu0 0
    %7093 = vmatpush1.bf16.msra.mxu0 0
    %7094 = vmatprep.subr.bf16.mxu0 0
    %7095 = vmatpush1.bf16.msra.mxu0 0
    %7096 = vmatprep.subr.bf16.mxu0 0
    %7097 = vmatpush1.bf16.msra.mxu0 0
    %7098 = vmatprep.subr.bf16.mxu0 0
    %7099 = vmatpush1.bf16.msra.mxu0 0
    %7100 = vmatprep.mubr.bf16.mxu0 0
    %7101 = vmatmul.mubr.bf16.gmra.mrb[0].mxu0 %v6448
    %v7102 = vpop.f32.mrb[0].mxu0
    %v7103 = vadd.f32 %v7063, %v7102
    %v7104 = vpop.f32.mrb[0].mxu0
    %v7105 = vpop.f32.mrb[0].mxu0
    %v7106 = vpop.f32.mrb[0].mxu0
    %7107 = vdwg.mxu0
    %v7108 = vmax.f32 %v7022, 0.0
    %v7109 = vmax.f32 %v7024, 0.0
    %v7110 = vmax.f32 %v7103, 0.0
    %v7111 = vpack.c.bf16 %v7108, %v7108
    %v7112 = vpack.c.bf16 %v7109, %v7109
    %v7113 = vpack.c.bf16 %v7110, %v7110
    %v7114 = vld [vmem:[#allocation25] sm:$0xff]
    %v7115 = vld [vmem:[#allocation25 + $0x8] sm:$0xf]
    %v7116 = vld [vmem:[#allocation25 + $0xc] sm:$0xff]
    %v7117 = vld [vmem:[#allocation25 + $0x14] sm:$0xf]
    %v7118 = vld [vmem:[#allocation25 + $0x18] sm:$0xff]
    %v7119 = vld [vmem:[#allocation25 + $0x20] sm:$0xf]
    %v7120 = vld [vmem:[#allocation25 + $0x24] sm:$0xff]
    %v7121 = vld [vmem:[#allocation25 + $0x2c] sm:$0xf]
    %v7122 = vld [vmem:[#allocation25 + $0x30] sm:$0xff]
    %v7123 = vld [vmem:[#allocation25 + $0x38] sm:$0xf]
    %v7124 = vld [vmem:[#allocation25 + $0x3c] sm:$0xff]
    %v7125 = vld [vmem:[#allocation25 + $0x44] sm:$0xf]
    %v7126 = vld [vmem:[#allocation25 + $0x48] sm:$0xff]
    %v7127 = vld [vmem:[#allocation25 + $0x50] sm:$0xf]
    %v7128 = vld [vmem:[#allocation25 + $0x54] sm:$0xff]
    %v7129 = vld [vmem:[#allocation25 + $0x5c] sm:$0xf]
    %v7130 = vld [vmem:[#allocation25 + $0x60] sm:$0xff]
    %v7131 = vld [vmem:[#allocation25 + $0x68] sm:$0xf]
    %v7132 = vld [vmem:[#allocation25 + $0x6c] sm:$0xff]
    %v7133 = vld [vmem:[#allocation25 + $0x74] sm:$0xf]
    %v7134 = vld [vmem:[#allocation25 + $0x78] sm:$0xff]
    %v7135 = vld [vmem:[#allocation25 + $0x80] sm:$0xf]
    %v7136 = vld [vmem:[#allocation25 + $0x84] sm:$0xff]
    %v7137 = vld [vmem:[#allocation25 + $0x8c] sm:$0xf]
    %v7138 = vld [vmem:[#allocation25 + $0x90] sm:$0xff]
    %v7139 = vld [vmem:[#allocation25 + $0x98] sm:$0xf]
    %v7140 = vld [vmem:[#allocation25 + $0x9c] sm:$0xff]
    %v7141 = vld [vmem:[#allocation25 + $0xa4] sm:$0xf]
    %v7142 = vld [vmem:[#allocation25 + $0xa8] sm:$0xff]
    %v7143 = vld [vmem:[#allocation25 + $0xb0] sm:$0xf]
    %v7144 = vld [vmem:[#allocation25 + $0xb4] sm:$0xff]
    %v7145 = vld [vmem:[#allocation25 + $0xbc] sm:$0xf]
    %v7146 = vld [vmem:[#allocation25 + $0xc0] sm:$0xff]
    %v7147 = vld [vmem:[#allocation25 + $0xc8] sm:$0xf]
    %v7148 = vld [vmem:[#allocation25 + $0xcc] sm:$0xff]
    %v7149 = vld [vmem:[#allocation25 + $0xd4] sm:$0xf]
    %v7150 = vld [vmem:[#allocation25 + $0xd8] sm:$0xff]
    %v7151 = vld [vmem:[#allocation25 + $0xe0] sm:$0xf]
    %v7152 = vld [vmem:[#allocation25 + $0xe4] sm:$0xff]
    %v7153 = vld [vmem:[#allocation25 + $0xec] sm:$0xf]
    %v7154 = vld [vmem:[#allocation25 + $0xf0] sm:$0xff]
    %v7155 = vld [vmem:[#allocation25 + $0xf8] sm:$0xf]
    %v7156 = vld [vmem:[#allocation25 + $0xfc] sm:$0xff]
    %v7157 = vld [vmem:[#allocation25 + $0x104] sm:$0xf]
    %v7158 = vld [vmem:[#allocation25 + $0x108] sm:$0xff]
    %v7159 = vld [vmem:[#allocation25 + $0x110] sm:$0xf]
    %v7160 = vld [vmem:[#allocation25 + $0x114] sm:$0xff]
    %v7161 = vld [vmem:[#allocation25 + $0x11c] sm:$0xf]
    %v7162 = vld [vmem:[#allocation25 + $0x120] sm:$0xff]
    %v7163 = vld [vmem:[#allocation25 + $0x128] sm:$0xf]
    %v7164 = vld [vmem:[#allocation25 + $0x12c] sm:$0xff]
    %v7165 = vld [vmem:[#allocation25 + $0x134] sm:$0xf]
    %v7166 = vld [vmem:[#allocation25 + $0x138] sm:$0xff]
    %v7167 = vld [vmem:[#allocation25 + $0x140] sm:$0xf]
    %v7168 = vld [vmem:[#allocation25 + $0x144] sm:$0xff]
    %v7169 = vld [vmem:[#allocation25 + $0x14c] sm:$0xf]
    %v7170 = vld [vmem:[#allocation25 + $0x150] sm:$0xff]
    %v7171 = vld [vmem:[#allocation25 + $0x158] sm:$0xf]
    %v7172 = vld [vmem:[#allocation25 + $0x15c] sm:$0xff]
    %v7173 = vld [vmem:[#allocation25 + $0x164] sm:$0xf]
    %v7174 = vld [vmem:[#allocation25 + $0x168] sm:$0xff]
    %v7175 = vld [vmem:[#allocation25 + $0x170] sm:$0xf]
    %v7176 = vld [vmem:[#allocation25 + $0x174] sm:$0xff]
    %v7177 = vld [vmem:[#allocation25 + $0x17c] sm:$0xf]
    %v7178 = vld [vmem:[#allocation25 + $0x180] sm:$0xff]
    %v7179 = vld [vmem:[#allocation25 + $0x188] sm:$0xf]
    %v7180 = vld [vmem:[#allocation25 + $0x18c] sm:$0xff]
    %v7181 = vld [vmem:[#allocation25 + $0x194] sm:$0xf]
    %v7182 = vld [vmem:[#allocation25 + $0x198] sm:$0xff]
    %v7183 = vld [vmem:[#allocation25 + $0x1a0] sm:$0xf]
    %v7184 = vld [vmem:[#allocation25 + $0x1a4] sm:$0xff]
    %v7185 = vld [vmem:[#allocation25 + $0x1ac] sm:$0xf]
    %v7186 = vld [vmem:[#allocation25 + $0x1b0] sm:$0xff]
    %v7187 = vld [vmem:[#allocation25 + $0x1b8] sm:$0xf]
    %v7188 = vld [vmem:[#allocation25 + $0x1bc] sm:$0xff]
    %v7189 = vld [vmem:[#allocation25 + $0x1c4] sm:$0xf]
    %v7190 = vld [vmem:[#allocation25 + $0x1c8] sm:$0xff]
    %v7191 = vld [vmem:[#allocation25 + $0x1d0] sm:$0xf]
    %v7192 = vld [vmem:[#allocation25 + $0x1d4] sm:$0xff]
    %v7193 = vld [vmem:[#allocation25 + $0x1dc] sm:$0xf]
    %v7194 = vld [vmem:[#allocation25 + $0x1e0] sm:$0xff]
    %v7195 = vld [vmem:[#allocation25 + $0x1e8] sm:$0xf]
    %v7196 = vld [vmem:[#allocation25 + $0x1ec] sm:$0xff]
    %v7197 = vld [vmem:[#allocation25 + $0x1f4] sm:$0xf]
    %v7198 = vld [vmem:[#allocation25 + $0x1f8] sm:$0xff]
    %v7199 = vld [vmem:[#allocation25 + $0x200] sm:$0xf]
    %v7200 = vld [vmem:[#allocation25 + $0x204] sm:$0xff]
    %v7201 = vld [vmem:[#allocation25 + $0x20c] sm:$0xf]
    %v7202 = vld [vmem:[#allocation25 + $0x210] sm:$0xff]
    %v7203 = vld [vmem:[#allocation25 + $0x218] sm:$0xf]
    %v7204 = vld [vmem:[#allocation25 + $0x21c] sm:$0xff]
    %v7205 = vld [vmem:[#allocation25 + $0x224] sm:$0xf]
    %v7206 = vld [vmem:[#allocation25 + $0x228] sm:$0xff]
    %v7207 = vld [vmem:[#allocation25 + $0x230] sm:$0xf]
    %v7208 = vld [vmem:[#allocation25 + $0x234] sm:$0xff]
    %v7209 = vld [vmem:[#allocation25 + $0x23c] sm:$0xf]
    %v7210 = vld [vmem:[#allocation27] sm:$0x7]
    %v7212 = vlaneseq
    %v7213 = vshrl.u32 %v7212, 7
    %v7214 = vsub.s32 0, %v7213
    %v7215 = vrot.slane %v7210, %v7214
    %v7216 = vlaneseq
    %v7217 = vshrl.u32 %v7216, 7
    %v7218 = vsub.s32 1, %v7217
    %v7219 = vrot.slane %v7210, %v7218
    %v7220 = vlaneseq
    %v7221 = vshrl.u32 %v7220, 7
    %v7222 = vsub.s32 2, %v7221
    %v7223 = vrot.slane %v7210, %v7222
    %v7323 = vunpack.c.l.b16 %v7114
    %v7324 = vunpack.c.h.b16 %v7114
    %v7325 = vunpack.c.l.b16 %v7115
    %v7326 = vunpack.c.l.b16 %v7116
    %v7327 = vunpack.c.h.b16 %v7116
    %v7328 = vunpack.c.l.b16 %v7117
    %v7329 = vunpack.c.l.b16 %v7118
    %v7330 = vunpack.c.h.b16 %v7118
    %v7331 = vunpack.c.l.b16 %v7119
    %v7332 = vunpack.c.l.b16 %v7120
    %v7333 = vunpack.c.h.b16 %v7120
    %v7334 = vunpack.c.l.b16 %v7121
    %v7335 = vunpack.c.l.b16 %v7122
    %v7336 = vunpack.c.h.b16 %v7122
    %v7337 = vunpack.c.l.b16 %v7123
    %v7338 = vunpack.c.l.b16 %v7124
    %v7339 = vunpack.c.h.b16 %v7124
    %v7340 = vunpack.c.l.b16 %v7125
    %v7341 = vunpack.c.l.b16 %v7126
    %v7342 = vunpack.c.h.b16 %v7126
    %v7343 = vunpack.c.l.b16 %v7127
    %v7344 = vunpack.c.l.b16 %v7128
    %v7345 = vunpack.c.h.b16 %v7128
    %v7346 = vunpack.c.l.b16 %v7129
    %v7347 = vunpack.c.l.b16 %v7130
    %v7348 = vunpack.c.h.b16 %v7130
    %v7349 = vunpack.c.l.b16 %v7131
    %v7350 = vunpack.c.l.b16 %v7132
    %v7351 = vunpack.c.h.b16 %v7132
    %v7352 = vunpack.c.l.b16 %v7133
    %v7353 = vunpack.c.l.b16 %v7134
    %v7354 = vunpack.c.h.b16 %v7134
    %v7355 = vunpack.c.l.b16 %v7135
    %v7356 = vunpack.c.l.b16 %v7136
    %v7357 = vunpack.c.h.b16 %v7136
    %v7358 = vunpack.c.l.b16 %v7137
    %v7359 = vunpack.c.l.b16 %v7138
    %v7360 = vunpack.c.h.b16 %v7138
    %v7361 = vunpack.c.l.b16 %v7139
    %v7362 = vunpack.c.l.b16 %v7140
    %v7363 = vunpack.c.h.b16 %v7140
    %v7364 = vunpack.c.l.b16 %v7141
    %v7365 = vunpack.c.l.b16 %v7142
    %v7366 = vunpack.c.h.b16 %v7142
    %v7367 = vunpack.c.l.b16 %v7143
    %v7368 = vunpack.c.l.b16 %v7144
    %v7369 = vunpack.c.h.b16 %v7144
    %v7370 = vunpack.c.l.b16 %v7145
    %v7371 = vunpack.c.l.b16 %v7146
    %v7372 = vunpack.c.h.b16 %v7146
    %v7373 = vunpack.c.l.b16 %v7147
    %v7374 = vunpack.c.l.b16 %v7148
    %v7375 = vunpack.c.h.b16 %v7148
    %v7376 = vunpack.c.l.b16 %v7149
    %v7377 = vunpack.c.l.b16 %v7150
    %v7378 = vunpack.c.h.b16 %v7150
    %v7379 = vunpack.c.l.b16 %v7151
    %v7380 = vunpack.c.l.b16 %v7152
    %v7381 = vunpack.c.h.b16 %v7152
    %v7382 = vunpack.c.l.b16 %v7153
    %v7383 = vunpack.c.l.b16 %v7154
    %v7384 = vunpack.c.h.b16 %v7154
    %v7385 = vunpack.c.l.b16 %v7155
    %v7386 = vunpack.c.l.b16 %v7156
    %v7387 = vunpack.c.h.b16 %v7156
    %v7388 = vunpack.c.l.b16 %v7157
    %v7389 = vunpack.c.l.b16 %v7158
    %v7390 = vunpack.c.h.b16 %v7158
    %v7391 = vunpack.c.l.b16 %v7159
    %v7392 = vunpack.c.l.b16 %v7160
    %v7393 = vunpack.c.h.b16 %v7160
    %v7394 = vunpack.c.l.b16 %v7161
    %v7395 = vunpack.c.l.b16 %v7162
    %v7396 = vunpack.c.h.b16 %v7162
    %v7397 = vunpack.c.l.b16 %v7163
    %v7398 = vunpack.c.l.b16 %v7164
    %v7399 = vunpack.c.h.b16 %v7164
    %v7400 = vunpack.c.l.b16 %v7165
    %v7401 = vunpack.c.l.b16 %v7166
    %v7402 = vunpack.c.h.b16 %v7166
    %v7403 = vunpack.c.l.b16 %v7167
    %v7404 = vunpack.c.l.b16 %v7168
    %v7405 = vunpack.c.h.b16 %v7168
    %v7406 = vunpack.c.l.b16 %v7169
    %v7407 = vunpack.c.l.b16 %v7170
    %v7408 = vunpack.c.h.b16 %v7170
    %v7409 = vunpack.c.l.b16 %v7171
    %v7410 = vunpack.c.l.b16 %v7172
    %v7411 = vunpack.c.h.b16 %v7172
    %v7412 = vunpack.c.l.b16 %v7173
    %v7413 = vunpack.c.l.b16 %v7174
    %v7414 = vunpack.c.h.b16 %v7174
    %v7415 = vunpack.c.l.b16 %v7175
    %v7416 = vunpack.c.l.b16 %v7176
    %v7417 = vunpack.c.h.b16 %v7176
    %v7418 = vunpack.c.l.b16 %v7177
    %v7419 = vunpack.c.l.b16 %v7178
    %v7420 = vunpack.c.h.b16 %v7178
    %v7421 = vunpack.c.l.b16 %v7179
    %v7422 = vunpack.c.l.b16 %v7180
    %v7423 = vunpack.c.h.b16 %v7180
    %v7424 = vunpack.c.l.b16 %v7181
    %v7425 = vunpack.c.l.b16 %v7182
    %v7426 = vunpack.c.h.b16 %v7182
    %v7427 = vunpack.c.l.b16 %v7183
    %v7428 = vunpack.c.l.b16 %v7184
    %v7429 = vunpack.c.h.b16 %v7184
    %v7430 = vunpack.c.l.b16 %v7185
    %v7431 = vunpack.c.l.b16 %v7186
    %v7432 = vunpack.c.h.b16 %v7186
    %v7433 = vunpack.c.l.b16 %v7187
    %v7434 = vunpack.c.l.b16 %v7188
    %v7435 = vunpack.c.h.b16 %v7188
    %v7436 = vunpack.c.l.b16 %v7189
    %v7437 = vunpack.c.l.b16 %v7190
    %v7438 = vunpack.c.h.b16 %v7190
    %v7439 = vunpack.c.l.b16 %v7191
    %v7440 = vunpack.c.l.b16 %v7192
    %v7441 = vunpack.c.h.b16 %v7192
    %v7442 = vunpack.c.l.b16 %v7193
    %v7443 = vunpack.c.l.b16 %v7194
    %v7444 = vunpack.c.h.b16 %v7194
    %v7445 = vunpack.c.l.b16 %v7195
    %v7446 = vunpack.c.l.b16 %v7196
    %v7447 = vunpack.c.h.b16 %v7196
    %v7448 = vunpack.c.l.b16 %v7197
    %v7449 = vunpack.c.l.b16 %v7198
    %v7450 = vunpack.c.h.b16 %v7198
    %v7451 = vunpack.c.l.b16 %v7199
    %v7452 = vunpack.c.l.b16 %v7200
    %v7453 = vunpack.c.h.b16 %v7200
    %v7454 = vunpack.c.l.b16 %v7201
    %v7455 = vunpack.c.l.b16 %v7202
    %v7456 = vunpack.c.h.b16 %v7202
    %v7457 = vunpack.c.l.b16 %v7203
    %v7458 = vunpack.c.l.b16 %v7204
    %v7459 = vunpack.c.h.b16 %v7204
    %v7460 = vunpack.c.l.b16 %v7205
    %v7461 = vunpack.c.l.b16 %v7206
    %v7462 = vunpack.c.h.b16 %v7206
    %v7463 = vunpack.c.l.b16 %v7207
    %v7464 = vunpack.c.l.b16 %v7208
    %v7465 = vunpack.c.h.b16 %v7208
    %v7466 = vunpack.c.l.b16 %v7209
    %v7467 = vpack.c.b16 %v7326, %v7323
    %v7468 = vpack.c.b16 %v7327, %v7324
    %v7469 = vpack.c.b16 %v7328, %v7325
    %v7470 = vpack.c.b16 %v7332, %v7329
    %v7471 = vpack.c.b16 %v7333, %v7330
    %v7472 = vpack.c.b16 %v7334, %v7331
    %v7473 = vpack.c.b16 %v7338, %v7335
    %v7474 = vpack.c.b16 %v7339, %v7336
    %v7475 = vpack.c.b16 %v7340, %v7337
    %v7476 = vpack.c.b16 %v7344, %v7341
    %v7477 = vpack.c.b16 %v7345, %v7342
    %v7478 = vpack.c.b16 %v7346, %v7343
    %v7479 = vpack.c.b16 %v7350, %v7347
    %v7480 = vpack.c.b16 %v7351, %v7348
    %v7481 = vpack.c.b16 %v7352, %v7349
    %v7482 = vpack.c.b16 %v7356, %v7353
    %v7483 = vpack.c.b16 %v7357, %v7354
    %v7484 = vpack.c.b16 %v7358, %v7355
    %v7485 = vpack.c.b16 %v7362, %v7359
    %v7486 = vpack.c.b16 %v7363, %v7360
    %v7487 = vpack.c.b16 %v7364, %v7361
    %v7488 = vpack.c.b16 %v7368, %v7365
    %v7489 = vpack.c.b16 %v7369, %v7366
    %v7490 = vpack.c.b16 %v7370, %v7367
    %v7491 = vpack.c.b16 %v7374, %v7371
    %v7492 = vpack.c.b16 %v7375, %v7372
    %v7493 = vpack.c.b16 %v7376, %v7373
    %v7494 = vpack.c.b16 %v7380, %v7377
    %v7495 = vpack.c.b16 %v7381, %v7378
    %v7496 = vpack.c.b16 %v7382, %v7379
    %v7497 = vpack.c.b16 %v7386, %v7383
    %v7498 = vpack.c.b16 %v7387, %v7384
    %v7499 = vpack.c.b16 %v7388, %v7385
    %v7500 = vpack.c.b16 %v7392, %v7389
    %v7501 = vpack.c.b16 %v7393, %v7390
    %v7502 = vpack.c.b16 %v7394, %v7391
    %v7503 = vpack.c.b16 %v7398, %v7395
    %v7504 = vpack.c.b16 %v7399, %v7396
    %v7505 = vpack.c.b16 %v7400, %v7397
    %v7506 = vpack.c.b16 %v7404, %v7401
    %v7507 = vpack.c.b16 %v7405, %v7402
    %v7508 = vpack.c.b16 %v7406, %v7403
    %v7509 = vpack.c.b16 %v7410, %v7407
    %v7510 = vpack.c.b16 %v7411, %v7408
    %v7511 = vpack.c.b16 %v7412, %v7409
    %v7512 = vpack.c.b16 %v7416, %v7413
    %v7513 = vpack.c.b16 %v7417, %v7414
    %v7514 = vpack.c.b16 %v7418, %v7415
    %v7515 = vpack.c.b16 %v7422, %v7419
    %v7516 = vpack.c.b16 %v7423, %v7420
    %v7517 = vpack.c.b16 %v7424, %v7421
    %v7518 = vpack.c.b16 %v7428, %v7425
    %v7519 = vpack.c.b16 %v7429, %v7426
    %v7520 = vpack.c.b16 %v7430, %v7427
    %v7521 = vpack.c.b16 %v7434, %v7431
    %v7522 = vpack.c.b16 %v7435, %v7432
    %v7523 = vpack.c.b16 %v7436, %v7433
    %v7524 = vpack.c.b16 %v7440, %v7437
    %v7525 = vpack.c.b16 %v7441, %v7438
    %v7526 = vpack.c.b16 %v7442, %v7439
    %v7527 = vpack.c.b16 %v7446, %v7443
    %v7528 = vpack.c.b16 %v7447, %v7444
    %v7529 = vpack.c.b16 %v7448, %v7445
    %v7530 = vpack.c.b16 %v7452, %v7449
    %v7531 = vpack.c.b16 %v7453, %v7450
    %v7532 = vpack.c.b16 %v7454, %v7451
    %v7533 = vpack.c.b16 %v7458, %v7455
    %v7534 = vpack.c.b16 %v7459, %v7456
    %v7535 = vpack.c.b16 %v7460, %v7457
    %v7536 = vpack.c.b16 %v7464, %v7461
    %v7537 = vpack.c.b16 %v7465, %v7462
    %v7538 = vpack.c.b16 %v7466, %v7463
    %7611 = vmatprep.subr.bf16.mxu0 %v7468
    %7612 = vmatpush1.bf16.msra.mxu0 %v7467
    %7613 = vmatprep.subr.bf16.mxu0 %v7471
    %7614 = vmatpush1.bf16.msra.mxu0 %v7470
    %7615 = vmatprep.subr.bf16.mxu0 %v7474
    %7616 = vmatpush1.bf16.msra.mxu0 %v7473
    %7617 = vmatprep.subr.bf16.mxu0 %v7477
    %7618 = vmatpush1.bf16.msra.mxu0 %v7476
    %7619 = vmatprep.subr.bf16.mxu0 %v7480
    %7620 = vmatpush1.bf16.msra.mxu0 %v7479
    %7621 = vmatprep.subr.bf16.mxu0 %v7483
    %7622 = vmatpush1.bf16.msra.mxu0 %v7482
    %7623 = vmatprep.subr.bf16.mxu0 %v7486
    %7624 = vmatpush1.bf16.msra.mxu0 %v7485
    %7625 = vmatprep.subr.bf16.mxu0 %v7489
    %7626 = vmatpush1.bf16.msra.mxu0 %v7488
    %7627 = vmatprep.subr.bf16.mxu0 %v7492
    %7628 = vmatpush1.bf16.msra.mxu0 %v7491
    %7629 = vmatprep.subr.bf16.mxu0 %v7495
    %7630 = vmatpush1.bf16.msra.mxu0 %v7494
    %7631 = vmatprep.subr.bf16.mxu0 %v7498
    %7632 = vmatpush1.bf16.msra.mxu0 %v7497
    %7633 = vmatprep.subr.bf16.mxu0 %v7501
    %7634 = vmatpush1.bf16.msra.mxu0 %v7500
    %7635 = vmatprep.subr.bf16.mxu0 %v7504
    %7636 = vmatpush1.bf16.msra.mxu0 %v7503
    %7637 = vmatprep.subr.bf16.mxu0 %v7507
    %7638 = vmatpush1.bf16.msra.mxu0 %v7506
    %7639 = vmatprep.subr.bf16.mxu0 %v7510
    %7640 = vmatpush1.bf16.msra.mxu0 %v7509
    %7641 = vmatprep.subr.bf16.mxu0 %v7513
    %7642 = vmatpush1.bf16.msra.mxu0 %v7512
    %7643 = vmatprep.mubr.bf16.mxu0 %v7112
    %7644 = vmatmul.mubr.bf16.gmra.mrb[0].mxu0 %v7111
    %v7645 = vpop.f32.mrb[0].mxu0
    %v7646 = vadd.f32 %v7215, %v7645
    %v7647 = vpop.f32.mrb[0].mxu0
    %v7648 = vadd.f32 %v7219, %v7647
    %v7649 = vpop.f32.mrb[0].mxu0
    %v7650 = vpop.f32.mrb[0].mxu0
    %7651 = vdwg.mxu0
    %7652 = vmatprep.subr.bf16.mxu0 %v7516
    %7653 = vmatpush1.bf16.msra.mxu0 %v7515
    %7654 = vmatprep.subr.bf16.mxu0 %v7519
    %7655 = vmatpush1.bf16.msra.mxu0 %v7518
    %7656 = vmatprep.subr.bf16.mxu0 %v7522
    %7657 = vmatpush1.bf16.msra.mxu0 %v7521
    %7658 = vmatprep.subr.bf16.mxu0 %v7525
    %7659 = vmatpush1.bf16.msra.mxu0 %v7524
    %7660 = vmatprep.subr.bf16.mxu0 %v7528
    %7661 = vmatpush1.bf16.msra.mxu0 %v7527
    %7662 = vmatprep.subr.bf16.mxu0 %v7531
    %7663 = vmatpush1.bf16.msra.mxu0 %v7530
    %7664 = vmatprep.subr.bf16.mxu0 %v7534
    %7665 = vmatpush1.bf16.msra.mxu0 %v7533
    %7666 = vmatprep.subr.bf16.mxu0 %v7537
    %7667 = vmatpush1.bf16.msra.mxu0 %v7536
    %7668 = vmatprep.subr.bf16.mxu0 0
    %7669 = vmatpush1.bf16.msra.mxu0 0
    %7670 = vmatprep.subr.bf16.mxu0 0
    %7671 = vmatpush1.bf16.msra.mxu0 0
    %7672 = vmatprep.subr.bf16.mxu0 0
    %7673 = vmatpush1.bf16.msra.mxu0 0
    %7674 = vmatprep.subr.bf16.mxu0 0
    %7675 = vmatpush1.bf16.msra.mxu0 0
    %7676 = vmatprep.subr.bf16.mxu0 0
    %7677 = vmatpush1.bf16.msra.mxu0 0
    %7678 = vmatprep.subr.bf16.mxu0 0
    %7679 = vmatpush1.bf16.msra.mxu0 0
    %7680 = vmatprep.subr.bf16.mxu0 0
    %7681 = vmatpush1.bf16.msra.mxu0 0
    %7682 = vmatprep.subr.bf16.mxu0 0
    %7683 = vmatpush1.bf16.msra.mxu0 0
    %7684 = vmatprep.mubr.bf16.mxu0 0
    %7685 = vmatmul.mubr.bf16.gmra.mrb[0].mxu0 %v7113
    %v7686 = vpop.f32.mrb[0].mxu0
    %v7687 = vadd.f32 %v7646, %v7686
    %v7688 = vpop.f32.mrb[0].mxu0
    %v7689 = vadd.f32 %v7648, %v7688
    %v7690 = vpop.f32.mrb[0].mxu0
    %v7691 = vpop.f32.mrb[0].mxu0
    %7692 = vdwg.mxu0
    %7693 = vmatprep.subr.bf16.mxu0 0
    %7694 = vmatpush1.bf16.msra.mxu0 %v7469
    %7695 = vmatprep.subr.bf16.mxu0 0
    %7696 = vmatpush1.bf16.msra.mxu0 %v7472
    %7697 = vmatprep.subr.bf16.mxu0 0
    %7698 = vmatpush1.bf16.msra.mxu0 %v7475
    %7699 = vmatprep.subr.bf16.mxu0 0
    %7700 = vmatpush1.bf16.msra.mxu0 %v7478
    %7701 = vmatprep.subr.bf16.mxu0 0
    %7702 = vmatpush1.bf16.msra.mxu0 %v7481
    %7703 = vmatprep.subr.bf16.mxu0 0
    %7704 = vmatpush1.bf16.msra.mxu0 %v7484
    %7705 = vmatprep.subr.bf16.mxu0 0
    %7706 = vmatpush1.bf16.msra.mxu0 %v7487
    %7707 = vmatprep.subr.bf16.mxu0 0
    %7708 = vmatpush1.bf16.msra.mxu0 %v7490
    %7709 = vmatprep.subr.bf16.mxu0 0
    %7710 = vmatpush1.bf16.msra.mxu0 %v7493
    %7711 = vmatprep.subr.bf16.mxu0 0
    %7712 = vmatpush1.bf16.msra.mxu0 %v7496
    %7713 = vmatprep.subr.bf16.mxu0 0
    %7714 = vmatpush1.bf16.msra.mxu0 %v7499
    %7715 = vmatprep.subr.bf16.mxu0 0
    %7716 = vmatpush1.bf16.msra.mxu0 %v7502
    %7717 = vmatprep.subr.bf16.mxu0 0
    %7718 = vmatpush1.bf16.msra.mxu0 %v7505
    %7719 = vmatprep.subr.bf16.mxu0 0
    %7720 = vmatpush1.bf16.msra.mxu0 %v7508
    %7721 = vmatprep.subr.bf16.mxu0 0
    %7722 = vmatpush1.bf16.msra.mxu0 %v7511
    %7723 = vmatprep.subr.bf16.mxu0 0
    %7724 = vmatpush1.bf16.msra.mxu0 %v7514
    %7725 = vmatprep.mubr.bf16.mxu0 %v7112
    %7726 = vmatmul.mubr.bf16.gmra.mrb[0].mxu0 %v7111
    %v7727 = vpop.f32.mrb[0].mxu0
    %v7728 = vadd.f32 %v7223, %v7727
    %v7729 = vpop.f32.mrb[0].mxu0
    %v7730 = vpop.f32.mrb[0].mxu0
    %v7731 = vpop.f32.mrb[0].mxu0
    %7732 = vdwg.mxu0
    %7733 = vmatprep.subr.bf16.mxu0 0
    %7734 = vmatpush1.bf16.msra.mxu0 %v7517
    %7735 = vmatprep.subr.bf16.mxu0 0
    %7736 = vmatpush1.bf16.msra.mxu0 %v7520
    %7737 = vmatprep.subr.bf16.mxu0 0
    %7738 = vmatpush1.bf16.msra.mxu0 %v7523
    %7739 = vmatprep.subr.bf16.mxu0 0
    %7740 = vmatpush1.bf16.msra.mxu0 %v7526
    %7741 = vmatprep.subr.bf16.mxu0 0
    %7742 = vmatpush1.bf16.msra.mxu0 %v7529
    %7743 = vmatprep.subr.bf16.mxu0 0
    %7744 = vmatpush1.bf16.msra.mxu0 %v7532
    %7745 = vmatprep.subr.bf16.mxu0 0
    %7746 = vmatpush1.bf16.msra.mxu0 %v7535
    %7747 = vmatprep.subr.bf16.mxu0 0
    %7748 = vmatpush1.bf16.msra.mxu0 %v7538
    %7749 = vmatprep.subr.bf16.mxu0 0
    %7750 = vmatpush1.bf16.msra.mxu0 0
    %7751 = vmatprep.subr.bf16.mxu0 0
    %7752 = vmatpush1.bf16.msra.mxu0 0
    %7753 = vmatprep.subr.bf16.mxu0 0
    %7754 = vmatpush1.bf16.msra.mxu0 0
    %7755 = vmatprep.subr.bf16.mxu0 0
    %7756 = vmatpush1.bf16.msra.mxu0 0
    %7757 = vmatprep.subr.bf16.mxu0 0
    %7758 = vmatpush1.bf16.msra.mxu0 0
    %7759 = vmatprep.subr.bf16.mxu0 0
    %7760 = vmatpush1.bf16.msra.mxu0 0
    %7761 = vmatprep.subr.bf16.mxu0 0
    %7762 = vmatpush1.bf16.msra.mxu0 0
    %7763 = vmatprep.subr.bf16.mxu0 0
    %7764 = vmatpush1.bf16.msra.mxu0 0
    %7765 = vmatprep.mubr.bf16.mxu0 0
    %7766 = vmatmul.mubr.bf16.gmra.mrb[0].mxu0 %v7113
    %v7767 = vpop.f32.mrb[0].mxu0
    %v7768 = vadd.f32 %v7728, %v7767
    %v7769 = vpop.f32.mrb[0].mxu0
    %v7770 = vpop.f32.mrb[0].mxu0
    %v7771 = vpop.f32.mrb[0].mxu0
    %7772 = vdwg.mxu0
    %v7773 = vmax.f32 %v7687, 0.0
    %v7774 = vmax.f32 %v7689, 0.0
    %v7775 = vmax.f32 %v7768, 0.0
    %v7776 = vpack.c.bf16 %v7773, %v7773
    %v7777 = vpack.c.bf16 %v7774, %v7774
    %v7778 = vpack.c.bf16 %v7775, %v7775
    %v7779 = vld [vmem:[#allocation28] sm:$0xf]
    %v7780 = vld [vmem:[#allocation28 + $0x4] sm:$0xf]
    %v7781 = vld [vmem:[#allocation28 + $0x8] sm:$0xf]
    %v7782 = vld [vmem:[#allocation28 + $0xc] sm:$0xf]
    %v7783 = vld [vmem:[#allocation28 + $0x10] sm:$0xf]
    %v7784 = vld [vmem:[#allocation28 + $0x14] sm:$0xf]
    %v7785 = vld [vmem:[#allocation28 + $0x18] sm:$0xf]
    %v7786 = vld [vmem:[#allocation28 + $0x1c] sm:$0xf]
    %v7787 = vld [vmem:[#allocation28 + $0x20] sm:$0xf]
    %v7788 = vld [vmem:[#allocation28 + $0x24] sm:$0xf]
    %v7789 = vld [vmem:[#allocation28 + $0x28] sm:$0xf]
    %v7790 = vld [vmem:[#allocation28 + $0x2c] sm:$0xf]
    %v7791 = vld [vmem:[#allocation28 + $0x30] sm:$0xf]
    %v7792 = vld [vmem:[#allocation28 + $0x34] sm:$0xf]
    %v7793 = vld [vmem:[#allocation28 + $0x38] sm:$0xf]
    %v7794 = vld [vmem:[#allocation28 + $0x3c] sm:$0xf]
    %v7795 = vld [vmem:[#allocation28 + $0x40] sm:$0xf]
    %v7796 = vld [vmem:[#allocation28 + $0x44] sm:$0xf]
    %v7797 = vld [vmem:[#allocation28 + $0x48] sm:$0xf]
    %v7798 = vld [vmem:[#allocation28 + $0x4c] sm:$0xf]
    %v7799 = vld [vmem:[#allocation28 + $0x50] sm:$0xf]
    %v7800 = vld [vmem:[#allocation28 + $0x54] sm:$0xf]
    %v7801 = vld [vmem:[#allocation28 + $0x58] sm:$0xf]
    %v7802 = vld [vmem:[#allocation28 + $0x5c] sm:$0xf]
    %v7803 = vld [vmem:[#allocation28 + $0x60] sm:$0xf]
    %v7804 = vld [vmem:[#allocation28 + $0x64] sm:$0xf]
    %v7805 = vld [vmem:[#allocation28 + $0x68] sm:$0xf]
    %v7806 = vld [vmem:[#allocation28 + $0x6c] sm:$0xf]
    %v7807 = vld [vmem:[#allocation28 + $0x70] sm:$0xf]
    %v7808 = vld [vmem:[#allocation28 + $0x74] sm:$0xf]
    %v7809 = vld [vmem:[#allocation28 + $0x78] sm:$0xf]
    %v7810 = vld [vmem:[#allocation28 + $0x7c] sm:$0xf]
    %v7811 = vld [vmem:[#allocation28 + $0x80] sm:$0xf]
    %v7812 = vld [vmem:[#allocation28 + $0x84] sm:$0xf]
    %v7813 = vld [vmem:[#allocation28 + $0x88] sm:$0xf]
    %v7814 = vld [vmem:[#allocation28 + $0x8c] sm:$0xf]
    %v7815 = vld [vmem:[#allocation28 + $0x90] sm:$0xf]
    %v7816 = vld [vmem:[#allocation28 + $0x94] sm:$0xf]
    %v7817 = vld [vmem:[#allocation28 + $0x98] sm:$0xf]
    %v7818 = vld [vmem:[#allocation28 + $0x9c] sm:$0xf]
    %v7819 = vld [vmem:[#allocation28 + $0xa0] sm:$0xf]
    %v7820 = vld [vmem:[#allocation28 + $0xa4] sm:$0xf]
    %v7821 = vld [vmem:[#allocation28 + $0xa8] sm:$0xf]
    %v7822 = vld [vmem:[#allocation28 + $0xac] sm:$0xf]
    %v7823 = vld [vmem:[#allocation28 + $0xb0] sm:$0xf]
    %v7824 = vld [vmem:[#allocation28 + $0xb4] sm:$0xf]
    %v7825 = vld [vmem:[#allocation28 + $0xb8] sm:$0xf]
    %v7826 = vld [vmem:[#allocation28 + $0xbc] sm:$0xf]
    %v7827 = vld [vmem:[#allocation30] sm:$0x1]
    %v7829 = vlaneseq
    %v7830 = vshrl.u32 %v7829, 7
    %v7831 = vsub.s32 0, %v7830
    %v7832 = vrot.slane %v7827, %v7831
    %v7882 = vunpack.c.l.b16 %v7779
    %v7883 = vunpack.c.l.b16 %v7780
    %v7884 = vunpack.c.l.b16 %v7781
    %v7885 = vunpack.c.l.b16 %v7782
    %v7886 = vunpack.c.l.b16 %v7783
    %v7887 = vunpack.c.l.b16 %v7784
    %v7888 = vunpack.c.l.b16 %v7785
    %v7889 = vunpack.c.l.b16 %v7786
    %v7890 = vunpack.c.l.b16 %v7787
    %v7891 = vunpack.c.l.b16 %v7788
    %v7892 = vunpack.c.l.b16 %v7789
    %v7893 = vunpack.c.l.b16 %v7790
    %v7894 = vunpack.c.l.b16 %v7791
    %v7895 = vunpack.c.l.b16 %v7792
    %v7896 = vunpack.c.l.b16 %v7793
    %v7897 = vunpack.c.l.b16 %v7794
    %v7898 = vunpack.c.l.b16 %v7795
    %v7899 = vunpack.c.l.b16 %v7796
    %v7900 = vunpack.c.l.b16 %v7797
    %v7901 = vunpack.c.l.b16 %v7798
    %v7902 = vunpack.c.l.b16 %v7799
    %v7903 = vunpack.c.l.b16 %v7800
    %v7904 = vunpack.c.l.b16 %v7801
    %v7905 = vunpack.c.l.b16 %v7802
    %v7906 = vunpack.c.l.b16 %v7803
    %v7907 = vunpack.c.l.b16 %v7804
    %v7908 = vunpack.c.l.b16 %v7805
    %v7909 = vunpack.c.l.b16 %v7806
    %v7910 = vunpack.c.l.b16 %v7807
    %v7911 = vunpack.c.l.b16 %v7808
    %v7912 = vunpack.c.l.b16 %v7809
    %v7913 = vunpack.c.l.b16 %v7810
    %v7914 = vunpack.c.l.b16 %v7811
    %v7915 = vunpack.c.l.b16 %v7812
    %v7916 = vunpack.c.l.b16 %v7813
    %v7917 = vunpack.c.l.b16 %v7814
    %v7918 = vunpack.c.l.b16 %v7815
    %v7919 = vunpack.c.l.b16 %v7816
    %v7920 = vunpack.c.l.b16 %v7817
    %v7921 = vunpack.c.l.b16 %v7818
    %v7922 = vunpack.c.l.b16 %v7819
    %v7923 = vunpack.c.l.b16 %v7820
    %v7924 = vunpack.c.l.b16 %v7821
    %v7925 = vunpack.c.l.b16 %v7822
    %v7926 = vunpack.c.l.b16 %v7823
    %v7927 = vunpack.c.l.b16 %v7824
    %v7928 = vunpack.c.l.b16 %v7825
    %v7929 = vunpack.c.l.b16 %v7826
    %v7930 = vpack.c.b16 %v7883, %v7882
    %v7931 = vpack.c.b16 %v7885, %v7884
    %v7932 = vpack.c.b16 %v7887, %v7886
    %v7933 = vpack.c.b16 %v7889, %v7888
    %v7934 = vpack.c.b16 %v7891, %v7890
    %v7935 = vpack.c.b16 %v7893, %v7892
    %v7936 = vpack.c.b16 %v7895, %v7894
    %v7937 = vpack.c.b16 %v7897, %v7896
    %v7938 = vpack.c.b16 %v7899, %v7898
    %v7939 = vpack.c.b16 %v7901, %v7900
    %v7940 = vpack.c.b16 %v7903, %v7902
    %v7941 = vpack.c.b16 %v7905, %v7904
    %v7942 = vpack.c.b16 %v7907, %v7906
    %v7943 = vpack.c.b16 %v7909, %v7908
    %v7944 = vpack.c.b16 %v7911, %v7910
    %v7945 = vpack.c.b16 %v7913, %v7912
    %v7946 = vpack.c.b16 %v7915, %v7914
    %v7947 = vpack.c.b16 %v7917, %v7916
    %v7948 = vpack.c.b16 %v7919, %v7918
    %v7949 = vpack.c.b16 %v7921, %v7920
    %v7950 = vpack.c.b16 %v7923, %v7922
    %v7951 = vpack.c.b16 %v7925, %v7924
    %v7952 = vpack.c.b16 %v7927, %v7926
    %v7953 = vpack.c.b16 %v7929, %v7928
    %7978 = vmatprep.subr.bf16.mxu0 0
    %7979 = vmatpush1.bf16.msra.mxu0 %v7930
    %7980 = vmatprep.subr.bf16.mxu0 0
    %7981 = vmatpush1.bf16.msra.mxu0 %v7931
    %7982 = vmatprep.subr.bf16.mxu0 0
    %7983 = vmatpush1.bf16.msra.mxu0 %v7932
    %7984 = vmatprep.subr.bf16.mxu0 0
    %7985 = vmatpush1.bf16.msra.mxu0 %v7933
    %7986 = vmatprep.subr.bf16.mxu0 0
    %7987 = vmatpush1.bf16.msra.mxu0 %v7934
    %7988 = vmatprep.subr.bf16.mxu0 0
    %7989 = vmatpush1.bf16.msra.mxu0 %v7935
    %7990 = vmatprep.subr.bf16.mxu0 0
    %7991 = vmatpush1.bf16.msra.mxu0 %v7936
    %7992 = vmatprep.subr.bf16.mxu0 0
    %7993 = vmatpush1.bf16.msra.mxu0 %v7937
    %7994 = vmatprep.subr.bf16.mxu0 0
    %7995 = vmatpush1.bf16.msra.mxu0 %v7938
    %7996 = vmatprep.subr.bf16.mxu0 0
    %7997 = vmatpush1.bf16.msra.mxu0 %v7939
    %7998 = vmatprep.subr.bf16.mxu0 0
    %7999 = vmatpush1.bf16.msra.mxu0 %v7940
    %8000 = vmatprep.subr.bf16.mxu0 0
    %8001 = vmatpush1.bf16.msra.mxu0 %v7941
    %8002 = vmatprep.subr.bf16.mxu0 0
    %8003 = vmatpush1.bf16.msra.mxu0 %v7942
    %8004 = vmatprep.subr.bf16.mxu0 0
    %8005 = vmatpush1.bf16.msra.mxu0 %v7943
    %8006 = vmatprep.subr.bf16.mxu0 0
    %8007 = vmatpush1.bf16.msra.mxu0 %v7944
    %8008 = vmatprep.subr.bf16.mxu0 0
    %8009 = vmatpush1.bf16.msra.mxu0 %v7945
    %8010 = vmatprep.mubr.bf16.mxu0 %v7777
    %8011 = vmatmul.mubr.bf16.gmra.mrb[0].mxu0 %v7776
    %v8012 = vpop.f32.mrb[0].mxu0
    %v8013 = vadd.f32 %v7832, %v8012
    %v8014 = vpop.f32.mrb[0].mxu0
    %v8015 = vpop.f32.mrb[0].mxu0
    %v8016 = vpop.f32.mrb[0].mxu0
    %8017 = vdwg.mxu0
    %8018 = vmatprep.subr.bf16.mxu0 0
    %8019 = vmatpush1.bf16.msra.mxu0 %v7946
    %8020 = vmatprep.subr.bf16.mxu0 0
    %8021 = vmatpush1.bf16.msra.mxu0 %v7947
    %8022 = vmatprep.subr.bf16.mxu0 0
    %8023 = vmatpush1.bf16.msra.mxu0 %v7948
    %8024 = vmatprep.subr.bf16.mxu0 0
    %8025 = vmatpush1.bf16.msra.mxu0 %v7949
    %8026 = vmatprep.subr.bf16.mxu0 0
    %8027 = vmatpush1.bf16.msra.mxu0 %v7950
    %8028 = vmatprep.subr.bf16.mxu0 0
    %8029 = vmatpush1.bf16.msra.mxu0 %v7951
    %8030 = vmatprep.subr.bf16.mxu0 0
    %8031 = vmatpush1.bf16.msra.mxu0 %v7952
    %8032 = vmatprep.subr.bf16.mxu0 0
    %8033 = vmatpush1.bf16.msra.mxu0 %v7953
    %8034 = vmatprep.subr.bf16.mxu0 0
    %8035 = vmatpush1.bf16.msra.mxu0 0
    %8036 = vmatprep.subr.bf16.mxu0 0
    %8037 = vmatpush1.bf16.msra.mxu0 0
    %8038 = vmatprep.subr.bf16.mxu0 0
    %8039 = vmatpush1.bf16.msra.mxu0 0
    %8040 = vmatprep.subr.bf16.mxu0 0
    %8041 = vmatpush1.bf16.msra.mxu0 0
    %8042 = vmatprep.subr.bf16.mxu0 0
    %8043 = vmatpush1.bf16.msra.mxu0 0
    %8044 = vmatprep.subr.bf16.mxu0 0
    %8045 = vmatpush1.bf16.msra.mxu0 0
    %8046 = vmatprep.subr.bf16.mxu0 0
    %8047 = vmatpush1.bf16.msra.mxu0 0
    %8048 = vmatprep.subr.bf16.mxu0 0
    %8049 = vmatpush1.bf16.msra.mxu0 0
    %8050 = vmatprep.mubr.bf16.mxu0 0
    %8051 = vmatmul.mubr.bf16.gmra.mrb[0].mxu0 %v7778
    %v8052 = vpop.f32.mrb[0].mxu0
    %v8053 = vadd.f32 %v8013, %v8052
    %v8054 = vpop.f32.mrb[0].mxu0
    %v8055 = vpop.f32.mrb[0].mxu0
    %v8056 = vpop.f32.mrb[0].mxu0
    %8057 = vdwg.mxu0
    %v8058 = vlaneseq
    %v8059 = vand.u32 %v8058, 127
    %vm8060 = vcmp.lt.s32.totalorder %v8059, 3
    %v8061 = vtanh.pop %v8053
    %vm8062 = vcmp.lt.s32.totalorder %v8059, 6
    %v8063 = vxor.u32 %v8053, 2147483648
    %v8064 = vmul.f32 %v8063, 1.442695
    %v8065 = vpow.pop %v8064
    %v8066 = vadd.f32 %v8065, 1.0
    %v8067 = vrcp.pop %v8066
    %v8068 = vmul.f32 1.0, %v8067
    %v8069 = vadd.f32 %v8068, 0.005
    %v8070 = vsel %vm8062, %v8069, %v8053
    %v8071 = vsel %vm8060, %v8061, %v8070
    %8072 = vst [vmem:[%s21] sm:$0xff] %v8071
    // Predicated region
    $region162: #{acnet_forward.1} parent=1 // pred_check
      _
    $region163: #{acnet_forward.1} parent=1 // pred_check_branch
      %8074 = sbr.rel (0) target = $region165
    $region164: #{acnet_forward.1} parent=1 // pred_region
      _
    $region165: #{acnet_forward.1} parent=1 // pred_fallthru
      _
    // Predicated region
    $region166: #{acnet_forward.1} parent=1 // pred_check
      _
    $region167: #{acnet_forward.1} parent=1 // pred_check_branch
      %8076 = sbr.rel (0) target = $region169
    $region168: #{acnet_forward.1} parent=1 // pred_region
      _
    $region169: #{acnet_forward.1} parent=1 // pred_fallthru
      _
    %8077 = vsyncpa [#allocation3], 1
    %8078 = vsyncpa [#allocation5], 1
    %8079 = vsyncpa [#allocation8], 1
    %8080 = vsyncpa [#allocation11], 1
    %8081 = vsyncpa [#allocation14], 1
    %8082 = vsyncpa [#allocation17], 1
    %8083 = vsyncpa [#allocation20], 1
    %8084 = vsyncpa [#allocation23], 1
    %8085 = vsyncpa [#allocation26], 1
    %8086 = vsyncpa [#allocation29], 1

</llo_original>
